<compile_context>
chip_gen: v6e
topology: v6e:2x2x1
jax: 0.10.0
libtpu: 0.0.40
codegen_flags: <defaults>
</compile_context>

<pallas_src>
import functools

import numpy as np
import jax
import jax.numpy as jnp
from jax import lax
from jax.experimental import pallas as pl
from jax.experimental.pallas import tpu as pltpu

BN_EPS = 1e-5
LEAKY_SLOPE = 0.01            # nn.LeakyReLU default negative_slope
LANE = 128                    # TPU lane width; feature axes padded to this
VMEM_LIMIT = 64 * 1024 * 1024

_VMEM = pl.BlockSpec(memory_space=pltpu.MemorySpace.VMEM)


def _round_up(v, m):
    return (v + m - 1) // m * m


def _pad_axis(a, axis, new_size):
    if new_size <= a.shape[axis]:
        return a
    pad = [(0, 0)] * a.ndim
    pad[axis] = (0, new_size - a.shape[axis])
    return jnp.pad(a, pad)


def _cost(flops, bytes_accessed):
    return pl.CostEstimate(flops=int(flops), transcendentals=0,
                           bytes_accessed=int(bytes_accessed))


# ------------------------------- kernels -----------------------------------

def _batchnorm(y, g, b):
    """Training-mode BatchNorm over rows; one-pass sum / sum-of-squares."""
    n = y.shape[0]
    mean = jnp.sum(y, axis=0, keepdims=True) * (1.0 / n)
    var = jnp.maximum(
        jnp.sum(y * y, axis=0, keepdims=True) * (1.0 / n) - mean * mean, 0.0)
    return (y - mean) * lax.rsqrt(var + BN_EPS) * g + b


def _conv_bn_relu_kernel(p_ref, w_ref, g_ref, b_ref, o_ref):
    # fused im2col-matmul (bf16 MXU) -> BatchNorm (batch stats) -> ReLU
    y = jnp.dot(p_ref[...], w_ref[...], preferred_element_type=jnp.float32)
    y = _batchnorm(y, g_ref[...], b_ref[...])
    o_ref[...] = jnp.maximum(y, 0.0).astype(o_ref.dtype)


def _resblock_kernel(x_ref, m_ref, w1_ref, g1_ref, b1_ref,
                     w2_ref, g2_ref, b2_ref, o_ref, *, shifts):
    # One fused ResidualBlock: conv3x3+BN+ReLU -> conv3x3+BN -> + skip.
    # im2col patches are built in-kernel with sublane rolls + validity masks,
    # so the intermediate activation never leaves VMEM/vregs.
    rows = x_ref.shape[0]

    def taps(h):                                    # h: (rows, C) f32
        cols = []
        for idx, s in enumerate(shifts):
            hs = h if s == 0 else pltpu.roll(h, shift=(-s) % rows, axis=0)
            cols.append(hs * m_ref[idx])            # (rows, 1) 0/1 mask
        return jnp.concatenate(cols, axis=1).astype(jnp.bfloat16)

    x32 = x_ref[...].astype(jnp.float32)
    y1 = jnp.dot(taps(x32), w1_ref[...], preferred_element_type=jnp.float32)
    h = jnp.maximum(_batchnorm(y1, g1_ref[...], b1_ref[...]), 0.0)
    y2 = jnp.dot(taps(h), w2_ref[...], preferred_element_type=jnp.float32)
    o_ref[...] = (x32 + _batchnorm(y2, g2_ref[...], b2_ref[...])).astype(o_ref.dtype)


def _linear_kernel(x_ref, w_ref, b_ref, o_ref, acc_ref, *, act):
    # K-tiled matmul with f32 accumulator; bias + activation on the last tile.
    k = pl.program_id(0)

    @pl.when(k == 0)
    def _():
        acc_ref[...] = jnp.zeros_like(acc_ref)

    acc_ref[...] += jnp.dot(x_ref[...], w_ref[...],
                            preferred_element_type=jnp.float32)

    @pl.when(k == pl.num_programs(0) - 1)
    def _():
        y = acc_ref[...] + b_ref[...]
        if act == "relu":
            y = jnp.maximum(y, 0.0)
        elif act == "leaky_relu":
            y = jnp.where(y >= 0.0, y, LEAKY_SLOPE * y)
        o_ref[...] = y.astype(o_ref.dtype)


# ------------------------------- wrappers -----------------------------------

def _im2col(x_nhwc, kh, kw, stride, pad):
    """(B,H,W,C) -> (B*Ho*Wo, kh*kw*C) patch matrix (pure data movement)."""
    B, H, W, C = x_nhwc.shape
    xp = jnp.pad(x_nhwc, ((0, 0), (pad, pad), (pad, pad), (0, 0)))
    Ho = (H + 2 * pad - kh) // stride + 1
    Wo = (W + 2 * pad - kw) // stride + 1
    cols = []
    for i in range(kh):
        for j in range(kw):
            cols.append(xp[:, i:i + stride * Ho:stride,
                           j:j + stride * Wo:stride, :])
    p = jnp.stack(cols, axis=3)                      # (B,Ho,Wo,kh*kw,C)
    return p.reshape(B * Ho * Wo, kh * kw * C), B, Ho, Wo


def _conv_weight_matrix(w_oihw, cin_pad, cout_pad):
    """(Cout,Cin,Kh,Kw) -> zero-padded (Kh*Kw*Cin_pad, Cout_pad) bf16 matrix."""
    cout, cin, kh, kw = w_oihw.shape
    w = _pad_axis(_pad_axis(w_oihw, 0, cout_pad), 1, cin_pad)
    return (jnp.transpose(w, (2, 3, 1, 0))
            .reshape(kh * kw * cin_pad, cout_pad).astype(jnp.bfloat16))


def _bn_params(gamma, beta, cpad):
    g = _pad_axis(gamma, 0, cpad).reshape(1, cpad).astype(jnp.float32)
    b = _pad_axis(beta, 0, cpad).reshape(1, cpad).astype(jnp.float32)
    return g, b


def conv_bn_relu(x_nhwc, w_oihw, gamma, beta, *, stride, pad):
    """Conv2d(bias=False) + BatchNorm2d(train stats) + ReLU, lane-padded out."""
    cout, cin, kh, kw = w_oihw.shape
    cin_p = x_nhwc.shape[-1]
    cout_p = _round_up(cout, LANE)
    wmat = _conv_weight_matrix(w_oihw, cin_p, cout_p)
    g, b = _bn_params(gamma, beta, cout_p)
    patches, B, Ho, Wo = _im2col(x_nhwc, kh, kw, stride, pad)
    rows, K = patches.shape
    y = pl.pallas_call(
        _conv_bn_relu_kernel,
        out_shape=jax.ShapeDtypeStruct((rows, cout_p), jnp.bfloat16),
        in_specs=[_VMEM, _VMEM, _VMEM, _VMEM],
        out_specs=_VMEM,
        compiler_params=pltpu.CompilerParams(vmem_limit_bytes=VMEM_LIMIT),
        cost_estimate=_cost(2 * rows * K * cout_p,
                            2 * (rows * K + K * cout_p + rows * cout_p)),
    )(patches, wmat, g, b)
    return y.reshape(B, Ho, Wo, cout_p)


def _conv_tap_masks(B, Ho, Wo, k, pad):
    """Static row-shift amounts + validity masks for in-kernel patch building."""
    rows = B * Ho * Wo
    r = np.arange(rows)
    y = (r // Wo) % Ho
    x = r % Wo
    masks, shifts = [], []
    for i in range(k):
        for j in range(k):
            di, dj = i - pad, j - pad
            valid = ((y + di >= 0) & (y + di < Ho) &
                     (x + dj >= 0) & (x + dj < Wo))
            masks.append(valid.astype(np.float32))
            shifts.append(di * Wo + dj)
    masks = np.stack(masks, axis=0).reshape(k * k, rows, 1)
    return jnp.asarray(masks), tuple(shifts)


def residual_block(x_nhwc, w1, g1, b1, w2, g2, b2):
    """Fused ResidualBlock: one pallas_call, no HBM im2col / intermediate."""
    B, Ho, Wo, C = x_nhwc.shape                     # C is already lane-padded
    rows = B * Ho * Wo
    k = w1.shape[2]
    masks, shifts = _conv_tap_masks(B, Ho, Wo, k, k // 2)
    w1m = _conv_weight_matrix(w1, C, C)
    w2m = _conv_weight_matrix(w2, C, C)
    g1p, b1p = _bn_params(g1, b1, C)
    g2p, b2p = _bn_params(g2, b2, C)
    flops = 2 * 2 * rows * (k * k * C) * C
    bytes_acc = 2 * (2 * rows * C + 2 * k * k * C * C) + 4 * masks.size
    y = pl.pallas_call(
        functools.partial(_resblock_kernel, shifts=shifts),
        out_shape=jax.ShapeDtypeStruct((rows, C), jnp.bfloat16),
        in_specs=[_VMEM] * 8,
        out_specs=_VMEM,
        compiler_params=pltpu.CompilerParams(vmem_limit_bytes=VMEM_LIMIT),
        cost_estimate=_cost(flops, bytes_acc),
    )(x_nhwc.reshape(rows, C), masks, w1m, g1p, b1p, w2m, g2p, b2p)
    return y.reshape(B, Ho, Wo, C)


def linear(x, w, bias, *, act, out_dtype):
    """nn.Linear (+ activation) as a K-tiled fused Pallas matmul."""
    rows, K = x.shape
    N = w.shape[1]
    tk = K
    for cand in (512, 256, 128):
        if K % cand == 0:
            tk = cand
            break
    grid = (K // tk,)
    return pl.pallas_call(
        functools.partial(_linear_kernel, act=act),
        out_shape=jax.ShapeDtypeStruct((rows, N), out_dtype),
        grid_spec=pltpu.PrefetchScalarGridSpec(
            num_scalar_prefetch=0,
            grid=grid,
            in_specs=[pl.BlockSpec((rows, tk), lambda kk: (0, kk)),
                      pl.BlockSpec((tk, N), lambda kk: (kk, 0)),
                      pl.BlockSpec((1, N), lambda kk: (0, 0))],
            out_specs=pl.BlockSpec((rows, N), lambda kk: (0, 0)),
            scratch_shapes=[pltpu.VMEM((rows, N), jnp.float32)]),
        compiler_params=pltpu.CompilerParams(
            dimension_semantics=("arbitrary",),
            vmem_limit_bytes=VMEM_LIMIT),
        cost_estimate=_cost(2 * rows * K * N,
                            2 * (rows * K + K * N) + 4 * (N + rows * N)),
    )(x.astype(jnp.bfloat16), w.astype(jnp.bfloat16),
      bias.reshape(1, N).astype(jnp.float32))


# --------------------------- Generator forward ------------------------------

def generator_forward(x_nchw, params, *, ds_num=2, res_num=2, feature_size=512):
    # NCHW -> NHWC; bf16 activations between kernels, f32 math inside kernels.
    x = jnp.transpose(x_nchw, (0, 2, 3, 1)).astype(jnp.bfloat16)

    # stem: Conv2d(3, conv_dim, k=7, s=1, p=3) + BN + ReLU
    x = conv_bn_relu(x, params["stem_w"], params["stem_gamma"],
                     params["stem_beta"], stride=1, pad=3)

    # downsampling: Conv2d(k=4, s=2, p=1) + BN + ReLU
    for i in range(ds_num):
        p = params["ds"][i]
        x = conv_bn_relu(x, p["w"], p["gamma"], p["beta"], stride=2, pad=1)

    # residual blocks (fully fused, one kernel each)
    for i in range(res_num):
        p = params["res"][i]
        x = residual_block(x, p["w1"], p["g1"], p["b1"],
                           p["w2"], p["g2"], p["b2"])

    # Flatten in NHWC order (no activation transpose); fc1 weight rows were
    # laid out for this order at init (equivalent to PyTorch's NCHW .view
    # under a fixed row permutation of the weight).
    B = x.shape[0]
    flat = x.reshape(B, -1)

    h = linear(flat, params["fc1_w"], params["fc1_b"], act="relu",
               out_dtype=jnp.bfloat16)
    out = linear(h, params["fc2_w"], params["fc2_b"], act="leaky_relu",
                 out_dtype=jnp.float32)
    return out[:, :feature_size]          # strip output lane padding


# ------------------------------ param init ----------------------------------

def init_params(key, *, image_size, conv_dim, ds_num, res_num, feature_size):
    keys = iter(jax.random.split(key, 128))

    def nrm(shape, scale=0.1):
        return scale * jax.random.normal(next(keys), shape, dtype=jnp.float32)

    def bn(c):
        return (jnp.ones((c,), jnp.float32) + nrm((c,), 0.05), nrm((c,), 0.05))

    params = {}
    params["stem_w"] = nrm((conv_dim, 3, 7, 7))
    params["stem_gamma"], params["stem_beta"] = bn(conv_dim)

    curr, ims = conv_dim, image_size
    ds = []
    for _ in range(ds_num):
        g, b = bn(curr * 2)
        ds.append({"w": nrm((curr * 2, curr, 4, 4)), "gamma": g, "beta": b})
        curr *= 2
        ims //= 2
    params["ds"] = ds

    res = []
    for _ in range(res_num):
        g1, b1 = bn(curr)
        g2, b2 = bn(curr)
        res.append({"w1": nrm((curr, curr, 3, 3)), "g1": g1, "b1": b1,
                    "w2": nrm((curr, curr, 3, 3)), "g2": g2, "b2": b2})
    params["res"] = res

    # fc1 consumes the NHWC-flattened, lane-padded conv features directly.
    c_pad = _round_up(curr, LANE)
    w1 = jnp.zeros((ims, ims, c_pad, 1024), jnp.float32)
    w1 = w1.at[:, :, :curr, :].set(nrm((ims, ims, curr, 1024), 0.05))
    params["fc1_w"] = w1.reshape(ims * ims * c_pad, 1024)
    params["fc1_b"] = nrm((1024,), 0.05)

    n_pad = _round_up(feature_size, LANE)
    w2 = jnp.zeros((1024, n_pad), jnp.float32)
    w2 = w2.at[:, :feature_size].set(nrm((1024, feature_size), 0.05))
    params["fc2_w"] = w2
    params["fc2_b"] = jnp.zeros((n_pad,), jnp.float32).at[:feature_size].set(
        nrm((feature_size,), 0.05))
    return params


# ---------------------------------- main -------------------------------------

if __name__ == "__main__":
    image_size, conv_dim, ds_num, res_num, feature_size = 16, 8, 2, 2, 32
    batch = 2

    key = jax.random.PRNGKey(0)
    k_param, k_x = jax.random.split(key)
    params = init_params(k_param, image_size=image_size, conv_dim=conv_dim,
                         ds_num=ds_num, res_num=res_num,
                         feature_size=feature_size)

    x = jax.random.normal(k_x, (batch, 3, image_size, image_size),
                          dtype=jnp.float32)   # NCHW, like the PyTorch module

    fwd = jax.jit(functools.partial(generator_forward, ds_num=ds_num,
                                    res_num=res_num,
                                    feature_size=feature_size))
    out = jax.block_until_ready(fwd(x, params))

    assert out.shape == (batch, feature_size), out.shape
    assert bool(jnp.all(jnp.isfinite(out)))
    print("KERNEL_OK")
</pallas_src>

<mosaic_0001>
module attributes {stable_mosaic.version = 11 : i64} {
  func.func @_conv_bn_relu_kernel(%arg0: memref<512x147xbf16, #tpu.memory_space<vmem>>, %arg1: memref<147x128xbf16, #tpu.memory_space<vmem>>, %arg2: memref<1x128xf32, #tpu.memory_space<vmem>>, %arg3: memref<1x128xf32, #tpu.memory_space<vmem>>, %arg4: memref<512x128xbf16, #tpu.memory_space<vmem>>) attributes {dimension_semantics = [], scalar_prefetch = 0 : i64, scratch_operands = 0 : i64, tpu.core_type = #tpu.core_type<tc>} {
    %c0 = arith.constant 0 : index
    %c0_0 = arith.constant 0 : index
    %0 = vector.load %arg0[%c0, %c0_0] : memref<512x147xbf16, #tpu.memory_space<vmem>>, vector<512x147xbf16>
    %c0_1 = arith.constant 0 : index
    %c0_2 = arith.constant 0 : index
    %1 = vector.load %arg1[%c0_1, %c0_2] : memref<147x128xbf16, #tpu.memory_space<vmem>>, vector<147x128xbf16>
    %cst = arith.constant dense<0.000000e+00> : vector<512x128xf32>
    %2 = tpu.matmul %0, %1, %cst {dimension_numbers = #tpu.dot_dimension_numbers<[1], [0], [0], [1], [0, 0, 1, 1], [], []>} : vector<512x147xbf16>, vector<147x128xbf16>, vector<512x128xf32> -> vector<512x128xf32>
    %c0_3 = arith.constant 0 : index
    %c0_4 = arith.constant 0 : index
    %3 = vector.load %arg2[%c0_3, %c0_4] : memref<1x128xf32, #tpu.memory_space<vmem>>, vector<1x128xf32>
    %c0_5 = arith.constant 0 : index
    %c0_6 = arith.constant 0 : index
    %4 = vector.load %arg3[%c0_5, %c0_6] : memref<1x128xf32, #tpu.memory_space<vmem>>, vector<1x128xf32>
    %cst_7 = arith.constant dense<0.000000e+00> : vector<128xf32>
    %5 = vector.multi_reduction <add>, %2, %cst_7 [0] : vector<512x128xf32> to vector<128xf32>
    %6 = vector.shape_cast %5 : vector<128xf32> to vector<1x128xf32>
    %cst_8 = arith.constant 0.001953125 : f32
    %7 = vector.broadcast %cst_8 : f32 to vector<1x128xf32>
    %8 = arith.mulf %6, %7 : vector<1x128xf32>
    %9 = arith.mulf %2, %2 : vector<512x128xf32>
    %cst_9 = arith.constant dense<0.000000e+00> : vector<128xf32>
    %10 = vector.multi_reduction <add>, %9, %cst_9 [0] : vector<512x128xf32> to vector<128xf32>
    %11 = vector.shape_cast %10 : vector<128xf32> to vector<1x128xf32>
    %cst_10 = arith.constant 0.001953125 : f32
    %12 = vector.broadcast %cst_10 : f32 to vector<1x128xf32>
    %13 = arith.mulf %11, %12 : vector<1x128xf32>
    %14 = arith.mulf %8, %8 : vector<1x128xf32>
    %15 = arith.subf %13, %14 : vector<1x128xf32>
    %cst_11 = arith.constant 0.000000e+00 : f32
    %16 = vector.broadcast %cst_11 : f32 to vector<1x128xf32>
    %17 = arith.maximumf %15, %16 : vector<1x128xf32>
    %18 = vector.broadcast %8 : vector<1x128xf32> to vector<512x128xf32>
    %19 = arith.subf %2, %18 : vector<512x128xf32>
    %cst_12 = arith.constant 9.99999974E-6 : f32
    %20 = vector.broadcast %cst_12 : f32 to vector<1x128xf32>
    %21 = arith.addf %17, %20 : vector<1x128xf32>
    %22 = math.rsqrt %21 : vector<1x128xf32>
    %23 = vector.broadcast %22 : vector<1x128xf32> to vector<512x128xf32>
    %24 = arith.mulf %19, %23 : vector<512x128xf32>
    %25 = vector.broadcast %3 : vector<1x128xf32> to vector<512x128xf32>
    %26 = arith.mulf %24, %25 : vector<512x128xf32>
    %27 = vector.broadcast %4 : vector<1x128xf32> to vector<512x128xf32>
    %28 = arith.addf %26, %27 : vector<512x128xf32>
    %cst_13 = arith.constant 0.000000e+00 : f32
    %29 = vector.broadcast %cst_13 : f32 to vector<512x128xf32>
    %30 = arith.maximumf %28, %29 : vector<512x128xf32>
    %31 = arith.truncf %30 : vector<512x128xf32> to vector<512x128xbf16>
    %c0_14 = arith.constant 0 : index
    %c0_15 = arith.constant 0 : index
    %32 = vector.load %arg4[%c0_14, %c0_15] : memref<512x128xbf16, #tpu.memory_space<vmem>>, vector<512x128xbf16>
    tpu.vector_store %arg4[%c0_14, %c0_15], %31 {strides = array<i32>} : memref<512x128xbf16, #tpu.memory_space<vmem>>, vector<512x128xbf16>,
    return
  }
}

module attributes {stable_mosaic.version = 11 : i64} {
  func.func @_conv_bn_relu_kernel(%arg0: memref<128x2048xbf16, #tpu.memory_space<vmem>>, %arg1: memref<2048x128xbf16, #tpu.memory_space<vmem>>, %arg2: memref<1x128xf32, #tpu.memory_space<vmem>>, %arg3: memref<1x128xf32, #tpu.memory_space<vmem>>, %arg4: memref<128x128xbf16, #tpu.memory_space<vmem>>) attributes {dimension_semantics = [], scalar_prefetch = 0 : i64, scratch_operands = 0 : i64, tpu.core_type = #tpu.core_type<tc>} {
    %c0 = arith.constant 0 : index
    %c0_0 = arith.constant 0 : index
    %0 = vector.load %arg0[%c0, %c0_0] : memref<128x2048xbf16, #tpu.memory_space<vmem>>, vector<128x2048xbf16>
    %c0_1 = arith.constant 0 : index
    %c0_2 = arith.constant 0 : index
    %1 = vector.load %arg1[%c0_1, %c0_2] : memref<2048x128xbf16, #tpu.memory_space<vmem>>, vector<2048x128xbf16>
    %cst = arith.constant dense<0.000000e+00> : vector<128x128xf32>
    %2 = tpu.matmul %0, %1, %cst {dimension_numbers = #tpu.dot_dimension_numbers<[1], [0], [0], [1], [0, 0, 1, 1], [], []>} : vector<128x2048xbf16>, vector<2048x128xbf16>, vector<128x128xf32> -> vector<128x128xf32>
    %c0_3 = arith.constant 0 : index
    %c0_4 = arith.constant 0 : index
    %3 = vector.load %arg2[%c0_3, %c0_4] : memref<1x128xf32, #tpu.memory_space<vmem>>, vector<1x128xf32>
    %c0_5 = arith.constant 0 : index
    %c0_6 = arith.constant 0 : index
    %4 = vector.load %arg3[%c0_5, %c0_6] : memref<1x128xf32, #tpu.memory_space<vmem>>, vector<1x128xf32>
    %cst_7 = arith.constant dense<0.000000e+00> : vector<128xf32>
    %5 = vector.multi_reduction <add>, %2, %cst_7 [0] : vector<128x128xf32> to vector<128xf32>
    %6 = vector.shape_cast %5 : vector<128xf32> to vector<1x128xf32>
    %cst_8 = arith.constant 7.812500e-03 : f32
    %7 = vector.broadcast %cst_8 : f32 to vector<1x128xf32>
    %8 = arith.mulf %6, %7 : vector<1x128xf32>
    %9 = arith.mulf %2, %2 : vector<128x128xf32>
    %cst_9 = arith.constant dense<0.000000e+00> : vector<128xf32>
    %10 = vector.multi_reduction <add>, %9, %cst_9 [0] : vector<128x128xf32> to vector<128xf32>
    %11 = vector.shape_cast %10 : vector<128xf32> to vector<1x128xf32>
    %cst_10 = arith.constant 7.812500e-03 : f32
    %12 = vector.broadcast %cst_10 : f32 to vector<1x128xf32>
    %13 = arith.mulf %11, %12 : vector<1x128xf32>
    %14 = arith.mulf %8, %8 : vector<1x128xf32>
    %15 = arith.subf %13, %14 : vector<1x128xf32>
    %cst_11 = arith.constant 0.000000e+00 : f32
    %16 = vector.broadcast %cst_11 : f32 to vector<1x128xf32>
    %17 = arith.maximumf %15, %16 : vector<1x128xf32>
    %18 = vector.broadcast %8 : vector<1x128xf32> to vector<128x128xf32>
    %19 = arith.subf %2, %18 : vector<128x128xf32>
    %cst_12 = arith.constant 9.99999974E-6 : f32
    %20 = vector.broadcast %cst_12 : f32 to vector<1x128xf32>
    %21 = arith.addf %17, %20 : vector<1x128xf32>
    %22 = math.rsqrt %21 : vector<1x128xf32>
    %23 = vector.broadcast %22 : vector<1x128xf32> to vector<128x128xf32>
    %24 = arith.mulf %19, %23 : vector<128x128xf32>
    %25 = vector.broadcast %3 : vector<1x128xf32> to vector<128x128xf32>
    %26 = arith.mulf %24, %25 : vector<128x128xf32>
    %27 = vector.broadcast %4 : vector<1x128xf32> to vector<128x128xf32>
    %28 = arith.addf %26, %27 : vector<128x128xf32>
    %cst_13 = arith.constant 0.000000e+00 : f32
    %29 = vector.broadcast %cst_13 : f32 to vector<128x128xf32>
    %30 = arith.maximumf %28, %29 : vector<128x128xf32>
    %31 = arith.truncf %30 : vector<128x128xf32> to vector<128x128xbf16>
    %c0_14 = arith.constant 0 : index
    %c0_15 = arith.constant 0 : index
    %32 = vector.load %arg4[%c0_14, %c0_15] : memref<128x128xbf16, #tpu.memory_space<vmem>>, vector<128x128xbf16>
    tpu.vector_store %arg4[%c0_14, %c0_15], %31 {strides = array<i32>} : memref<128x128xbf16, #tpu.memory_space<vmem>>, vector<128x128xbf16>,
    return
  }
}

module attributes {stable_mosaic.version = 11 : i64} {
  func.func @_conv_bn_relu_kernel(%arg0: memref<32x2048xbf16, #tpu.memory_space<vmem>>, %arg1: memref<2048x128xbf16, #tpu.memory_space<vmem>>, %arg2: memref<1x128xf32, #tpu.memory_space<vmem>>, %arg3: memref<1x128xf32, #tpu.memory_space<vmem>>, %arg4: memref<32x128xbf16, #tpu.memory_space<vmem>>) attributes {dimension_semantics = [], scalar_prefetch = 0 : i64, scratch_operands = 0 : i64, tpu.core_type = #tpu.core_type<tc>} {
    %c0 = arith.constant 0 : index
    %c0_0 = arith.constant 0 : index
    %0 = vector.load %arg0[%c0, %c0_0] : memref<32x2048xbf16, #tpu.memory_space<vmem>>, vector<32x2048xbf16>
    %c0_1 = arith.constant 0 : index
    %c0_2 = arith.constant 0 : index
    %1 = vector.load %arg1[%c0_1, %c0_2] : memref<2048x128xbf16, #tpu.memory_space<vmem>>, vector<2048x128xbf16>
    %cst = arith.constant dense<0.000000e+00> : vector<32x128xf32>
    %2 = tpu.matmul %0, %1, %cst {dimension_numbers = #tpu.dot_dimension_numbers<[1], [0], [0], [1], [0, 0, 1, 1], [], []>} : vector<32x2048xbf16>, vector<2048x128xbf16>, vector<32x128xf32> -> vector<32x128xf32>
    %c0_3 = arith.constant 0 : index
    %c0_4 = arith.constant 0 : index
    %3 = vector.load %arg2[%c0_3, %c0_4] : memref<1x128xf32, #tpu.memory_space<vmem>>, vector<1x128xf32>
    %c0_5 = arith.constant 0 : index
    %c0_6 = arith.constant 0 : index
    %4 = vector.load %arg3[%c0_5, %c0_6] : memref<1x128xf32, #tpu.memory_space<vmem>>, vector<1x128xf32>
    %cst_7 = arith.constant dense<0.000000e+00> : vector<128xf32>
    %5 = vector.multi_reduction <add>, %2, %cst_7 [0] : vector<32x128xf32> to vector<128xf32>
    %6 = vector.shape_cast %5 : vector<128xf32> to vector<1x128xf32>
    %cst_8 = arith.constant 3.125000e-02 : f32
    %7 = vector.broadcast %cst_8 : f32 to vector<1x128xf32>
    %8 = arith.mulf %6, %7 : vector<1x128xf32>
    %9 = arith.mulf %2, %2 : vector<32x128xf32>
    %cst_9 = arith.constant dense<0.000000e+00> : vector<128xf32>
    %10 = vector.multi_reduction <add>, %9, %cst_9 [0] : vector<32x128xf32> to vector<128xf32>
    %11 = vector.shape_cast %10 : vector<128xf32> to vector<1x128xf32>
    %cst_10 = arith.constant 3.125000e-02 : f32
    %12 = vector.broadcast %cst_10 : f32 to vector<1x128xf32>
    %13 = arith.mulf %11, %12 : vector<1x128xf32>
    %14 = arith.mulf %8, %8 : vector<1x128xf32>
    %15 = arith.subf %13, %14 : vector<1x128xf32>
    %cst_11 = arith.constant 0.000000e+00 : f32
    %16 = vector.broadcast %cst_11 : f32 to vector<1x128xf32>
    %17 = arith.maximumf %15, %16 : vector<1x128xf32>
    %18 = vector.broadcast %8 : vector<1x128xf32> to vector<32x128xf32>
    %19 = arith.subf %2, %18 : vector<32x128xf32>
    %cst_12 = arith.constant 9.99999974E-6 : f32
    %20 = vector.broadcast %cst_12 : f32 to vector<1x128xf32>
    %21 = arith.addf %17, %20 : vector<1x128xf32>
    %22 = math.rsqrt %21 : vector<1x128xf32>
    %23 = vector.broadcast %22 : vector<1x128xf32> to vector<32x128xf32>
    %24 = arith.mulf %19, %23 : vector<32x128xf32>
    %25 = vector.broadcast %3 : vector<1x128xf32> to vector<32x128xf32>
    %26 = arith.mulf %24, %25 : vector<32x128xf32>
    %27 = vector.broadcast %4 : vector<1x128xf32> to vector<32x128xf32>
    %28 = arith.addf %26, %27 : vector<32x128xf32>
    %cst_13 = arith.constant 0.000000e+00 : f32
    %29 = vector.broadcast %cst_13 : f32 to vector<32x128xf32>
    %30 = arith.maximumf %28, %29 : vector<32x128xf32>
    %31 = arith.truncf %30 : vector<32x128xf32> to vector<32x128xbf16>
    %c0_14 = arith.constant 0 : index
    %c0_15 = arith.constant 0 : index
    %32 = vector.load %arg4[%c0_14, %c0_15] : memref<32x128xbf16, #tpu.memory_space<vmem>>, vector<32x128xbf16>
    tpu.vector_store %arg4[%c0_14, %c0_15], %31 {strides = array<i32>} : memref<32x128xbf16, #tpu.memory_space<vmem>>, vector<32x128xbf16>,
    return
  }
}

module attributes {stable_mosaic.version = 11 : i64} {
  func.func @_resblock_kernel(%arg0: memref<32x128xbf16, #tpu.memory_space<vmem>>, %arg1: memref<9x32x1xf32, #tpu.memory_space<vmem>>, %arg2: memref<1152x128xbf16, #tpu.memory_space<vmem>>, %arg3: memref<1x128xf32, #tpu.memory_space<vmem>>, %arg4: memref<1x128xf32, #tpu.memory_space<vmem>>, %arg5: memref<1152x128xbf16, #tpu.memory_space<vmem>>, %arg6: memref<1x128xf32, #tpu.memory_space<vmem>>, %arg7: memref<1x128xf32, #tpu.memory_space<vmem>>, %arg8: memref<32x128xbf16, #tpu.memory_space<vmem>>) attributes {dimension_semantics = [], scalar_prefetch = 0 : i64, scratch_operands = 0 : i64, tpu.core_type = #tpu.core_type<tc>} {
    %c0 = arith.constant 0 : index
    %c0_0 = arith.constant 0 : index
    %0 = vector.load %arg0[%c0, %c0_0] : memref<32x128xbf16, #tpu.memory_space<vmem>>, vector<32x128xbf16>
    %1 = arith.extf %0 : vector<32x128xbf16> to vector<32x128xf32>
    %c5_i32 = arith.constant 5 : i32
    %2 = tpu.dynamic_rotate %1 by %c5_i32 dim 0 : vector<32x128xf32>, i32 -> vector<32x128xf32>
    %c0_1 = arith.constant 0 : index
    %c0_2 = arith.constant 0 : index
    %c0_3 = arith.constant 0 : index
    %3 = vector.load %arg1[%c0_1, %c0_2, %c0_3] : memref<9x32x1xf32, #tpu.memory_space<vmem>>, vector<1x32x1xf32>
    %4 = vector.shape_cast %3 : vector<1x32x1xf32> to vector<32x1xf32>
    %5 = vector.broadcast %4 : vector<32x1xf32> to vector<32x128xf32>
    %6 = arith.mulf %2, %5 : vector<32x128xf32>
    %c4_i32 = arith.constant 4 : i32
    %7 = tpu.dynamic_rotate %1 by %c4_i32 dim 0 : vector<32x128xf32>, i32 -> vector<32x128xf32>
    %c1 = arith.constant 1 : index
    %c0_4 = arith.constant 0 : index
    %c0_5 = arith.constant 0 : index
    %8 = vector.load %arg1[%c1, %c0_4, %c0_5] : memref<9x32x1xf32, #tpu.memory_space<vmem>>, vector<1x32x1xf32>
    %9 = vector.shape_cast %8 : vector<1x32x1xf32> to vector<32x1xf32>
    %10 = vector.broadcast %9 : vector<32x1xf32> to vector<32x128xf32>
    %11 = arith.mulf %7, %10 : vector<32x128xf32>
    %c3_i32 = arith.constant 3 : i32
    %12 = tpu.dynamic_rotate %1 by %c3_i32 dim 0 : vector<32x128xf32>, i32 -> vector<32x128xf32>
    %c2 = arith.constant 2 : index
    %c0_6 = arith.constant 0 : index
    %c0_7 = arith.constant 0 : index
    %13 = vector.load %arg1[%c2, %c0_6, %c0_7] : memref<9x32x1xf32, #tpu.memory_space<vmem>>, vector<1x32x1xf32>
    %14 = vector.shape_cast %13 : vector<1x32x1xf32> to vector<32x1xf32>
    %15 = vector.broadcast %14 : vector<32x1xf32> to vector<32x128xf32>
    %16 = arith.mulf %12, %15 : vector<32x128xf32>
    %c1_i32 = arith.constant 1 : i32
    %17 = tpu.dynamic_rotate %1 by %c1_i32 dim 0 : vector<32x128xf32>, i32 -> vector<32x128xf32>
    %c3 = arith.constant 3 : index
    %c0_8 = arith.constant 0 : index
    %c0_9 = arith.constant 0 : index
    %18 = vector.load %arg1[%c3, %c0_8, %c0_9] : memref<9x32x1xf32, #tpu.memory_space<vmem>>, vector<1x32x1xf32>
    %19 = vector.shape_cast %18 : vector<1x32x1xf32> to vector<32x1xf32>
    %20 = vector.broadcast %19 : vector<32x1xf32> to vector<32x128xf32>
    %21 = arith.mulf %17, %20 : vector<32x128xf32>
    %c4 = arith.constant 4 : index
    %c0_10 = arith.constant 0 : index
    %c0_11 = arith.constant 0 : index
    %22 = vector.load %arg1[%c4, %c0_10, %c0_11] : memref<9x32x1xf32, #tpu.memory_space<vmem>>, vector<1x32x1xf32>
    %23 = vector.shape_cast %22 : vector<1x32x1xf32> to vector<32x1xf32>
    %24 = vector.broadcast %23 : vector<32x1xf32> to vector<32x128xf32>
    %25 = arith.mulf %1, %24 : vector<32x128xf32>
    %c31_i32 = arith.constant 31 : i32
    %26 = tpu.dynamic_rotate %1 by %c31_i32 dim 0 : vector<32x128xf32>, i32 -> vector<32x128xf32>
    %c5 = arith.constant 5 : index
    %c0_12 = arith.constant 0 : index
    %c0_13 = arith.constant 0 : index
    %27 = vector.load %arg1[%c5, %c0_12, %c0_13] : memref<9x32x1xf32, #tpu.memory_space<vmem>>, vector<1x32x1xf32>
    %28 = vector.shape_cast %27 : vector<1x32x1xf32> to vector<32x1xf32>
    %29 = vector.broadcast %28 : vector<32x1xf32> to vector<32x128xf32>
    %30 = arith.mulf %26, %29 : vector<32x128xf32>
    %c29_i32 = arith.constant 29 : i32
    %31 = tpu.dynamic_rotate %1 by %c29_i32 dim 0 : vector<32x128xf32>, i32 -> vector<32x128xf32>
    %c6 = arith.constant 6 : index
    %c0_14 = arith.constant 0 : index
    %c0_15 = arith.constant 0 : index
    %32 = vector.load %arg1[%c6, %c0_14, %c0_15] : memref<9x32x1xf32, #tpu.memory_space<vmem>>, vector<1x32x1xf32>
    %33 = vector.shape_cast %32 : vector<1x32x1xf32> to vector<32x1xf32>
    %34 = vector.broadcast %33 : vector<32x1xf32> to vector<32x128xf32>
    %35 = arith.mulf %31, %34 : vector<32x128xf32>
    %c28_i32 = arith.constant 28 : i32
    %36 = tpu.dynamic_rotate %1 by %c28_i32 dim 0 : vector<32x128xf32>, i32 -> vector<32x128xf32>
    %c7 = arith.constant 7 : index
    %c0_16 = arith.constant 0 : index
    %c0_17 = arith.constant 0 : index
    %37 = vector.load %arg1[%c7, %c0_16, %c0_17] : memref<9x32x1xf32, #tpu.memory_space<vmem>>, vector<1x32x1xf32>
    %38 = vector.shape_cast %37 : vector<1x32x1xf32> to vector<32x1xf32>
    %39 = vector.broadcast %38 : vector<32x1xf32> to vector<32x128xf32>
    %40 = arith.mulf %36, %39 : vector<32x128xf32>
    %c27_i32 = arith.constant 27 : i32
    %41 = tpu.dynamic_rotate %1 by %c27_i32 dim 0 : vector<32x128xf32>, i32 -> vector<32x128xf32>
    %c8 = arith.constant 8 : index
    %c0_18 = arith.constant 0 : index
    %c0_19 = arith.constant 0 : index
    %42 = vector.load %arg1[%c8, %c0_18, %c0_19] : memref<9x32x1xf32, #tpu.memory_space<vmem>>, vector<1x32x1xf32>
    %43 = vector.shape_cast %42 : vector<1x32x1xf32> to vector<32x1xf32>
    %44 = vector.broadcast %43 : vector<32x1xf32> to vector<32x128xf32>
    %45 = arith.mulf %41, %44 : vector<32x128xf32>
    %46 = tpu.concatenate %6, %11, %16, %21, %25, %30, %35, %40, %45 in 1 : vector<32x128xf32>, vector<32x128xf32>, vector<32x128xf32>, vector<32x128xf32>, vector<32x128xf32>, vector<32x128xf32>, vector<32x128xf32>, vector<32x128xf32>, vector<32x128xf32> -> vector<32x1152xf32>
    %47 = arith.truncf %46 : vector<32x1152xf32> to vector<32x1152xbf16>
    %c0_20 = arith.constant 0 : index
    %c0_21 = arith.constant 0 : index
    %48 = vector.load %arg2[%c0_20, %c0_21] : memref<1152x128xbf16, #tpu.memory_space<vmem>>, vector<1152x128xbf16>
    %cst = arith.constant dense<0.000000e+00> : vector<32x128xf32>
    %49 = tpu.matmul %47, %48, %cst {dimension_numbers = #tpu.dot_dimension_numbers<[1], [0], [0], [1], [0, 0, 1, 1], [], []>} : vector<32x1152xbf16>, vector<1152x128xbf16>, vector<32x128xf32> -> vector<32x128xf32>
    %c0_22 = arith.constant 0 : index
    %c0_23 = arith.constant 0 : index
    %50 = vector.load %arg3[%c0_22, %c0_23] : memref<1x128xf32, #tpu.memory_space<vmem>>, vector<1x128xf32>
    %c0_24 = arith.constant 0 : index
    %c0_25 = arith.constant 0 : index
    %51 = vector.load %arg4[%c0_24, %c0_25] : memref<1x128xf32, #tpu.memory_space<vmem>>, vector<1x128xf32>
    %cst_26 = arith.constant dense<0.000000e+00> : vector<128xf32>
    %52 = vector.multi_reduction <add>, %49, %cst_26 [0] : vector<32x128xf32> to vector<128xf32>
    %53 = vector.shape_cast %52 : vector<128xf32> to vector<1x128xf32>
    %cst_27 = arith.constant 3.125000e-02 : f32
    %54 = vector.broadcast %cst_27 : f32 to vector<1x128xf32>
    %55 = arith.mulf %53, %54 : vector<1x128xf32>
    %56 = arith.mulf %49, %49 : vector<32x128xf32>
    %cst_28 = arith.constant dense<0.000000e+00> : vector<128xf32>
    %57 = vector.multi_reduction <add>, %56, %cst_28 [0] : vector<32x128xf32> to vector<128xf32>
    %58 = vector.shape_cast %57 : vector<128xf32> to vector<1x128xf32>
    %cst_29 = arith.constant 3.125000e-02 : f32
    %59 = vector.broadcast %cst_29 : f32 to vector<1x128xf32>
    %60 = arith.mulf %58, %59 : vector<1x128xf32>
    %61 = arith.mulf %55, %55 : vector<1x128xf32>
    %62 = arith.subf %60, %61 : vector<1x128xf32>
    %cst_30 = arith.constant 0.000000e+00 : f32
    %63 = vector.broadcast %cst_30 : f32 to vector<1x128xf32>
    %64 = arith.maximumf %62, %63 : vector<1x128xf32>
    %65 = vector.broadcast %55 : vector<1x128xf32> to vector<32x128xf32>
    %66 = arith.subf %49, %65 : vector<32x128xf32>
    %cst_31 = arith.constant 9.99999974E-6 : f32
    %67 = vector.broadcast %cst_31 : f32 to vector<1x128xf32>
    %68 = arith.addf %64, %67 : vector<1x128xf32>
    %69 = math.rsqrt %68 : vector<1x128xf32>
    %70 = vector.broadcast %69 : vector<1x128xf32> to vector<32x128xf32>
    %71 = arith.mulf %66, %70 : vector<32x128xf32>
    %72 = vector.broadcast %50 : vector<1x128xf32> to vector<32x128xf32>
    %73 = arith.mulf %71, %72 : vector<32x128xf32>
    %74 = vector.broadcast %51 : vector<1x128xf32> to vector<32x128xf32>
    %75 = arith.addf %73, %74 : vector<32x128xf32>
    %cst_32 = arith.constant 0.000000e+00 : f32
    %76 = vector.broadcast %cst_32 : f32 to vector<32x128xf32>
    %77 = arith.maximumf %75, %76 : vector<32x128xf32>
    %c5_i32_33 = arith.constant 5 : i32
    %78 = tpu.dynamic_rotate %77 by %c5_i32_33 dim 0 : vector<32x128xf32>, i32 -> vector<32x128xf32>
    %c0_34 = arith.constant 0 : index
    %c0_35 = arith.constant 0 : index
    %c0_36 = arith.constant 0 : index
    %79 = vector.load %arg1[%c0_34, %c0_35, %c0_36] : memref<9x32x1xf32, #tpu.memory_space<vmem>>, vector<1x32x1xf32>
    %80 = vector.shape_cast %79 : vector<1x32x1xf32> to vector<32x1xf32>
    %81 = vector.broadcast %80 : vector<32x1xf32> to vector<32x128xf32>
    %82 = arith.mulf %78, %81 : vector<32x128xf32>
    %c4_i32_37 = arith.constant 4 : i32
    %83 = tpu.dynamic_rotate %77 by %c4_i32_37 dim 0 : vector<32x128xf32>, i32 -> vector<32x128xf32>
    %c1_38 = arith.constant 1 : index
    %c0_39 = arith.constant 0 : index
    %c0_40 = arith.constant 0 : index
    %84 = vector.load %arg1[%c1_38, %c0_39, %c0_40] : memref<9x32x1xf32, #tpu.memory_space<vmem>>, vector<1x32x1xf32>
    %85 = vector.shape_cast %84 : vector<1x32x1xf32> to vector<32x1xf32>
    %86 = vector.broadcast %85 : vector<32x1xf32> to vector<32x128xf32>
    %87 = arith.mulf %83, %86 : vector<32x128xf32>
    %c3_i32_41 = arith.constant 3 : i32
    %88 = tpu.dynamic_rotate %77 by %c3_i32_41 dim 0 : vector<32x128xf32>, i32 -> vector<32x128xf32>
    %c2_42 = arith.constant 2 : index
    %c0_43 = arith.constant 0 : index
    %c0_44 = arith.constant 0 : index
    %89 = vector.load %arg1[%c2_42, %c0_43, %c0_44] : memref<9x32x1xf32, #tpu.memory_space<vmem>>, vector<1x32x1xf32>
    %90 = vector.shape_cast %89 : vector<1x32x1xf32> to vector<32x1xf32>
    %91 = vector.broadcast %90 : vector<32x1xf32> to vector<32x128xf32>
    %92 = arith.mulf %88, %91 : vector<32x128xf32>
    %c1_i32_45 = arith.constant 1 : i32
    %93 = tpu.dynamic_rotate %77 by %c1_i32_45 dim 0 : vector<32x128xf32>, i32 -> vector<32x128xf32>
    %c3_46 = arith.constant 3 : index
    %c0_47 = arith.constant 0 : index
    %c0_48 = arith.constant 0 : index
    %94 = vector.load %arg1[%c3_46, %c0_47, %c0_48] : memref<9x32x1xf32, #tpu.memory_space<vmem>>, vector<1x32x1xf32>
    %95 = vector.shape_cast %94 : vector<1x32x1xf32> to vector<32x1xf32>
    %96 = vector.broadcast %95 : vector<32x1xf32> to vector<32x128xf32>
    %97 = arith.mulf %93, %96 : vector<32x128xf32>
    %c4_49 = arith.constant 4 : index
    %c0_50 = arith.constant 0 : index
    %c0_51 = arith.constant 0 : index
    %98 = vector.load %arg1[%c4_49, %c0_50, %c0_51] : memref<9x32x1xf32, #tpu.memory_space<vmem>>, vector<1x32x1xf32>
    %99 = vector.shape_cast %98 : vector<1x32x1xf32> to vector<32x1xf32>
    %100 = vector.broadcast %99 : vector<32x1xf32> to vector<32x128xf32>
    %101 = arith.mulf %77, %100 : vector<32x128xf32>
    %c31_i32_52 = arith.constant 31 : i32
    %102 = tpu.dynamic_rotate %77 by %c31_i32_52 dim 0 : vector<32x128xf32>, i32 -> vector<32x128xf32>
    %c5_53 = arith.constant 5 : index
    %c0_54 = arith.constant 0 : index
    %c0_55 = arith.constant 0 : index
    %103 = vector.load %arg1[%c5_53, %c0_54, %c0_55] : memref<9x32x1xf32, #tpu.memory_space<vmem>>, vector<1x32x1xf32>
    %104 = vector.shape_cast %103 : vector<1x32x1xf32> to vector<32x1xf32>
    %105 = vector.broadcast %104 : vector<32x1xf32> to vector<32x128xf32>
    %106 = arith.mulf %102, %105 : vector<32x128xf32>
    %c29_i32_56 = arith.constant 29 : i32
    %107 = tpu.dynamic_rotate %77 by %c29_i32_56 dim 0 : vector<32x128xf32>, i32 -> vector<32x128xf32>
    %c6_57 = arith.constant 6 : index
    %c0_58 = arith.constant 0 : index
    %c0_59 = arith.constant 0 : index
    %108 = vector.load %arg1[%c6_57, %c0_58, %c0_59] : memref<9x32x1xf32, #tpu.memory_space<vmem>>, vector<1x32x1xf32>
    %109 = vector.shape_cast %108 : vector<1x32x1xf32> to vector<32x1xf32>
    %110 = vector.broadcast %109 : vector<32x1xf32> to vector<32x128xf32>
    %111 = arith.mulf %107, %110 : vector<32x128xf32>
    %c28_i32_60 = arith.constant 28 : i32
    %112 = tpu.dynamic_rotate %77 by %c28_i32_60 dim 0 : vector<32x128xf32>, i32 -> vector<32x128xf32>
    %c7_61 = arith.constant 7 : index
    %c0_62 = arith.constant 0 : index
    %c0_63 = arith.constant 0 : index
    %113 = vector.load %arg1[%c7_61, %c0_62, %c0_63] : memref<9x32x1xf32, #tpu.memory_space<vmem>>, vector<1x32x1xf32>
    %114 = vector.shape_cast %113 : vector<1x32x1xf32> to vector<32x1xf32>
    %115 = vector.broadcast %114 : vector<32x1xf32> to vector<32x128xf32>
    %116 = arith.mulf %112, %115 : vector<32x128xf32>
    %c27_i32_64 = arith.constant 27 : i32
    %117 = tpu.dynamic_rotate %77 by %c27_i32_64 dim 0 : vector<32x128xf32>, i32 -> vector<32x128xf32>
    %c8_65 = arith.constant 8 : index
    %c0_66 = arith.constant 0 : index
    %c0_67 = arith.constant 0 : index
    %118 = vector.load %arg1[%c8_65, %c0_66, %c0_67] : memref<9x32x1xf32, #tpu.memory_space<vmem>>, vector<1x32x1xf32>
    %119 = vector.shape_cast %118 : vector<1x32x1xf32> to vector<32x1xf32>
    %120 = vector.broadcast %119 : vector<32x1xf32> to vector<32x128xf32>
    %121 = arith.mulf %117, %120 : vector<32x128xf32>
    %122 = tpu.concatenate %82, %87, %92, %97, %101, %106, %111, %116, %121 in 1 : vector<32x128xf32>, vector<32x128xf32>, vector<32x128xf32>, vector<32x128xf32>, vector<32x128xf32>, vector<32x128xf32>, vector<32x128xf32>, vector<32x128xf32>, vector<32x128xf32> -> vector<32x1152xf32>
    %123 = arith.truncf %122 : vector<32x1152xf32> to vector<32x1152xbf16>
    %c0_68 = arith.constant 0 : index
    %c0_69 = arith.constant 0 : index
    %124 = vector.load %arg5[%c0_68, %c0_69] : memref<1152x128xbf16, #tpu.memory_space<vmem>>, vector<1152x128xbf16>
    %cst_70 = arith.constant dense<0.000000e+00> : vector<32x128xf32>
    %125 = tpu.matmul %123, %124, %cst_70 {dimension_numbers = #tpu.dot_dimension_numbers<[1], [0], [0], [1], [0, 0, 1, 1], [], []>} : vector<32x1152xbf16>, vector<1152x128xbf16>, vector<32x128xf32> -> vector<32x128xf32>
    %c0_71 = arith.constant 0 : index
    %c0_72 = arith.constant 0 : index
    %126 = vector.load %arg6[%c0_71, %c0_72] : memref<1x128xf32, #tpu.memory_space<vmem>>, vector<1x128xf32>
    %c0_73 = arith.constant 0 : index
    %c0_74 = arith.constant 0 : index
    %127 = vector.load %arg7[%c0_73, %c0_74] : memref<1x128xf32, #tpu.memory_space<vmem>>, vector<1x128xf32>
    %cst_75 = arith.constant dense<0.000000e+00> : vector<128xf32>
    %128 = vector.multi_reduction <add>, %125, %cst_75 [0] : vector<32x128xf32> to vector<128xf32>
    %129 = vector.shape_cast %128 : vector<128xf32> to vector<1x128xf32>
    %cst_76 = arith.constant 3.125000e-02 : f32
    %130 = vector.broadcast %cst_76 : f32 to vector<1x128xf32>
    %131 = arith.mulf %129, %130 : vector<1x128xf32>
    %132 = arith.mulf %125, %125 : vector<32x128xf32>
    %cst_77 = arith.constant dense<0.000000e+00> : vector<128xf32>
    %133 = vector.multi_reduction <add>, %132, %cst_77 [0] : vector<32x128xf32> to vector<128xf32>
    %134 = vector.shape_cast %133 : vector<128xf32> to vector<1x128xf32>
    %cst_78 = arith.constant 3.125000e-02 : f32
    %135 = vector.broadcast %cst_78 : f32 to vector<1x128xf32>
    %136 = arith.mulf %134, %135 : vector<1x128xf32>
    %137 = arith.mulf %131, %131 : vector<1x128xf32>
    %138 = arith.subf %136, %137 : vector<1x128xf32>
    %cst_79 = arith.constant 0.000000e+00 : f32
    %139 = vector.broadcast %cst_79 : f32 to vector<1x128xf32>
    %140 = arith.maximumf %138, %139 : vector<1x128xf32>
    %141 = vector.broadcast %131 : vector<1x128xf32> to vector<32x128xf32>
    %142 = arith.subf %125, %141 : vector<32x128xf32>
    %cst_80 = arith.constant 9.99999974E-6 : f32
    %143 = vector.broadcast %cst_80 : f32 to vector<1x128xf32>
    %144 = arith.addf %140, %143 : vector<1x128xf32>
    %145 = math.rsqrt %144 : vector<1x128xf32>
    %146 = vector.broadcast %145 : vector<1x128xf32> to vector<32x128xf32>
    %147 = arith.mulf %142, %146 : vector<32x128xf32>
    %148 = vector.broadcast %126 : vector<1x128xf32> to vector<32x128xf32>
    %149 = arith.mulf %147, %148 : vector<32x128xf32>
    %150 = vector.broadcast %127 : vector<1x128xf32> to vector<32x128xf32>
    %151 = arith.addf %149, %150 : vector<32x128xf32>
    %152 = arith.addf %1, %151 : vector<32x128xf32>
    %153 = arith.truncf %152 : vector<32x128xf32> to vector<32x128xbf16>
    %c0_81 = arith.constant 0 : index
    %c0_82 = arith.constant 0 : index
    %154 = vector.load %arg8[%c0_81, %c0_82] : memref<32x128xbf16, #tpu.memory_space<vmem>>, vector<32x128xbf16>
    tpu.vector_store %arg8[%c0_81, %c0_82], %153 {strides = array<i32>} : memref<32x128xbf16, #tpu.memory_space<vmem>>, vector<32x128xbf16>,
    return
  }
}

module attributes {stable_mosaic.version = 11 : i64} {
  func.func @_linear_kernel(%arg0: i32, %arg1: memref<2x512xbf16, #tpu.memory_space<vmem>>, %arg2: memref<512x1024xbf16, #tpu.memory_space<vmem>>, %arg3: memref<1x1024xf32, #tpu.memory_space<vmem>>, %arg4: memref<2x1024xbf16, #tpu.memory_space<vmem>>, %arg5: memref<2x1024xf32, #tpu.memory_space<vmem>>) attributes {dimension_semantics = [#tpu.dimension_semantics<arbitrary>], iteration_bounds = array<i64: 4>, scalar_prefetch = 0 : i64, scratch_operands = 1 : i64, tpu.core_type = #tpu.core_type<tc>, window_params = [{transform_indices = @transform_0, window_bounds = array<i64: 2, 512>}, {transform_indices = @transform_1, window_bounds = array<i64: 512, 1024>}, {pipeline_mode = #tpu.pipeline_mode<synchronous>, transform_indices = @transform_2, window_bounds = array<i64: 1, 1024>}, {pipeline_mode = #tpu.pipeline_mode<synchronous>, transform_indices = @transform_3, window_bounds = array<i64: 2, 1024>}]} {
    %c0_i32 = arith.constant 0 : i32
    %0 = arith.cmpi eq, %arg0, %c0_i32 : i32
    %1 = arith.extui %0 : i1 to i32
    %c0_i32_0 = arith.constant 0 : i32
    %2 = arith.cmpi ne, %1, %c0_i32_0 : i32
    scf.if %2 {
      %cst_9 = arith.constant 0.000000e+00 : f32
      %12 = vector.broadcast %cst_9 : f32 to vector<2x1024xf32>
      %c0_10 = arith.constant 0 : index
      %c0_11 = arith.constant 0 : index
      %13 = vector.load %arg5[%c0_10, %c0_11] : memref<2x1024xf32, #tpu.memory_space<vmem>>, vector<2x1024xf32>
      tpu.vector_store %arg5[%c0_10, %c0_11], %12 {strides = array<i32>} : memref<2x1024xf32, #tpu.memory_space<vmem>>, vector<2x1024xf32>,
    } else {
    }
    %c0 = arith.constant 0 : index
    %c0_1 = arith.constant 0 : index
    %3 = vector.load %arg5[%c0, %c0_1] : memref<2x1024xf32, #tpu.memory_space<vmem>>, vector<2x1024xf32>
    %c0_2 = arith.constant 0 : index
    %c0_3 = arith.constant 0 : index
    %4 = vector.load %arg1[%c0_2, %c0_3] : memref<2x512xbf16, #tpu.memory_space<vmem>>, vector<2x512xbf16>
    %c0_4 = arith.constant 0 : index
    %c0_5 = arith.constant 0 : index
    %5 = vector.load %arg2[%c0_4, %c0_5] : memref<512x1024xbf16, #tpu.memory_space<vmem>>, vector<512x1024xbf16>
    %cst = arith.constant dense<0.000000e+00> : vector<2x1024xf32>
    %6 = tpu.matmul %4, %5, %cst {dimension_numbers = #tpu.dot_dimension_numbers<[1], [0], [0], [1], [0, 0, 1, 1], [], []>} : vector<2x512xbf16>, vector<512x1024xbf16>, vector<2x1024xf32> -> vector<2x1024xf32>
    %7 = arith.addf %3, %6 : vector<2x1024xf32>
    %c0_6 = arith.constant 0 : index
    %c0_7 = arith.constant 0 : index
    %8 = vector.load %arg5[%c0_6, %c0_7] : memref<2x1024xf32, #tpu.memory_space<vmem>>, vector<2x1024xf32>
    tpu.vector_store %arg5[%c0_6, %c0_7], %7 {strides = array<i32>} : memref<2x1024xf32, #tpu.memory_space<vmem>>, vector<2x1024xf32>,
    %c3_i32 = arith.constant 3 : i32
    %9 = arith.cmpi eq, %arg0, %c3_i32 : i32
    %10 = arith.extui %9 : i1 to i32
    %c0_i32_8 = arith.constant 0 : i32
    %11 = arith.cmpi ne, %10, %c0_i32_8 : i32
    scf.if %11 {
      %c0_9 = arith.constant 0 : index
      %c0_10 = arith.constant 0 : index
      %12 = vector.load %arg5[%c0_9, %c0_10] : memref<2x1024xf32, #tpu.memory_space<vmem>>, vector<2x1024xf32>
      %c0_11 = arith.constant 0 : index
      %c0_12 = arith.constant 0 : index
      %13 = vector.load %arg3[%c0_11, %c0_12] : memref<1x1024xf32, #tpu.memory_space<vmem>>, vector<1x1024xf32>
      %14 = vector.broadcast %13 : vector<1x1024xf32> to vector<2x1024xf32>
      %15 = arith.addf %12, %14 : vector<2x1024xf32>
      %cst_13 = arith.constant 0.000000e+00 : f32
      %16 = vector.broadcast %cst_13 : f32 to vector<2x1024xf32>
      %17 = arith.maximumf %15, %16 : vector<2x1024xf32>
      %18 = arith.truncf %17 : vector<2x1024xf32> to vector<2x1024xbf16>
      %c0_14 = arith.constant 0 : index
      %c0_15 = arith.constant 0 : index
      %19 = vector.load %arg4[%c0_14, %c0_15] : memref<2x1024xbf16, #tpu.memory_space<vmem>>, vector<2x1024xbf16>
      tpu.vector_store %arg4[%c0_14, %c0_15], %18 {strides = array<i32>} : memref<2x1024xbf16, #tpu.memory_space<vmem>>, vector<2x1024xbf16>,
    } else {
    }
    return
  }
  func.func @transform_0(%arg0: i32) -> (i32, i32) {
    %c0_i32 = arith.constant 0 : i32
    %c0_i32_0 = arith.constant 0 : i32
    return %c0_i32, %arg0 : i32, i32
  }
  func.func @transform_1(%arg0: i32) -> (i32, i32) {
    %c0_i32 = arith.constant 0 : i32
    %c0_i32_0 = arith.constant 0 : i32
    return %arg0, %c0_i32 : i32, i32
  }
  func.func @transform_2(%arg0: i32) -> (i32, i32) {
    %c0_i32 = arith.constant 0 : i32
    %c0_i32_0 = arith.constant 0 : i32
    %c0_i32_1 = arith.constant 0 : i32
    return %c0_i32, %c0_i32_0 : i32, i32
  }
  func.func @transform_3(%arg0: i32) -> (i32, i32) {
    %c0_i32 = arith.constant 0 : i32
    %c0_i32_0 = arith.constant 0 : i32
    %c0_i32_1 = arith.constant 0 : i32
    return %c0_i32, %c0_i32_0 : i32, i32
  }
}

module attributes {stable_mosaic.version = 11 : i64} {
  func.func @_linear_kernel(%arg0: i32, %arg1: memref<2x512xbf16, #tpu.memory_space<vmem>>, %arg2: memref<512x128xbf16, #tpu.memory_space<vmem>>, %arg3: memref<1x128xf32, #tpu.memory_space<vmem>>, %arg4: memref<2x128xf32, #tpu.memory_space<vmem>>, %arg5: memref<2x128xf32, #tpu.memory_space<vmem>>) attributes {dimension_semantics = [#tpu.dimension_semantics<arbitrary>], iteration_bounds = array<i64: 2>, scalar_prefetch = 0 : i64, scratch_operands = 1 : i64, tpu.core_type = #tpu.core_type<tc>, window_params = [{transform_indices = @transform_0, window_bounds = array<i64: 2, 512>}, {transform_indices = @transform_1, window_bounds = array<i64: 512, 128>}, {pipeline_mode = #tpu.pipeline_mode<synchronous>, transform_indices = @transform_2, window_bounds = array<i64: 1, 128>}, {pipeline_mode = #tpu.pipeline_mode<synchronous>, transform_indices = @transform_3, window_bounds = array<i64: 2, 128>}]} {
    %c0_i32 = arith.constant 0 : i32
    %0 = arith.cmpi eq, %arg0, %c0_i32 : i32
    %1 = arith.extui %0 : i1 to i32
    %c0_i32_0 = arith.constant 0 : i32
    %2 = arith.cmpi ne, %1, %c0_i32_0 : i32
    scf.if %2 {
      %cst_9 = arith.constant 0.000000e+00 : f32
      %12 = vector.broadcast %cst_9 : f32 to vector<2x128xf32>
      %c0_10 = arith.constant 0 : index
      %c0_11 = arith.constant 0 : index
      %13 = vector.load %arg5[%c0_10, %c0_11] : memref<2x128xf32, #tpu.memory_space<vmem>>, vector<2x128xf32>
      tpu.vector_store %arg5[%c0_10, %c0_11], %12 {strides = array<i32>} : memref<2x128xf32, #tpu.memory_space<vmem>>, vector<2x128xf32>,
    } else {
    }
    %c0 = arith.constant 0 : index
    %c0_1 = arith.constant 0 : index
    %3 = vector.load %arg5[%c0, %c0_1] : memref<2x128xf32, #tpu.memory_space<vmem>>, vector<2x128xf32>
    %c0_2 = arith.constant 0 : index
    %c0_3 = arith.constant 0 : index
    %4 = vector.load %arg1[%c0_2, %c0_3] : memref<2x512xbf16, #tpu.memory_space<vmem>>, vector<2x512xbf16>
    %c0_4 = arith.constant 0 : index
    %c0_5 = arith.constant 0 : index
    %5 = vector.load %arg2[%c0_4, %c0_5] : memref<512x128xbf16, #tpu.memory_space<vmem>>, vector<512x128xbf16>
    %cst = arith.constant dense<0.000000e+00> : vector<2x128xf32>
    %6 = tpu.matmul %4, %5, %cst {dimension_numbers = #tpu.dot_dimension_numbers<[1], [0], [0], [1], [0, 0, 1, 1], [], []>} : vector<2x512xbf16>, vector<512x128xbf16>, vector<2x128xf32> -> vector<2x128xf32>
    %7 = arith.addf %3, %6 : vector<2x128xf32>
    %c0_6 = arith.constant 0 : index
    %c0_7 = arith.constant 0 : index
    %8 = vector.load %arg5[%c0_6, %c0_7] : memref<2x128xf32, #tpu.memory_space<vmem>>, vector<2x128xf32>
    tpu.vector_store %arg5[%c0_6, %c0_7], %7 {strides = array<i32>} : memref<2x128xf32, #tpu.memory_space<vmem>>, vector<2x128xf32>,
    %c1_i32 = arith.constant 1 : i32
    %9 = arith.cmpi eq, %arg0, %c1_i32 : i32
    %10 = arith.extui %9 : i1 to i32
    %c0_i32_8 = arith.constant 0 : i32
    %11 = arith.cmpi ne, %10, %c0_i32_8 : i32
    scf.if %11 {
      %c0_9 = arith.constant 0 : index
      %c0_10 = arith.constant 0 : index
      %12 = vector.load %arg5[%c0_9, %c0_10] : memref<2x128xf32, #tpu.memory_space<vmem>>, vector<2x128xf32>
      %c0_11 = arith.constant 0 : index
      %c0_12 = arith.constant 0 : index
      %13 = vector.load %arg3[%c0_11, %c0_12] : memref<1x128xf32, #tpu.memory_space<vmem>>, vector<1x128xf32>
      %14 = vector.broadcast %13 : vector<1x128xf32> to vector<2x128xf32>
      %15 = arith.addf %12, %14 : vector<2x128xf32>
      %cst_13 = arith.constant 0.000000e+00 : f32
      %16 = vector.broadcast %cst_13 : f32 to vector<2x128xf32>
      %17 = arith.cmpf oge, %15, %16 : vector<2x128xf32>
      %cst_14 = arith.constant 0.00999999977 : f32
      %18 = vector.broadcast %cst_14 : f32 to vector<2x128xf32>
      %19 = arith.mulf %18, %15 : vector<2x128xf32>
      %20 = arith.select %17, %15, %19 : vector<2x128xi1>, vector<2x128xf32>
      %c0_15 = arith.constant 0 : index
      %c0_16 = arith.constant 0 : index
      %21 = vector.load %arg4[%c0_15, %c0_16] : memref<2x128xf32, #tpu.memory_space<vmem>>, vector<2x128xf32>
      tpu.vector_store %arg4[%c0_15, %c0_16], %20 {strides = array<i32>} : memref<2x128xf32, #tpu.memory_space<vmem>>, vector<2x128xf32>,
    } else {
    }
    return
  }
  func.func @transform_0(%arg0: i32) -> (i32, i32) {
    %c0_i32 = arith.constant 0 : i32
    %c0_i32_0 = arith.constant 0 : i32
    return %c0_i32, %arg0 : i32, i32
  }
  func.func @transform_1(%arg0: i32) -> (i32, i32) {
    %c0_i32 = arith.constant 0 : i32
    %c0_i32_0 = arith.constant 0 : i32
    return %arg0, %c0_i32 : i32, i32
  }
  func.func @transform_2(%arg0: i32) -> (i32, i32) {
    %c0_i32 = arith.constant 0 : i32
    %c0_i32_0 = arith.constant 0 : i32
    %c0_i32_1 = arith.constant 0 : i32
    return %c0_i32, %c0_i32_0 : i32, i32
  }
  func.func @transform_3(%arg0: i32) -> (i32, i32) {
    %c0_i32 = arith.constant 0 : i32
    %c0_i32_0 = arith.constant 0 : i32
    %c0_i32_1 = arith.constant 0 : i32
    return %c0_i32, %c0_i32_0 : i32, i32
  }
}

</mosaic_0001>

<llo_original>
// kernel: generator_forward.7
$region0: #{generator_forward.7}
  #allocation0 [shape = 'u32[]', space=smem, size = 0x4, offset = 0x4, fixed_abs, tag = 'smem constant byte address 0x4 - core index']
  #allocation1 [shape = 'u32[144,128]{1,0:T(1,128)}', space=vmem, size = 0x12000, scoped, tag = 'internal scratch']
  %s0 = inlined_call_operand.vmem [shape: bf16[512,147], index: 0, kind: input, shape index: {}]
  %s1 = inlined_call_operand.vmem [shape: bf16[147,128], index: 1, kind: input, shape index: {}]
  %s2 = inlined_call_operand.vmem [shape: f32[1,128], index: 2, kind: input, shape index: {}]
  %s3 = inlined_call_operand.vmem [shape: f32[1,128], index: 3, kind: input, shape index: {}]
  %s4 = inlined_call_operand.vmem [shape: bf16[512,128], index: 4, kind: output, shape index: {}]
  %s5 = sld [smem:[#allocation0]]
  $region26: #{generator_forward.7} parent=0
    _
  %s7 = ssub.s32 1, %s5
  %s8 = scalar_select 0, %s7, %s5
  // Predicated region
  $region2: #{generator_forward.7} parent=0 // pred_check
    _
  $region3: #{generator_forward.7} parent=0 // pred_check_branch
    %10 = sbr.rel (0) target = $region5
  $region4: #{generator_forward.7} parent=0 // pred_region
    _
  $region5: #{generator_forward.7} parent=0 // pred_fallthru
    _
  // Predicated region
  $region6: #{generator_forward.7} parent=0 // pred_check
    _
  $region7: #{generator_forward.7} parent=0 // pred_check_branch
    %12 = sbr.rel (0) target = $region9
  $region8: #{generator_forward.7} parent=0 // pred_region
    _
  $region9: #{generator_forward.7} parent=0 // pred_fallthru
    _
  // Predicated region
  $region10: #{generator_forward.7} parent=0 // pred_check
    _
  $region11: #{generator_forward.7} parent=0 // pred_check_branch
    %14 = sbr.rel (0) target = $region13
  $region12: #{generator_forward.7} parent=0 // pred_region
    _
  $region13: #{generator_forward.7} parent=0 // pred_fallthru
    _
  // Predicated region
  $region14: #{generator_forward.7} parent=0 // pred_check
    _
  $region15: #{generator_forward.7} parent=0 // pred_check_branch
    %16 = sbr.rel (0) target = $region17
  $region16: #{generator_forward.7} parent=0 // pred_region
    _
  $region17: #{generator_forward.7} parent=0 // pred_fallthru
    _
  %v18 = vld [vmem:[%s0] sm:$0xff]
  %v19 = vld [vmem:[%s0 + $0x8] sm:$0xff]
  %v20 = vld [vmem:[%s0 + $0x10] sm:$0xff]
  %v21 = vld [vmem:[%s0 + $0x18] sm:$0xff]
  %v22 = vld [vmem:[%s0 + $0x20] sm:$0xff]
  %v23 = vld [vmem:[%s0 + $0x28] sm:$0xff]
  %v24 = vld [vmem:[%s0 + $0x30] sm:$0xff]
  %v25 = vld [vmem:[%s0 + $0x38] sm:$0xff]
  %v26 = vld [vmem:[%s0 + $0x40] sm:$0xff]
  %v27 = vld [vmem:[%s0 + $0x48] sm:$0xff]
  %v28 = vld [vmem:[%s0 + $0x50] sm:$0xff]
  %v29 = vld [vmem:[%s0 + $0x58] sm:$0xff]
  %v30 = vld [vmem:[%s0 + $0x60] sm:$0xff]
  %v31 = vld [vmem:[%s0 + $0x68] sm:$0xff]
  %v32 = vld [vmem:[%s0 + $0x70] sm:$0xff]
  %v33 = vld [vmem:[%s0 + $0x78] sm:$0xff]
  %v34 = vld [vmem:[%s0 + $0x80] sm:$0xff]
  %v35 = vld [vmem:[%s0 + $0x88] sm:$0xff]
  %v36 = vld [vmem:[%s0 + $0x90] sm:$0xff]
  %v37 = vld [vmem:[%s0 + $0x98] sm:$0xff]
  %v38 = vld [vmem:[%s0 + $0xa0] sm:$0xff]
  %v39 = vld [vmem:[%s0 + $0xa8] sm:$0xff]
  %v40 = vld [vmem:[%s0 + $0xb0] sm:$0xff]
  %v41 = vld [vmem:[%s0 + $0xb8] sm:$0xff]
  %v42 = vld [vmem:[%s0 + $0xc0] sm:$0xff]
  %v43 = vld [vmem:[%s0 + $0xc8] sm:$0xff]
  %v44 = vld [vmem:[%s0 + $0xd0] sm:$0xff]
  %v45 = vld [vmem:[%s0 + $0xd8] sm:$0xff]
  %v46 = vld [vmem:[%s0 + $0xe0] sm:$0xff]
  %v47 = vld [vmem:[%s0 + $0xe8] sm:$0xff]
  %v48 = vld [vmem:[%s0 + $0xf0] sm:$0xff]
  %v49 = vld [vmem:[%s0 + $0xf8] sm:$0xff]
  %v50 = vld [vmem:[%s0 + $0x100] sm:$0xff]
  %v51 = vld [vmem:[%s0 + $0x108] sm:$0xff]
  %v52 = vld [vmem:[%s0 + $0x110] sm:$0xff]
  %v53 = vld [vmem:[%s0 + $0x118] sm:$0xff]
  %v54 = vld [vmem:[%s0 + $0x120] sm:$0xff]
  %v55 = vld [vmem:[%s0 + $0x128] sm:$0xff]
  %v56 = vld [vmem:[%s0 + $0x130] sm:$0xff]
  %v57 = vld [vmem:[%s0 + $0x138] sm:$0xff]
  %v58 = vld [vmem:[%s0 + $0x140] sm:$0xff]
  %v59 = vld [vmem:[%s0 + $0x148] sm:$0xff]
  %v60 = vld [vmem:[%s0 + $0x150] sm:$0xff]
  %v61 = vld [vmem:[%s0 + $0x158] sm:$0xff]
  %v62 = vld [vmem:[%s0 + $0x160] sm:$0xff]
  %v63 = vld [vmem:[%s0 + $0x168] sm:$0xff]
  %v64 = vld [vmem:[%s0 + $0x170] sm:$0xff]
  %v65 = vld [vmem:[%s0 + $0x178] sm:$0xff]
  %v66 = vld [vmem:[%s0 + $0x180] sm:$0xff]
  %v67 = vld [vmem:[%s0 + $0x188] sm:$0xff]
  %v68 = vld [vmem:[%s0 + $0x190] sm:$0xff]
  %v69 = vld [vmem:[%s0 + $0x198] sm:$0xff]
  %v70 = vld [vmem:[%s0 + $0x1a0] sm:$0xff]
  %v71 = vld [vmem:[%s0 + $0x1a8] sm:$0xff]
  %v72 = vld [vmem:[%s0 + $0x1b0] sm:$0xff]
  %v73 = vld [vmem:[%s0 + $0x1b8] sm:$0xff]
  %v74 = vld [vmem:[%s0 + $0x1c0] sm:$0xff]
  %v75 = vld [vmem:[%s0 + $0x1c8] sm:$0xff]
  %v76 = vld [vmem:[%s0 + $0x1d0] sm:$0xff]
  %v77 = vld [vmem:[%s0 + $0x1d8] sm:$0xff]
  %v78 = vld [vmem:[%s0 + $0x1e0] sm:$0xff]
  %v79 = vld [vmem:[%s0 + $0x1e8] sm:$0xff]
  %v80 = vld [vmem:[%s0 + $0x1f0] sm:$0xff]
  %v81 = vld [vmem:[%s0 + $0x1f8] sm:$0xff]
  %v82 = vld [vmem:[%s1] sm:$0xf]
  %v83 = vld [vmem:[%s1 + $0x4] sm:$0xf]
  %v84 = vld [vmem:[%s1 + $0x8] sm:$0xf]
  %v85 = vld [vmem:[%s1 + $0xc] sm:$0xf]
  %v86 = vld [vmem:[%s1 + $0x10] sm:$0xf]
  %v87 = vld [vmem:[%s1 + $0x14] sm:$0xf]
  %v88 = vld [vmem:[%s1 + $0x18] sm:$0xf]
  %v89 = vld [vmem:[%s1 + $0x1c] sm:$0xf]
  %v90 = vld [vmem:[%s1 + $0x20] sm:$0xf]
  %v91 = vld [vmem:[%s1 + $0x24] sm:$0xf]
  %v92 = vld [vmem:[%s1 + $0x28] sm:$0xf]
  %v93 = vld [vmem:[%s1 + $0x2c] sm:$0xf]
  %v94 = vld [vmem:[%s1 + $0x30] sm:$0xf]
  %v95 = vld [vmem:[%s1 + $0x34] sm:$0xf]
  %v96 = vld [vmem:[%s1 + $0x38] sm:$0xf]
  %v97 = vld [vmem:[%s1 + $0x3c] sm:$0xf]
  %v98 = vld [vmem:[%s1 + $0x40] sm:$0xf]
  %v99 = vld [vmem:[%s1 + $0x44] sm:$0xf]
  %v100 = vld [vmem:[%s1 + $0x48] sm:$0x3]
  %v165 = vunpack.c.l.b16 %v18
  %v166 = vunpack.c.h.b16 %v18
  %v167 = vunpack.c.l.b16 %v19
  %v168 = vunpack.c.h.b16 %v19
  %v169 = vunpack.c.l.b16 %v20
  %v170 = vunpack.c.h.b16 %v20
  %v171 = vunpack.c.l.b16 %v21
  %v172 = vunpack.c.h.b16 %v21
  %v173 = vunpack.c.l.b16 %v22
  %v174 = vunpack.c.h.b16 %v22
  %v175 = vunpack.c.l.b16 %v23
  %v176 = vunpack.c.h.b16 %v23
  %v177 = vunpack.c.l.b16 %v24
  %v178 = vunpack.c.h.b16 %v24
  %v179 = vunpack.c.l.b16 %v25
  %v180 = vunpack.c.h.b16 %v25
  %v181 = vunpack.c.l.b16 %v26
  %v182 = vunpack.c.h.b16 %v26
  %v183 = vunpack.c.l.b16 %v27
  %v184 = vunpack.c.h.b16 %v27
  %v185 = vunpack.c.l.b16 %v28
  %v186 = vunpack.c.h.b16 %v28
  %v187 = vunpack.c.l.b16 %v29
  %v188 = vunpack.c.h.b16 %v29
  %v189 = vunpack.c.l.b16 %v30
  %v190 = vunpack.c.h.b16 %v30
  %v191 = vunpack.c.l.b16 %v31
  %v192 = vunpack.c.h.b16 %v31
  %v193 = vunpack.c.l.b16 %v32
  %v194 = vunpack.c.h.b16 %v32
  %v195 = vunpack.c.l.b16 %v33
  %v196 = vunpack.c.h.b16 %v33
  %v197 = vunpack.c.l.b16 %v34
  %v198 = vunpack.c.h.b16 %v34
  %v199 = vunpack.c.l.b16 %v35
  %v200 = vunpack.c.h.b16 %v35
  %v201 = vunpack.c.l.b16 %v36
  %v202 = vunpack.c.h.b16 %v36
  %v203 = vunpack.c.l.b16 %v37
  %v204 = vunpack.c.h.b16 %v37
  %v205 = vunpack.c.l.b16 %v38
  %v206 = vunpack.c.h.b16 %v38
  %v207 = vunpack.c.l.b16 %v39
  %v208 = vunpack.c.h.b16 %v39
  %v209 = vunpack.c.l.b16 %v40
  %v210 = vunpack.c.h.b16 %v40
  %v211 = vunpack.c.l.b16 %v41
  %v212 = vunpack.c.h.b16 %v41
  %v213 = vunpack.c.l.b16 %v42
  %v214 = vunpack.c.h.b16 %v42
  %v215 = vunpack.c.l.b16 %v43
  %v216 = vunpack.c.h.b16 %v43
  %v217 = vunpack.c.l.b16 %v44
  %v218 = vunpack.c.h.b16 %v44
  %v219 = vunpack.c.l.b16 %v45
  %v220 = vunpack.c.h.b16 %v45
  %v221 = vunpack.c.l.b16 %v46
  %v222 = vunpack.c.h.b16 %v46
  %v223 = vunpack.c.l.b16 %v47
  %v224 = vunpack.c.h.b16 %v47
  %v225 = vunpack.c.l.b16 %v48
  %v226 = vunpack.c.h.b16 %v48
  %v227 = vunpack.c.l.b16 %v49
  %v228 = vunpack.c.h.b16 %v49
  %v229 = vunpack.c.l.b16 %v50
  %v230 = vunpack.c.h.b16 %v50
  %v231 = vunpack.c.l.b16 %v51
  %v232 = vunpack.c.h.b16 %v51
  %v233 = vunpack.c.l.b16 %v52
  %v234 = vunpack.c.h.b16 %v52
  %v235 = vunpack.c.l.b16 %v53
  %v236 = vunpack.c.h.b16 %v53
  %v237 = vunpack.c.l.b16 %v54
  %v238 = vunpack.c.h.b16 %v54
  %v239 = vunpack.c.l.b16 %v55
  %v240 = vunpack.c.h.b16 %v55
  %v241 = vunpack.c.l.b16 %v56
  %v242 = vunpack.c.h.b16 %v56
  %v243 = vunpack.c.l.b16 %v57
  %v244 = vunpack.c.h.b16 %v57
  %v245 = vunpack.c.l.b16 %v58
  %v246 = vunpack.c.h.b16 %v58
  %v247 = vunpack.c.l.b16 %v59
  %v248 = vunpack.c.h.b16 %v59
  %v249 = vunpack.c.l.b16 %v60
  %v250 = vunpack.c.h.b16 %v60
  %v251 = vunpack.c.l.b16 %v61
  %v252 = vunpack.c.h.b16 %v61
  %v253 = vunpack.c.l.b16 %v62
  %v254 = vunpack.c.h.b16 %v62
  %v255 = vunpack.c.l.b16 %v63
  %v256 = vunpack.c.h.b16 %v63
  %v257 = vunpack.c.l.b16 %v64
  %v258 = vunpack.c.h.b16 %v64
  %v259 = vunpack.c.l.b16 %v65
  %v260 = vunpack.c.h.b16 %v65
  %v261 = vunpack.c.l.b16 %v66
  %v262 = vunpack.c.h.b16 %v66
  %v263 = vunpack.c.l.b16 %v67
  %v264 = vunpack.c.h.b16 %v67
  %v265 = vunpack.c.l.b16 %v68
  %v266 = vunpack.c.h.b16 %v68
  %v267 = vunpack.c.l.b16 %v69
  %v268 = vunpack.c.h.b16 %v69
  %v269 = vunpack.c.l.b16 %v70
  %v270 = vunpack.c.h.b16 %v70
  %v271 = vunpack.c.l.b16 %v71
  %v272 = vunpack.c.h.b16 %v71
  %v273 = vunpack.c.l.b16 %v72
  %v274 = vunpack.c.h.b16 %v72
  %v275 = vunpack.c.l.b16 %v73
  %v276 = vunpack.c.h.b16 %v73
  %v277 = vunpack.c.l.b16 %v74
  %v278 = vunpack.c.h.b16 %v74
  %v279 = vunpack.c.l.b16 %v75
  %v280 = vunpack.c.h.b16 %v75
  %v281 = vunpack.c.l.b16 %v76
  %v282 = vunpack.c.h.b16 %v76
  %v283 = vunpack.c.l.b16 %v77
  %v284 = vunpack.c.h.b16 %v77
  %v285 = vunpack.c.l.b16 %v78
  %v286 = vunpack.c.h.b16 %v78
  %v287 = vunpack.c.l.b16 %v79
  %v288 = vunpack.c.h.b16 %v79
  %v289 = vunpack.c.l.b16 %v80
  %v290 = vunpack.c.h.b16 %v80
  %v291 = vunpack.c.l.b16 %v81
  %v292 = vunpack.c.h.b16 %v81
  %v293 = vpack.c.b16 %v167, %v165
  %v294 = vpack.c.b16 %v168, %v166
  %v295 = vpack.c.b16 %v171, %v169
  %v296 = vpack.c.b16 %v172, %v170
  %v297 = vpack.c.b16 %v175, %v173
  %v298 = vpack.c.b16 %v176, %v174
  %v299 = vpack.c.b16 %v179, %v177
  %v300 = vpack.c.b16 %v180, %v178
  %v301 = vpack.c.b16 %v183, %v181
  %v302 = vpack.c.b16 %v184, %v182
  %v303 = vpack.c.b16 %v187, %v185
  %v304 = vpack.c.b16 %v188, %v186
  %v305 = vpack.c.b16 %v191, %v189
  %v306 = vpack.c.b16 %v192, %v190
  %v307 = vpack.c.b16 %v195, %v193
  %v308 = vpack.c.b16 %v196, %v194
  %v309 = vpack.c.b16 %v199, %v197
  %v310 = vpack.c.b16 %v200, %v198
  %v311 = vpack.c.b16 %v203, %v201
  %v312 = vpack.c.b16 %v204, %v202
  %v313 = vpack.c.b16 %v207, %v205
  %v314 = vpack.c.b16 %v208, %v206
  %v315 = vpack.c.b16 %v211, %v209
  %v316 = vpack.c.b16 %v212, %v210
  %v317 = vpack.c.b16 %v215, %v213
  %v318 = vpack.c.b16 %v216, %v214
  %v319 = vpack.c.b16 %v219, %v217
  %v320 = vpack.c.b16 %v220, %v218
  %v321 = vpack.c.b16 %v223, %v221
  %v322 = vpack.c.b16 %v224, %v222
  %v323 = vpack.c.b16 %v227, %v225
  %v324 = vpack.c.b16 %v228, %v226
  %v325 = vpack.c.b16 %v231, %v229
  %v326 = vpack.c.b16 %v232, %v230
  %v327 = vpack.c.b16 %v235, %v233
  %v328 = vpack.c.b16 %v236, %v234
  %v329 = vpack.c.b16 %v239, %v237
  %v330 = vpack.c.b16 %v240, %v238
  %v331 = vpack.c.b16 %v243, %v241
  %v332 = vpack.c.b16 %v244, %v242
  %v333 = vpack.c.b16 %v247, %v245
  %v334 = vpack.c.b16 %v248, %v246
  %v335 = vpack.c.b16 %v251, %v249
  %v336 = vpack.c.b16 %v252, %v250
  %v337 = vpack.c.b16 %v255, %v253
  %v338 = vpack.c.b16 %v256, %v254
  %v339 = vpack.c.b16 %v259, %v257
  %v340 = vpack.c.b16 %v260, %v258
  %v341 = vpack.c.b16 %v263, %v261
  %v342 = vpack.c.b16 %v264, %v262
  %v343 = vpack.c.b16 %v267, %v265
  %v344 = vpack.c.b16 %v268, %v266
  %v345 = vpack.c.b16 %v271, %v269
  %v346 = vpack.c.b16 %v272, %v270
  %v347 = vpack.c.b16 %v275, %v273
  %v348 = vpack.c.b16 %v276, %v274
  %v349 = vpack.c.b16 %v279, %v277
  %v350 = vpack.c.b16 %v280, %v278
  %v351 = vpack.c.b16 %v283, %v281
  %v352 = vpack.c.b16 %v284, %v282
  %v353 = vpack.c.b16 %v287, %v285
  %v354 = vpack.c.b16 %v288, %v286
  %v355 = vpack.c.b16 %v291, %v289
  %v356 = vpack.c.b16 %v292, %v290
  %v408 = vunpack.c.l.b16 %v82
  %v409 = vunpack.c.l.b16 %v83
  %v410 = vunpack.c.l.b16 %v84
  %v411 = vunpack.c.l.b16 %v85
  %v412 = vunpack.c.l.b16 %v86
  %v413 = vunpack.c.l.b16 %v87
  %v414 = vunpack.c.l.b16 %v88
  %v415 = vunpack.c.l.b16 %v89
  %v416 = vunpack.c.l.b16 %v90
  %v417 = vunpack.c.l.b16 %v91
  %v418 = vunpack.c.l.b16 %v92
  %v419 = vunpack.c.l.b16 %v93
  %v420 = vunpack.c.l.b16 %v94
  %v421 = vunpack.c.l.b16 %v95
  %v422 = vunpack.c.l.b16 %v96
  %v423 = vunpack.c.l.b16 %v97
  %v424 = vunpack.c.l.b16 %v98
  %v425 = vunpack.c.l.b16 %v99
  %v426 = vunpack.c.l.b16 %v100
  %v427 = vpack.c.b16 %v409, %v408
  %v428 = vpack.c.b16 %v411, %v410
  %v429 = vpack.c.b16 %v413, %v412
  %v430 = vpack.c.b16 %v415, %v414
  %v431 = vpack.c.b16 %v417, %v416
  %v432 = vpack.c.b16 %v419, %v418
  %v433 = vpack.c.b16 %v421, %v420
  %v434 = vpack.c.b16 %v423, %v422
  %v435 = vpack.c.b16 %v425, %v424
  %v436 = vpack.c.b16 %v426, %v426
  %vm446 = vcmask 154624
  %v448 = vsel %vm446, %v294, 0
  %v451 = vsel %vm446, %v296, 0
  %v454 = vsel %vm446, %v298, 0
  %v457 = vsel %vm446, %v300, 0
  %v460 = vsel %vm446, %v302, 0
  %v463 = vsel %vm446, %v304, 0
  %v466 = vsel %vm446, %v306, 0
  %v469 = vsel %vm446, %v308, 0
  %v472 = vsel %vm446, %v310, 0
  %v475 = vsel %vm446, %v312, 0
  %v478 = vsel %vm446, %v314, 0
  %v481 = vsel %vm446, %v316, 0
  %v484 = vsel %vm446, %v318, 0
  %v487 = vsel %vm446, %v320, 0
  %v490 = vsel %vm446, %v322, 0
  %v493 = vsel %vm446, %v324, 0
  %v496 = vsel %vm446, %v326, 0
  %v499 = vsel %vm446, %v328, 0
  %v502 = vsel %vm446, %v330, 0
  %v505 = vsel %vm446, %v332, 0
  %v508 = vsel %vm446, %v334, 0
  %v511 = vsel %vm446, %v336, 0
  %v514 = vsel %vm446, %v338, 0
  %v517 = vsel %vm446, %v340, 0
  %v520 = vsel %vm446, %v342, 0
  %v523 = vsel %vm446, %v344, 0
  %v526 = vsel %vm446, %v346, 0
  %v529 = vsel %vm446, %v348, 0
  %v532 = vsel %vm446, %v350, 0
  %v535 = vsel %vm446, %v352, 0
  %v538 = vsel %vm446, %v354, 0
  %v541 = vsel %vm446, %v356, 0
  %vm543 = vcmask 1040384
  %vm544 = vcmask 1041408
  %v545 = vsel %vm543, 4294967295, 65535
  %v546 = vsel %vm544, %v545, 0
  %v548 = vand.u32 %v436, %v546
  %550 = vmatprep.subr.bf16.mxu0 0
  %551 = vmatpush1.bf16.msra.mxu0 %v434
  %552 = vmatprep.subr.bf16.mxu0 0
  %553 = vmatpush1.bf16.msra.mxu0 %v433
  %554 = vmatprep.subr.bf16.mxu0 0
  %555 = vmatpush1.bf16.msra.mxu0 %v432
  %556 = vmatprep.subr.bf16.mxu0 0
  %557 = vmatpush1.bf16.msra.mxu0 %v431
  %558 = vmatprep.subr.bf16.mxu0 0
  %559 = vmatpush1.bf16.msra.mxu0 %v430
  %560 = vmatprep.subr.bf16.mxu0 0
  %561 = vmatpush1.bf16.msra.mxu0 %v429
  %562 = vmatprep.subr.bf16.mxu0 0
  %563 = vmatpush1.bf16.msra.mxu0 %v428
  %564 = vmatprep.subr.bf16.mxu0 0
  %565 = vmatpush1.bf16.msra.mxu0 %v427
  %566 = vmatprep.subr.bf16.mxu0 0
  %567 = vmatpush2.bf16.msra.mxu0 0
  %568 = vmatprep.subr.bf16.mxu0 0
  %569 = vmatpush2.bf16.msra.mxu0 0
  %570 = vmatprep.subr.bf16.mxu0 0
  %571 = vmatpush2.bf16.msra.mxu0 0
  %572 = vmatprep.subr.bf16.mxu0 0
  %573 = vmatpush2.bf16.msra.mxu0 0
  %574 = vmatprep.subr.bf16.mxu0 0
  %575 = vmatpush2.bf16.msra.mxu0 0
  %576 = vmatprep.subr.bf16.mxu0 0
  %577 = vmatpush2.bf16.msra.mxu0 0
  %578 = vmatprep.subr.bf16.mxu0 0
  %579 = vmatpush2.bf16.msra.mxu0 %v548
  %580 = vmatprep.subr.bf16.mxu0 0
  %581 = vmatpush2.bf16.msra.mxu0 %v435
  %582 = vmatprep.mubr.bf16.mxu0 %v448
  %583 = vmatmul.mubr.bf16.gmra.mxu0 %v293
  %v584 = vpop.f32.mrf.mxu0
  %v585 = vadd.f32 0.0, %v584
  %v586 = vpop.f32.mrf.mxu0
  %v587 = vpop.f32.mrf.mxu0
  %v588 = vadd.f32 0.0, %v587
  %v589 = vpop.f32.mrf.mxu0
  %590 = vmatprep.mubr.bf16.mxu0 %v451
  %591 = vmatmul.mubr.bf16.gmra.mxu0 %v295
  %v592 = vpop.f32.mrf.mxu0
  %v593 = vadd.f32 0.0, %v592
  %v594 = vpop.f32.mrf.mxu0
  %v595 = vpop.f32.mrf.mxu0
  %v596 = vadd.f32 0.0, %v595
  %v597 = vpop.f32.mrf.mxu0
  %598 = vmatprep.mubr.bf16.mxu0 %v454
  %599 = vmatmul.mubr.bf16.gmra.mxu0 %v297
  %v600 = vpop.f32.mrf.mxu0
  %v601 = vadd.f32 0.0, %v600
  %v602 = vpop.f32.mrf.mxu0
  %v603 = vpop.f32.mrf.mxu0
  %v604 = vadd.f32 0.0, %v603
  %v605 = vpop.f32.mrf.mxu0
  %606 = vmatprep.mubr.bf16.mxu0 %v457
  %607 = vmatmul.mubr.bf16.gmra.mxu0 %v299
  %v608 = vpop.f32.mrf.mxu0
  %v609 = vadd.f32 0.0, %v608
  %v610 = vpop.f32.mrf.mxu0
  %v611 = vpop.f32.mrf.mxu0
  %v612 = vadd.f32 0.0, %v611
  %v613 = vpop.f32.mrf.mxu0
  %614 = vmatprep.mubr.bf16.mxu0 %v460
  %615 = vmatmul.mubr.bf16.gmra.mxu0 %v301
  %v616 = vpop.f32.mrf.mxu0
  %v617 = vadd.f32 0.0, %v616
  %v618 = vpop.f32.mrf.mxu0
  %v619 = vpop.f32.mrf.mxu0
  %v620 = vadd.f32 0.0, %v619
  %v621 = vpop.f32.mrf.mxu0
  %622 = vmatprep.mubr.bf16.mxu0 %v463
  %623 = vmatmul.mubr.bf16.gmra.mxu0 %v303
  %v624 = vpop.f32.mrf.mxu0
  %v625 = vadd.f32 0.0, %v624
  %v626 = vpop.f32.mrf.mxu0
  %v627 = vpop.f32.mrf.mxu0
  %v628 = vadd.f32 0.0, %v627
  %v629 = vpop.f32.mrf.mxu0
  %630 = vmatprep.mubr.bf16.mxu0 %v466
  %631 = vmatmul.mubr.bf16.gmra.mxu0 %v305
  %v632 = vpop.f32.mrf.mxu0
  %v633 = vadd.f32 0.0, %v632
  %v634 = vpop.f32.mrf.mxu0
  %v635 = vpop.f32.mrf.mxu0
  %v636 = vadd.f32 0.0, %v635
  %v637 = vpop.f32.mrf.mxu0
  %638 = vmatprep.mubr.bf16.mxu0 %v469
  %639 = vmatmul.mubr.bf16.gmra.mxu0 %v307
  %v640 = vpop.f32.mrf.mxu0
  %v641 = vadd.f32 0.0, %v640
  %v642 = vpop.f32.mrf.mxu0
  %v643 = vpop.f32.mrf.mxu0
  %v644 = vadd.f32 0.0, %v643
  %v645 = vpop.f32.mrf.mxu0
  %646 = vmatprep.mubr.bf16.mxu0 %v472
  %647 = vmatmul.mubr.bf16.gmra.mxu0 %v309
  %v648 = vpop.f32.mrf.mxu0
  %v649 = vadd.f32 0.0, %v648
  %v650 = vpop.f32.mrf.mxu0
  %v651 = vpop.f32.mrf.mxu0
  %v652 = vadd.f32 0.0, %v651
  %v653 = vpop.f32.mrf.mxu0
  %654 = vmatprep.mubr.bf16.mxu0 %v475
  %655 = vmatmul.mubr.bf16.gmra.mxu0 %v311
  %v656 = vpop.f32.mrf.mxu0
  %v657 = vadd.f32 0.0, %v656
  %v658 = vpop.f32.mrf.mxu0
  %v659 = vpop.f32.mrf.mxu0
  %v660 = vadd.f32 0.0, %v659
  %v661 = vpop.f32.mrf.mxu0
  %662 = vmatprep.mubr.bf16.mxu0 %v478
  %663 = vmatmul.mubr.bf16.gmra.mxu0 %v313
  %v664 = vpop.f32.mrf.mxu0
  %v665 = vadd.f32 0.0, %v664
  %v666 = vpop.f32.mrf.mxu0
  %v667 = vpop.f32.mrf.mxu0
  %v668 = vadd.f32 0.0, %v667
  %v669 = vpop.f32.mrf.mxu0
  %670 = vmatprep.mubr.bf16.mxu0 %v481
  %671 = vmatmul.mubr.bf16.gmra.mxu0 %v315
  %v672 = vpop.f32.mrf.mxu0
  %v673 = vadd.f32 0.0, %v672
  %v674 = vpop.f32.mrf.mxu0
  %v675 = vpop.f32.mrf.mxu0
  %v676 = vadd.f32 0.0, %v675
  %v677 = vpop.f32.mrf.mxu0
  %678 = vmatprep.mubr.bf16.mxu0 %v484
  %679 = vmatmul.mubr.bf16.gmra.mxu0 %v317
  %v680 = vpop.f32.mrf.mxu0
  %v681 = vadd.f32 0.0, %v680
  %v682 = vpop.f32.mrf.mxu0
  %v683 = vpop.f32.mrf.mxu0
  %v684 = vadd.f32 0.0, %v683
  %v685 = vpop.f32.mrf.mxu0
  %686 = vmatprep.mubr.bf16.mxu0 %v487
  %687 = vmatmul.mubr.bf16.gmra.mxu0 %v319
  %v688 = vpop.f32.mrf.mxu0
  %v689 = vadd.f32 0.0, %v688
  %v690 = vpop.f32.mrf.mxu0
  %v691 = vpop.f32.mrf.mxu0
  %v692 = vadd.f32 0.0, %v691
  %v693 = vpop.f32.mrf.mxu0
  %694 = vmatprep.mubr.bf16.mxu0 %v490
  %695 = vmatmul.mubr.bf16.gmra.mxu0 %v321
  %v696 = vpop.f32.mrf.mxu0
  %v697 = vadd.f32 0.0, %v696
  %v698 = vpop.f32.mrf.mxu0
  %v699 = vpop.f32.mrf.mxu0
  %v700 = vadd.f32 0.0, %v699
  %v701 = vpop.f32.mrf.mxu0
  %702 = vmatprep.mubr.bf16.mxu0 %v493
  %703 = vmatmul.mubr.bf16.gmra.mxu0 %v323
  %v704 = vpop.f32.mrf.mxu0
  %v705 = vadd.f32 0.0, %v704
  %v706 = vpop.f32.mrf.mxu0
  %v707 = vpop.f32.mrf.mxu0
  %v708 = vadd.f32 0.0, %v707
  %v709 = vpop.f32.mrf.mxu0
  %710 = vmatprep.mubr.bf16.mxu0 %v496
  %711 = vmatmul.mubr.bf16.gmra.mxu0 %v325
  %v712 = vpop.f32.mrf.mxu0
  %v713 = vadd.f32 0.0, %v712
  %v714 = vpop.f32.mrf.mxu0
  %v715 = vpop.f32.mrf.mxu0
  %v716 = vadd.f32 0.0, %v715
  %v717 = vpop.f32.mrf.mxu0
  %718 = vmatprep.mubr.bf16.mxu0 %v499
  %719 = vmatmul.mubr.bf16.gmra.mxu0 %v327
  %v720 = vpop.f32.mrf.mxu0
  %v721 = vadd.f32 0.0, %v720
  %v722 = vpop.f32.mrf.mxu0
  %v723 = vpop.f32.mrf.mxu0
  %v724 = vadd.f32 0.0, %v723
  %v725 = vpop.f32.mrf.mxu0
  %726 = vmatprep.mubr.bf16.mxu0 %v502
  %727 = vmatmul.mubr.bf16.gmra.mxu0 %v329
  %v728 = vpop.f32.mrf.mxu0
  %v729 = vadd.f32 0.0, %v728
  %v730 = vpop.f32.mrf.mxu0
  %v731 = vpop.f32.mrf.mxu0
  %v732 = vadd.f32 0.0, %v731
  %v733 = vpop.f32.mrf.mxu0
  %734 = vmatprep.mubr.bf16.mxu0 %v505
  %735 = vmatmul.mubr.bf16.gmra.mxu0 %v331
  %v736 = vpop.f32.mrf.mxu0
  %v737 = vadd.f32 0.0, %v736
  %v738 = vpop.f32.mrf.mxu0
  %v739 = vpop.f32.mrf.mxu0
  %v740 = vadd.f32 0.0, %v739
  %v741 = vpop.f32.mrf.mxu0
  %742 = vmatprep.mubr.bf16.mxu0 %v508
  %743 = vmatmul.mubr.bf16.gmra.mxu0 %v333
  %v744 = vpop.f32.mrf.mxu0
  %v745 = vadd.f32 0.0, %v744
  %v746 = vpop.f32.mrf.mxu0
  %v747 = vpop.f32.mrf.mxu0
  %v748 = vadd.f32 0.0, %v747
  %v749 = vpop.f32.mrf.mxu0
  %750 = vmatprep.mubr.bf16.mxu0 %v511
  %751 = vmatmul.mubr.bf16.gmra.mxu0 %v335
  %v752 = vpop.f32.mrf.mxu0
  %v753 = vadd.f32 0.0, %v752
  %v754 = vpop.f32.mrf.mxu0
  %v755 = vpop.f32.mrf.mxu0
  %v756 = vadd.f32 0.0, %v755
  %v757 = vpop.f32.mrf.mxu0
  %758 = vmatprep.mubr.bf16.mxu0 %v514
  %759 = vmatmul.mubr.bf16.gmra.mxu0 %v337
  %v760 = vpop.f32.mrf.mxu0
  %v761 = vadd.f32 0.0, %v760
  %v762 = vpop.f32.mrf.mxu0
  %v763 = vpop.f32.mrf.mxu0
  %v764 = vadd.f32 0.0, %v763
  %v765 = vpop.f32.mrf.mxu0
  %766 = vmatprep.mubr.bf16.mxu0 %v517
  %767 = vmatmul.mubr.bf16.gmra.mxu0 %v339
  %v768 = vpop.f32.mrf.mxu0
  %v769 = vadd.f32 0.0, %v768
  %v770 = vpop.f32.mrf.mxu0
  %v771 = vpop.f32.mrf.mxu0
  %v772 = vadd.f32 0.0, %v771
  %v773 = vpop.f32.mrf.mxu0
  %774 = vmatprep.mubr.bf16.mxu0 %v520
  %775 = vmatmul.mubr.bf16.gmra.mxu0 %v341
  %v776 = vpop.f32.mrf.mxu0
  %v777 = vadd.f32 0.0, %v776
  %v778 = vpop.f32.mrf.mxu0
  %v779 = vpop.f32.mrf.mxu0
  %v780 = vadd.f32 0.0, %v779
  %v781 = vpop.f32.mrf.mxu0
  %782 = vmatprep.mubr.bf16.mxu0 %v523
  %783 = vmatmul.mubr.bf16.gmra.mxu0 %v343
  %v784 = vpop.f32.mrf.mxu0
  %v785 = vadd.f32 0.0, %v784
  %v786 = vpop.f32.mrf.mxu0
  %v787 = vpop.f32.mrf.mxu0
  %v788 = vadd.f32 0.0, %v787
  %v789 = vpop.f32.mrf.mxu0
  %790 = vmatprep.mubr.bf16.mxu0 %v526
  %791 = vmatmul.mubr.bf16.gmra.mxu0 %v345
  %v792 = vpop.f32.mrf.mxu0
  %v793 = vadd.f32 0.0, %v792
  %v794 = vpop.f32.mrf.mxu0
  %v795 = vpop.f32.mrf.mxu0
  %v796 = vadd.f32 0.0, %v795
  %v797 = vpop.f32.mrf.mxu0
  %798 = vmatprep.mubr.bf16.mxu0 %v529
  %799 = vmatmul.mubr.bf16.gmra.mxu0 %v347
  %v800 = vpop.f32.mrf.mxu0
  %v801 = vadd.f32 0.0, %v800
  %v802 = vpop.f32.mrf.mxu0
  %v803 = vpop.f32.mrf.mxu0
  %v804 = vadd.f32 0.0, %v803
  %v805 = vpop.f32.mrf.mxu0
  %806 = vmatprep.mubr.bf16.mxu0 %v532
  %807 = vmatmul.mubr.bf16.gmra.mxu0 %v349
  %v808 = vpop.f32.mrf.mxu0
  %v809 = vadd.f32 0.0, %v808
  %v810 = vpop.f32.mrf.mxu0
  %v811 = vpop.f32.mrf.mxu0
  %v812 = vadd.f32 0.0, %v811
  %v813 = vpop.f32.mrf.mxu0
  %814 = vmatprep.mubr.bf16.mxu0 %v535
  %815 = vmatmul.mubr.bf16.gmra.mxu0 %v351
  %v816 = vpop.f32.mrf.mxu0
  %v817 = vadd.f32 0.0, %v816
  %v818 = vpop.f32.mrf.mxu0
  %v819 = vpop.f32.mrf.mxu0
  %v820 = vadd.f32 0.0, %v819
  %v821 = vpop.f32.mrf.mxu0
  %822 = vmatprep.mubr.bf16.mxu0 %v538
  %823 = vmatmul.mubr.bf16.gmra.mxu0 %v353
  %v824 = vpop.f32.mrf.mxu0
  %v825 = vadd.f32 0.0, %v824
  %v826 = vpop.f32.mrf.mxu0
  %v827 = vpop.f32.mrf.mxu0
  %v828 = vadd.f32 0.0, %v827
  %v829 = vpop.f32.mrf.mxu0
  %830 = vmatprep.mubr.bf16.mxu0 %v541
  %831 = vmatmul.mubr.bf16.gmra.mxu0 %v355
  %v832 = vpop.f32.mrf.mxu0
  %v833 = vadd.f32 0.0, %v832
  %v834 = vpop.f32.mrf.mxu0
  %v835 = vpop.f32.mrf.mxu0
  %v836 = vadd.f32 0.0, %v835
  %v837 = vpop.f32.mrf.mxu0
  %838 = vdwg.mxu0
  %v839 = vld [vmem:[%s2] sm:$0x1]
  %v840 = vld [vmem:[%s3] sm:$0x1]
  %v841 = vadd.f32 %v585, %v588
  %v842 = vadd.f32 %v841, %v593
  %v843 = vadd.f32 %v842, %v596
  %v844 = vadd.f32 %v843, %v601
  %v845 = vadd.f32 %v844, %v604
  %v846 = vadd.f32 %v845, %v609
  %v847 = vadd.f32 %v846, %v612
  %v848 = vadd.f32 %v847, %v617
  %v849 = vadd.f32 %v848, %v620
  %v850 = vadd.f32 %v849, %v625
  %v851 = vadd.f32 %v850, %v628
  %v852 = vadd.f32 %v851, %v633
  %v853 = vadd.f32 %v852, %v636
  %v854 = vadd.f32 %v853, %v641
  %v855 = vadd.f32 %v854, %v644
  %v856 = vadd.f32 %v855, %v649
  %v857 = vadd.f32 %v856, %v652
  %v858 = vadd.f32 %v857, %v657
  %v859 = vadd.f32 %v858, %v660
  %v860 = vadd.f32 %v859, %v665
  %v861 = vadd.f32 %v860, %v668
  %v862 = vadd.f32 %v861, %v673
  %v863 = vadd.f32 %v862, %v676
  %v864 = vadd.f32 %v863, %v681
  %v865 = vadd.f32 %v864, %v684
  %v866 = vadd.f32 %v865, %v689
  %v867 = vadd.f32 %v866, %v692
  %v868 = vadd.f32 %v867, %v697
  %v869 = vadd.f32 %v868, %v700
  %v870 = vadd.f32 %v869, %v705
  %v871 = vadd.f32 %v870, %v708
  %v872 = vadd.f32 %v871, %v713
  %v873 = vadd.f32 %v872, %v716
  %v874 = vadd.f32 %v873, %v721
  %v875 = vadd.f32 %v874, %v724
  %v876 = vadd.f32 %v875, %v729
  %v877 = vadd.f32 %v876, %v732
  %v878 = vadd.f32 %v877, %v737
  %v879 = vadd.f32 %v878, %v740
  %v880 = vadd.f32 %v879, %v745
  %v881 = vadd.f32 %v880, %v748
  %v882 = vadd.f32 %v881, %v753
  %v883 = vadd.f32 %v882, %v756
  %v884 = vadd.f32 %v883, %v761
  %v885 = vadd.f32 %v884, %v764
  %v886 = vadd.f32 %v885, %v769
  %v887 = vadd.f32 %v886, %v772
  %v888 = vadd.f32 %v887, %v777
  %v889 = vadd.f32 %v888, %v780
  %v890 = vadd.f32 %v889, %v785
  %v891 = vadd.f32 %v890, %v788
  %v892 = vadd.f32 %v891, %v793
  %v893 = vadd.f32 %v892, %v796
  %v894 = vadd.f32 %v893, %v801
  %v895 = vadd.f32 %v894, %v804
  %v896 = vadd.f32 %v895, %v809
  %v897 = vadd.f32 %v896, %v812
  %v898 = vadd.f32 %v897, %v817
  %v899 = vadd.f32 %v898, %v820
  %v900 = vadd.f32 %v899, %v825
  %v901 = vadd.f32 %v900, %v828
  %v902 = vadd.f32 %v901, %v833
  %v903 = vadd.f32 %v902, %v836
  %v904 = vrot.slane %v903, 4
  %v905 = vadd.f32 %v903, %v904
  %v906 = vrot.slane %v905, 2
  %v907 = vadd.f32 %v905, %v906
  %v908 = vrot.slane %v907, 1
  %v909 = vadd.f32 %v907, %v908
  %v910 = vmul.f32 %v909, 0.001953125
  %v911 = vmul.f32 %v585, %v585
  %v912 = vmul.f32 %v588, %v588
  %v913 = vmul.f32 %v593, %v593
  %v914 = vmul.f32 %v596, %v596
  %v915 = vmul.f32 %v601, %v601
  %v916 = vmul.f32 %v604, %v604
  %v917 = vmul.f32 %v609, %v609
  %v918 = vmul.f32 %v612, %v612
  %v919 = vmul.f32 %v617, %v617
  %v920 = vmul.f32 %v620, %v620
  %v921 = vmul.f32 %v625, %v625
  %v922 = vmul.f32 %v628, %v628
  %v923 = vmul.f32 %v633, %v633
  %v924 = vmul.f32 %v636, %v636
  %v925 = vmul.f32 %v641, %v641
  %v926 = vmul.f32 %v644, %v644
  %v927 = vmul.f32 %v649, %v649
  %v928 = vmul.f32 %v652, %v652
  %v929 = vmul.f32 %v657, %v657
  %v930 = vmul.f32 %v660, %v660
  %v931 = vmul.f32 %v665, %v665
  %v932 = vmul.f32 %v668, %v668
  %v933 = vmul.f32 %v673, %v673
  %v934 = vmul.f32 %v676, %v676
  %v935 = vmul.f32 %v681, %v681
  %v936 = vmul.f32 %v684, %v684
  %v937 = vmul.f32 %v689, %v689
  %v938 = vmul.f32 %v692, %v692
  %v939 = vmul.f32 %v697, %v697
  %v940 = vmul.f32 %v700, %v700
  %v941 = vmul.f32 %v705, %v705
  %v942 = vmul.f32 %v708, %v708
  %v943 = vmul.f32 %v713, %v713
  %v944 = vmul.f32 %v716, %v716
  %v945 = vmul.f32 %v721, %v721
  %v946 = vmul.f32 %v724, %v724
  %v947 = vmul.f32 %v729, %v729
  %v948 = vmul.f32 %v732, %v732
  %v949 = vmul.f32 %v737, %v737
  %v950 = vmul.f32 %v740, %v740
  %v951 = vmul.f32 %v745, %v745
  %v952 = vmul.f32 %v748, %v748
  %v953 = vmul.f32 %v753, %v753
  %v954 = vmul.f32 %v756, %v756
  %v955 = vmul.f32 %v761, %v761
  %v956 = vmul.f32 %v764, %v764
  %v957 = vmul.f32 %v769, %v769
  %v958 = vmul.f32 %v772, %v772
  %v959 = vmul.f32 %v777, %v777
  %v960 = vmul.f32 %v780, %v780
  %v961 = vmul.f32 %v785, %v785
  %v962 = vmul.f32 %v788, %v788
  %v963 = vmul.f32 %v793, %v793
  %v964 = vmul.f32 %v796, %v796
  %v965 = vmul.f32 %v801, %v801
  %v966 = vmul.f32 %v804, %v804
  %v967 = vmul.f32 %v809, %v809
  %v968 = vmul.f32 %v812, %v812
  %v969 = vmul.f32 %v817, %v817
  %v970 = vmul.f32 %v820, %v820
  %v971 = vmul.f32 %v825, %v825
  %v972 = vmul.f32 %v828, %v828
  %v973 = vmul.f32 %v833, %v833
  %v974 = vmul.f32 %v836, %v836
  %v975 = vadd.f32 %v911, %v912
  %v976 = vadd.f32 %v975, %v913
  %v977 = vadd.f32 %v976, %v914
  %v978 = vadd.f32 %v977, %v915
  %v979 = vadd.f32 %v978, %v916
  %v980 = vadd.f32 %v979, %v917
  %v981 = vadd.f32 %v980, %v918
  %v982 = vadd.f32 %v981, %v919
  %v983 = vadd.f32 %v982, %v920
  %v984 = vadd.f32 %v983, %v921
  %v985 = vadd.f32 %v984, %v922
  %v986 = vadd.f32 %v985, %v923
  %v987 = vadd.f32 %v986, %v924
  %v988 = vadd.f32 %v987, %v925
  %v989 = vadd.f32 %v988, %v926
  %v990 = vadd.f32 %v989, %v927
  %v991 = vadd.f32 %v990, %v928
  %v992 = vadd.f32 %v991, %v929
  %v993 = vadd.f32 %v992, %v930
  %v994 = vadd.f32 %v993, %v931
  %v995 = vadd.f32 %v994, %v932
  %v996 = vadd.f32 %v995, %v933
  %v997 = vadd.f32 %v996, %v934
  %v998 = vadd.f32 %v997, %v935
  %v999 = vadd.f32 %v998, %v936
  %v1000 = vadd.f32 %v999, %v937
  %v1001 = vadd.f32 %v1000, %v938
  %v1002 = vadd.f32 %v1001, %v939
  %v1003 = vadd.f32 %v1002, %v940
  %v1004 = vadd.f32 %v1003, %v941
  %v1005 = vadd.f32 %v1004, %v942
  %v1006 = vadd.f32 %v1005, %v943
  %v1007 = vadd.f32 %v1006, %v944
  %v1008 = vadd.f32 %v1007, %v945
  %v1009 = vadd.f32 %v1008, %v946
  %v1010 = vadd.f32 %v1009, %v947
  %v1011 = vadd.f32 %v1010, %v948
  %v1012 = vadd.f32 %v1011, %v949
  %v1013 = vadd.f32 %v1012, %v950
  %v1014 = vadd.f32 %v1013, %v951
  %v1015 = vadd.f32 %v1014, %v952
  %v1016 = vadd.f32 %v1015, %v953
  %v1017 = vadd.f32 %v1016, %v954
  %v1018 = vadd.f32 %v1017, %v955
  %v1019 = vadd.f32 %v1018, %v956
  %v1020 = vadd.f32 %v1019, %v957
  %v1021 = vadd.f32 %v1020, %v958
  %v1022 = vadd.f32 %v1021, %v959
  %v1023 = vadd.f32 %v1022, %v960
  %v1024 = vadd.f32 %v1023, %v961
  %v1025 = vadd.f32 %v1024, %v962
  %v1026 = vadd.f32 %v1025, %v963
  %v1027 = vadd.f32 %v1026, %v964
  %v1028 = vadd.f32 %v1027, %v965
  %v1029 = vadd.f32 %v1028, %v966
  %v1030 = vadd.f32 %v1029, %v967
  %v1031 = vadd.f32 %v1030, %v968
  %v1032 = vadd.f32 %v1031, %v969
  %v1033 = vadd.f32 %v1032, %v970
  %v1034 = vadd.f32 %v1033, %v971
  %v1035 = vadd.f32 %v1034, %v972
  %v1036 = vadd.f32 %v1035, %v973
  %v1037 = vadd.f32 %v1036, %v974
  %v1038 = vrot.slane %v1037, 4
  %v1039 = vadd.f32 %v1037, %v1038
  %v1040 = vrot.slane %v1039, 2
  %v1041 = vadd.f32 %v1039, %v1040
  %v1042 = vrot.slane %v1041, 1
  %v1043 = vadd.f32 %v1041, %v1042
  %v1044 = vmul.f32 %v1043, 0.001953125
  %v1045 = vmul.f32 %v910, %v910
  %v1046 = vsub.f32 %v1044, %v1045
  %v1047 = vmax.f32 %v1046, 0.0
  %v1048 = vsub.f32 %v585, %v910
  %v1049 = vsub.f32 %v588, %v910
  %v1050 = vsub.f32 %v593, %v910
  %v1051 = vsub.f32 %v596, %v910
  %v1052 = vsub.f32 %v601, %v910
  %v1053 = vsub.f32 %v604, %v910
  %v1054 = vsub.f32 %v609, %v910
  %v1055 = vsub.f32 %v612, %v910
  %v1056 = vsub.f32 %v617, %v910
  %v1057 = vsub.f32 %v620, %v910
  %v1058 = vsub.f32 %v625, %v910
  %v1059 = vsub.f32 %v628, %v910
  %v1060 = vsub.f32 %v633, %v910
  %v1061 = vsub.f32 %v636, %v910
  %v1062 = vsub.f32 %v641, %v910
  %v1063 = vsub.f32 %v644, %v910
  %v1064 = vsub.f32 %v649, %v910
  %v1065 = vsub.f32 %v652, %v910
  %v1066 = vsub.f32 %v657, %v910
  %v1067 = vsub.f32 %v660, %v910
  %v1068 = vsub.f32 %v665, %v910
  %v1069 = vsub.f32 %v668, %v910
  %v1070 = vsub.f32 %v673, %v910
  %v1071 = vsub.f32 %v676, %v910
  %v1072 = vsub.f32 %v681, %v910
  %v1073 = vsub.f32 %v684, %v910
  %v1074 = vsub.f32 %v689, %v910
  %v1075 = vsub.f32 %v692, %v910
  %v1076 = vsub.f32 %v697, %v910
  %v1077 = vsub.f32 %v700, %v910
  %v1078 = vsub.f32 %v705, %v910
  %v1079 = vsub.f32 %v708, %v910
  %v1080 = vsub.f32 %v713, %v910
  %v1081 = vsub.f32 %v716, %v910
  %v1082 = vsub.f32 %v721, %v910
  %v1083 = vsub.f32 %v724, %v910
  %v1084 = vsub.f32 %v729, %v910
  %v1085 = vsub.f32 %v732, %v910
  %v1086 = vsub.f32 %v737, %v910
  %v1087 = vsub.f32 %v740, %v910
  %v1088 = vsub.f32 %v745, %v910
  %v1089 = vsub.f32 %v748, %v910
  %v1090 = vsub.f32 %v753, %v910
  %v1091 = vsub.f32 %v756, %v910
  %v1092 = vsub.f32 %v761, %v910
  %v1093 = vsub.f32 %v764, %v910
  %v1094 = vsub.f32 %v769, %v910
  %v1095 = vsub.f32 %v772, %v910
  %v1096 = vsub.f32 %v777, %v910
  %v1097 = vsub.f32 %v780, %v910
  %v1098 = vsub.f32 %v785, %v910
  %v1099 = vsub.f32 %v788, %v910
  %v1100 = vsub.f32 %v793, %v910
  %v1101 = vsub.f32 %v796, %v910
  %v1102 = vsub.f32 %v801, %v910
  %v1103 = vsub.f32 %v804, %v910
  %v1104 = vsub.f32 %v809, %v910
  %v1105 = vsub.f32 %v812, %v910
  %v1106 = vsub.f32 %v817, %v910
  %v1107 = vsub.f32 %v820, %v910
  %v1108 = vsub.f32 %v825, %v910
  %v1109 = vsub.f32 %v828, %v910
  %v1110 = vsub.f32 %v833, %v910
  %v1111 = vsub.f32 %v836, %v910
  %v1112 = vadd.f32 %v1047, 1e-05
  %v1113 = vrsqrt.pop %v1112
  %v1114 = vmul.f32 %v1048, %v1113
  %v1115 = vmul.f32 %v1049, %v1113
  %v1116 = vmul.f32 %v1050, %v1113
  %v1117 = vmul.f32 %v1051, %v1113
  %v1118 = vmul.f32 %v1052, %v1113
  %v1119 = vmul.f32 %v1053, %v1113
  %v1120 = vmul.f32 %v1054, %v1113
  %v1121 = vmul.f32 %v1055, %v1113
  %v1122 = vmul.f32 %v1056, %v1113
  %v1123 = vmul.f32 %v1057, %v1113
  %v1124 = vmul.f32 %v1058, %v1113
  %v1125 = vmul.f32 %v1059, %v1113
  %v1126 = vmul.f32 %v1060, %v1113
  %v1127 = vmul.f32 %v1061, %v1113
  %v1128 = vmul.f32 %v1062, %v1113
  %v1129 = vmul.f32 %v1063, %v1113
  %v1130 = vmul.f32 %v1064, %v1113
  %v1131 = vmul.f32 %v1065, %v1113
  %v1132 = vmul.f32 %v1066, %v1113
  %v1133 = vmul.f32 %v1067, %v1113
  %v1134 = vmul.f32 %v1068, %v1113
  %v1135 = vmul.f32 %v1069, %v1113
  %v1136 = vmul.f32 %v1070, %v1113
  %v1137 = vmul.f32 %v1071, %v1113
  %v1138 = vmul.f32 %v1072, %v1113
  %v1139 = vmul.f32 %v1073, %v1113
  %v1140 = vmul.f32 %v1074, %v1113
  %v1141 = vmul.f32 %v1075, %v1113
  %v1142 = vmul.f32 %v1076, %v1113
  %v1143 = vmul.f32 %v1077, %v1113
  %v1144 = vmul.f32 %v1078, %v1113
  %v1145 = vmul.f32 %v1079, %v1113
  %v1146 = vmul.f32 %v1080, %v1113
  %v1147 = vmul.f32 %v1081, %v1113
  %v1148 = vmul.f32 %v1082, %v1113
  %v1149 = vmul.f32 %v1083, %v1113
  %v1150 = vmul.f32 %v1084, %v1113
  %v1151 = vmul.f32 %v1085, %v1113
  %v1152 = vmul.f32 %v1086, %v1113
  %v1153 = vmul.f32 %v1087, %v1113
  %v1154 = vmul.f32 %v1088, %v1113
  %v1155 = vmul.f32 %v1089, %v1113
  %v1156 = vmul.f32 %v1090, %v1113
  %v1157 = vmul.f32 %v1091, %v1113
  %v1158 = vmul.f32 %v1092, %v1113
  %v1159 = vmul.f32 %v1093, %v1113
  %v1160 = vmul.f32 %v1094, %v1113
  %v1161 = vmul.f32 %v1095, %v1113
  %v1162 = vmul.f32 %v1096, %v1113
  %v1163 = vmul.f32 %v1097, %v1113
  %v1164 = vmul.f32 %v1098, %v1113
  %v1165 = vmul.f32 %v1099, %v1113
  %v1166 = vmul.f32 %v1100, %v1113
  %v1167 = vmul.f32 %v1101, %v1113
  %v1168 = vmul.f32 %v1102, %v1113
  %v1169 = vmul.f32 %v1103, %v1113
  %v1170 = vmul.f32 %v1104, %v1113
  %v1171 = vmul.f32 %v1105, %v1113
  %v1172 = vmul.f32 %v1106, %v1113
  %v1173 = vmul.f32 %v1107, %v1113
  %v1174 = vmul.f32 %v1108, %v1113
  %v1175 = vmul.f32 %v1109, %v1113
  %v1176 = vmul.f32 %v1110, %v1113
  %v1177 = vmul.f32 %v1111, %v1113
  %v1179 = vlaneseq
  %v1180 = vshrl.u32 %v1179, 7
  %v1181 = vsub.s32 0, %v1180
  %v1182 = vrot.slane %v839, %v1181
  %v1184 = vmul.f32 %v1114, %v1182
  %v1185 = vmul.f32 %v1115, %v1182
  %v1186 = vmul.f32 %v1116, %v1182
  %v1187 = vmul.f32 %v1117, %v1182
  %v1188 = vmul.f32 %v1118, %v1182
  %v1189 = vmul.f32 %v1119, %v1182
  %v1190 = vmul.f32 %v1120, %v1182
  %v1191 = vmul.f32 %v1121, %v1182
  %v1192 = vmul.f32 %v1122, %v1182
  %v1193 = vmul.f32 %v1123, %v1182
  %v1194 = vmul.f32 %v1124, %v1182
  %v1195 = vmul.f32 %v1125, %v1182
  %v1196 = vmul.f32 %v1126, %v1182
  %v1197 = vmul.f32 %v1127, %v1182
  %v1198 = vmul.f32 %v1128, %v1182
  %v1199 = vmul.f32 %v1129, %v1182
  %v1200 = vmul.f32 %v1130, %v1182
  %v1201 = vmul.f32 %v1131, %v1182
  %v1202 = vmul.f32 %v1132, %v1182
  %v1203 = vmul.f32 %v1133, %v1182
  %v1204 = vmul.f32 %v1134, %v1182
  %v1205 = vmul.f32 %v1135, %v1182
  %v1206 = vmul.f32 %v1136, %v1182
  %v1207 = vmul.f32 %v1137, %v1182
  %v1208 = vmul.f32 %v1138, %v1182
  %v1209 = vmul.f32 %v1139, %v1182
  %v1210 = vmul.f32 %v1140, %v1182
  %v1211 = vmul.f32 %v1141, %v1182
  %v1212 = vmul.f32 %v1142, %v1182
  %v1213 = vmul.f32 %v1143, %v1182
  %v1214 = vmul.f32 %v1144, %v1182
  %v1215 = vmul.f32 %v1145, %v1182
  %v1216 = vmul.f32 %v1146, %v1182
  %v1217 = vmul.f32 %v1147, %v1182
  %v1218 = vmul.f32 %v1148, %v1182
  %v1219 = vmul.f32 %v1149, %v1182
  %v1220 = vmul.f32 %v1150, %v1182
  %v1221 = vmul.f32 %v1151, %v1182
  %v1222 = vmul.f32 %v1152, %v1182
  %v1223 = vmul.f32 %v1153, %v1182
  %v1224 = vmul.f32 %v1154, %v1182
  %v1225 = vmul.f32 %v1155, %v1182
  %v1226 = vmul.f32 %v1156, %v1182
  %v1227 = vmul.f32 %v1157, %v1182
  %v1228 = vmul.f32 %v1158, %v1182
  %v1229 = vmul.f32 %v1159, %v1182
  %v1230 = vmul.f32 %v1160, %v1182
  %v1231 = vmul.f32 %v1161, %v1182
  %v1232 = vmul.f32 %v1162, %v1182
  %v1233 = vmul.f32 %v1163, %v1182
  %v1234 = vmul.f32 %v1164, %v1182
  %v1235 = vmul.f32 %v1165, %v1182
  %v1236 = vmul.f32 %v1166, %v1182
  %v1237 = vmul.f32 %v1167, %v1182
  %v1238 = vmul.f32 %v1168, %v1182
  %v1239 = vmul.f32 %v1169, %v1182
  %v1240 = vmul.f32 %v1170, %v1182
  %v1241 = vmul.f32 %v1171, %v1182
  %v1242 = vmul.f32 %v1172, %v1182
  %v1243 = vmul.f32 %v1173, %v1182
  %v1244 = vmul.f32 %v1174, %v1182
  %v1245 = vmul.f32 %v1175, %v1182
  %v1246 = vmul.f32 %v1176, %v1182
  %v1247 = vmul.f32 %v1177, %v1182
  %v1249 = vlaneseq
  %v1250 = vshrl.u32 %v1249, 7
  %v1251 = vsub.s32 0, %v1250
  %v1252 = vrot.slane %v840, %v1251
  %v1254 = vadd.f32 %v1184, %v1252
  %v1255 = vadd.f32 %v1185, %v1252
  %v1256 = vadd.f32 %v1186, %v1252
  %v1257 = vadd.f32 %v1187, %v1252
  %v1258 = vadd.f32 %v1188, %v1252
  %v1259 = vadd.f32 %v1189, %v1252
  %v1260 = vadd.f32 %v1190, %v1252
  %v1261 = vadd.f32 %v1191, %v1252
  %v1262 = vadd.f32 %v1192, %v1252
  %v1263 = vadd.f32 %v1193, %v1252
  %v1264 = vadd.f32 %v1194, %v1252
  %v1265 = vadd.f32 %v1195, %v1252
  %v1266 = vadd.f32 %v1196, %v1252
  %v1267 = vadd.f32 %v1197, %v1252
  %v1268 = vadd.f32 %v1198, %v1252
  %v1269 = vadd.f32 %v1199, %v1252
  %v1270 = vadd.f32 %v1200, %v1252
  %v1271 = vadd.f32 %v1201, %v1252
  %v1272 = vadd.f32 %v1202, %v1252
  %v1273 = vadd.f32 %v1203, %v1252
  %v1274 = vadd.f32 %v1204, %v1252
  %v1275 = vadd.f32 %v1205, %v1252
  %v1276 = vadd.f32 %v1206, %v1252
  %v1277 = vadd.f32 %v1207, %v1252
  %v1278 = vadd.f32 %v1208, %v1252
  %v1279 = vadd.f32 %v1209, %v1252
  %v1280 = vadd.f32 %v1210, %v1252
  %v1281 = vadd.f32 %v1211, %v1252
  %v1282 = vadd.f32 %v1212, %v1252
  %v1283 = vadd.f32 %v1213, %v1252
  %v1284 = vadd.f32 %v1214, %v1252
  %v1285 = vadd.f32 %v1215, %v1252
  %v1286 = vadd.f32 %v1216, %v1252
  %v1287 = vadd.f32 %v1217, %v1252
  %v1288 = vadd.f32 %v1218, %v1252
  %v1289 = vadd.f32 %v1219, %v1252
  %v1290 = vadd.f32 %v1220, %v1252
  %v1291 = vadd.f32 %v1221, %v1252
  %v1292 = vadd.f32 %v1222, %v1252
  %v1293 = vadd.f32 %v1223, %v1252
  %v1294 = vadd.f32 %v1224, %v1252
  %v1295 = vadd.f32 %v1225, %v1252
  %v1296 = vadd.f32 %v1226, %v1252
  %v1297 = vadd.f32 %v1227, %v1252
  %v1298 = vadd.f32 %v1228, %v1252
  %v1299 = vadd.f32 %v1229, %v1252
  %v1300 = vadd.f32 %v1230, %v1252
  %v1301 = vadd.f32 %v1231, %v1252
  %v1302 = vadd.f32 %v1232, %v1252
  %v1303 = vadd.f32 %v1233, %v1252
  %v1304 = vadd.f32 %v1234, %v1252
  %v1305 = vadd.f32 %v1235, %v1252
  %v1306 = vadd.f32 %v1236, %v1252
  %v1307 = vadd.f32 %v1237, %v1252
  %v1308 = vadd.f32 %v1238, %v1252
  %v1309 = vadd.f32 %v1239, %v1252
  %v1310 = vadd.f32 %v1240, %v1252
  %v1311 = vadd.f32 %v1241, %v1252
  %v1312 = vadd.f32 %v1242, %v1252
  %v1313 = vadd.f32 %v1243, %v1252
  %v1314 = vadd.f32 %v1244, %v1252
  %v1315 = vadd.f32 %v1245, %v1252
  %v1316 = vadd.f32 %v1246, %v1252
  %v1317 = vadd.f32 %v1247, %v1252
  %v1318 = vmax.f32 %v1254, 0.0
  %v1319 = vmax.f32 %v1255, 0.0
  %v1320 = vmax.f32 %v1256, 0.0
  %v1321 = vmax.f32 %v1257, 0.0
  %v1322 = vmax.f32 %v1258, 0.0
  %v1323 = vmax.f32 %v1259, 0.0
  %v1324 = vmax.f32 %v1260, 0.0
  %v1325 = vmax.f32 %v1261, 0.0
  %v1326 = vmax.f32 %v1262, 0.0
  %v1327 = vmax.f32 %v1263, 0.0
  %v1328 = vmax.f32 %v1264, 0.0
  %v1329 = vmax.f32 %v1265, 0.0
  %v1330 = vmax.f32 %v1266, 0.0
  %v1331 = vmax.f32 %v1267, 0.0
  %v1332 = vmax.f32 %v1268, 0.0
  %v1333 = vmax.f32 %v1269, 0.0
  %v1334 = vmax.f32 %v1270, 0.0
  %v1335 = vmax.f32 %v1271, 0.0
  %v1336 = vmax.f32 %v1272, 0.0
  %v1337 = vmax.f32 %v1273, 0.0
  %v1338 = vmax.f32 %v1274, 0.0
  %v1339 = vmax.f32 %v1275, 0.0
  %v1340 = vmax.f32 %v1276, 0.0
  %v1341 = vmax.f32 %v1277, 0.0
  %v1342 = vmax.f32 %v1278, 0.0
  %v1343 = vmax.f32 %v1279, 0.0
  %v1344 = vmax.f32 %v1280, 0.0
  %v1345 = vmax.f32 %v1281, 0.0
  %v1346 = vmax.f32 %v1282, 0.0
  %v1347 = vmax.f32 %v1283, 0.0
  %v1348 = vmax.f32 %v1284, 0.0
  %v1349 = vmax.f32 %v1285, 0.0
  %v1350 = vmax.f32 %v1286, 0.0
  %v1351 = vmax.f32 %v1287, 0.0
  %v1352 = vmax.f32 %v1288, 0.0
  %v1353 = vmax.f32 %v1289, 0.0
  %v1354 = vmax.f32 %v1290, 0.0
  %v1355 = vmax.f32 %v1291, 0.0
  %v1356 = vmax.f32 %v1292, 0.0
  %v1357 = vmax.f32 %v1293, 0.0
  %v1358 = vmax.f32 %v1294, 0.0
  %v1359 = vmax.f32 %v1295, 0.0
  %v1360 = vmax.f32 %v1296, 0.0
  %v1361 = vmax.f32 %v1297, 0.0
  %v1362 = vmax.f32 %v1298, 0.0
  %v1363 = vmax.f32 %v1299, 0.0
  %v1364 = vmax.f32 %v1300, 0.0
  %v1365 = vmax.f32 %v1301, 0.0
  %v1366 = vmax.f32 %v1302, 0.0
  %v1367 = vmax.f32 %v1303, 0.0
  %v1368 = vmax.f32 %v1304, 0.0
  %v1369 = vmax.f32 %v1305, 0.0
  %v1370 = vmax.f32 %v1306, 0.0
  %v1371 = vmax.f32 %v1307, 0.0
  %v1372 = vmax.f32 %v1308, 0.0
  %v1373 = vmax.f32 %v1309, 0.0
  %v1374 = vmax.f32 %v1310, 0.0
  %v1375 = vmax.f32 %v1311, 0.0
  %v1376 = vmax.f32 %v1312, 0.0
  %v1377 = vmax.f32 %v1313, 0.0
  %v1378 = vmax.f32 %v1314, 0.0
  %v1379 = vmax.f32 %v1315, 0.0
  %v1380 = vmax.f32 %v1316, 0.0
  %v1381 = vmax.f32 %v1317, 0.0
  %v1382 = vpack.c.bf16 %v1319, %v1318
  %v1383 = vpack.c.bf16 %v1321, %v1320
  %v1384 = vpack.c.bf16 %v1323, %v1322
  %v1385 = vpack.c.bf16 %v1325, %v1324
  %v1386 = vpack.c.bf16 %v1327, %v1326
  %v1387 = vpack.c.bf16 %v1329, %v1328
  %v1388 = vpack.c.bf16 %v1331, %v1330
  %v1389 = vpack.c.bf16 %v1333, %v1332
  %v1390 = vpack.c.bf16 %v1335, %v1334
  %v1391 = vpack.c.bf16 %v1337, %v1336
  %v1392 = vpack.c.bf16 %v1339, %v1338
  %v1393 = vpack.c.bf16 %v1341, %v1340
  %v1394 = vpack.c.bf16 %v1343, %v1342
  %v1395 = vpack.c.bf16 %v1345, %v1344
  %v1396 = vpack.c.bf16 %v1347, %v1346
  %v1397 = vpack.c.bf16 %v1349, %v1348
  %v1398 = vpack.c.bf16 %v1351, %v1350
  %v1399 = vpack.c.bf16 %v1353, %v1352
  %v1400 = vpack.c.bf16 %v1355, %v1354
  %v1401 = vpack.c.bf16 %v1357, %v1356
  %v1402 = vpack.c.bf16 %v1359, %v1358
  %v1403 = vpack.c.bf16 %v1361, %v1360
  %v1404 = vpack.c.bf16 %v1363, %v1362
  %v1405 = vpack.c.bf16 %v1365, %v1364
  %v1406 = vpack.c.bf16 %v1367, %v1366
  %v1407 = vpack.c.bf16 %v1369, %v1368
  %v1408 = vpack.c.bf16 %v1371, %v1370
  %v1409 = vpack.c.bf16 %v1373, %v1372
  %v1410 = vpack.c.bf16 %v1375, %v1374
  %v1411 = vpack.c.bf16 %v1377, %v1376
  %v1412 = vpack.c.bf16 %v1379, %v1378
  %v1413 = vpack.c.bf16 %v1381, %v1380
  %v1446 = vunpack.c.l.b16 %v1382
  %v1447 = vunpack.c.h.b16 %v1382
  %v1448 = vunpack.c.l.b16 %v1383
  %v1449 = vunpack.c.h.b16 %v1383
  %v1450 = vunpack.c.l.b16 %v1384
  %v1451 = vunpack.c.h.b16 %v1384
  %v1452 = vunpack.c.l.b16 %v1385
  %v1453 = vunpack.c.h.b16 %v1385
  %v1454 = vunpack.c.l.b16 %v1386
  %v1455 = vunpack.c.h.b16 %v1386
  %v1456 = vunpack.c.l.b16 %v1387
  %v1457 = vunpack.c.h.b16 %v1387
  %v1458 = vunpack.c.l.b16 %v1388
  %v1459 = vunpack.c.h.b16 %v1388
  %v1460 = vunpack.c.l.b16 %v1389
  %v1461 = vunpack.c.h.b16 %v1389
  %v1462 = vunpack.c.l.b16 %v1390
  %v1463 = vunpack.c.h.b16 %v1390
  %v1464 = vunpack.c.l.b16 %v1391
  %v1465 = vunpack.c.h.b16 %v1391
  %v1466 = vunpack.c.l.b16 %v1392
  %v1467 = vunpack.c.h.b16 %v1392
  %v1468 = vunpack.c.l.b16 %v1393
  %v1469 = vunpack.c.h.b16 %v1393
  %v1470 = vunpack.c.l.b16 %v1394
  %v1471 = vunpack.c.h.b16 %v1394
  %v1472 = vunpack.c.l.b16 %v1395
  %v1473 = vunpack.c.h.b16 %v1395
  %v1474 = vunpack.c.l.b16 %v1396
  %v1475 = vunpack.c.h.b16 %v1396
  %v1476 = vunpack.c.l.b16 %v1397
  %v1477 = vunpack.c.h.b16 %v1397
  %v1478 = vunpack.c.l.b16 %v1398
  %v1479 = vunpack.c.h.b16 %v1398
  %v1480 = vunpack.c.l.b16 %v1399
  %v1481 = vunpack.c.h.b16 %v1399
  %v1482 = vunpack.c.l.b16 %v1400
  %v1483 = vunpack.c.h.b16 %v1400
  %v1484 = vunpack.c.l.b16 %v1401
  %v1485 = vunpack.c.h.b16 %v1401
  %v1486 = vunpack.c.l.b16 %v1402
  %v1487 = vunpack.c.h.b16 %v1402
  %v1488 = vunpack.c.l.b16 %v1403
  %v1489 = vunpack.c.h.b16 %v1403
  %v1490 = vunpack.c.l.b16 %v1404
  %v1491 = vunpack.c.h.b16 %v1404
  %v1492 = vunpack.c.l.b16 %v1405
  %v1493 = vunpack.c.h.b16 %v1405
  %v1494 = vunpack.c.l.b16 %v1406
  %v1495 = vunpack.c.h.b16 %v1406
  %v1496 = vunpack.c.l.b16 %v1407
  %v1497 = vunpack.c.h.b16 %v1407
  %v1498 = vunpack.c.l.b16 %v1408
  %v1499 = vunpack.c.h.b16 %v1408
  %v1500 = vunpack.c.l.b16 %v1409
  %v1501 = vunpack.c.h.b16 %v1409
  %v1502 = vunpack.c.l.b16 %v1410
  %v1503 = vunpack.c.h.b16 %v1410
  %v1504 = vunpack.c.l.b16 %v1411
  %v1505 = vunpack.c.h.b16 %v1411
  %v1506 = vunpack.c.l.b16 %v1412
  %v1507 = vunpack.c.h.b16 %v1412
  %v1508 = vunpack.c.l.b16 %v1413
  %v1509 = vunpack.c.h.b16 %v1413
  %v1510 = vpack.c.b16 %v1446, %v1446
  %v1511 = vpack.c.b16 %v1447, %v1447
  %v1512 = vpack.c.b16 %v1448, %v1448
  %v1513 = vpack.c.b16 %v1449, %v1449
  %v1514 = vpack.c.b16 %v1450, %v1450
  %v1515 = vpack.c.b16 %v1451, %v1451
  %v1516 = vpack.c.b16 %v1452, %v1452
  %v1517 = vpack.c.b16 %v1453, %v1453
  %v1518 = vpack.c.b16 %v1454, %v1454
  %v1519 = vpack.c.b16 %v1455, %v1455
  %v1520 = vpack.c.b16 %v1456, %v1456
  %v1521 = vpack.c.b16 %v1457, %v1457
  %v1522 = vpack.c.b16 %v1458, %v1458
  %v1523 = vpack.c.b16 %v1459, %v1459
  %v1524 = vpack.c.b16 %v1460, %v1460
  %v1525 = vpack.c.b16 %v1461, %v1461
  %v1526 = vpack.c.b16 %v1462, %v1462
  %v1527 = vpack.c.b16 %v1463, %v1463
  %v1528 = vpack.c.b16 %v1464, %v1464
  %v1529 = vpack.c.b16 %v1465, %v1465
  %v1530 = vpack.c.b16 %v1466, %v1466
  %v1531 = vpack.c.b16 %v1467, %v1467
  %v1532 = vpack.c.b16 %v1468, %v1468
  %v1533 = vpack.c.b16 %v1469, %v1469
  %v1534 = vpack.c.b16 %v1470, %v1470
  %v1535 = vpack.c.b16 %v1471, %v1471
  %v1536 = vpack.c.b16 %v1472, %v1472
  %v1537 = vpack.c.b16 %v1473, %v1473
  %v1538 = vpack.c.b16 %v1474, %v1474
  %v1539 = vpack.c.b16 %v1475, %v1475
  %v1540 = vpack.c.b16 %v1476, %v1476
  %v1541 = vpack.c.b16 %v1477, %v1477
  %v1542 = vpack.c.b16 %v1478, %v1478
  %v1543 = vpack.c.b16 %v1479, %v1479
  %v1544 = vpack.c.b16 %v1480, %v1480
  %v1545 = vpack.c.b16 %v1481, %v1481
  %v1546 = vpack.c.b16 %v1482, %v1482
  %v1547 = vpack.c.b16 %v1483, %v1483
  %v1548 = vpack.c.b16 %v1484, %v1484
  %v1549 = vpack.c.b16 %v1485, %v1485
  %v1550 = vpack.c.b16 %v1486, %v1486
  %v1551 = vpack.c.b16 %v1487, %v1487
  %v1552 = vpack.c.b16 %v1488, %v1488
  %v1553 = vpack.c.b16 %v1489, %v1489
  %v1554 = vpack.c.b16 %v1490, %v1490
  %v1555 = vpack.c.b16 %v1491, %v1491
  %v1556 = vpack.c.b16 %v1492, %v1492
  %v1557 = vpack.c.b16 %v1493, %v1493
  %v1558 = vpack.c.b16 %v1494, %v1494
  %v1559 = vpack.c.b16 %v1495, %v1495
  %v1560 = vpack.c.b16 %v1496, %v1496
  %v1561 = vpack.c.b16 %v1497, %v1497
  %v1562 = vpack.c.b16 %v1498, %v1498
  %v1563 = vpack.c.b16 %v1499, %v1499
  %v1564 = vpack.c.b16 %v1500, %v1500
  %v1565 = vpack.c.b16 %v1501, %v1501
  %v1566 = vpack.c.b16 %v1502, %v1502
  %v1567 = vpack.c.b16 %v1503, %v1503
  %v1568 = vpack.c.b16 %v1504, %v1504
  %v1569 = vpack.c.b16 %v1505, %v1505
  %v1570 = vpack.c.b16 %v1506, %v1506
  %v1571 = vpack.c.b16 %v1507, %v1507
  %v1572 = vpack.c.b16 %v1508, %v1508
  %v1573 = vpack.c.b16 %v1509, %v1509
  %1638 = vst [vmem:[%s4] sm:$0xf] %v1510
  %1639 = vst [vmem:[%s4 + $0x4] sm:$0xf] %v1511
  %1640 = vst [vmem:[%s4 + $0x8] sm:$0xf] %v1512
  %1641 = vst [vmem:[%s4 + $0xc] sm:$0xf] %v1513
  %1642 = vst [vmem:[%s4 + $0x10] sm:$0xf] %v1514
  %1643 = vst [vmem:[%s4 + $0x14] sm:$0xf] %v1515
  %1644 = vst [vmem:[%s4 + $0x18] sm:$0xf] %v1516
  %1645 = vst [vmem:[%s4 + $0x1c] sm:$0xf] %v1517
  %1646 = vst [vmem:[%s4 + $0x20] sm:$0xf] %v1518
  %1647 = vst [vmem:[%s4 + $0x24] sm:$0xf] %v1519
  %1648 = vst [vmem:[%s4 + $0x28] sm:$0xf] %v1520
  %1649 = vst [vmem:[%s4 + $0x2c] sm:$0xf] %v1521
  %1650 = vst [vmem:[%s4 + $0x30] sm:$0xf] %v1522
  %1651 = vst [vmem:[%s4 + $0x34] sm:$0xf] %v1523
  %1652 = vst [vmem:[%s4 + $0x38] sm:$0xf] %v1524
  %1653 = vst [vmem:[%s4 + $0x3c] sm:$0xf] %v1525
  %1654 = vst [vmem:[%s4 + $0x40] sm:$0xf] %v1526
  %1655 = vst [vmem:[%s4 + $0x44] sm:$0xf] %v1527
  %1656 = vst [vmem:[%s4 + $0x48] sm:$0xf] %v1528
  %1657 = vst [vmem:[%s4 + $0x4c] sm:$0xf] %v1529
  %1658 = vst [vmem:[%s4 + $0x50] sm:$0xf] %v1530
  %1659 = vst [vmem:[%s4 + $0x54] sm:$0xf] %v1531
  %1660 = vst [vmem:[%s4 + $0x58] sm:$0xf] %v1532
  %1661 = vst [vmem:[%s4 + $0x5c] sm:$0xf] %v1533
  %1662 = vst [vmem:[%s4 + $0x60] sm:$0xf] %v1534
  %1663 = vst [vmem:[%s4 + $0x64] sm:$0xf] %v1535
  %1664 = vst [vmem:[%s4 + $0x68] sm:$0xf] %v1536
  %1665 = vst [vmem:[%s4 + $0x6c] sm:$0xf] %v1537
  %1666 = vst [vmem:[%s4 + $0x70] sm:$0xf] %v1538
  %1667 = vst [vmem:[%s4 + $0x74] sm:$0xf] %v1539
  %1668 = vst [vmem:[%s4 + $0x78] sm:$0xf] %v1540
  %1669 = vst [vmem:[%s4 + $0x7c] sm:$0xf] %v1541
  %1670 = vst [vmem:[%s4 + $0x80] sm:$0xf] %v1542
  %1671 = vst [vmem:[%s4 + $0x84] sm:$0xf] %v1543
  %1672 = vst [vmem:[%s4 + $0x88] sm:$0xf] %v1544
  %1673 = vst [vmem:[%s4 + $0x8c] sm:$0xf] %v1545
  %1674 = vst [vmem:[%s4 + $0x90] sm:$0xf] %v1546
  %1675 = vst [vmem:[%s4 + $0x94] sm:$0xf] %v1547
  %1676 = vst [vmem:[%s4 + $0x98] sm:$0xf] %v1548
  %1677 = vst [vmem:[%s4 + $0x9c] sm:$0xf] %v1549
  %1678 = vst [vmem:[%s4 + $0xa0] sm:$0xf] %v1550
  %1679 = vst [vmem:[%s4 + $0xa4] sm:$0xf] %v1551
  %1680 = vst [vmem:[%s4 + $0xa8] sm:$0xf] %v1552
  %1681 = vst [vmem:[%s4 + $0xac] sm:$0xf] %v1553
  %1682 = vst [vmem:[%s4 + $0xb0] sm:$0xf] %v1554
  %1683 = vst [vmem:[%s4 + $0xb4] sm:$0xf] %v1555
  %1684 = vst [vmem:[%s4 + $0xb8] sm:$0xf] %v1556
  %1685 = vst [vmem:[%s4 + $0xbc] sm:$0xf] %v1557
  %1686 = vst [vmem:[%s4 + $0xc0] sm:$0xf] %v1558
  %1687 = vst [vmem:[%s4 + $0xc4] sm:$0xf] %v1559
  %1688 = vst [vmem:[%s4 + $0xc8] sm:$0xf] %v1560
  %1689 = vst [vmem:[%s4 + $0xcc] sm:$0xf] %v1561
  %1690 = vst [vmem:[%s4 + $0xd0] sm:$0xf] %v1562
  %1691 = vst [vmem:[%s4 + $0xd4] sm:$0xf] %v1563
  %1692 = vst [vmem:[%s4 + $0xd8] sm:$0xf] %v1564
  %1693 = vst [vmem:[%s4 + $0xdc] sm:$0xf] %v1565
  %1694 = vst [vmem:[%s4 + $0xe0] sm:$0xf] %v1566
  %1695 = vst [vmem:[%s4 + $0xe4] sm:$0xf] %v1567
  %1696 = vst [vmem:[%s4 + $0xe8] sm:$0xf] %v1568
  %1697 = vst [vmem:[%s4 + $0xec] sm:$0xf] %v1569
  %1698 = vst [vmem:[%s4 + $0xf0] sm:$0xf] %v1570
  %1699 = vst [vmem:[%s4 + $0xf4] sm:$0xf] %v1571
  %1700 = vst [vmem:[%s4 + $0xf8] sm:$0xf] %v1572
  %1701 = vst [vmem:[%s4 + $0xfc] sm:$0xf] %v1573
  // Predicated region
  $region18: #{generator_forward.7} parent=0 // pred_check
    _
  $region19: #{generator_forward.7} parent=0 // pred_check_branch
    %1703 = sbr.rel (0) target = $region21
  $region20: #{generator_forward.7} parent=0 // pred_region
    _
  $region21: #{generator_forward.7} parent=0 // pred_fallthru
    _
  // Predicated region
  $region22: #{generator_forward.7} parent=0 // pred_check
    _
  $region23: #{generator_forward.7} parent=0 // pred_check_branch
    %1705 = sbr.rel (0) target = $region25
  $region24: #{generator_forward.7} parent=0 // pred_region
    _
  $region25: #{generator_forward.7} parent=0 // pred_fallthru
    _

// kernel: generator_forward.8
$region0: #{generator_forward.8}
  #allocation0 [shape = 'u32[]', space=smem, size = 0x4, offset = 0x4, fixed_abs, tag = 'smem constant byte address 0x4 - core index']
  #allocation1 [shape = 'u32[144,128]{1,0:T(1,128)}', space=vmem, size = 0x12000, scoped, tag = 'internal scratch']
  %s0 = inlined_call_operand.vmem [shape: bf16[128,2048], index: 0, kind: input, shape index: {}]
  %s1 = inlined_call_operand.vmem [shape: bf16[2048,128], index: 1, kind: input, shape index: {}]
  %s2 = inlined_call_operand.vmem [shape: f32[1,128], index: 2, kind: input, shape index: {}]
  %s3 = inlined_call_operand.vmem [shape: f32[1,128], index: 3, kind: input, shape index: {}]
  %s4 = inlined_call_operand.vmem [shape: bf16[128,128], index: 4, kind: output, shape index: {}]
  %s5 = sld [smem:[#allocation0]]
  $region26: #{generator_forward.8} parent=0
    _
  %s7 = ssub.s32 1, %s5
  %s8 = scalar_select 0, %s7, %s5
  // Predicated region
  $region2: #{generator_forward.8} parent=0 // pred_check
    _
  $region3: #{generator_forward.8} parent=0 // pred_check_branch
    %10 = sbr.rel (0) target = $region5
  $region4: #{generator_forward.8} parent=0 // pred_region
    _
  $region5: #{generator_forward.8} parent=0 // pred_fallthru
    _
  // Predicated region
  $region6: #{generator_forward.8} parent=0 // pred_check
    _
  $region7: #{generator_forward.8} parent=0 // pred_check_branch
    %12 = sbr.rel (0) target = $region9
  $region8: #{generator_forward.8} parent=0 // pred_region
    _
  $region9: #{generator_forward.8} parent=0 // pred_fallthru
    _
  // Predicated region
  $region10: #{generator_forward.8} parent=0 // pred_check
    _
  $region11: #{generator_forward.8} parent=0 // pred_check_branch
    %14 = sbr.rel (0) target = $region13
  $region12: #{generator_forward.8} parent=0 // pred_region
    _
  $region13: #{generator_forward.8} parent=0 // pred_fallthru
    _
  // Predicated region
  $region14: #{generator_forward.8} parent=0 // pred_check
    _
  $region15: #{generator_forward.8} parent=0 // pred_check_branch
    %16 = sbr.rel (0) target = $region17
  $region16: #{generator_forward.8} parent=0 // pred_region
    _
  $region17: #{generator_forward.8} parent=0 // pred_fallthru
    _
  %v18 = vld [vmem:[%s0] sm:$0xff]
  %v19 = vld [vmem:[%s0 + $0x8] sm:$0xff]
  %v20 = vld [vmem:[%s0 + $0x10] sm:$0xff]
  %v21 = vld [vmem:[%s0 + $0x18] sm:$0xff]
  %v22 = vld [vmem:[%s0 + $0x20] sm:$0xff]
  %v23 = vld [vmem:[%s0 + $0x28] sm:$0xff]
  %v24 = vld [vmem:[%s0 + $0x30] sm:$0xff]
  %v25 = vld [vmem:[%s0 + $0x38] sm:$0xff]
  %v26 = vld [vmem:[%s0 + $0x40] sm:$0xff]
  %v27 = vld [vmem:[%s0 + $0x48] sm:$0xff]
  %v28 = vld [vmem:[%s0 + $0x50] sm:$0xff]
  %v29 = vld [vmem:[%s0 + $0x58] sm:$0xff]
  %v30 = vld [vmem:[%s0 + $0x60] sm:$0xff]
  %v31 = vld [vmem:[%s0 + $0x68] sm:$0xff]
  %v32 = vld [vmem:[%s0 + $0x70] sm:$0xff]
  %v33 = vld [vmem:[%s0 + $0x78] sm:$0xff]
  %v34 = vld [vmem:[%s0 + $0x80] sm:$0xff]
  %v35 = vld [vmem:[%s0 + $0x88] sm:$0xff]
  %v36 = vld [vmem:[%s0 + $0x90] sm:$0xff]
  %v37 = vld [vmem:[%s0 + $0x98] sm:$0xff]
  %v38 = vld [vmem:[%s0 + $0xa0] sm:$0xff]
  %v39 = vld [vmem:[%s0 + $0xa8] sm:$0xff]
  %v40 = vld [vmem:[%s0 + $0xb0] sm:$0xff]
  %v41 = vld [vmem:[%s0 + $0xb8] sm:$0xff]
  %v42 = vld [vmem:[%s0 + $0xc0] sm:$0xff]
  %v43 = vld [vmem:[%s0 + $0xc8] sm:$0xff]
  %v44 = vld [vmem:[%s0 + $0xd0] sm:$0xff]
  %v45 = vld [vmem:[%s0 + $0xd8] sm:$0xff]
  %v46 = vld [vmem:[%s0 + $0xe0] sm:$0xff]
  %v47 = vld [vmem:[%s0 + $0xe8] sm:$0xff]
  %v48 = vld [vmem:[%s0 + $0xf0] sm:$0xff]
  %v49 = vld [vmem:[%s0 + $0xf8] sm:$0xff]
  %v50 = vld [vmem:[%s0 + $0x100] sm:$0xff]
  %v51 = vld [vmem:[%s0 + $0x108] sm:$0xff]
  %v52 = vld [vmem:[%s0 + $0x110] sm:$0xff]
  %v53 = vld [vmem:[%s0 + $0x118] sm:$0xff]
  %v54 = vld [vmem:[%s0 + $0x120] sm:$0xff]
  %v55 = vld [vmem:[%s0 + $0x128] sm:$0xff]
  %v56 = vld [vmem:[%s0 + $0x130] sm:$0xff]
  %v57 = vld [vmem:[%s0 + $0x138] sm:$0xff]
  %v58 = vld [vmem:[%s0 + $0x140] sm:$0xff]
  %v59 = vld [vmem:[%s0 + $0x148] sm:$0xff]
  %v60 = vld [vmem:[%s0 + $0x150] sm:$0xff]
  %v61 = vld [vmem:[%s0 + $0x158] sm:$0xff]
  %v62 = vld [vmem:[%s0 + $0x160] sm:$0xff]
  %v63 = vld [vmem:[%s0 + $0x168] sm:$0xff]
  %v64 = vld [vmem:[%s0 + $0x170] sm:$0xff]
  %v65 = vld [vmem:[%s0 + $0x178] sm:$0xff]
  %v66 = vld [vmem:[%s0 + $0x180] sm:$0xff]
  %v67 = vld [vmem:[%s0 + $0x188] sm:$0xff]
  %v68 = vld [vmem:[%s0 + $0x190] sm:$0xff]
  %v69 = vld [vmem:[%s0 + $0x198] sm:$0xff]
  %v70 = vld [vmem:[%s0 + $0x1a0] sm:$0xff]
  %v71 = vld [vmem:[%s0 + $0x1a8] sm:$0xff]
  %v72 = vld [vmem:[%s0 + $0x1b0] sm:$0xff]
  %v73 = vld [vmem:[%s0 + $0x1b8] sm:$0xff]
  %v74 = vld [vmem:[%s0 + $0x1c0] sm:$0xff]
  %v75 = vld [vmem:[%s0 + $0x1c8] sm:$0xff]
  %v76 = vld [vmem:[%s0 + $0x1d0] sm:$0xff]
  %v77 = vld [vmem:[%s0 + $0x1d8] sm:$0xff]
  %v78 = vld [vmem:[%s0 + $0x1e0] sm:$0xff]
  %v79 = vld [vmem:[%s0 + $0x1e8] sm:$0xff]
  %v80 = vld [vmem:[%s0 + $0x1f0] sm:$0xff]
  %v81 = vld [vmem:[%s0 + $0x1f8] sm:$0xff]
  %v82 = vld [vmem:[%s0 + $0x200] sm:$0xff]
  %v83 = vld [vmem:[%s0 + $0x208] sm:$0xff]
  %v84 = vld [vmem:[%s0 + $0x210] sm:$0xff]
  %v85 = vld [vmem:[%s0 + $0x218] sm:$0xff]
  %v86 = vld [vmem:[%s0 + $0x220] sm:$0xff]
  %v87 = vld [vmem:[%s0 + $0x228] sm:$0xff]
  %v88 = vld [vmem:[%s0 + $0x230] sm:$0xff]
  %v89 = vld [vmem:[%s0 + $0x238] sm:$0xff]
  %v90 = vld [vmem:[%s0 + $0x240] sm:$0xff]
  %v91 = vld [vmem:[%s0 + $0x248] sm:$0xff]
  %v92 = vld [vmem:[%s0 + $0x250] sm:$0xff]
  %v93 = vld [vmem:[%s0 + $0x258] sm:$0xff]
  %v94 = vld [vmem:[%s0 + $0x260] sm:$0xff]
  %v95 = vld [vmem:[%s0 + $0x268] sm:$0xff]
  %v96 = vld [vmem:[%s0 + $0x270] sm:$0xff]
  %v97 = vld [vmem:[%s0 + $0x278] sm:$0xff]
  %v98 = vld [vmem:[%s0 + $0x280] sm:$0xff]
  %v99 = vld [vmem:[%s0 + $0x288] sm:$0xff]
  %v100 = vld [vmem:[%s0 + $0x290] sm:$0xff]
  %v101 = vld [vmem:[%s0 + $0x298] sm:$0xff]
  %v102 = vld [vmem:[%s0 + $0x2a0] sm:$0xff]
  %v103 = vld [vmem:[%s0 + $0x2a8] sm:$0xff]
  %v104 = vld [vmem:[%s0 + $0x2b0] sm:$0xff]
  %v105 = vld [vmem:[%s0 + $0x2b8] sm:$0xff]
  %v106 = vld [vmem:[%s0 + $0x2c0] sm:$0xff]
  %v107 = vld [vmem:[%s0 + $0x2c8] sm:$0xff]
  %v108 = vld [vmem:[%s0 + $0x2d0] sm:$0xff]
  %v109 = vld [vmem:[%s0 + $0x2d8] sm:$0xff]
  %v110 = vld [vmem:[%s0 + $0x2e0] sm:$0xff]
  %v111 = vld [vmem:[%s0 + $0x2e8] sm:$0xff]
  %v112 = vld [vmem:[%s0 + $0x2f0] sm:$0xff]
  %v113 = vld [vmem:[%s0 + $0x2f8] sm:$0xff]
  %v114 = vld [vmem:[%s0 + $0x300] sm:$0xff]
  %v115 = vld [vmem:[%s0 + $0x308] sm:$0xff]
  %v116 = vld [vmem:[%s0 + $0x310] sm:$0xff]
  %v117 = vld [vmem:[%s0 + $0x318] sm:$0xff]
  %v118 = vld [vmem:[%s0 + $0x320] sm:$0xff]
  %v119 = vld [vmem:[%s0 + $0x328] sm:$0xff]
  %v120 = vld [vmem:[%s0 + $0x330] sm:$0xff]
  %v121 = vld [vmem:[%s0 + $0x338] sm:$0xff]
  %v122 = vld [vmem:[%s0 + $0x340] sm:$0xff]
  %v123 = vld [vmem:[%s0 + $0x348] sm:$0xff]
  %v124 = vld [vmem:[%s0 + $0x350] sm:$0xff]
  %v125 = vld [vmem:[%s0 + $0x358] sm:$0xff]
  %v126 = vld [vmem:[%s0 + $0x360] sm:$0xff]
  %v127 = vld [vmem:[%s0 + $0x368] sm:$0xff]
  %v128 = vld [vmem:[%s0 + $0x370] sm:$0xff]
  %v129 = vld [vmem:[%s0 + $0x378] sm:$0xff]
  %v130 = vld [vmem:[%s0 + $0x380] sm:$0xff]
  %v131 = vld [vmem:[%s0 + $0x388] sm:$0xff]
  %v132 = vld [vmem:[%s0 + $0x390] sm:$0xff]
  %v133 = vld [vmem:[%s0 + $0x398] sm:$0xff]
  %v134 = vld [vmem:[%s0 + $0x3a0] sm:$0xff]
  %v135 = vld [vmem:[%s0 + $0x3a8] sm:$0xff]
  %v136 = vld [vmem:[%s0 + $0x3b0] sm:$0xff]
  %v137 = vld [vmem:[%s0 + $0x3b8] sm:$0xff]
  %v138 = vld [vmem:[%s0 + $0x3c0] sm:$0xff]
  %v139 = vld [vmem:[%s0 + $0x3c8] sm:$0xff]
  %v140 = vld [vmem:[%s0 + $0x3d0] sm:$0xff]
  %v141 = vld [vmem:[%s0 + $0x3d8] sm:$0xff]
  %v142 = vld [vmem:[%s0 + $0x3e0] sm:$0xff]
  %v143 = vld [vmem:[%s0 + $0x3e8] sm:$0xff]
  %v144 = vld [vmem:[%s0 + $0x3f0] sm:$0xff]
  %v145 = vld [vmem:[%s0 + $0x3f8] sm:$0xff]
  %v146 = vld [vmem:[%s1] sm:$0xf]
  %v147 = vld [vmem:[%s1 + $0x4] sm:$0xf]
  %v148 = vld [vmem:[%s1 + $0x8] sm:$0xf]
  %v149 = vld [vmem:[%s1 + $0xc] sm:$0xf]
  %v150 = vld [vmem:[%s1 + $0x10] sm:$0xf]
  %v151 = vld [vmem:[%s1 + $0x14] sm:$0xf]
  %v152 = vld [vmem:[%s1 + $0x18] sm:$0xf]
  %v153 = vld [vmem:[%s1 + $0x1c] sm:$0xf]
  %v154 = vld [vmem:[%s1 + $0x20] sm:$0xf]
  %v155 = vld [vmem:[%s1 + $0x24] sm:$0xf]
  %v156 = vld [vmem:[%s1 + $0x28] sm:$0xf]
  %v157 = vld [vmem:[%s1 + $0x2c] sm:$0xf]
  %v158 = vld [vmem:[%s1 + $0x30] sm:$0xf]
  %v159 = vld [vmem:[%s1 + $0x34] sm:$0xf]
  %v160 = vld [vmem:[%s1 + $0x38] sm:$0xf]
  %v161 = vld [vmem:[%s1 + $0x3c] sm:$0xf]
  %v162 = vld [vmem:[%s1 + $0x40] sm:$0xf]
  %v163 = vld [vmem:[%s1 + $0x44] sm:$0xf]
  %v164 = vld [vmem:[%s1 + $0x48] sm:$0xf]
  %v165 = vld [vmem:[%s1 + $0x4c] sm:$0xf]
  %v166 = vld [vmem:[%s1 + $0x50] sm:$0xf]
  %v167 = vld [vmem:[%s1 + $0x54] sm:$0xf]
  %v168 = vld [vmem:[%s1 + $0x58] sm:$0xf]
  %v169 = vld [vmem:[%s1 + $0x5c] sm:$0xf]
  %v170 = vld [vmem:[%s1 + $0x60] sm:$0xf]
  %v171 = vld [vmem:[%s1 + $0x64] sm:$0xf]
  %v172 = vld [vmem:[%s1 + $0x68] sm:$0xf]
  %v173 = vld [vmem:[%s1 + $0x6c] sm:$0xf]
  %v174 = vld [vmem:[%s1 + $0x70] sm:$0xf]
  %v175 = vld [vmem:[%s1 + $0x74] sm:$0xf]
  %v176 = vld [vmem:[%s1 + $0x78] sm:$0xf]
  %v177 = vld [vmem:[%s1 + $0x7c] sm:$0xf]
  %v178 = vld [vmem:[%s1 + $0x80] sm:$0xf]
  %v179 = vld [vmem:[%s1 + $0x84] sm:$0xf]
  %v180 = vld [vmem:[%s1 + $0x88] sm:$0xf]
  %v181 = vld [vmem:[%s1 + $0x8c] sm:$0xf]
  %v182 = vld [vmem:[%s1 + $0x90] sm:$0xf]
  %v183 = vld [vmem:[%s1 + $0x94] sm:$0xf]
  %v184 = vld [vmem:[%s1 + $0x98] sm:$0xf]
  %v185 = vld [vmem:[%s1 + $0x9c] sm:$0xf]
  %v186 = vld [vmem:[%s1 + $0xa0] sm:$0xf]
  %v187 = vld [vmem:[%s1 + $0xa4] sm:$0xf]
  %v188 = vld [vmem:[%s1 + $0xa8] sm:$0xf]
  %v189 = vld [vmem:[%s1 + $0xac] sm:$0xf]
  %v190 = vld [vmem:[%s1 + $0xb0] sm:$0xf]
  %v191 = vld [vmem:[%s1 + $0xb4] sm:$0xf]
  %v192 = vld [vmem:[%s1 + $0xb8] sm:$0xf]
  %v193 = vld [vmem:[%s1 + $0xbc] sm:$0xf]
  %v194 = vld [vmem:[%s1 + $0xc0] sm:$0xf]
  %v195 = vld [vmem:[%s1 + $0xc4] sm:$0xf]
  %v196 = vld [vmem:[%s1 + $0xc8] sm:$0xf]
  %v197 = vld [vmem:[%s1 + $0xcc] sm:$0xf]
  %v198 = vld [vmem:[%s1 + $0xd0] sm:$0xf]
  %v199 = vld [vmem:[%s1 + $0xd4] sm:$0xf]
  %v200 = vld [vmem:[%s1 + $0xd8] sm:$0xf]
  %v201 = vld [vmem:[%s1 + $0xdc] sm:$0xf]
  %v202 = vld [vmem:[%s1 + $0xe0] sm:$0xf]
  %v203 = vld [vmem:[%s1 + $0xe4] sm:$0xf]
  %v204 = vld [vmem:[%s1 + $0xe8] sm:$0xf]
  %v205 = vld [vmem:[%s1 + $0xec] sm:$0xf]
  %v206 = vld [vmem:[%s1 + $0xf0] sm:$0xf]
  %v207 = vld [vmem:[%s1 + $0xf4] sm:$0xf]
  %v208 = vld [vmem:[%s1 + $0xf8] sm:$0xf]
  %v209 = vld [vmem:[%s1 + $0xfc] sm:$0xf]
  %v210 = vld [vmem:[%s1 + $0x100] sm:$0xf]
  %v211 = vld [vmem:[%s1 + $0x104] sm:$0xf]
  %v212 = vld [vmem:[%s1 + $0x108] sm:$0xf]
  %v213 = vld [vmem:[%s1 + $0x10c] sm:$0xf]
  %v214 = vld [vmem:[%s1 + $0x110] sm:$0xf]
  %v215 = vld [vmem:[%s1 + $0x114] sm:$0xf]
  %v216 = vld [vmem:[%s1 + $0x118] sm:$0xf]
  %v217 = vld [vmem:[%s1 + $0x11c] sm:$0xf]
  %v218 = vld [vmem:[%s1 + $0x120] sm:$0xf]
  %v219 = vld [vmem:[%s1 + $0x124] sm:$0xf]
  %v220 = vld [vmem:[%s1 + $0x128] sm:$0xf]
  %v221 = vld [vmem:[%s1 + $0x12c] sm:$0xf]
  %v222 = vld [vmem:[%s1 + $0x130] sm:$0xf]
  %v223 = vld [vmem:[%s1 + $0x134] sm:$0xf]
  %v224 = vld [vmem:[%s1 + $0x138] sm:$0xf]
  %v225 = vld [vmem:[%s1 + $0x13c] sm:$0xf]
  %v226 = vld [vmem:[%s1 + $0x140] sm:$0xf]
  %v227 = vld [vmem:[%s1 + $0x144] sm:$0xf]
  %v228 = vld [vmem:[%s1 + $0x148] sm:$0xf]
  %v229 = vld [vmem:[%s1 + $0x14c] sm:$0xf]
  %v230 = vld [vmem:[%s1 + $0x150] sm:$0xf]
  %v231 = vld [vmem:[%s1 + $0x154] sm:$0xf]
  %v232 = vld [vmem:[%s1 + $0x158] sm:$0xf]
  %v233 = vld [vmem:[%s1 + $0x15c] sm:$0xf]
  %v234 = vld [vmem:[%s1 + $0x160] sm:$0xf]
  %v235 = vld [vmem:[%s1 + $0x164] sm:$0xf]
  %v236 = vld [vmem:[%s1 + $0x168] sm:$0xf]
  %v237 = vld [vmem:[%s1 + $0x16c] sm:$0xf]
  %v238 = vld [vmem:[%s1 + $0x170] sm:$0xf]
  %v239 = vld [vmem:[%s1 + $0x174] sm:$0xf]
  %v240 = vld [vmem:[%s1 + $0x178] sm:$0xf]
  %v241 = vld [vmem:[%s1 + $0x17c] sm:$0xf]
  %v242 = vld [vmem:[%s1 + $0x180] sm:$0xf]
  %v243 = vld [vmem:[%s1 + $0x184] sm:$0xf]
  %v244 = vld [vmem:[%s1 + $0x188] sm:$0xf]
  %v245 = vld [vmem:[%s1 + $0x18c] sm:$0xf]
  %v246 = vld [vmem:[%s1 + $0x190] sm:$0xf]
  %v247 = vld [vmem:[%s1 + $0x194] sm:$0xf]
  %v248 = vld [vmem:[%s1 + $0x198] sm:$0xf]
  %v249 = vld [vmem:[%s1 + $0x19c] sm:$0xf]
  %v250 = vld [vmem:[%s1 + $0x1a0] sm:$0xf]
  %v251 = vld [vmem:[%s1 + $0x1a4] sm:$0xf]
  %v252 = vld [vmem:[%s1 + $0x1a8] sm:$0xf]
  %v253 = vld [vmem:[%s1 + $0x1ac] sm:$0xf]
  %v254 = vld [vmem:[%s1 + $0x1b0] sm:$0xf]
  %v255 = vld [vmem:[%s1 + $0x1b4] sm:$0xf]
  %v256 = vld [vmem:[%s1 + $0x1b8] sm:$0xf]
  %v257 = vld [vmem:[%s1 + $0x1bc] sm:$0xf]
  %v258 = vld [vmem:[%s1 + $0x1c0] sm:$0xf]
  %v259 = vld [vmem:[%s1 + $0x1c4] sm:$0xf]
  %v260 = vld [vmem:[%s1 + $0x1c8] sm:$0xf]
  %v261 = vld [vmem:[%s1 + $0x1cc] sm:$0xf]
  %v262 = vld [vmem:[%s1 + $0x1d0] sm:$0xf]
  %v263 = vld [vmem:[%s1 + $0x1d4] sm:$0xf]
  %v264 = vld [vmem:[%s1 + $0x1d8] sm:$0xf]
  %v265 = vld [vmem:[%s1 + $0x1dc] sm:$0xf]
  %v266 = vld [vmem:[%s1 + $0x1e0] sm:$0xf]
  %v267 = vld [vmem:[%s1 + $0x1e4] sm:$0xf]
  %v268 = vld [vmem:[%s1 + $0x1e8] sm:$0xf]
  %v269 = vld [vmem:[%s1 + $0x1ec] sm:$0xf]
  %v270 = vld [vmem:[%s1 + $0x1f0] sm:$0xf]
  %v271 = vld [vmem:[%s1 + $0x1f4] sm:$0xf]
  %v272 = vld [vmem:[%s1 + $0x1f8] sm:$0xf]
  %v273 = vld [vmem:[%s1 + $0x1fc] sm:$0xf]
  %v274 = vld [vmem:[%s1 + $0x200] sm:$0xf]
  %v275 = vld [vmem:[%s1 + $0x204] sm:$0xf]
  %v276 = vld [vmem:[%s1 + $0x208] sm:$0xf]
  %v277 = vld [vmem:[%s1 + $0x20c] sm:$0xf]
  %v278 = vld [vmem:[%s1 + $0x210] sm:$0xf]
  %v279 = vld [vmem:[%s1 + $0x214] sm:$0xf]
  %v280 = vld [vmem:[%s1 + $0x218] sm:$0xf]
  %v281 = vld [vmem:[%s1 + $0x21c] sm:$0xf]
  %v282 = vld [vmem:[%s1 + $0x220] sm:$0xf]
  %v283 = vld [vmem:[%s1 + $0x224] sm:$0xf]
  %v284 = vld [vmem:[%s1 + $0x228] sm:$0xf]
  %v285 = vld [vmem:[%s1 + $0x22c] sm:$0xf]
  %v286 = vld [vmem:[%s1 + $0x230] sm:$0xf]
  %v287 = vld [vmem:[%s1 + $0x234] sm:$0xf]
  %v288 = vld [vmem:[%s1 + $0x238] sm:$0xf]
  %v289 = vld [vmem:[%s1 + $0x23c] sm:$0xf]
  %v290 = vld [vmem:[%s1 + $0x240] sm:$0xf]
  %v291 = vld [vmem:[%s1 + $0x244] sm:$0xf]
  %v292 = vld [vmem:[%s1 + $0x248] sm:$0xf]
  %v293 = vld [vmem:[%s1 + $0x24c] sm:$0xf]
  %v294 = vld [vmem:[%s1 + $0x250] sm:$0xf]
  %v295 = vld [vmem:[%s1 + $0x254] sm:$0xf]
  %v296 = vld [vmem:[%s1 + $0x258] sm:$0xf]
  %v297 = vld [vmem:[%s1 + $0x25c] sm:$0xf]
  %v298 = vld [vmem:[%s1 + $0x260] sm:$0xf]
  %v299 = vld [vmem:[%s1 + $0x264] sm:$0xf]
  %v300 = vld [vmem:[%s1 + $0x268] sm:$0xf]
  %v301 = vld [vmem:[%s1 + $0x26c] sm:$0xf]
  %v302 = vld [vmem:[%s1 + $0x270] sm:$0xf]
  %v303 = vld [vmem:[%s1 + $0x274] sm:$0xf]
  %v304 = vld [vmem:[%s1 + $0x278] sm:$0xf]
  %v305 = vld [vmem:[%s1 + $0x27c] sm:$0xf]
  %v306 = vld [vmem:[%s1 + $0x280] sm:$0xf]
  %v307 = vld [vmem:[%s1 + $0x284] sm:$0xf]
  %v308 = vld [vmem:[%s1 + $0x288] sm:$0xf]
  %v309 = vld [vmem:[%s1 + $0x28c] sm:$0xf]
  %v310 = vld [vmem:[%s1 + $0x290] sm:$0xf]
  %v311 = vld [vmem:[%s1 + $0x294] sm:$0xf]
  %v312 = vld [vmem:[%s1 + $0x298] sm:$0xf]
  %v313 = vld [vmem:[%s1 + $0x29c] sm:$0xf]
  %v314 = vld [vmem:[%s1 + $0x2a0] sm:$0xf]
  %v315 = vld [vmem:[%s1 + $0x2a4] sm:$0xf]
  %v316 = vld [vmem:[%s1 + $0x2a8] sm:$0xf]
  %v317 = vld [vmem:[%s1 + $0x2ac] sm:$0xf]
  %v318 = vld [vmem:[%s1 + $0x2b0] sm:$0xf]
  %v319 = vld [vmem:[%s1 + $0x2b4] sm:$0xf]
  %v320 = vld [vmem:[%s1 + $0x2b8] sm:$0xf]
  %v321 = vld [vmem:[%s1 + $0x2bc] sm:$0xf]
  %v322 = vld [vmem:[%s1 + $0x2c0] sm:$0xf]
  %v323 = vld [vmem:[%s1 + $0x2c4] sm:$0xf]
  %v324 = vld [vmem:[%s1 + $0x2c8] sm:$0xf]
  %v325 = vld [vmem:[%s1 + $0x2cc] sm:$0xf]
  %v326 = vld [vmem:[%s1 + $0x2d0] sm:$0xf]
  %v327 = vld [vmem:[%s1 + $0x2d4] sm:$0xf]
  %v328 = vld [vmem:[%s1 + $0x2d8] sm:$0xf]
  %v329 = vld [vmem:[%s1 + $0x2dc] sm:$0xf]
  %v330 = vld [vmem:[%s1 + $0x2e0] sm:$0xf]
  %v331 = vld [vmem:[%s1 + $0x2e4] sm:$0xf]
  %v332 = vld [vmem:[%s1 + $0x2e8] sm:$0xf]
  %v333 = vld [vmem:[%s1 + $0x2ec] sm:$0xf]
  %v334 = vld [vmem:[%s1 + $0x2f0] sm:$0xf]
  %v335 = vld [vmem:[%s1 + $0x2f4] sm:$0xf]
  %v336 = vld [vmem:[%s1 + $0x2f8] sm:$0xf]
  %v337 = vld [vmem:[%s1 + $0x2fc] sm:$0xf]
  %v338 = vld [vmem:[%s1 + $0x300] sm:$0xf]
  %v339 = vld [vmem:[%s1 + $0x304] sm:$0xf]
  %v340 = vld [vmem:[%s1 + $0x308] sm:$0xf]
  %v341 = vld [vmem:[%s1 + $0x30c] sm:$0xf]
  %v342 = vld [vmem:[%s1 + $0x310] sm:$0xf]
  %v343 = vld [vmem:[%s1 + $0x314] sm:$0xf]
  %v344 = vld [vmem:[%s1 + $0x318] sm:$0xf]
  %v345 = vld [vmem:[%s1 + $0x31c] sm:$0xf]
  %v346 = vld [vmem:[%s1 + $0x320] sm:$0xf]
  %v347 = vld [vmem:[%s1 + $0x324] sm:$0xf]
  %v348 = vld [vmem:[%s1 + $0x328] sm:$0xf]
  %v349 = vld [vmem:[%s1 + $0x32c] sm:$0xf]
  %v350 = vld [vmem:[%s1 + $0x330] sm:$0xf]
  %v351 = vld [vmem:[%s1 + $0x334] sm:$0xf]
  %v352 = vld [vmem:[%s1 + $0x338] sm:$0xf]
  %v353 = vld [vmem:[%s1 + $0x33c] sm:$0xf]
  %v354 = vld [vmem:[%s1 + $0x340] sm:$0xf]
  %v355 = vld [vmem:[%s1 + $0x344] sm:$0xf]
  %v356 = vld [vmem:[%s1 + $0x348] sm:$0xf]
  %v357 = vld [vmem:[%s1 + $0x34c] sm:$0xf]
  %v358 = vld [vmem:[%s1 + $0x350] sm:$0xf]
  %v359 = vld [vmem:[%s1 + $0x354] sm:$0xf]
  %v360 = vld [vmem:[%s1 + $0x358] sm:$0xf]
  %v361 = vld [vmem:[%s1 + $0x35c] sm:$0xf]
  %v362 = vld [vmem:[%s1 + $0x360] sm:$0xf]
  %v363 = vld [vmem:[%s1 + $0x364] sm:$0xf]
  %v364 = vld [vmem:[%s1 + $0x368] sm:$0xf]
  %v365 = vld [vmem:[%s1 + $0x36c] sm:$0xf]
  %v366 = vld [vmem:[%s1 + $0x370] sm:$0xf]
  %v367 = vld [vmem:[%s1 + $0x374] sm:$0xf]
  %v368 = vld [vmem:[%s1 + $0x378] sm:$0xf]
  %v369 = vld [vmem:[%s1 + $0x37c] sm:$0xf]
  %v370 = vld [vmem:[%s1 + $0x380] sm:$0xf]
  %v371 = vld [vmem:[%s1 + $0x384] sm:$0xf]
  %v372 = vld [vmem:[%s1 + $0x388] sm:$0xf]
  %v373 = vld [vmem:[%s1 + $0x38c] sm:$0xf]
  %v374 = vld [vmem:[%s1 + $0x390] sm:$0xf]
  %v375 = vld [vmem:[%s1 + $0x394] sm:$0xf]
  %v376 = vld [vmem:[%s1 + $0x398] sm:$0xf]
  %v377 = vld [vmem:[%s1 + $0x39c] sm:$0xf]
  %v378 = vld [vmem:[%s1 + $0x3a0] sm:$0xf]
  %v379 = vld [vmem:[%s1 + $0x3a4] sm:$0xf]
  %v380 = vld [vmem:[%s1 + $0x3a8] sm:$0xf]
  %v381 = vld [vmem:[%s1 + $0x3ac] sm:$0xf]
  %v382 = vld [vmem:[%s1 + $0x3b0] sm:$0xf]
  %v383 = vld [vmem:[%s1 + $0x3b4] sm:$0xf]
  %v384 = vld [vmem:[%s1 + $0x3b8] sm:$0xf]
  %v385 = vld [vmem:[%s1 + $0x3bc] sm:$0xf]
  %v386 = vld [vmem:[%s1 + $0x3c0] sm:$0xf]
  %v387 = vld [vmem:[%s1 + $0x3c4] sm:$0xf]
  %v388 = vld [vmem:[%s1 + $0x3c8] sm:$0xf]
  %v389 = vld [vmem:[%s1 + $0x3cc] sm:$0xf]
  %v390 = vld [vmem:[%s1 + $0x3d0] sm:$0xf]
  %v391 = vld [vmem:[%s1 + $0x3d4] sm:$0xf]
  %v392 = vld [vmem:[%s1 + $0x3d8] sm:$0xf]
  %v393 = vld [vmem:[%s1 + $0x3dc] sm:$0xf]
  %v394 = vld [vmem:[%s1 + $0x3e0] sm:$0xf]
  %v395 = vld [vmem:[%s1 + $0x3e4] sm:$0xf]
  %v396 = vld [vmem:[%s1 + $0x3e8] sm:$0xf]
  %v397 = vld [vmem:[%s1 + $0x3ec] sm:$0xf]
  %v398 = vld [vmem:[%s1 + $0x3f0] sm:$0xf]
  %v399 = vld [vmem:[%s1 + $0x3f4] sm:$0xf]
  %v400 = vld [vmem:[%s1 + $0x3f8] sm:$0xf]
  %v401 = vld [vmem:[%s1 + $0x3fc] sm:$0xf]
  %v530 = vunpack.c.l.b16 %v18
  %v531 = vunpack.c.h.b16 %v18
  %v532 = vunpack.c.l.b16 %v19
  %v533 = vunpack.c.h.b16 %v19
  %v534 = vunpack.c.l.b16 %v20
  %v535 = vunpack.c.h.b16 %v20
  %v536 = vunpack.c.l.b16 %v21
  %v537 = vunpack.c.h.b16 %v21
  %v538 = vunpack.c.l.b16 %v22
  %v539 = vunpack.c.h.b16 %v22
  %v540 = vunpack.c.l.b16 %v23
  %v541 = vunpack.c.h.b16 %v23
  %v542 = vunpack.c.l.b16 %v24
  %v543 = vunpack.c.h.b16 %v24
  %v544 = vunpack.c.l.b16 %v25
  %v545 = vunpack.c.h.b16 %v25
  %v546 = vunpack.c.l.b16 %v26
  %v547 = vunpack.c.h.b16 %v26
  %v548 = vunpack.c.l.b16 %v27
  %v549 = vunpack.c.h.b16 %v27
  %v550 = vunpack.c.l.b16 %v28
  %v551 = vunpack.c.h.b16 %v28
  %v552 = vunpack.c.l.b16 %v29
  %v553 = vunpack.c.h.b16 %v29
  %v554 = vunpack.c.l.b16 %v30
  %v555 = vunpack.c.h.b16 %v30
  %v556 = vunpack.c.l.b16 %v31
  %v557 = vunpack.c.h.b16 %v31
  %v558 = vunpack.c.l.b16 %v32
  %v559 = vunpack.c.h.b16 %v32
  %v560 = vunpack.c.l.b16 %v33
  %v561 = vunpack.c.h.b16 %v33
  %v562 = vunpack.c.l.b16 %v34
  %v563 = vunpack.c.h.b16 %v34
  %v564 = vunpack.c.l.b16 %v35
  %v565 = vunpack.c.h.b16 %v35
  %v566 = vunpack.c.l.b16 %v36
  %v567 = vunpack.c.h.b16 %v36
  %v568 = vunpack.c.l.b16 %v37
  %v569 = vunpack.c.h.b16 %v37
  %v570 = vunpack.c.l.b16 %v38
  %v571 = vunpack.c.h.b16 %v38
  %v572 = vunpack.c.l.b16 %v39
  %v573 = vunpack.c.h.b16 %v39
  %v574 = vunpack.c.l.b16 %v40
  %v575 = vunpack.c.h.b16 %v40
  %v576 = vunpack.c.l.b16 %v41
  %v577 = vunpack.c.h.b16 %v41
  %v578 = vunpack.c.l.b16 %v42
  %v579 = vunpack.c.h.b16 %v42
  %v580 = vunpack.c.l.b16 %v43
  %v581 = vunpack.c.h.b16 %v43
  %v582 = vunpack.c.l.b16 %v44
  %v583 = vunpack.c.h.b16 %v44
  %v584 = vunpack.c.l.b16 %v45
  %v585 = vunpack.c.h.b16 %v45
  %v586 = vunpack.c.l.b16 %v46
  %v587 = vunpack.c.h.b16 %v46
  %v588 = vunpack.c.l.b16 %v47
  %v589 = vunpack.c.h.b16 %v47
  %v590 = vunpack.c.l.b16 %v48
  %v591 = vunpack.c.h.b16 %v48
  %v592 = vunpack.c.l.b16 %v49
  %v593 = vunpack.c.h.b16 %v49
  %v594 = vunpack.c.l.b16 %v50
  %v595 = vunpack.c.h.b16 %v50
  %v596 = vunpack.c.l.b16 %v51
  %v597 = vunpack.c.h.b16 %v51
  %v598 = vunpack.c.l.b16 %v52
  %v599 = vunpack.c.h.b16 %v52
  %v600 = vunpack.c.l.b16 %v53
  %v601 = vunpack.c.h.b16 %v53
  %v602 = vunpack.c.l.b16 %v54
  %v603 = vunpack.c.h.b16 %v54
  %v604 = vunpack.c.l.b16 %v55
  %v605 = vunpack.c.h.b16 %v55
  %v606 = vunpack.c.l.b16 %v56
  %v607 = vunpack.c.h.b16 %v56
  %v608 = vunpack.c.l.b16 %v57
  %v609 = vunpack.c.h.b16 %v57
  %v610 = vunpack.c.l.b16 %v58
  %v611 = vunpack.c.h.b16 %v58
  %v612 = vunpack.c.l.b16 %v59
  %v613 = vunpack.c.h.b16 %v59
  %v614 = vunpack.c.l.b16 %v60
  %v615 = vunpack.c.h.b16 %v60
  %v616 = vunpack.c.l.b16 %v61
  %v617 = vunpack.c.h.b16 %v61
  %v618 = vunpack.c.l.b16 %v62
  %v619 = vunpack.c.h.b16 %v62
  %v620 = vunpack.c.l.b16 %v63
  %v621 = vunpack.c.h.b16 %v63
  %v622 = vunpack.c.l.b16 %v64
  %v623 = vunpack.c.h.b16 %v64
  %v624 = vunpack.c.l.b16 %v65
  %v625 = vunpack.c.h.b16 %v65
  %v626 = vunpack.c.l.b16 %v66
  %v627 = vunpack.c.h.b16 %v66
  %v628 = vunpack.c.l.b16 %v67
  %v629 = vunpack.c.h.b16 %v67
  %v630 = vunpack.c.l.b16 %v68
  %v631 = vunpack.c.h.b16 %v68
  %v632 = vunpack.c.l.b16 %v69
  %v633 = vunpack.c.h.b16 %v69
  %v634 = vunpack.c.l.b16 %v70
  %v635 = vunpack.c.h.b16 %v70
  %v636 = vunpack.c.l.b16 %v71
  %v637 = vunpack.c.h.b16 %v71
  %v638 = vunpack.c.l.b16 %v72
  %v639 = vunpack.c.h.b16 %v72
  %v640 = vunpack.c.l.b16 %v73
  %v641 = vunpack.c.h.b16 %v73
  %v642 = vunpack.c.l.b16 %v74
  %v643 = vunpack.c.h.b16 %v74
  %v644 = vunpack.c.l.b16 %v75
  %v645 = vunpack.c.h.b16 %v75
  %v646 = vunpack.c.l.b16 %v76
  %v647 = vunpack.c.h.b16 %v76
  %v648 = vunpack.c.l.b16 %v77
  %v649 = vunpack.c.h.b16 %v77
  %v650 = vunpack.c.l.b16 %v78
  %v651 = vunpack.c.h.b16 %v78
  %v652 = vunpack.c.l.b16 %v79
  %v653 = vunpack.c.h.b16 %v79
  %v654 = vunpack.c.l.b16 %v80
  %v655 = vunpack.c.h.b16 %v80
  %v656 = vunpack.c.l.b16 %v81
  %v657 = vunpack.c.h.b16 %v81
  %v658 = vunpack.c.l.b16 %v82
  %v659 = vunpack.c.h.b16 %v82
  %v660 = vunpack.c.l.b16 %v83
  %v661 = vunpack.c.h.b16 %v83
  %v662 = vunpack.c.l.b16 %v84
  %v663 = vunpack.c.h.b16 %v84
  %v664 = vunpack.c.l.b16 %v85
  %v665 = vunpack.c.h.b16 %v85
  %v666 = vunpack.c.l.b16 %v86
  %v667 = vunpack.c.h.b16 %v86
  %v668 = vunpack.c.l.b16 %v87
  %v669 = vunpack.c.h.b16 %v87
  %v670 = vunpack.c.l.b16 %v88
  %v671 = vunpack.c.h.b16 %v88
  %v672 = vunpack.c.l.b16 %v89
  %v673 = vunpack.c.h.b16 %v89
  %v674 = vunpack.c.l.b16 %v90
  %v675 = vunpack.c.h.b16 %v90
  %v676 = vunpack.c.l.b16 %v91
  %v677 = vunpack.c.h.b16 %v91
  %v678 = vunpack.c.l.b16 %v92
  %v679 = vunpack.c.h.b16 %v92
  %v680 = vunpack.c.l.b16 %v93
  %v681 = vunpack.c.h.b16 %v93
  %v682 = vunpack.c.l.b16 %v94
  %v683 = vunpack.c.h.b16 %v94
  %v684 = vunpack.c.l.b16 %v95
  %v685 = vunpack.c.h.b16 %v95
  %v686 = vunpack.c.l.b16 %v96
  %v687 = vunpack.c.h.b16 %v96
  %v688 = vunpack.c.l.b16 %v97
  %v689 = vunpack.c.h.b16 %v97
  %v690 = vunpack.c.l.b16 %v98
  %v691 = vunpack.c.h.b16 %v98
  %v692 = vunpack.c.l.b16 %v99
  %v693 = vunpack.c.h.b16 %v99
  %v694 = vunpack.c.l.b16 %v100
  %v695 = vunpack.c.h.b16 %v100
  %v696 = vunpack.c.l.b16 %v101
  %v697 = vunpack.c.h.b16 %v101
  %v698 = vunpack.c.l.b16 %v102
  %v699 = vunpack.c.h.b16 %v102
  %v700 = vunpack.c.l.b16 %v103
  %v701 = vunpack.c.h.b16 %v103
  %v702 = vunpack.c.l.b16 %v104
  %v703 = vunpack.c.h.b16 %v104
  %v704 = vunpack.c.l.b16 %v105
  %v705 = vunpack.c.h.b16 %v105
  %v706 = vunpack.c.l.b16 %v106
  %v707 = vunpack.c.h.b16 %v106
  %v708 = vunpack.c.l.b16 %v107
  %v709 = vunpack.c.h.b16 %v107
  %v710 = vunpack.c.l.b16 %v108
  %v711 = vunpack.c.h.b16 %v108
  %v712 = vunpack.c.l.b16 %v109
  %v713 = vunpack.c.h.b16 %v109
  %v714 = vunpack.c.l.b16 %v110
  %v715 = vunpack.c.h.b16 %v110
  %v716 = vunpack.c.l.b16 %v111
  %v717 = vunpack.c.h.b16 %v111
  %v718 = vunpack.c.l.b16 %v112
  %v719 = vunpack.c.h.b16 %v112
  %v720 = vunpack.c.l.b16 %v113
  %v721 = vunpack.c.h.b16 %v113
  %v722 = vunpack.c.l.b16 %v114
  %v723 = vunpack.c.h.b16 %v114
  %v724 = vunpack.c.l.b16 %v115
  %v725 = vunpack.c.h.b16 %v115
  %v726 = vunpack.c.l.b16 %v116
  %v727 = vunpack.c.h.b16 %v116
  %v728 = vunpack.c.l.b16 %v117
  %v729 = vunpack.c.h.b16 %v117
  %v730 = vunpack.c.l.b16 %v118
  %v731 = vunpack.c.h.b16 %v118
  %v732 = vunpack.c.l.b16 %v119
  %v733 = vunpack.c.h.b16 %v119
  %v734 = vunpack.c.l.b16 %v120
  %v735 = vunpack.c.h.b16 %v120
  %v736 = vunpack.c.l.b16 %v121
  %v737 = vunpack.c.h.b16 %v121
  %v738 = vunpack.c.l.b16 %v122
  %v739 = vunpack.c.h.b16 %v122
  %v740 = vunpack.c.l.b16 %v123
  %v741 = vunpack.c.h.b16 %v123
  %v742 = vunpack.c.l.b16 %v124
  %v743 = vunpack.c.h.b16 %v124
  %v744 = vunpack.c.l.b16 %v125
  %v745 = vunpack.c.h.b16 %v125
  %v746 = vunpack.c.l.b16 %v126
  %v747 = vunpack.c.h.b16 %v126
  %v748 = vunpack.c.l.b16 %v127
  %v749 = vunpack.c.h.b16 %v127
  %v750 = vunpack.c.l.b16 %v128
  %v751 = vunpack.c.h.b16 %v128
  %v752 = vunpack.c.l.b16 %v129
  %v753 = vunpack.c.h.b16 %v129
  %v754 = vunpack.c.l.b16 %v130
  %v755 = vunpack.c.h.b16 %v130
  %v756 = vunpack.c.l.b16 %v131
  %v757 = vunpack.c.h.b16 %v131
  %v758 = vunpack.c.l.b16 %v132
  %v759 = vunpack.c.h.b16 %v132
  %v760 = vunpack.c.l.b16 %v133
  %v761 = vunpack.c.h.b16 %v133
  %v762 = vunpack.c.l.b16 %v134
  %v763 = vunpack.c.h.b16 %v134
  %v764 = vunpack.c.l.b16 %v135
  %v765 = vunpack.c.h.b16 %v135
  %v766 = vunpack.c.l.b16 %v136
  %v767 = vunpack.c.h.b16 %v136
  %v768 = vunpack.c.l.b16 %v137
  %v769 = vunpack.c.h.b16 %v137
  %v770 = vunpack.c.l.b16 %v138
  %v771 = vunpack.c.h.b16 %v138
  %v772 = vunpack.c.l.b16 %v139
  %v773 = vunpack.c.h.b16 %v139
  %v774 = vunpack.c.l.b16 %v140
  %v775 = vunpack.c.h.b16 %v140
  %v776 = vunpack.c.l.b16 %v141
  %v777 = vunpack.c.h.b16 %v141
  %v778 = vunpack.c.l.b16 %v142
  %v779 = vunpack.c.h.b16 %v142
  %v780 = vunpack.c.l.b16 %v143
  %v781 = vunpack.c.h.b16 %v143
  %v782 = vunpack.c.l.b16 %v144
  %v783 = vunpack.c.h.b16 %v144
  %v784 = vunpack.c.l.b16 %v145
  %v785 = vunpack.c.h.b16 %v145
  %v786 = vpack.c.b16 %v546, %v530
  %v787 = vpack.c.b16 %v547, %v531
  %v788 = vpack.c.b16 %v548, %v532
  %v789 = vpack.c.b16 %v549, %v533
  %v790 = vpack.c.b16 %v550, %v534
  %v791 = vpack.c.b16 %v551, %v535
  %v792 = vpack.c.b16 %v552, %v536
  %v793 = vpack.c.b16 %v553, %v537
  %v794 = vpack.c.b16 %v554, %v538
  %v795 = vpack.c.b16 %v555, %v539
  %v796 = vpack.c.b16 %v556, %v540
  %v797 = vpack.c.b16 %v557, %v541
  %v798 = vpack.c.b16 %v558, %v542
  %v799 = vpack.c.b16 %v559, %v543
  %v800 = vpack.c.b16 %v560, %v544
  %v801 = vpack.c.b16 %v561, %v545
  %v802 = vpack.c.b16 %v578, %v562
  %v803 = vpack.c.b16 %v579, %v563
  %v804 = vpack.c.b16 %v580, %v564
  %v805 = vpack.c.b16 %v581, %v565
  %v806 = vpack.c.b16 %v582, %v566
  %v807 = vpack.c.b16 %v583, %v567
  %v808 = vpack.c.b16 %v584, %v568
  %v809 = vpack.c.b16 %v585, %v569
  %v810 = vpack.c.b16 %v586, %v570
  %v811 = vpack.c.b16 %v587, %v571
  %v812 = vpack.c.b16 %v588, %v572
  %v813 = vpack.c.b16 %v589, %v573
  %v814 = vpack.c.b16 %v590, %v574
  %v815 = vpack.c.b16 %v591, %v575
  %v816 = vpack.c.b16 %v592, %v576
  %v817 = vpack.c.b16 %v593, %v577
  %v818 = vpack.c.b16 %v610, %v594
  %v819 = vpack.c.b16 %v611, %v595
  %v820 = vpack.c.b16 %v612, %v596
  %v821 = vpack.c.b16 %v613, %v597
  %v822 = vpack.c.b16 %v614, %v598
  %v823 = vpack.c.b16 %v615, %v599
  %v824 = vpack.c.b16 %v616, %v600
  %v825 = vpack.c.b16 %v617, %v601
  %v826 = vpack.c.b16 %v618, %v602
  %v827 = vpack.c.b16 %v619, %v603
  %v828 = vpack.c.b16 %v620, %v604
  %v829 = vpack.c.b16 %v621, %v605
  %v830 = vpack.c.b16 %v622, %v606
  %v831 = vpack.c.b16 %v623, %v607
  %v832 = vpack.c.b16 %v624, %v608
  %v833 = vpack.c.b16 %v625, %v609
  %v834 = vpack.c.b16 %v642, %v626
  %v835 = vpack.c.b16 %v643, %v627
  %v836 = vpack.c.b16 %v644, %v628
  %v837 = vpack.c.b16 %v645, %v629
  %v838 = vpack.c.b16 %v646, %v630
  %v839 = vpack.c.b16 %v647, %v631
  %v840 = vpack.c.b16 %v648, %v632
  %v841 = vpack.c.b16 %v649, %v633
  %v842 = vpack.c.b16 %v650, %v634
  %v843 = vpack.c.b16 %v651, %v635
  %v844 = vpack.c.b16 %v652, %v636
  %v845 = vpack.c.b16 %v653, %v637
  %v846 = vpack.c.b16 %v654, %v638
  %v847 = vpack.c.b16 %v655, %v639
  %v848 = vpack.c.b16 %v656, %v640
  %v849 = vpack.c.b16 %v657, %v641
  %v850 = vpack.c.b16 %v674, %v658
  %v851 = vpack.c.b16 %v675, %v659
  %v852 = vpack.c.b16 %v676, %v660
  %v853 = vpack.c.b16 %v677, %v661
  %v854 = vpack.c.b16 %v678, %v662
  %v855 = vpack.c.b16 %v679, %v663
  %v856 = vpack.c.b16 %v680, %v664
  %v857 = vpack.c.b16 %v681, %v665
  %v858 = vpack.c.b16 %v682, %v666
  %v859 = vpack.c.b16 %v683, %v667
  %v860 = vpack.c.b16 %v684, %v668
  %v861 = vpack.c.b16 %v685, %v669
  %v862 = vpack.c.b16 %v686, %v670
  %v863 = vpack.c.b16 %v687, %v671
  %v864 = vpack.c.b16 %v688, %v672
  %v865 = vpack.c.b16 %v689, %v673
  %v866 = vpack.c.b16 %v706, %v690
  %v867 = vpack.c.b16 %v707, %v691
  %v868 = vpack.c.b16 %v708, %v692
  %v869 = vpack.c.b16 %v709, %v693
  %v870 = vpack.c.b16 %v710, %v694
  %v871 = vpack.c.b16 %v711, %v695
  %v872 = vpack.c.b16 %v712, %v696
  %v873 = vpack.c.b16 %v713, %v697
  %v874 = vpack.c.b16 %v714, %v698
  %v875 = vpack.c.b16 %v715, %v699
  %v876 = vpack.c.b16 %v716, %v700
  %v877 = vpack.c.b16 %v717, %v701
  %v878 = vpack.c.b16 %v718, %v702
  %v879 = vpack.c.b16 %v719, %v703
  %v880 = vpack.c.b16 %v720, %v704
  %v881 = vpack.c.b16 %v721, %v705
  %v882 = vpack.c.b16 %v738, %v722
  %v883 = vpack.c.b16 %v739, %v723
  %v884 = vpack.c.b16 %v740, %v724
  %v885 = vpack.c.b16 %v741, %v725
  %v886 = vpack.c.b16 %v742, %v726
  %v887 = vpack.c.b16 %v743, %v727
  %v888 = vpack.c.b16 %v744, %v728
  %v889 = vpack.c.b16 %v745, %v729
  %v890 = vpack.c.b16 %v746, %v730
  %v891 = vpack.c.b16 %v747, %v731
  %v892 = vpack.c.b16 %v748, %v732
  %v893 = vpack.c.b16 %v749, %v733
  %v894 = vpack.c.b16 %v750, %v734
  %v895 = vpack.c.b16 %v751, %v735
  %v896 = vpack.c.b16 %v752, %v736
  %v897 = vpack.c.b16 %v753, %v737
  %v898 = vpack.c.b16 %v770, %v754
  %v899 = vpack.c.b16 %v771, %v755
  %v900 = vpack.c.b16 %v772, %v756
  %v901 = vpack.c.b16 %v773, %v757
  %v902 = vpack.c.b16 %v774, %v758
  %v903 = vpack.c.b16 %v775, %v759
  %v904 = vpack.c.b16 %v776, %v760
  %v905 = vpack.c.b16 %v777, %v761
  %v906 = vpack.c.b16 %v778, %v762
  %v907 = vpack.c.b16 %v779, %v763
  %v908 = vpack.c.b16 %v780, %v764
  %v909 = vpack.c.b16 %v781, %v765
  %v910 = vpack.c.b16 %v782, %v766
  %v911 = vpack.c.b16 %v783, %v767
  %v912 = vpack.c.b16 %v784, %v768
  %v913 = vpack.c.b16 %v785, %v769
  %v1298 = vunpack.c.l.b16 %v146
  %v1299 = vunpack.c.l.b16 %v147
  %v1300 = vunpack.c.l.b16 %v148
  %v1301 = vunpack.c.l.b16 %v149
  %v1302 = vunpack.c.l.b16 %v150
  %v1303 = vunpack.c.l.b16 %v151
  %v1304 = vunpack.c.l.b16 %v152
  %v1305 = vunpack.c.l.b16 %v153
  %v1306 = vunpack.c.l.b16 %v154
  %v1307 = vunpack.c.l.b16 %v155
  %v1308 = vunpack.c.l.b16 %v156
  %v1309 = vunpack.c.l.b16 %v157
  %v1310 = vunpack.c.l.b16 %v158
  %v1311 = vunpack.c.l.b16 %v159
  %v1312 = vunpack.c.l.b16 %v160
  %v1313 = vunpack.c.l.b16 %v161
  %v1314 = vunpack.c.l.b16 %v162
  %v1315 = vunpack.c.l.b16 %v163
  %v1316 = vunpack.c.l.b16 %v164
  %v1317 = vunpack.c.l.b16 %v165
  %v1318 = vunpack.c.l.b16 %v166
  %v1319 = vunpack.c.l.b16 %v167
  %v1320 = vunpack.c.l.b16 %v168
  %v1321 = vunpack.c.l.b16 %v169
  %v1322 = vunpack.c.l.b16 %v170
  %v1323 = vunpack.c.l.b16 %v171
  %v1324 = vunpack.c.l.b16 %v172
  %v1325 = vunpack.c.l.b16 %v173
  %v1326 = vunpack.c.l.b16 %v174
  %v1327 = vunpack.c.l.b16 %v175
  %v1328 = vunpack.c.l.b16 %v176
  %v1329 = vunpack.c.l.b16 %v177
  %v1330 = vunpack.c.l.b16 %v178
  %v1331 = vunpack.c.l.b16 %v179
  %v1332 = vunpack.c.l.b16 %v180
  %v1333 = vunpack.c.l.b16 %v181
  %v1334 = vunpack.c.l.b16 %v182
  %v1335 = vunpack.c.l.b16 %v183
  %v1336 = vunpack.c.l.b16 %v184
  %v1337 = vunpack.c.l.b16 %v185
  %v1338 = vunpack.c.l.b16 %v186
  %v1339 = vunpack.c.l.b16 %v187
  %v1340 = vunpack.c.l.b16 %v188
  %v1341 = vunpack.c.l.b16 %v189
  %v1342 = vunpack.c.l.b16 %v190
  %v1343 = vunpack.c.l.b16 %v191
  %v1344 = vunpack.c.l.b16 %v192
  %v1345 = vunpack.c.l.b16 %v193
  %v1346 = vunpack.c.l.b16 %v194
  %v1347 = vunpack.c.l.b16 %v195
  %v1348 = vunpack.c.l.b16 %v196
  %v1349 = vunpack.c.l.b16 %v197
  %v1350 = vunpack.c.l.b16 %v198
  %v1351 = vunpack.c.l.b16 %v199
  %v1352 = vunpack.c.l.b16 %v200
  %v1353 = vunpack.c.l.b16 %v201
  %v1354 = vunpack.c.l.b16 %v202
  %v1355 = vunpack.c.l.b16 %v203
  %v1356 = vunpack.c.l.b16 %v204
  %v1357 = vunpack.c.l.b16 %v205
  %v1358 = vunpack.c.l.b16 %v206
  %v1359 = vunpack.c.l.b16 %v207
  %v1360 = vunpack.c.l.b16 %v208
  %v1361 = vunpack.c.l.b16 %v209
  %v1362 = vunpack.c.l.b16 %v210
  %v1363 = vunpack.c.l.b16 %v211
  %v1364 = vunpack.c.l.b16 %v212
  %v1365 = vunpack.c.l.b16 %v213
  %v1366 = vunpack.c.l.b16 %v214
  %v1367 = vunpack.c.l.b16 %v215
  %v1368 = vunpack.c.l.b16 %v216
  %v1369 = vunpack.c.l.b16 %v217
  %v1370 = vunpack.c.l.b16 %v218
  %v1371 = vunpack.c.l.b16 %v219
  %v1372 = vunpack.c.l.b16 %v220
  %v1373 = vunpack.c.l.b16 %v221
  %v1374 = vunpack.c.l.b16 %v222
  %v1375 = vunpack.c.l.b16 %v223
  %v1376 = vunpack.c.l.b16 %v224
  %v1377 = vunpack.c.l.b16 %v225
  %v1378 = vunpack.c.l.b16 %v226
  %v1379 = vunpack.c.l.b16 %v227
  %v1380 = vunpack.c.l.b16 %v228
  %v1381 = vunpack.c.l.b16 %v229
  %v1382 = vunpack.c.l.b16 %v230
  %v1383 = vunpack.c.l.b16 %v231
  %v1384 = vunpack.c.l.b16 %v232
  %v1385 = vunpack.c.l.b16 %v233
  %v1386 = vunpack.c.l.b16 %v234
  %v1387 = vunpack.c.l.b16 %v235
  %v1388 = vunpack.c.l.b16 %v236
  %v1389 = vunpack.c.l.b16 %v237
  %v1390 = vunpack.c.l.b16 %v238
  %v1391 = vunpack.c.l.b16 %v239
  %v1392 = vunpack.c.l.b16 %v240
  %v1393 = vunpack.c.l.b16 %v241
  %v1394 = vunpack.c.l.b16 %v242
  %v1395 = vunpack.c.l.b16 %v243
  %v1396 = vunpack.c.l.b16 %v244
  %v1397 = vunpack.c.l.b16 %v245
  %v1398 = vunpack.c.l.b16 %v246
  %v1399 = vunpack.c.l.b16 %v247
  %v1400 = vunpack.c.l.b16 %v248
  %v1401 = vunpack.c.l.b16 %v249
  %v1402 = vunpack.c.l.b16 %v250
  %v1403 = vunpack.c.l.b16 %v251
  %v1404 = vunpack.c.l.b16 %v252
  %v1405 = vunpack.c.l.b16 %v253
  %v1406 = vunpack.c.l.b16 %v254
  %v1407 = vunpack.c.l.b16 %v255
  %v1408 = vunpack.c.l.b16 %v256
  %v1409 = vunpack.c.l.b16 %v257
  %v1410 = vunpack.c.l.b16 %v258
  %v1411 = vunpack.c.l.b16 %v259
  %v1412 = vunpack.c.l.b16 %v260
  %v1413 = vunpack.c.l.b16 %v261
  %v1414 = vunpack.c.l.b16 %v262
  %v1415 = vunpack.c.l.b16 %v263
  %v1416 = vunpack.c.l.b16 %v264
  %v1417 = vunpack.c.l.b16 %v265
  %v1418 = vunpack.c.l.b16 %v266
  %v1419 = vunpack.c.l.b16 %v267
  %v1420 = vunpack.c.l.b16 %v268
  %v1421 = vunpack.c.l.b16 %v269
  %v1422 = vunpack.c.l.b16 %v270
  %v1423 = vunpack.c.l.b16 %v271
  %v1424 = vunpack.c.l.b16 %v272
  %v1425 = vunpack.c.l.b16 %v273
  %v1426 = vunpack.c.l.b16 %v274
  %v1427 = vunpack.c.l.b16 %v275
  %v1428 = vunpack.c.l.b16 %v276
  %v1429 = vunpack.c.l.b16 %v277
  %v1430 = vunpack.c.l.b16 %v278
  %v1431 = vunpack.c.l.b16 %v279
  %v1432 = vunpack.c.l.b16 %v280
  %v1433 = vunpack.c.l.b16 %v281
  %v1434 = vunpack.c.l.b16 %v282
  %v1435 = vunpack.c.l.b16 %v283
  %v1436 = vunpack.c.l.b16 %v284
  %v1437 = vunpack.c.l.b16 %v285
  %v1438 = vunpack.c.l.b16 %v286
  %v1439 = vunpack.c.l.b16 %v287
  %v1440 = vunpack.c.l.b16 %v288
  %v1441 = vunpack.c.l.b16 %v289
  %v1442 = vunpack.c.l.b16 %v290
  %v1443 = vunpack.c.l.b16 %v291
  %v1444 = vunpack.c.l.b16 %v292
  %v1445 = vunpack.c.l.b16 %v293
  %v1446 = vunpack.c.l.b16 %v294
  %v1447 = vunpack.c.l.b16 %v295
  %v1448 = vunpack.c.l.b16 %v296
  %v1449 = vunpack.c.l.b16 %v297
  %v1450 = vunpack.c.l.b16 %v298
  %v1451 = vunpack.c.l.b16 %v299
  %v1452 = vunpack.c.l.b16 %v300
  %v1453 = vunpack.c.l.b16 %v301
  %v1454 = vunpack.c.l.b16 %v302
  %v1455 = vunpack.c.l.b16 %v303
  %v1456 = vunpack.c.l.b16 %v304
  %v1457 = vunpack.c.l.b16 %v305
  %v1458 = vunpack.c.l.b16 %v306
  %v1459 = vunpack.c.l.b16 %v307
  %v1460 = vunpack.c.l.b16 %v308
  %v1461 = vunpack.c.l.b16 %v309
  %v1462 = vunpack.c.l.b16 %v310
  %v1463 = vunpack.c.l.b16 %v311
  %v1464 = vunpack.c.l.b16 %v312
  %v1465 = vunpack.c.l.b16 %v313
  %v1466 = vunpack.c.l.b16 %v314
  %v1467 = vunpack.c.l.b16 %v315
  %v1468 = vunpack.c.l.b16 %v316
  %v1469 = vunpack.c.l.b16 %v317
  %v1470 = vunpack.c.l.b16 %v318
  %v1471 = vunpack.c.l.b16 %v319
  %v1472 = vunpack.c.l.b16 %v320
  %v1473 = vunpack.c.l.b16 %v321
  %v1474 = vunpack.c.l.b16 %v322
  %v1475 = vunpack.c.l.b16 %v323
  %v1476 = vunpack.c.l.b16 %v324
  %v1477 = vunpack.c.l.b16 %v325
  %v1478 = vunpack.c.l.b16 %v326
  %v1479 = vunpack.c.l.b16 %v327
  %v1480 = vunpack.c.l.b16 %v328
  %v1481 = vunpack.c.l.b16 %v329
  %v1482 = vunpack.c.l.b16 %v330
  %v1483 = vunpack.c.l.b16 %v331
  %v1484 = vunpack.c.l.b16 %v332
  %v1485 = vunpack.c.l.b16 %v333
  %v1486 = vunpack.c.l.b16 %v334
  %v1487 = vunpack.c.l.b16 %v335
  %v1488 = vunpack.c.l.b16 %v336
  %v1489 = vunpack.c.l.b16 %v337
  %v1490 = vunpack.c.l.b16 %v338
  %v1491 = vunpack.c.l.b16 %v339
  %v1492 = vunpack.c.l.b16 %v340
  %v1493 = vunpack.c.l.b16 %v341
  %v1494 = vunpack.c.l.b16 %v342
  %v1495 = vunpack.c.l.b16 %v343
  %v1496 = vunpack.c.l.b16 %v344
  %v1497 = vunpack.c.l.b16 %v345
  %v1498 = vunpack.c.l.b16 %v346
  %v1499 = vunpack.c.l.b16 %v347
  %v1500 = vunpack.c.l.b16 %v348
  %v1501 = vunpack.c.l.b16 %v349
  %v1502 = vunpack.c.l.b16 %v350
  %v1503 = vunpack.c.l.b16 %v351
  %v1504 = vunpack.c.l.b16 %v352
  %v1505 = vunpack.c.l.b16 %v353
  %v1506 = vunpack.c.l.b16 %v354
  %v1507 = vunpack.c.l.b16 %v355
  %v1508 = vunpack.c.l.b16 %v356
  %v1509 = vunpack.c.l.b16 %v357
  %v1510 = vunpack.c.l.b16 %v358
  %v1511 = vunpack.c.l.b16 %v359
  %v1512 = vunpack.c.l.b16 %v360
  %v1513 = vunpack.c.l.b16 %v361
  %v1514 = vunpack.c.l.b16 %v362
  %v1515 = vunpack.c.l.b16 %v363
  %v1516 = vunpack.c.l.b16 %v364
  %v1517 = vunpack.c.l.b16 %v365
  %v1518 = vunpack.c.l.b16 %v366
  %v1519 = vunpack.c.l.b16 %v367
  %v1520 = vunpack.c.l.b16 %v368
  %v1521 = vunpack.c.l.b16 %v369
  %v1522 = vunpack.c.l.b16 %v370
  %v1523 = vunpack.c.l.b16 %v371
  %v1524 = vunpack.c.l.b16 %v372
  %v1525 = vunpack.c.l.b16 %v373
  %v1526 = vunpack.c.l.b16 %v374
  %v1527 = vunpack.c.l.b16 %v375
  %v1528 = vunpack.c.l.b16 %v376
  %v1529 = vunpack.c.l.b16 %v377
  %v1530 = vunpack.c.l.b16 %v378
  %v1531 = vunpack.c.l.b16 %v379
  %v1532 = vunpack.c.l.b16 %v380
  %v1533 = vunpack.c.l.b16 %v381
  %v1534 = vunpack.c.l.b16 %v382
  %v1535 = vunpack.c.l.b16 %v383
  %v1536 = vunpack.c.l.b16 %v384
  %v1537 = vunpack.c.l.b16 %v385
  %v1538 = vunpack.c.l.b16 %v386
  %v1539 = vunpack.c.l.b16 %v387
  %v1540 = vunpack.c.l.b16 %v388
  %v1541 = vunpack.c.l.b16 %v389
  %v1542 = vunpack.c.l.b16 %v390
  %v1543 = vunpack.c.l.b16 %v391
  %v1544 = vunpack.c.l.b16 %v392
  %v1545 = vunpack.c.l.b16 %v393
  %v1546 = vunpack.c.l.b16 %v394
  %v1547 = vunpack.c.l.b16 %v395
  %v1548 = vunpack.c.l.b16 %v396
  %v1549 = vunpack.c.l.b16 %v397
  %v1550 = vunpack.c.l.b16 %v398
  %v1551 = vunpack.c.l.b16 %v399
  %v1552 = vunpack.c.l.b16 %v400
  %v1553 = vunpack.c.l.b16 %v401
  %v1554 = vpack.c.b16 %v1299, %v1298
  %v1555 = vpack.c.b16 %v1301, %v1300
  %v1556 = vpack.c.b16 %v1303, %v1302
  %v1557 = vpack.c.b16 %v1305, %v1304
  %v1558 = vpack.c.b16 %v1307, %v1306
  %v1559 = vpack.c.b16 %v1309, %v1308
  %v1560 = vpack.c.b16 %v1311, %v1310
  %v1561 = vpack.c.b16 %v1313, %v1312
  %v1562 = vpack.c.b16 %v1315, %v1314
  %v1563 = vpack.c.b16 %v1317, %v1316
  %v1564 = vpack.c.b16 %v1319, %v1318
  %v1565 = vpack.c.b16 %v1321, %v1320
  %v1566 = vpack.c.b16 %v1323, %v1322
  %v1567 = vpack.c.b16 %v1325, %v1324
  %v1568 = vpack.c.b16 %v1327, %v1326
  %v1569 = vpack.c.b16 %v1329, %v1328
  %v1570 = vpack.c.b16 %v1331, %v1330
  %v1571 = vpack.c.b16 %v1333, %v1332
  %v1572 = vpack.c.b16 %v1335, %v1334
  %v1573 = vpack.c.b16 %v1337, %v1336
  %v1574 = vpack.c.b16 %v1339, %v1338
  %v1575 = vpack.c.b16 %v1341, %v1340
  %v1576 = vpack.c.b16 %v1343, %v1342
  %v1577 = vpack.c.b16 %v1345, %v1344
  %v1578 = vpack.c.b16 %v1347, %v1346
  %v1579 = vpack.c.b16 %v1349, %v1348
  %v1580 = vpack.c.b16 %v1351, %v1350
  %v1581 = vpack.c.b16 %v1353, %v1352
  %v1582 = vpack.c.b16 %v1355, %v1354
  %v1583 = vpack.c.b16 %v1357, %v1356
  %v1584 = vpack.c.b16 %v1359, %v1358
  %v1585 = vpack.c.b16 %v1361, %v1360
  %v1586 = vpack.c.b16 %v1363, %v1362
  %v1587 = vpack.c.b16 %v1365, %v1364
  %v1588 = vpack.c.b16 %v1367, %v1366
  %v1589 = vpack.c.b16 %v1369, %v1368
  %v1590 = vpack.c.b16 %v1371, %v1370
  %v1591 = vpack.c.b16 %v1373, %v1372
  %v1592 = vpack.c.b16 %v1375, %v1374
  %v1593 = vpack.c.b16 %v1377, %v1376
  %v1594 = vpack.c.b16 %v1379, %v1378
  %v1595 = vpack.c.b16 %v1381, %v1380
  %v1596 = vpack.c.b16 %v1383, %v1382
  %v1597 = vpack.c.b16 %v1385, %v1384
  %v1598 = vpack.c.b16 %v1387, %v1386
  %v1599 = vpack.c.b16 %v1389, %v1388
  %v1600 = vpack.c.b16 %v1391, %v1390
  %v1601 = vpack.c.b16 %v1393, %v1392
  %v1602 = vpack.c.b16 %v1395, %v1394
  %v1603 = vpack.c.b16 %v1397, %v1396
  %v1604 = vpack.c.b16 %v1399, %v1398
  %v1605 = vpack.c.b16 %v1401, %v1400
  %v1606 = vpack.c.b16 %v1403, %v1402
  %v1607 = vpack.c.b16 %v1405, %v1404
  %v1608 = vpack.c.b16 %v1407, %v1406
  %v1609 = vpack.c.b16 %v1409, %v1408
  %v1610 = vpack.c.b16 %v1411, %v1410
  %v1611 = vpack.c.b16 %v1413, %v1412
  %v1612 = vpack.c.b16 %v1415, %v1414
  %v1613 = vpack.c.b16 %v1417, %v1416
  %v1614 = vpack.c.b16 %v1419, %v1418
  %v1615 = vpack.c.b16 %v1421, %v1420
  %v1616 = vpack.c.b16 %v1423, %v1422
  %v1617 = vpack.c.b16 %v1425, %v1424
  %v1618 = vpack.c.b16 %v1427, %v1426
  %v1619 = vpack.c.b16 %v1429, %v1428
  %v1620 = vpack.c.b16 %v1431, %v1430
  %v1621 = vpack.c.b16 %v1433, %v1432
  %v1622 = vpack.c.b16 %v1435, %v1434
  %v1623 = vpack.c.b16 %v1437, %v1436
  %v1624 = vpack.c.b16 %v1439, %v1438
  %v1625 = vpack.c.b16 %v1441, %v1440
  %v1626 = vpack.c.b16 %v1443, %v1442
  %v1627 = vpack.c.b16 %v1445, %v1444
  %v1628 = vpack.c.b16 %v1447, %v1446
  %v1629 = vpack.c.b16 %v1449, %v1448
  %v1630 = vpack.c.b16 %v1451, %v1450
  %v1631 = vpack.c.b16 %v1453, %v1452
  %v1632 = vpack.c.b16 %v1455, %v1454
  %v1633 = vpack.c.b16 %v1457, %v1456
  %v1634 = vpack.c.b16 %v1459, %v1458
  %v1635 = vpack.c.b16 %v1461, %v1460
  %v1636 = vpack.c.b16 %v1463, %v1462
  %v1637 = vpack.c.b16 %v1465, %v1464
  %v1638 = vpack.c.b16 %v1467, %v1466
  %v1639 = vpack.c.b16 %v1469, %v1468
  %v1640 = vpack.c.b16 %v1471, %v1470
  %v1641 = vpack.c.b16 %v1473, %v1472
  %v1642 = vpack.c.b16 %v1475, %v1474
  %v1643 = vpack.c.b16 %v1477, %v1476
  %v1644 = vpack.c.b16 %v1479, %v1478
  %v1645 = vpack.c.b16 %v1481, %v1480
  %v1646 = vpack.c.b16 %v1483, %v1482
  %v1647 = vpack.c.b16 %v1485, %v1484
  %v1648 = vpack.c.b16 %v1487, %v1486
  %v1649 = vpack.c.b16 %v1489, %v1488
  %v1650 = vpack.c.b16 %v1491, %v1490
  %v1651 = vpack.c.b16 %v1493, %v1492
  %v1652 = vpack.c.b16 %v1495, %v1494
  %v1653 = vpack.c.b16 %v1497, %v1496
  %v1654 = vpack.c.b16 %v1499, %v1498
  %v1655 = vpack.c.b16 %v1501, %v1500
  %v1656 = vpack.c.b16 %v1503, %v1502
  %v1657 = vpack.c.b16 %v1505, %v1504
  %v1658 = vpack.c.b16 %v1507, %v1506
  %v1659 = vpack.c.b16 %v1509, %v1508
  %v1660 = vpack.c.b16 %v1511, %v1510
  %v1661 = vpack.c.b16 %v1513, %v1512
  %v1662 = vpack.c.b16 %v1515, %v1514
  %v1663 = vpack.c.b16 %v1517, %v1516
  %v1664 = vpack.c.b16 %v1519, %v1518
  %v1665 = vpack.c.b16 %v1521, %v1520
  %v1666 = vpack.c.b16 %v1523, %v1522
  %v1667 = vpack.c.b16 %v1525, %v1524
  %v1668 = vpack.c.b16 %v1527, %v1526
  %v1669 = vpack.c.b16 %v1529, %v1528
  %v1670 = vpack.c.b16 %v1531, %v1530
  %v1671 = vpack.c.b16 %v1533, %v1532
  %v1672 = vpack.c.b16 %v1535, %v1534
  %v1673 = vpack.c.b16 %v1537, %v1536
  %v1674 = vpack.c.b16 %v1539, %v1538
  %v1675 = vpack.c.b16 %v1541, %v1540
  %v1676 = vpack.c.b16 %v1543, %v1542
  %v1677 = vpack.c.b16 %v1545, %v1544
  %v1678 = vpack.c.b16 %v1547, %v1546
  %v1679 = vpack.c.b16 %v1549, %v1548
  %v1680 = vpack.c.b16 %v1551, %v1550
  %v1681 = vpack.c.b16 %v1553, %v1552
  %1810 = vmatprep.subr.bf16.mxu0 0
  %1811 = vmatpush1.bf16.msra.mxu0 %v1561
  %1812 = vmatprep.subr.bf16.mxu0 0
  %1813 = vmatpush1.bf16.msra.mxu0 %v1560
  %1814 = vmatprep.subr.bf16.mxu0 0
  %1815 = vmatpush1.bf16.msra.mxu0 %v1559
  %1816 = vmatprep.subr.bf16.mxu0 0
  %1817 = vmatpush1.bf16.msra.mxu0 %v1558
  %1818 = vmatprep.subr.bf16.mxu0 0
  %1819 = vmatpush1.bf16.msra.mxu0 %v1557
  %1820 = vmatprep.subr.bf16.mxu0 0
  %1821 = vmatpush1.bf16.msra.mxu0 %v1556
  %1822 = vmatprep.subr.bf16.mxu0 0
  %1823 = vmatpush1.bf16.msra.mxu0 %v1555
  %1824 = vmatprep.subr.bf16.mxu0 0
  %1825 = vmatpush1.bf16.msra.mxu0 %v1554
  %1826 = vmatprep.subr.bf16.mxu0 0
  %1827 = vmatpush2.bf16.msra.mxu0 %v1569
  %1828 = vmatprep.subr.bf16.mxu0 0
  %1829 = vmatpush2.bf16.msra.mxu0 %v1568
  %1830 = vmatprep.subr.bf16.mxu0 0
  %1831 = vmatpush2.bf16.msra.mxu0 %v1567
  %1832 = vmatprep.subr.bf16.mxu0 0
  %1833 = vmatpush2.bf16.msra.mxu0 %v1566
  %1834 = vmatprep.subr.bf16.mxu0 0
  %1835 = vmatpush2.bf16.msra.mxu0 %v1565
  %1836 = vmatprep.subr.bf16.mxu0 0
  %1837 = vmatpush2.bf16.msra.mxu0 %v1564
  %1838 = vmatprep.subr.bf16.mxu0 0
  %1839 = vmatpush2.bf16.msra.mxu0 %v1563
  %1840 = vmatprep.subr.bf16.mxu0 0
  %1841 = vmatpush2.bf16.msra.mxu0 %v1562
  %1842 = vmatprep.mubr.bf16.mxu0 %v787
  %1843 = vmatmul.mubr.bf16.gmra.mxu0 %v786
  %v1844 = vpop.f32.mrf.mxu0
  %v1845 = vadd.f32 0.0, %v1844
  %v1846 = vpop.f32.mrf.mxu0
  %v1847 = vpop.f32.mrf.mxu0
  %v1848 = vadd.f32 0.0, %v1847
  %v1849 = vpop.f32.mrf.mxu0
  %1850 = vmatprep.mubr.bf16.mxu0 %v803
  %1851 = vmatmul.mubr.bf16.gmra.mxu0 %v802
  %v1852 = vpop.f32.mrf.mxu0
  %v1853 = vadd.f32 0.0, %v1852
  %v1854 = vpop.f32.mrf.mxu0
  %v1855 = vpop.f32.mrf.mxu0
  %v1856 = vadd.f32 0.0, %v1855
  %v1857 = vpop.f32.mrf.mxu0
  %1858 = vmatprep.mubr.bf16.mxu0 %v819
  %1859 = vmatmul.mubr.bf16.gmra.mxu0 %v818
  %v1860 = vpop.f32.mrf.mxu0
  %v1861 = vadd.f32 0.0, %v1860
  %v1862 = vpop.f32.mrf.mxu0
  %v1863 = vpop.f32.mrf.mxu0
  %v1864 = vadd.f32 0.0, %v1863
  %v1865 = vpop.f32.mrf.mxu0
  %1866 = vmatprep.mubr.bf16.mxu0 %v835
  %1867 = vmatmul.mubr.bf16.gmra.mxu0 %v834
  %v1868 = vpop.f32.mrf.mxu0
  %v1869 = vadd.f32 0.0, %v1868
  %v1870 = vpop.f32.mrf.mxu0
  %v1871 = vpop.f32.mrf.mxu0
  %v1872 = vadd.f32 0.0, %v1871
  %v1873 = vpop.f32.mrf.mxu0
  %1874 = vmatprep.mubr.bf16.mxu0 %v851
  %1875 = vmatmul.mubr.bf16.gmra.mxu0 %v850
  %v1876 = vpop.f32.mrf.mxu0
  %v1877 = vadd.f32 0.0, %v1876
  %v1878 = vpop.f32.mrf.mxu0
  %v1879 = vpop.f32.mrf.mxu0
  %v1880 = vadd.f32 0.0, %v1879
  %v1881 = vpop.f32.mrf.mxu0
  %1882 = vmatprep.mubr.bf16.mxu0 %v867
  %1883 = vmatmul.mubr.bf16.gmra.mxu0 %v866
  %v1884 = vpop.f32.mrf.mxu0
  %v1885 = vadd.f32 0.0, %v1884
  %v1886 = vpop.f32.mrf.mxu0
  %v1887 = vpop.f32.mrf.mxu0
  %v1888 = vadd.f32 0.0, %v1887
  %v1889 = vpop.f32.mrf.mxu0
  %1890 = vmatprep.mubr.bf16.mxu0 %v883
  %1891 = vmatmul.mubr.bf16.gmra.mxu0 %v882
  %v1892 = vpop.f32.mrf.mxu0
  %v1893 = vadd.f32 0.0, %v1892
  %v1894 = vpop.f32.mrf.mxu0
  %v1895 = vpop.f32.mrf.mxu0
  %v1896 = vadd.f32 0.0, %v1895
  %v1897 = vpop.f32.mrf.mxu0
  %1898 = vmatprep.mubr.bf16.mxu0 %v899
  %1899 = vmatmul.mubr.bf16.gmra.mxu0 %v898
  %v1900 = vpop.f32.mrf.mxu0
  %v1901 = vadd.f32 0.0, %v1900
  %v1902 = vpop.f32.mrf.mxu0
  %v1903 = vpop.f32.mrf.mxu0
  %v1904 = vadd.f32 0.0, %v1903
  %v1905 = vpop.f32.mrf.mxu0
  %1906 = vdwg.mxu0
  %1907 = vmatprep.subr.bf16.mxu0 0
  %1908 = vmatpush1.bf16.msra.mxu0 %v1577
  %1909 = vmatprep.subr.bf16.mxu0 0
  %1910 = vmatpush1.bf16.msra.mxu0 %v1576
  %1911 = vmatprep.subr.bf16.mxu0 0
  %1912 = vmatpush1.bf16.msra.mxu0 %v1575
  %1913 = vmatprep.subr.bf16.mxu0 0
  %1914 = vmatpush1.bf16.msra.mxu0 %v1574
  %1915 = vmatprep.subr.bf16.mxu0 0
  %1916 = vmatpush1.bf16.msra.mxu0 %v1573
  %1917 = vmatprep.subr.bf16.mxu0 0
  %1918 = vmatpush1.bf16.msra.mxu0 %v1572
  %1919 = vmatprep.subr.bf16.mxu0 0
  %1920 = vmatpush1.bf16.msra.mxu0 %v1571
  %1921 = vmatprep.subr.bf16.mxu0 0
  %1922 = vmatpush1.bf16.msra.mxu0 %v1570
  %1923 = vmatprep.subr.bf16.mxu0 0
  %1924 = vmatpush2.bf16.msra.mxu0 %v1585
  %1925 = vmatprep.subr.bf16.mxu0 0
  %1926 = vmatpush2.bf16.msra.mxu0 %v1584
  %1927 = vmatprep.subr.bf16.mxu0 0
  %1928 = vmatpush2.bf16.msra.mxu0 %v1583
  %1929 = vmatprep.subr.bf16.mxu0 0
  %1930 = vmatpush2.bf16.msra.mxu0 %v1582
  %1931 = vmatprep.subr.bf16.mxu0 0
  %1932 = vmatpush2.bf16.msra.mxu0 %v1581
  %1933 = vmatprep.subr.bf16.mxu0 0
  %1934 = vmatpush2.bf16.msra.mxu0 %v1580
  %1935 = vmatprep.subr.bf16.mxu0 0
  %1936 = vmatpush2.bf16.msra.mxu0 %v1579
  %1937 = vmatprep.subr.bf16.mxu0 0
  %1938 = vmatpush2.bf16.msra.mxu0 %v1578
  %1939 = vmatprep.mubr.bf16.mxu0 %v789
  %1940 = vmatmul.mubr.bf16.gmra.mxu0 %v788
  %v1941 = vpop.f32.mrf.mxu0
  %v1942 = vadd.f32 %v1845, %v1941
  %v1943 = vpop.f32.mrf.mxu0
  %v1944 = vpop.f32.mrf.mxu0
  %v1945 = vadd.f32 %v1848, %v1944
  %v1946 = vpop.f32.mrf.mxu0
  %1947 = vmatprep.mubr.bf16.mxu0 %v805
  %1948 = vmatmul.mubr.bf16.gmra.mxu0 %v804
  %v1949 = vpop.f32.mrf.mxu0
  %v1950 = vadd.f32 %v1853, %v1949
  %v1951 = vpop.f32.mrf.mxu0
  %v1952 = vpop.f32.mrf.mxu0
  %v1953 = vadd.f32 %v1856, %v1952
  %v1954 = vpop.f32.mrf.mxu0
  %1955 = vmatprep.mubr.bf16.mxu0 %v821
  %1956 = vmatmul.mubr.bf16.gmra.mxu0 %v820
  %v1957 = vpop.f32.mrf.mxu0
  %v1958 = vadd.f32 %v1861, %v1957
  %v1959 = vpop.f32.mrf.mxu0
  %v1960 = vpop.f32.mrf.mxu0
  %v1961 = vadd.f32 %v1864, %v1960
  %v1962 = vpop.f32.mrf.mxu0
  %1963 = vmatprep.mubr.bf16.mxu0 %v837
  %1964 = vmatmul.mubr.bf16.gmra.mxu0 %v836
  %v1965 = vpop.f32.mrf.mxu0
  %v1966 = vadd.f32 %v1869, %v1965
  %v1967 = vpop.f32.mrf.mxu0
  %v1968 = vpop.f32.mrf.mxu0
  %v1969 = vadd.f32 %v1872, %v1968
  %v1970 = vpop.f32.mrf.mxu0
  %1971 = vmatprep.mubr.bf16.mxu0 %v853
  %1972 = vmatmul.mubr.bf16.gmra.mxu0 %v852
  %v1973 = vpop.f32.mrf.mxu0
  %v1974 = vadd.f32 %v1877, %v1973
  %v1975 = vpop.f32.mrf.mxu0
  %v1976 = vpop.f32.mrf.mxu0
  %v1977 = vadd.f32 %v1880, %v1976
  %v1978 = vpop.f32.mrf.mxu0
  %1979 = vmatprep.mubr.bf16.mxu0 %v869
  %1980 = vmatmul.mubr.bf16.gmra.mxu0 %v868
  %v1981 = vpop.f32.mrf.mxu0
  %v1982 = vadd.f32 %v1885, %v1981
  %v1983 = vpop.f32.mrf.mxu0
  %v1984 = vpop.f32.mrf.mxu0
  %v1985 = vadd.f32 %v1888, %v1984
  %v1986 = vpop.f32.mrf.mxu0
  %1987 = vmatprep.mubr.bf16.mxu0 %v885
  %1988 = vmatmul.mubr.bf16.gmra.mxu0 %v884
  %v1989 = vpop.f32.mrf.mxu0
  %v1990 = vadd.f32 %v1893, %v1989
  %v1991 = vpop.f32.mrf.mxu0
  %v1992 = vpop.f32.mrf.mxu0
  %v1993 = vadd.f32 %v1896, %v1992
  %v1994 = vpop.f32.mrf.mxu0
  %1995 = vmatprep.mubr.bf16.mxu0 %v901
  %1996 = vmatmul.mubr.bf16.gmra.mxu0 %v900
  %v1997 = vpop.f32.mrf.mxu0
  %v1998 = vadd.f32 %v1901, %v1997
  %v1999 = vpop.f32.mrf.mxu0
  %v2000 = vpop.f32.mrf.mxu0
  %v2001 = vadd.f32 %v1904, %v2000
  %v2002 = vpop.f32.mrf.mxu0
  %2003 = vdwg.mxu0
  %2004 = vmatprep.subr.bf16.mxu0 0
  %2005 = vmatpush1.bf16.msra.mxu0 %v1593
  %2006 = vmatprep.subr.bf16.mxu0 0
  %2007 = vmatpush1.bf16.msra.mxu0 %v1592
  %2008 = vmatprep.subr.bf16.mxu0 0
  %2009 = vmatpush1.bf16.msra.mxu0 %v1591
  %2010 = vmatprep.subr.bf16.mxu0 0
  %2011 = vmatpush1.bf16.msra.mxu0 %v1590
  %2012 = vmatprep.subr.bf16.mxu0 0
  %2013 = vmatpush1.bf16.msra.mxu0 %v1589
  %2014 = vmatprep.subr.bf16.mxu0 0
  %2015 = vmatpush1.bf16.msra.mxu0 %v1588
  %2016 = vmatprep.subr.bf16.mxu0 0
  %2017 = vmatpush1.bf16.msra.mxu0 %v1587
  %2018 = vmatprep.subr.bf16.mxu0 0
  %2019 = vmatpush1.bf16.msra.mxu0 %v1586
  %2020 = vmatprep.subr.bf16.mxu0 0
  %2021 = vmatpush2.bf16.msra.mxu0 %v1601
  %2022 = vmatprep.subr.bf16.mxu0 0
  %2023 = vmatpush2.bf16.msra.mxu0 %v1600
  %2024 = vmatprep.subr.bf16.mxu0 0
  %2025 = vmatpush2.bf16.msra.mxu0 %v1599
  %2026 = vmatprep.subr.bf16.mxu0 0
  %2027 = vmatpush2.bf16.msra.mxu0 %v1598
  %2028 = vmatprep.subr.bf16.mxu0 0
  %2029 = vmatpush2.bf16.msra.mxu0 %v1597
  %2030 = vmatprep.subr.bf16.mxu0 0
  %2031 = vmatpush2.bf16.msra.mxu0 %v1596
  %2032 = vmatprep.subr.bf16.mxu0 0
  %2033 = vmatpush2.bf16.msra.mxu0 %v1595
  %2034 = vmatprep.subr.bf16.mxu0 0
  %2035 = vmatpush2.bf16.msra.mxu0 %v1594
  %2036 = vmatprep.mubr.bf16.mxu0 %v791
  %2037 = vmatmul.mubr.bf16.gmra.mxu0 %v790
  %v2038 = vpop.f32.mrf.mxu0
  %v2039 = vadd.f32 %v1942, %v2038
  %v2040 = vpop.f32.mrf.mxu0
  %v2041 = vpop.f32.mrf.mxu0
  %v2042 = vadd.f32 %v1945, %v2041
  %v2043 = vpop.f32.mrf.mxu0
  %2044 = vmatprep.mubr.bf16.mxu0 %v807
  %2045 = vmatmul.mubr.bf16.gmra.mxu0 %v806
  %v2046 = vpop.f32.mrf.mxu0
  %v2047 = vadd.f32 %v1950, %v2046
  %v2048 = vpop.f32.mrf.mxu0
  %v2049 = vpop.f32.mrf.mxu0
  %v2050 = vadd.f32 %v1953, %v2049
  %v2051 = vpop.f32.mrf.mxu0
  %2052 = vmatprep.mubr.bf16.mxu0 %v823
  %2053 = vmatmul.mubr.bf16.gmra.mxu0 %v822
  %v2054 = vpop.f32.mrf.mxu0
  %v2055 = vadd.f32 %v1958, %v2054
  %v2056 = vpop.f32.mrf.mxu0
  %v2057 = vpop.f32.mrf.mxu0
  %v2058 = vadd.f32 %v1961, %v2057
  %v2059 = vpop.f32.mrf.mxu0
  %2060 = vmatprep.mubr.bf16.mxu0 %v839
  %2061 = vmatmul.mubr.bf16.gmra.mxu0 %v838
  %v2062 = vpop.f32.mrf.mxu0
  %v2063 = vadd.f32 %v1966, %v2062
  %v2064 = vpop.f32.mrf.mxu0
  %v2065 = vpop.f32.mrf.mxu0
  %v2066 = vadd.f32 %v1969, %v2065
  %v2067 = vpop.f32.mrf.mxu0
  %2068 = vmatprep.mubr.bf16.mxu0 %v855
  %2069 = vmatmul.mubr.bf16.gmra.mxu0 %v854
  %v2070 = vpop.f32.mrf.mxu0
  %v2071 = vadd.f32 %v1974, %v2070
  %v2072 = vpop.f32.mrf.mxu0
  %v2073 = vpop.f32.mrf.mxu0
  %v2074 = vadd.f32 %v1977, %v2073
  %v2075 = vpop.f32.mrf.mxu0
  %2076 = vmatprep.mubr.bf16.mxu0 %v871
  %2077 = vmatmul.mubr.bf16.gmra.mxu0 %v870
  %v2078 = vpop.f32.mrf.mxu0
  %v2079 = vadd.f32 %v1982, %v2078
  %v2080 = vpop.f32.mrf.mxu0
  %v2081 = vpop.f32.mrf.mxu0
  %v2082 = vadd.f32 %v1985, %v2081
  %v2083 = vpop.f32.mrf.mxu0
  %2084 = vmatprep.mubr.bf16.mxu0 %v887
  %2085 = vmatmul.mubr.bf16.gmra.mxu0 %v886
  %v2086 = vpop.f32.mrf.mxu0
  %v2087 = vadd.f32 %v1990, %v2086
  %v2088 = vpop.f32.mrf.mxu0
  %v2089 = vpop.f32.mrf.mxu0
  %v2090 = vadd.f32 %v1993, %v2089
  %v2091 = vpop.f32.mrf.mxu0
  %2092 = vmatprep.mubr.bf16.mxu0 %v903
  %2093 = vmatmul.mubr.bf16.gmra.mxu0 %v902
  %v2094 = vpop.f32.mrf.mxu0
  %v2095 = vadd.f32 %v1998, %v2094
  %v2096 = vpop.f32.mrf.mxu0
  %v2097 = vpop.f32.mrf.mxu0
  %v2098 = vadd.f32 %v2001, %v2097
  %v2099 = vpop.f32.mrf.mxu0
  %2100 = vdwg.mxu0
  %2101 = vmatprep.subr.bf16.mxu0 0
  %2102 = vmatpush1.bf16.msra.mxu0 %v1609
  %2103 = vmatprep.subr.bf16.mxu0 0
  %2104 = vmatpush1.bf16.msra.mxu0 %v1608
  %2105 = vmatprep.subr.bf16.mxu0 0
  %2106 = vmatpush1.bf16.msra.mxu0 %v1607
  %2107 = vmatprep.subr.bf16.mxu0 0
  %2108 = vmatpush1.bf16.msra.mxu0 %v1606
  %2109 = vmatprep.subr.bf16.mxu0 0
  %2110 = vmatpush1.bf16.msra.mxu0 %v1605
  %2111 = vmatprep.subr.bf16.mxu0 0
  %2112 = vmatpush1.bf16.msra.mxu0 %v1604
  %2113 = vmatprep.subr.bf16.mxu0 0
  %2114 = vmatpush1.bf16.msra.mxu0 %v1603
  %2115 = vmatprep.subr.bf16.mxu0 0
  %2116 = vmatpush1.bf16.msra.mxu0 %v1602
  %2117 = vmatprep.subr.bf16.mxu0 0
  %2118 = vmatpush2.bf16.msra.mxu0 %v1617
  %2119 = vmatprep.subr.bf16.mxu0 0
  %2120 = vmatpush2.bf16.msra.mxu0 %v1616
  %2121 = vmatprep.subr.bf16.mxu0 0
  %2122 = vmatpush2.bf16.msra.mxu0 %v1615
  %2123 = vmatprep.subr.bf16.mxu0 0
  %2124 = vmatpush2.bf16.msra.mxu0 %v1614
  %2125 = vmatprep.subr.bf16.mxu0 0
  %2126 = vmatpush2.bf16.msra.mxu0 %v1613
  %2127 = vmatprep.subr.bf16.mxu0 0
  %2128 = vmatpush2.bf16.msra.mxu0 %v1612
  %2129 = vmatprep.subr.bf16.mxu0 0
  %2130 = vmatpush2.bf16.msra.mxu0 %v1611
  %2131 = vmatprep.subr.bf16.mxu0 0
  %2132 = vmatpush2.bf16.msra.mxu0 %v1610
  %2133 = vmatprep.mubr.bf16.mxu0 %v793
  %2134 = vmatmul.mubr.bf16.gmra.mxu0 %v792
  %v2135 = vpop.f32.mrf.mxu0
  %v2136 = vadd.f32 %v2039, %v2135
  %v2137 = vpop.f32.mrf.mxu0
  %v2138 = vpop.f32.mrf.mxu0
  %v2139 = vadd.f32 %v2042, %v2138
  %v2140 = vpop.f32.mrf.mxu0
  %2141 = vmatprep.mubr.bf16.mxu0 %v809
  %2142 = vmatmul.mubr.bf16.gmra.mxu0 %v808
  %v2143 = vpop.f32.mrf.mxu0
  %v2144 = vadd.f32 %v2047, %v2143
  %v2145 = vpop.f32.mrf.mxu0
  %v2146 = vpop.f32.mrf.mxu0
  %v2147 = vadd.f32 %v2050, %v2146
  %v2148 = vpop.f32.mrf.mxu0
  %2149 = vmatprep.mubr.bf16.mxu0 %v825
  %2150 = vmatmul.mubr.bf16.gmra.mxu0 %v824
  %v2151 = vpop.f32.mrf.mxu0
  %v2152 = vadd.f32 %v2055, %v2151
  %v2153 = vpop.f32.mrf.mxu0
  %v2154 = vpop.f32.mrf.mxu0
  %v2155 = vadd.f32 %v2058, %v2154
  %v2156 = vpop.f32.mrf.mxu0
  %2157 = vmatprep.mubr.bf16.mxu0 %v841
  %2158 = vmatmul.mubr.bf16.gmra.mxu0 %v840
  %v2159 = vpop.f32.mrf.mxu0
  %v2160 = vadd.f32 %v2063, %v2159
  %v2161 = vpop.f32.mrf.mxu0
  %v2162 = vpop.f32.mrf.mxu0
  %v2163 = vadd.f32 %v2066, %v2162
  %v2164 = vpop.f32.mrf.mxu0
  %2165 = vmatprep.mubr.bf16.mxu0 %v857
  %2166 = vmatmul.mubr.bf16.gmra.mxu0 %v856
  %v2167 = vpop.f32.mrf.mxu0
  %v2168 = vadd.f32 %v2071, %v2167
  %v2169 = vpop.f32.mrf.mxu0
  %v2170 = vpop.f32.mrf.mxu0
  %v2171 = vadd.f32 %v2074, %v2170
  %v2172 = vpop.f32.mrf.mxu0
  %2173 = vmatprep.mubr.bf16.mxu0 %v873
  %2174 = vmatmul.mubr.bf16.gmra.mxu0 %v872
  %v2175 = vpop.f32.mrf.mxu0
  %v2176 = vadd.f32 %v2079, %v2175
  %v2177 = vpop.f32.mrf.mxu0
  %v2178 = vpop.f32.mrf.mxu0
  %v2179 = vadd.f32 %v2082, %v2178
  %v2180 = vpop.f32.mrf.mxu0
  %2181 = vmatprep.mubr.bf16.mxu0 %v889
  %2182 = vmatmul.mubr.bf16.gmra.mxu0 %v888
  %v2183 = vpop.f32.mrf.mxu0
  %v2184 = vadd.f32 %v2087, %v2183
  %v2185 = vpop.f32.mrf.mxu0
  %v2186 = vpop.f32.mrf.mxu0
  %v2187 = vadd.f32 %v2090, %v2186
  %v2188 = vpop.f32.mrf.mxu0
  %2189 = vmatprep.mubr.bf16.mxu0 %v905
  %2190 = vmatmul.mubr.bf16.gmra.mxu0 %v904
  %v2191 = vpop.f32.mrf.mxu0
  %v2192 = vadd.f32 %v2095, %v2191
  %v2193 = vpop.f32.mrf.mxu0
  %v2194 = vpop.f32.mrf.mxu0
  %v2195 = vadd.f32 %v2098, %v2194
  %v2196 = vpop.f32.mrf.mxu0
  %2197 = vdwg.mxu0
  %2198 = vmatprep.subr.bf16.mxu0 0
  %2199 = vmatpush1.bf16.msra.mxu0 %v1625
  %2200 = vmatprep.subr.bf16.mxu0 0
  %2201 = vmatpush1.bf16.msra.mxu0 %v1624
  %2202 = vmatprep.subr.bf16.mxu0 0
  %2203 = vmatpush1.bf16.msra.mxu0 %v1623
  %2204 = vmatprep.subr.bf16.mxu0 0
  %2205 = vmatpush1.bf16.msra.mxu0 %v1622
  %2206 = vmatprep.subr.bf16.mxu0 0
  %2207 = vmatpush1.bf16.msra.mxu0 %v1621
  %2208 = vmatprep.subr.bf16.mxu0 0
  %2209 = vmatpush1.bf16.msra.mxu0 %v1620
  %2210 = vmatprep.subr.bf16.mxu0 0
  %2211 = vmatpush1.bf16.msra.mxu0 %v1619
  %2212 = vmatprep.subr.bf16.mxu0 0
  %2213 = vmatpush1.bf16.msra.mxu0 %v1618
  %2214 = vmatprep.subr.bf16.mxu0 0
  %2215 = vmatpush2.bf16.msra.mxu0 %v1633
  %2216 = vmatprep.subr.bf16.mxu0 0
  %2217 = vmatpush2.bf16.msra.mxu0 %v1632
  %2218 = vmatprep.subr.bf16.mxu0 0
  %2219 = vmatpush2.bf16.msra.mxu0 %v1631
  %2220 = vmatprep.subr.bf16.mxu0 0
  %2221 = vmatpush2.bf16.msra.mxu0 %v1630
  %2222 = vmatprep.subr.bf16.mxu0 0
  %2223 = vmatpush2.bf16.msra.mxu0 %v1629
  %2224 = vmatprep.subr.bf16.mxu0 0
  %2225 = vmatpush2.bf16.msra.mxu0 %v1628
  %2226 = vmatprep.subr.bf16.mxu0 0
  %2227 = vmatpush2.bf16.msra.mxu0 %v1627
  %2228 = vmatprep.subr.bf16.mxu0 0
  %2229 = vmatpush2.bf16.msra.mxu0 %v1626
  %2230 = vmatprep.mubr.bf16.mxu0 %v795
  %2231 = vmatmul.mubr.bf16.gmra.mxu0 %v794
  %v2232 = vpop.f32.mrf.mxu0
  %v2233 = vadd.f32 %v2136, %v2232
  %v2234 = vpop.f32.mrf.mxu0
  %v2235 = vpop.f32.mrf.mxu0
  %v2236 = vadd.f32 %v2139, %v2235
  %v2237 = vpop.f32.mrf.mxu0
  %2238 = vmatprep.mubr.bf16.mxu0 %v811
  %2239 = vmatmul.mubr.bf16.gmra.mxu0 %v810
  %v2240 = vpop.f32.mrf.mxu0
  %v2241 = vadd.f32 %v2144, %v2240
  %v2242 = vpop.f32.mrf.mxu0
  %v2243 = vpop.f32.mrf.mxu0
  %v2244 = vadd.f32 %v2147, %v2243
  %v2245 = vpop.f32.mrf.mxu0
  %2246 = vmatprep.mubr.bf16.mxu0 %v827
  %2247 = vmatmul.mubr.bf16.gmra.mxu0 %v826
  %v2248 = vpop.f32.mrf.mxu0
  %v2249 = vadd.f32 %v2152, %v2248
  %v2250 = vpop.f32.mrf.mxu0
  %v2251 = vpop.f32.mrf.mxu0
  %v2252 = vadd.f32 %v2155, %v2251
  %v2253 = vpop.f32.mrf.mxu0
  %2254 = vmatprep.mubr.bf16.mxu0 %v843
  %2255 = vmatmul.mubr.bf16.gmra.mxu0 %v842
  %v2256 = vpop.f32.mrf.mxu0
  %v2257 = vadd.f32 %v2160, %v2256
  %v2258 = vpop.f32.mrf.mxu0
  %v2259 = vpop.f32.mrf.mxu0
  %v2260 = vadd.f32 %v2163, %v2259
  %v2261 = vpop.f32.mrf.mxu0
  %2262 = vmatprep.mubr.bf16.mxu0 %v859
  %2263 = vmatmul.mubr.bf16.gmra.mxu0 %v858
  %v2264 = vpop.f32.mrf.mxu0
  %v2265 = vadd.f32 %v2168, %v2264
  %v2266 = vpop.f32.mrf.mxu0
  %v2267 = vpop.f32.mrf.mxu0
  %v2268 = vadd.f32 %v2171, %v2267
  %v2269 = vpop.f32.mrf.mxu0
  %2270 = vmatprep.mubr.bf16.mxu0 %v875
  %2271 = vmatmul.mubr.bf16.gmra.mxu0 %v874
  %v2272 = vpop.f32.mrf.mxu0
  %v2273 = vadd.f32 %v2176, %v2272
  %v2274 = vpop.f32.mrf.mxu0
  %v2275 = vpop.f32.mrf.mxu0
  %v2276 = vadd.f32 %v2179, %v2275
  %v2277 = vpop.f32.mrf.mxu0
  %2278 = vmatprep.mubr.bf16.mxu0 %v891
  %2279 = vmatmul.mubr.bf16.gmra.mxu0 %v890
  %v2280 = vpop.f32.mrf.mxu0
  %v2281 = vadd.f32 %v2184, %v2280
  %v2282 = vpop.f32.mrf.mxu0
  %v2283 = vpop.f32.mrf.mxu0
  %v2284 = vadd.f32 %v2187, %v2283
  %v2285 = vpop.f32.mrf.mxu0
  %2286 = vmatprep.mubr.bf16.mxu0 %v907
  %2287 = vmatmul.mubr.bf16.gmra.mxu0 %v906
  %v2288 = vpop.f32.mrf.mxu0
  %v2289 = vadd.f32 %v2192, %v2288
  %v2290 = vpop.f32.mrf.mxu0
  %v2291 = vpop.f32.mrf.mxu0
  %v2292 = vadd.f32 %v2195, %v2291
  %v2293 = vpop.f32.mrf.mxu0
  %2294 = vdwg.mxu0
  %2295 = vmatprep.subr.bf16.mxu0 0
  %2296 = vmatpush1.bf16.msra.mxu0 %v1641
  %2297 = vmatprep.subr.bf16.mxu0 0
  %2298 = vmatpush1.bf16.msra.mxu0 %v1640
  %2299 = vmatprep.subr.bf16.mxu0 0
  %2300 = vmatpush1.bf16.msra.mxu0 %v1639
  %2301 = vmatprep.subr.bf16.mxu0 0
  %2302 = vmatpush1.bf16.msra.mxu0 %v1638
  %2303 = vmatprep.subr.bf16.mxu0 0
  %2304 = vmatpush1.bf16.msra.mxu0 %v1637
  %2305 = vmatprep.subr.bf16.mxu0 0
  %2306 = vmatpush1.bf16.msra.mxu0 %v1636
  %2307 = vmatprep.subr.bf16.mxu0 0
  %2308 = vmatpush1.bf16.msra.mxu0 %v1635
  %2309 = vmatprep.subr.bf16.mxu0 0
  %2310 = vmatpush1.bf16.msra.mxu0 %v1634
  %2311 = vmatprep.subr.bf16.mxu0 0
  %2312 = vmatpush2.bf16.msra.mxu0 %v1649
  %2313 = vmatprep.subr.bf16.mxu0 0
  %2314 = vmatpush2.bf16.msra.mxu0 %v1648
  %2315 = vmatprep.subr.bf16.mxu0 0
  %2316 = vmatpush2.bf16.msra.mxu0 %v1647
  %2317 = vmatprep.subr.bf16.mxu0 0
  %2318 = vmatpush2.bf16.msra.mxu0 %v1646
  %2319 = vmatprep.subr.bf16.mxu0 0
  %2320 = vmatpush2.bf16.msra.mxu0 %v1645
  %2321 = vmatprep.subr.bf16.mxu0 0
  %2322 = vmatpush2.bf16.msra.mxu0 %v1644
  %2323 = vmatprep.subr.bf16.mxu0 0
  %2324 = vmatpush2.bf16.msra.mxu0 %v1643
  %2325 = vmatprep.subr.bf16.mxu0 0
  %2326 = vmatpush2.bf16.msra.mxu0 %v1642
  %2327 = vmatprep.mubr.bf16.mxu0 %v797
  %2328 = vmatmul.mubr.bf16.gmra.mxu0 %v796
  %v2329 = vpop.f32.mrf.mxu0
  %v2330 = vadd.f32 %v2233, %v2329
  %v2331 = vpop.f32.mrf.mxu0
  %v2332 = vpop.f32.mrf.mxu0
  %v2333 = vadd.f32 %v2236, %v2332
  %v2334 = vpop.f32.mrf.mxu0
  %2335 = vmatprep.mubr.bf16.mxu0 %v813
  %2336 = vmatmul.mubr.bf16.gmra.mxu0 %v812
  %v2337 = vpop.f32.mrf.mxu0
  %v2338 = vadd.f32 %v2241, %v2337
  %v2339 = vpop.f32.mrf.mxu0
  %v2340 = vpop.f32.mrf.mxu0
  %v2341 = vadd.f32 %v2244, %v2340
  %v2342 = vpop.f32.mrf.mxu0
  %2343 = vmatprep.mubr.bf16.mxu0 %v829
  %2344 = vmatmul.mubr.bf16.gmra.mxu0 %v828
  %v2345 = vpop.f32.mrf.mxu0
  %v2346 = vadd.f32 %v2249, %v2345
  %v2347 = vpop.f32.mrf.mxu0
  %v2348 = vpop.f32.mrf.mxu0
  %v2349 = vadd.f32 %v2252, %v2348
  %v2350 = vpop.f32.mrf.mxu0
  %2351 = vmatprep.mubr.bf16.mxu0 %v845
  %2352 = vmatmul.mubr.bf16.gmra.mxu0 %v844
  %v2353 = vpop.f32.mrf.mxu0
  %v2354 = vadd.f32 %v2257, %v2353
  %v2355 = vpop.f32.mrf.mxu0
  %v2356 = vpop.f32.mrf.mxu0
  %v2357 = vadd.f32 %v2260, %v2356
  %v2358 = vpop.f32.mrf.mxu0
  %2359 = vmatprep.mubr.bf16.mxu0 %v861
  %2360 = vmatmul.mubr.bf16.gmra.mxu0 %v860
  %v2361 = vpop.f32.mrf.mxu0
  %v2362 = vadd.f32 %v2265, %v2361
  %v2363 = vpop.f32.mrf.mxu0
  %v2364 = vpop.f32.mrf.mxu0
  %v2365 = vadd.f32 %v2268, %v2364
  %v2366 = vpop.f32.mrf.mxu0
  %2367 = vmatprep.mubr.bf16.mxu0 %v877
  %2368 = vmatmul.mubr.bf16.gmra.mxu0 %v876
  %v2369 = vpop.f32.mrf.mxu0
  %v2370 = vadd.f32 %v2273, %v2369
  %v2371 = vpop.f32.mrf.mxu0
  %v2372 = vpop.f32.mrf.mxu0
  %v2373 = vadd.f32 %v2276, %v2372
  %v2374 = vpop.f32.mrf.mxu0
  %2375 = vmatprep.mubr.bf16.mxu0 %v893
  %2376 = vmatmul.mubr.bf16.gmra.mxu0 %v892
  %v2377 = vpop.f32.mrf.mxu0
  %v2378 = vadd.f32 %v2281, %v2377
  %v2379 = vpop.f32.mrf.mxu0
  %v2380 = vpop.f32.mrf.mxu0
  %v2381 = vadd.f32 %v2284, %v2380
  %v2382 = vpop.f32.mrf.mxu0
  %2383 = vmatprep.mubr.bf16.mxu0 %v909
  %2384 = vmatmul.mubr.bf16.gmra.mxu0 %v908
  %v2385 = vpop.f32.mrf.mxu0
  %v2386 = vadd.f32 %v2289, %v2385
  %v2387 = vpop.f32.mrf.mxu0
  %v2388 = vpop.f32.mrf.mxu0
  %v2389 = vadd.f32 %v2292, %v2388
  %v2390 = vpop.f32.mrf.mxu0
  %2391 = vdwg.mxu0
  %2392 = vmatprep.subr.bf16.mxu0 0
  %2393 = vmatpush1.bf16.msra.mxu0 %v1657
  %2394 = vmatprep.subr.bf16.mxu0 0
  %2395 = vmatpush1.bf16.msra.mxu0 %v1656
  %2396 = vmatprep.subr.bf16.mxu0 0
  %2397 = vmatpush1.bf16.msra.mxu0 %v1655
  %2398 = vmatprep.subr.bf16.mxu0 0
  %2399 = vmatpush1.bf16.msra.mxu0 %v1654
  %2400 = vmatprep.subr.bf16.mxu0 0
  %2401 = vmatpush1.bf16.msra.mxu0 %v1653
  %2402 = vmatprep.subr.bf16.mxu0 0
  %2403 = vmatpush1.bf16.msra.mxu0 %v1652
  %2404 = vmatprep.subr.bf16.mxu0 0
  %2405 = vmatpush1.bf16.msra.mxu0 %v1651
  %2406 = vmatprep.subr.bf16.mxu0 0
  %2407 = vmatpush1.bf16.msra.mxu0 %v1650
  %2408 = vmatprep.subr.bf16.mxu0 0
  %2409 = vmatpush2.bf16.msra.mxu0 %v1665
  %2410 = vmatprep.subr.bf16.mxu0 0
  %2411 = vmatpush2.bf16.msra.mxu0 %v1664
  %2412 = vmatprep.subr.bf16.mxu0 0
  %2413 = vmatpush2.bf16.msra.mxu0 %v1663
  %2414 = vmatprep.subr.bf16.mxu0 0
  %2415 = vmatpush2.bf16.msra.mxu0 %v1662
  %2416 = vmatprep.subr.bf16.mxu0 0
  %2417 = vmatpush2.bf16.msra.mxu0 %v1661
  %2418 = vmatprep.subr.bf16.mxu0 0
  %2419 = vmatpush2.bf16.msra.mxu0 %v1660
  %2420 = vmatprep.subr.bf16.mxu0 0
  %2421 = vmatpush2.bf16.msra.mxu0 %v1659
  %2422 = vmatprep.subr.bf16.mxu0 0
  %2423 = vmatpush2.bf16.msra.mxu0 %v1658
  %2424 = vmatprep.mubr.bf16.mxu0 %v799
  %2425 = vmatmul.mubr.bf16.gmra.mxu0 %v798
  %v2426 = vpop.f32.mrf.mxu0
  %v2427 = vadd.f32 %v2330, %v2426
  %v2428 = vpop.f32.mrf.mxu0
  %v2429 = vpop.f32.mrf.mxu0
  %v2430 = vadd.f32 %v2333, %v2429
  %v2431 = vpop.f32.mrf.mxu0
  %2432 = vmatprep.mubr.bf16.mxu0 %v815
  %2433 = vmatmul.mubr.bf16.gmra.mxu0 %v814
  %v2434 = vpop.f32.mrf.mxu0
  %v2435 = vadd.f32 %v2338, %v2434
  %v2436 = vpop.f32.mrf.mxu0
  %v2437 = vpop.f32.mrf.mxu0
  %v2438 = vadd.f32 %v2341, %v2437
  %v2439 = vpop.f32.mrf.mxu0
  %2440 = vmatprep.mubr.bf16.mxu0 %v831
  %2441 = vmatmul.mubr.bf16.gmra.mxu0 %v830
  %v2442 = vpop.f32.mrf.mxu0
  %v2443 = vadd.f32 %v2346, %v2442
  %v2444 = vpop.f32.mrf.mxu0
  %v2445 = vpop.f32.mrf.mxu0
  %v2446 = vadd.f32 %v2349, %v2445
  %v2447 = vpop.f32.mrf.mxu0
  %2448 = vmatprep.mubr.bf16.mxu0 %v847
  %2449 = vmatmul.mubr.bf16.gmra.mxu0 %v846
  %v2450 = vpop.f32.mrf.mxu0
  %v2451 = vadd.f32 %v2354, %v2450
  %v2452 = vpop.f32.mrf.mxu0
  %v2453 = vpop.f32.mrf.mxu0
  %v2454 = vadd.f32 %v2357, %v2453
  %v2455 = vpop.f32.mrf.mxu0
  %2456 = vmatprep.mubr.bf16.mxu0 %v863
  %2457 = vmatmul.mubr.bf16.gmra.mxu0 %v862
  %v2458 = vpop.f32.mrf.mxu0
  %v2459 = vadd.f32 %v2362, %v2458
  %v2460 = vpop.f32.mrf.mxu0
  %v2461 = vpop.f32.mrf.mxu0
  %v2462 = vadd.f32 %v2365, %v2461
  %v2463 = vpop.f32.mrf.mxu0
  %2464 = vmatprep.mubr.bf16.mxu0 %v879
  %2465 = vmatmul.mubr.bf16.gmra.mxu0 %v878
  %v2466 = vpop.f32.mrf.mxu0
  %v2467 = vadd.f32 %v2370, %v2466
  %v2468 = vpop.f32.mrf.mxu0
  %v2469 = vpop.f32.mrf.mxu0
  %v2470 = vadd.f32 %v2373, %v2469
  %v2471 = vpop.f32.mrf.mxu0
  %2472 = vmatprep.mubr.bf16.mxu0 %v895
  %2473 = vmatmul.mubr.bf16.gmra.mxu0 %v894
  %v2474 = vpop.f32.mrf.mxu0
  %v2475 = vadd.f32 %v2378, %v2474
  %v2476 = vpop.f32.mrf.mxu0
  %v2477 = vpop.f32.mrf.mxu0
  %v2478 = vadd.f32 %v2381, %v2477
  %v2479 = vpop.f32.mrf.mxu0
  %2480 = vmatprep.mubr.bf16.mxu0 %v911
  %2481 = vmatmul.mubr.bf16.gmra.mxu0 %v910
  %v2482 = vpop.f32.mrf.mxu0
  %v2483 = vadd.f32 %v2386, %v2482
  %v2484 = vpop.f32.mrf.mxu0
  %v2485 = vpop.f32.mrf.mxu0
  %v2486 = vadd.f32 %v2389, %v2485
  %v2487 = vpop.f32.mrf.mxu0
  %2488 = vdwg.mxu0
  %2489 = vmatprep.subr.bf16.mxu0 0
  %2490 = vmatpush1.bf16.msra.mxu0 %v1673
  %2491 = vmatprep.subr.bf16.mxu0 0
  %2492 = vmatpush1.bf16.msra.mxu0 %v1672
  %2493 = vmatprep.subr.bf16.mxu0 0
  %2494 = vmatpush1.bf16.msra.mxu0 %v1671
  %2495 = vmatprep.subr.bf16.mxu0 0
  %2496 = vmatpush1.bf16.msra.mxu0 %v1670
  %2497 = vmatprep.subr.bf16.mxu0 0
  %2498 = vmatpush1.bf16.msra.mxu0 %v1669
  %2499 = vmatprep.subr.bf16.mxu0 0
  %2500 = vmatpush1.bf16.msra.mxu0 %v1668
  %2501 = vmatprep.subr.bf16.mxu0 0
  %2502 = vmatpush1.bf16.msra.mxu0 %v1667
  %2503 = vmatprep.subr.bf16.mxu0 0
  %2504 = vmatpush1.bf16.msra.mxu0 %v1666
  %2505 = vmatprep.subr.bf16.mxu0 0
  %2506 = vmatpush2.bf16.msra.mxu0 %v1681
  %2507 = vmatprep.subr.bf16.mxu0 0
  %2508 = vmatpush2.bf16.msra.mxu0 %v1680
  %2509 = vmatprep.subr.bf16.mxu0 0
  %2510 = vmatpush2.bf16.msra.mxu0 %v1679
  %2511 = vmatprep.subr.bf16.mxu0 0
  %2512 = vmatpush2.bf16.msra.mxu0 %v1678
  %2513 = vmatprep.subr.bf16.mxu0 0
  %2514 = vmatpush2.bf16.msra.mxu0 %v1677
  %2515 = vmatprep.subr.bf16.mxu0 0
  %2516 = vmatpush2.bf16.msra.mxu0 %v1676
  %2517 = vmatprep.subr.bf16.mxu0 0
  %2518 = vmatpush2.bf16.msra.mxu0 %v1675
  %2519 = vmatprep.subr.bf16.mxu0 0
  %2520 = vmatpush2.bf16.msra.mxu0 %v1674
  %2521 = vmatprep.mubr.bf16.mxu0 %v801
  %2522 = vmatmul.mubr.bf16.gmra.mxu0 %v800
  %v2523 = vpop.f32.mrf.mxu0
  %v2524 = vadd.f32 %v2427, %v2523
  %v2525 = vpop.f32.mrf.mxu0
  %v2526 = vpop.f32.mrf.mxu0
  %v2527 = vadd.f32 %v2430, %v2526
  %v2528 = vpop.f32.mrf.mxu0
  %2529 = vmatprep.mubr.bf16.mxu0 %v817
  %2530 = vmatmul.mubr.bf16.gmra.mxu0 %v816
  %v2531 = vpop.f32.mrf.mxu0
  %v2532 = vadd.f32 %v2435, %v2531
  %v2533 = vpop.f32.mrf.mxu0
  %v2534 = vpop.f32.mrf.mxu0
  %v2535 = vadd.f32 %v2438, %v2534
  %v2536 = vpop.f32.mrf.mxu0
  %2537 = vmatprep.mubr.bf16.mxu0 %v833
  %2538 = vmatmul.mubr.bf16.gmra.mxu0 %v832
  %v2539 = vpop.f32.mrf.mxu0
  %v2540 = vadd.f32 %v2443, %v2539
  %v2541 = vpop.f32.mrf.mxu0
  %v2542 = vpop.f32.mrf.mxu0
  %v2543 = vadd.f32 %v2446, %v2542
  %v2544 = vpop.f32.mrf.mxu0
  %2545 = vmatprep.mubr.bf16.mxu0 %v849
  %2546 = vmatmul.mubr.bf16.gmra.mxu0 %v848
  %v2547 = vpop.f32.mrf.mxu0
  %v2548 = vadd.f32 %v2451, %v2547
  %v2549 = vpop.f32.mrf.mxu0
  %v2550 = vpop.f32.mrf.mxu0
  %v2551 = vadd.f32 %v2454, %v2550
  %v2552 = vpop.f32.mrf.mxu0
  %2553 = vmatprep.mubr.bf16.mxu0 %v865
  %2554 = vmatmul.mubr.bf16.gmra.mxu0 %v864
  %v2555 = vpop.f32.mrf.mxu0
  %v2556 = vadd.f32 %v2459, %v2555
  %v2557 = vpop.f32.mrf.mxu0
  %v2558 = vpop.f32.mrf.mxu0
  %v2559 = vadd.f32 %v2462, %v2558
  %v2560 = vpop.f32.mrf.mxu0
  %2561 = vmatprep.mubr.bf16.mxu0 %v881
  %2562 = vmatmul.mubr.bf16.gmra.mxu0 %v880
  %v2563 = vpop.f32.mrf.mxu0
  %v2564 = vadd.f32 %v2467, %v2563
  %v2565 = vpop.f32.mrf.mxu0
  %v2566 = vpop.f32.mrf.mxu0
  %v2567 = vadd.f32 %v2470, %v2566
  %v2568 = vpop.f32.mrf.mxu0
  %2569 = vmatprep.mubr.bf16.mxu0 %v897
  %2570 = vmatmul.mubr.bf16.gmra.mxu0 %v896
  %v2571 = vpop.f32.mrf.mxu0
  %v2572 = vadd.f32 %v2475, %v2571
  %v2573 = vpop.f32.mrf.mxu0
  %v2574 = vpop.f32.mrf.mxu0
  %v2575 = vadd.f32 %v2478, %v2574
  %v2576 = vpop.f32.mrf.mxu0
  %2577 = vmatprep.mubr.bf16.mxu0 %v913
  %2578 = vmatmul.mubr.bf16.gmra.mxu0 %v912
  %v2579 = vpop.f32.mrf.mxu0
  %v2580 = vadd.f32 %v2483, %v2579
  %v2581 = vpop.f32.mrf.mxu0
  %v2582 = vpop.f32.mrf.mxu0
  %v2583 = vadd.f32 %v2486, %v2582
  %v2584 = vpop.f32.mrf.mxu0
  %2585 = vdwg.mxu0
  %v2586 = vld [vmem:[%s2] sm:$0x1]
  %v2587 = vld [vmem:[%s3] sm:$0x1]
  %v2588 = vadd.f32 %v2524, %v2527
  %v2589 = vadd.f32 %v2588, %v2532
  %v2590 = vadd.f32 %v2589, %v2535
  %v2591 = vadd.f32 %v2590, %v2540
  %v2592 = vadd.f32 %v2591, %v2543
  %v2593 = vadd.f32 %v2592, %v2548
  %v2594 = vadd.f32 %v2593, %v2551
  %v2595 = vadd.f32 %v2594, %v2556
  %v2596 = vadd.f32 %v2595, %v2559
  %v2597 = vadd.f32 %v2596, %v2564
  %v2598 = vadd.f32 %v2597, %v2567
  %v2599 = vadd.f32 %v2598, %v2572
  %v2600 = vadd.f32 %v2599, %v2575
  %v2601 = vadd.f32 %v2600, %v2580
  %v2602 = vadd.f32 %v2601, %v2583
  %v2603 = vrot.slane %v2602, 4
  %v2604 = vadd.f32 %v2602, %v2603
  %v2605 = vrot.slane %v2604, 2
  %v2606 = vadd.f32 %v2604, %v2605
  %v2607 = vrot.slane %v2606, 1
  %v2608 = vadd.f32 %v2606, %v2607
  %v2609 = vmul.f32 %v2608, 0.0078125
  %v2610 = vmul.f32 %v2524, %v2524
  %v2611 = vmul.f32 %v2527, %v2527
  %v2612 = vmul.f32 %v2532, %v2532
  %v2613 = vmul.f32 %v2535, %v2535
  %v2614 = vmul.f32 %v2540, %v2540
  %v2615 = vmul.f32 %v2543, %v2543
  %v2616 = vmul.f32 %v2548, %v2548
  %v2617 = vmul.f32 %v2551, %v2551
  %v2618 = vmul.f32 %v2556, %v2556
  %v2619 = vmul.f32 %v2559, %v2559
  %v2620 = vmul.f32 %v2564, %v2564
  %v2621 = vmul.f32 %v2567, %v2567
  %v2622 = vmul.f32 %v2572, %v2572
  %v2623 = vmul.f32 %v2575, %v2575
  %v2624 = vmul.f32 %v2580, %v2580
  %v2625 = vmul.f32 %v2583, %v2583
  %v2626 = vadd.f32 %v2610, %v2611
  %v2627 = vadd.f32 %v2626, %v2612
  %v2628 = vadd.f32 %v2627, %v2613
  %v2629 = vadd.f32 %v2628, %v2614
  %v2630 = vadd.f32 %v2629, %v2615
  %v2631 = vadd.f32 %v2630, %v2616
  %v2632 = vadd.f32 %v2631, %v2617
  %v2633 = vadd.f32 %v2632, %v2618
  %v2634 = vadd.f32 %v2633, %v2619
  %v2635 = vadd.f32 %v2634, %v2620
  %v2636 = vadd.f32 %v2635, %v2621
  %v2637 = vadd.f32 %v2636, %v2622
  %v2638 = vadd.f32 %v2637, %v2623
  %v2639 = vadd.f32 %v2638, %v2624
  %v2640 = vadd.f32 %v2639, %v2625
  %v2641 = vrot.slane %v2640, 4
  %v2642 = vadd.f32 %v2640, %v2641
  %v2643 = vrot.slane %v2642, 2
  %v2644 = vadd.f32 %v2642, %v2643
  %v2645 = vrot.slane %v2644, 1
  %v2646 = vadd.f32 %v2644, %v2645
  %v2647 = vmul.f32 %v2646, 0.0078125
  %v2648 = vmul.f32 %v2609, %v2609
  %v2649 = vsub.f32 %v2647, %v2648
  %v2650 = vmax.f32 %v2649, 0.0
  %v2651 = vsub.f32 %v2524, %v2609
  %v2652 = vsub.f32 %v2527, %v2609
  %v2653 = vsub.f32 %v2532, %v2609
  %v2654 = vsub.f32 %v2535, %v2609
  %v2655 = vsub.f32 %v2540, %v2609
  %v2656 = vsub.f32 %v2543, %v2609
  %v2657 = vsub.f32 %v2548, %v2609
  %v2658 = vsub.f32 %v2551, %v2609
  %v2659 = vsub.f32 %v2556, %v2609
  %v2660 = vsub.f32 %v2559, %v2609
  %v2661 = vsub.f32 %v2564, %v2609
  %v2662 = vsub.f32 %v2567, %v2609
  %v2663 = vsub.f32 %v2572, %v2609
  %v2664 = vsub.f32 %v2575, %v2609
  %v2665 = vsub.f32 %v2580, %v2609
  %v2666 = vsub.f32 %v2583, %v2609
  %v2667 = vadd.f32 %v2650, 1e-05
  %v2668 = vrsqrt.pop %v2667
  %v2669 = vmul.f32 %v2651, %v2668
  %v2670 = vmul.f32 %v2652, %v2668
  %v2671 = vmul.f32 %v2653, %v2668
  %v2672 = vmul.f32 %v2654, %v2668
  %v2673 = vmul.f32 %v2655, %v2668
  %v2674 = vmul.f32 %v2656, %v2668
  %v2675 = vmul.f32 %v2657, %v2668
  %v2676 = vmul.f32 %v2658, %v2668
  %v2677 = vmul.f32 %v2659, %v2668
  %v2678 = vmul.f32 %v2660, %v2668
  %v2679 = vmul.f32 %v2661, %v2668
  %v2680 = vmul.f32 %v2662, %v2668
  %v2681 = vmul.f32 %v2663, %v2668
  %v2682 = vmul.f32 %v2664, %v2668
  %v2683 = vmul.f32 %v2665, %v2668
  %v2684 = vmul.f32 %v2666, %v2668
  %v2686 = vlaneseq
  %v2687 = vshrl.u32 %v2686, 7
  %v2688 = vsub.s32 0, %v2687
  %v2689 = vrot.slane %v2586, %v2688
  %v2691 = vmul.f32 %v2669, %v2689
  %v2692 = vmul.f32 %v2670, %v2689
  %v2693 = vmul.f32 %v2671, %v2689
  %v2694 = vmul.f32 %v2672, %v2689
  %v2695 = vmul.f32 %v2673, %v2689
  %v2696 = vmul.f32 %v2674, %v2689
  %v2697 = vmul.f32 %v2675, %v2689
  %v2698 = vmul.f32 %v2676, %v2689
  %v2699 = vmul.f32 %v2677, %v2689
  %v2700 = vmul.f32 %v2678, %v2689
  %v2701 = vmul.f32 %v2679, %v2689
  %v2702 = vmul.f32 %v2680, %v2689
  %v2703 = vmul.f32 %v2681, %v2689
  %v2704 = vmul.f32 %v2682, %v2689
  %v2705 = vmul.f32 %v2683, %v2689
  %v2706 = vmul.f32 %v2684, %v2689
  %v2708 = vlaneseq
  %v2709 = vshrl.u32 %v2708, 7
  %v2710 = vsub.s32 0, %v2709
  %v2711 = vrot.slane %v2587, %v2710
  %v2713 = vadd.f32 %v2691, %v2711
  %v2714 = vadd.f32 %v2692, %v2711
  %v2715 = vadd.f32 %v2693, %v2711
  %v2716 = vadd.f32 %v2694, %v2711
  %v2717 = vadd.f32 %v2695, %v2711
  %v2718 = vadd.f32 %v2696, %v2711
  %v2719 = vadd.f32 %v2697, %v2711
  %v2720 = vadd.f32 %v2698, %v2711
  %v2721 = vadd.f32 %v2699, %v2711
  %v2722 = vadd.f32 %v2700, %v2711
  %v2723 = vadd.f32 %v2701, %v2711
  %v2724 = vadd.f32 %v2702, %v2711
  %v2725 = vadd.f32 %v2703, %v2711
  %v2726 = vadd.f32 %v2704, %v2711
  %v2727 = vadd.f32 %v2705, %v2711
  %v2728 = vadd.f32 %v2706, %v2711
  %v2729 = vmax.f32 %v2713, 0.0
  %v2730 = vmax.f32 %v2714, 0.0
  %v2731 = vmax.f32 %v2715, 0.0
  %v2732 = vmax.f32 %v2716, 0.0
  %v2733 = vmax.f32 %v2717, 0.0
  %v2734 = vmax.f32 %v2718, 0.0
  %v2735 = vmax.f32 %v2719, 0.0
  %v2736 = vmax.f32 %v2720, 0.0
  %v2737 = vmax.f32 %v2721, 0.0
  %v2738 = vmax.f32 %v2722, 0.0
  %v2739 = vmax.f32 %v2723, 0.0
  %v2740 = vmax.f32 %v2724, 0.0
  %v2741 = vmax.f32 %v2725, 0.0
  %v2742 = vmax.f32 %v2726, 0.0
  %v2743 = vmax.f32 %v2727, 0.0
  %v2744 = vmax.f32 %v2728, 0.0
  %v2745 = vpack.c.bf16 %v2730, %v2729
  %v2746 = vpack.c.bf16 %v2732, %v2731
  %v2747 = vpack.c.bf16 %v2734, %v2733
  %v2748 = vpack.c.bf16 %v2736, %v2735
  %v2749 = vpack.c.bf16 %v2738, %v2737
  %v2750 = vpack.c.bf16 %v2740, %v2739
  %v2751 = vpack.c.bf16 %v2742, %v2741
  %v2752 = vpack.c.bf16 %v2744, %v2743
  %v2761 = vunpack.c.l.b16 %v2745
  %v2762 = vunpack.c.h.b16 %v2745
  %v2763 = vunpack.c.l.b16 %v2746
  %v2764 = vunpack.c.h.b16 %v2746
  %v2765 = vunpack.c.l.b16 %v2747
  %v2766 = vunpack.c.h.b16 %v2747
  %v2767 = vunpack.c.l.b16 %v2748
  %v2768 = vunpack.c.h.b16 %v2748
  %v2769 = vunpack.c.l.b16 %v2749
  %v2770 = vunpack.c.h.b16 %v2749
  %v2771 = vunpack.c.l.b16 %v2750
  %v2772 = vunpack.c.h.b16 %v2750
  %v2773 = vunpack.c.l.b16 %v2751
  %v2774 = vunpack.c.h.b16 %v2751
  %v2775 = vunpack.c.l.b16 %v2752
  %v2776 = vunpack.c.h.b16 %v2752
  %v2777 = vpack.c.b16 %v2761, %v2761
  %v2778 = vpack.c.b16 %v2762, %v2762
  %v2779 = vpack.c.b16 %v2763, %v2763
  %v2780 = vpack.c.b16 %v2764, %v2764
  %v2781 = vpack.c.b16 %v2765, %v2765
  %v2782 = vpack.c.b16 %v2766, %v2766
  %v2783 = vpack.c.b16 %v2767, %v2767
  %v2784 = vpack.c.b16 %v2768, %v2768
  %v2785 = vpack.c.b16 %v2769, %v2769
  %v2786 = vpack.c.b16 %v2770, %v2770
  %v2787 = vpack.c.b16 %v2771, %v2771
  %v2788 = vpack.c.b16 %v2772, %v2772
  %v2789 = vpack.c.b16 %v2773, %v2773
  %v2790 = vpack.c.b16 %v2774, %v2774
  %v2791 = vpack.c.b16 %v2775, %v2775
  %v2792 = vpack.c.b16 %v2776, %v2776
  %2809 = vst [vmem:[%s4] sm:$0xf] %v2777
  %2810 = vst [vmem:[%s4 + $0x4] sm:$0xf] %v2778
  %2811 = vst [vmem:[%s4 + $0x8] sm:$0xf] %v2779
  %2812 = vst [vmem:[%s4 + $0xc] sm:$0xf] %v2780
  %2813 = vst [vmem:[%s4 + $0x10] sm:$0xf] %v2781
  %2814 = vst [vmem:[%s4 + $0x14] sm:$0xf] %v2782
  %2815 = vst [vmem:[%s4 + $0x18] sm:$0xf] %v2783
  %2816 = vst [vmem:[%s4 + $0x1c] sm:$0xf] %v2784
  %2817 = vst [vmem:[%s4 + $0x20] sm:$0xf] %v2785
  %2818 = vst [vmem:[%s4 + $0x24] sm:$0xf] %v2786
  %2819 = vst [vmem:[%s4 + $0x28] sm:$0xf] %v2787
  %2820 = vst [vmem:[%s4 + $0x2c] sm:$0xf] %v2788
  %2821 = vst [vmem:[%s4 + $0x30] sm:$0xf] %v2789
  %2822 = vst [vmem:[%s4 + $0x34] sm:$0xf] %v2790
  %2823 = vst [vmem:[%s4 + $0x38] sm:$0xf] %v2791
  %2824 = vst [vmem:[%s4 + $0x3c] sm:$0xf] %v2792
  // Predicated region
  $region18: #{generator_forward.8} parent=0 // pred_check
    _
  $region19: #{generator_forward.8} parent=0 // pred_check_branch
    %2826 = sbr.rel (0) target = $region21
  $region20: #{generator_forward.8} parent=0 // pred_region
    _
  $region21: #{generator_forward.8} parent=0 // pred_fallthru
    _
  // Predicated region
  $region22: #{generator_forward.8} parent=0 // pred_check
    _
  $region23: #{generator_forward.8} parent=0 // pred_check_branch
    %2828 = sbr.rel (0) target = $region25
  $region24: #{generator_forward.8} parent=0 // pred_region
    _
  $region25: #{generator_forward.8} parent=0 // pred_fallthru
    _

// kernel: generator_forward.9
$region0: #{generator_forward.9}
  #allocation0 [shape = 'u32[]', space=smem, size = 0x4, offset = 0x4, fixed_abs, tag = 'smem constant byte address 0x4 - core index']
  #allocation1 [shape = 'u32[144,128]{1,0:T(1,128)}', space=vmem, size = 0x12000, scoped, tag = 'internal scratch']
  %s0 = inlined_call_operand.vmem [shape: bf16[32,2048], index: 0, kind: input, shape index: {}]
  %s1 = inlined_call_operand.vmem [shape: bf16[2048,128], index: 1, kind: input, shape index: {}]
  %s2 = inlined_call_operand.vmem [shape: f32[1,128], index: 2, kind: input, shape index: {}]
  %s3 = inlined_call_operand.vmem [shape: f32[1,128], index: 3, kind: input, shape index: {}]
  %s4 = inlined_call_operand.vmem [shape: bf16[32,128], index: 4, kind: output, shape index: {}]
  %s5 = sld [smem:[#allocation0]]
  $region26: #{generator_forward.9} parent=0
    _
  %s7 = ssub.s32 1, %s5
  %s8 = scalar_select 0, %s7, %s5
  // Predicated region
  $region2: #{generator_forward.9} parent=0 // pred_check
    _
  $region3: #{generator_forward.9} parent=0 // pred_check_branch
    %10 = sbr.rel (0) target = $region5
  $region4: #{generator_forward.9} parent=0 // pred_region
    _
  $region5: #{generator_forward.9} parent=0 // pred_fallthru
    _
  // Predicated region
  $region6: #{generator_forward.9} parent=0 // pred_check
    _
  $region7: #{generator_forward.9} parent=0 // pred_check_branch
    %12 = sbr.rel (0) target = $region9
  $region8: #{generator_forward.9} parent=0 // pred_region
    _
  $region9: #{generator_forward.9} parent=0 // pred_fallthru
    _
  // Predicated region
  $region10: #{generator_forward.9} parent=0 // pred_check
    _
  $region11: #{generator_forward.9} parent=0 // pred_check_branch
    %14 = sbr.rel (0) target = $region13
  $region12: #{generator_forward.9} parent=0 // pred_region
    _
  $region13: #{generator_forward.9} parent=0 // pred_fallthru
    _
  // Predicated region
  $region14: #{generator_forward.9} parent=0 // pred_check
    _
  $region15: #{generator_forward.9} parent=0 // pred_check_branch
    %16 = sbr.rel (0) target = $region17
  $region16: #{generator_forward.9} parent=0 // pred_region
    _
  $region17: #{generator_forward.9} parent=0 // pred_fallthru
    _
  %v18 = vld [vmem:[%s0] sm:$0xff]
  %v19 = vld [vmem:[%s0 + $0x8] sm:$0xff]
  %v20 = vld [vmem:[%s0 + $0x10] sm:$0xff]
  %v21 = vld [vmem:[%s0 + $0x18] sm:$0xff]
  %v22 = vld [vmem:[%s0 + $0x20] sm:$0xff]
  %v23 = vld [vmem:[%s0 + $0x28] sm:$0xff]
  %v24 = vld [vmem:[%s0 + $0x30] sm:$0xff]
  %v25 = vld [vmem:[%s0 + $0x38] sm:$0xff]
  %v26 = vld [vmem:[%s0 + $0x40] sm:$0xff]
  %v27 = vld [vmem:[%s0 + $0x48] sm:$0xff]
  %v28 = vld [vmem:[%s0 + $0x50] sm:$0xff]
  %v29 = vld [vmem:[%s0 + $0x58] sm:$0xff]
  %v30 = vld [vmem:[%s0 + $0x60] sm:$0xff]
  %v31 = vld [vmem:[%s0 + $0x68] sm:$0xff]
  %v32 = vld [vmem:[%s0 + $0x70] sm:$0xff]
  %v33 = vld [vmem:[%s0 + $0x78] sm:$0xff]
  %v34 = vld [vmem:[%s0 + $0x80] sm:$0xff]
  %v35 = vld [vmem:[%s0 + $0x88] sm:$0xff]
  %v36 = vld [vmem:[%s0 + $0x90] sm:$0xff]
  %v37 = vld [vmem:[%s0 + $0x98] sm:$0xff]
  %v38 = vld [vmem:[%s0 + $0xa0] sm:$0xff]
  %v39 = vld [vmem:[%s0 + $0xa8] sm:$0xff]
  %v40 = vld [vmem:[%s0 + $0xb0] sm:$0xff]
  %v41 = vld [vmem:[%s0 + $0xb8] sm:$0xff]
  %v42 = vld [vmem:[%s0 + $0xc0] sm:$0xff]
  %v43 = vld [vmem:[%s0 + $0xc8] sm:$0xff]
  %v44 = vld [vmem:[%s0 + $0xd0] sm:$0xff]
  %v45 = vld [vmem:[%s0 + $0xd8] sm:$0xff]
  %v46 = vld [vmem:[%s0 + $0xe0] sm:$0xff]
  %v47 = vld [vmem:[%s0 + $0xe8] sm:$0xff]
  %v48 = vld [vmem:[%s0 + $0xf0] sm:$0xff]
  %v49 = vld [vmem:[%s0 + $0xf8] sm:$0xff]
  %v50 = vld [vmem:[%s1] sm:$0xf]
  %v51 = vld [vmem:[%s1 + $0x4] sm:$0xf]
  %v52 = vld [vmem:[%s1 + $0x8] sm:$0xf]
  %v53 = vld [vmem:[%s1 + $0xc] sm:$0xf]
  %v54 = vld [vmem:[%s1 + $0x10] sm:$0xf]
  %v55 = vld [vmem:[%s1 + $0x14] sm:$0xf]
  %v56 = vld [vmem:[%s1 + $0x18] sm:$0xf]
  %v57 = vld [vmem:[%s1 + $0x1c] sm:$0xf]
  %v58 = vld [vmem:[%s1 + $0x20] sm:$0xf]
  %v59 = vld [vmem:[%s1 + $0x24] sm:$0xf]
  %v60 = vld [vmem:[%s1 + $0x28] sm:$0xf]
  %v61 = vld [vmem:[%s1 + $0x2c] sm:$0xf]
  %v62 = vld [vmem:[%s1 + $0x30] sm:$0xf]
  %v63 = vld [vmem:[%s1 + $0x34] sm:$0xf]
  %v64 = vld [vmem:[%s1 + $0x38] sm:$0xf]
  %v65 = vld [vmem:[%s1 + $0x3c] sm:$0xf]
  %v66 = vld [vmem:[%s1 + $0x40] sm:$0xf]
  %v67 = vld [vmem:[%s1 + $0x44] sm:$0xf]
  %v68 = vld [vmem:[%s1 + $0x48] sm:$0xf]
  %v69 = vld [vmem:[%s1 + $0x4c] sm:$0xf]
  %v70 = vld [vmem:[%s1 + $0x50] sm:$0xf]
  %v71 = vld [vmem:[%s1 + $0x54] sm:$0xf]
  %v72 = vld [vmem:[%s1 + $0x58] sm:$0xf]
  %v73 = vld [vmem:[%s1 + $0x5c] sm:$0xf]
  %v74 = vld [vmem:[%s1 + $0x60] sm:$0xf]
  %v75 = vld [vmem:[%s1 + $0x64] sm:$0xf]
  %v76 = vld [vmem:[%s1 + $0x68] sm:$0xf]
  %v77 = vld [vmem:[%s1 + $0x6c] sm:$0xf]
  %v78 = vld [vmem:[%s1 + $0x70] sm:$0xf]
  %v79 = vld [vmem:[%s1 + $0x74] sm:$0xf]
  %v80 = vld [vmem:[%s1 + $0x78] sm:$0xf]
  %v81 = vld [vmem:[%s1 + $0x7c] sm:$0xf]
  %v82 = vld [vmem:[%s1 + $0x80] sm:$0xf]
  %v83 = vld [vmem:[%s1 + $0x84] sm:$0xf]
  %v84 = vld [vmem:[%s1 + $0x88] sm:$0xf]
  %v85 = vld [vmem:[%s1 + $0x8c] sm:$0xf]
  %v86 = vld [vmem:[%s1 + $0x90] sm:$0xf]
  %v87 = vld [vmem:[%s1 + $0x94] sm:$0xf]
  %v88 = vld [vmem:[%s1 + $0x98] sm:$0xf]
  %v89 = vld [vmem:[%s1 + $0x9c] sm:$0xf]
  %v90 = vld [vmem:[%s1 + $0xa0] sm:$0xf]
  %v91 = vld [vmem:[%s1 + $0xa4] sm:$0xf]
  %v92 = vld [vmem:[%s1 + $0xa8] sm:$0xf]
  %v93 = vld [vmem:[%s1 + $0xac] sm:$0xf]
  %v94 = vld [vmem:[%s1 + $0xb0] sm:$0xf]
  %v95 = vld [vmem:[%s1 + $0xb4] sm:$0xf]
  %v96 = vld [vmem:[%s1 + $0xb8] sm:$0xf]
  %v97 = vld [vmem:[%s1 + $0xbc] sm:$0xf]
  %v98 = vld [vmem:[%s1 + $0xc0] sm:$0xf]
  %v99 = vld [vmem:[%s1 + $0xc4] sm:$0xf]
  %v100 = vld [vmem:[%s1 + $0xc8] sm:$0xf]
  %v101 = vld [vmem:[%s1 + $0xcc] sm:$0xf]
  %v102 = vld [vmem:[%s1 + $0xd0] sm:$0xf]
  %v103 = vld [vmem:[%s1 + $0xd4] sm:$0xf]
  %v104 = vld [vmem:[%s1 + $0xd8] sm:$0xf]
  %v105 = vld [vmem:[%s1 + $0xdc] sm:$0xf]
  %v106 = vld [vmem:[%s1 + $0xe0] sm:$0xf]
  %v107 = vld [vmem:[%s1 + $0xe4] sm:$0xf]
  %v108 = vld [vmem:[%s1 + $0xe8] sm:$0xf]
  %v109 = vld [vmem:[%s1 + $0xec] sm:$0xf]
  %v110 = vld [vmem:[%s1 + $0xf0] sm:$0xf]
  %v111 = vld [vmem:[%s1 + $0xf4] sm:$0xf]
  %v112 = vld [vmem:[%s1 + $0xf8] sm:$0xf]
  %v113 = vld [vmem:[%s1 + $0xfc] sm:$0xf]
  %v114 = vld [vmem:[%s1 + $0x100] sm:$0xf]
  %v115 = vld [vmem:[%s1 + $0x104] sm:$0xf]
  %v116 = vld [vmem:[%s1 + $0x108] sm:$0xf]
  %v117 = vld [vmem:[%s1 + $0x10c] sm:$0xf]
  %v118 = vld [vmem:[%s1 + $0x110] sm:$0xf]
  %v119 = vld [vmem:[%s1 + $0x114] sm:$0xf]
  %v120 = vld [vmem:[%s1 + $0x118] sm:$0xf]
  %v121 = vld [vmem:[%s1 + $0x11c] sm:$0xf]
  %v122 = vld [vmem:[%s1 + $0x120] sm:$0xf]
  %v123 = vld [vmem:[%s1 + $0x124] sm:$0xf]
  %v124 = vld [vmem:[%s1 + $0x128] sm:$0xf]
  %v125 = vld [vmem:[%s1 + $0x12c] sm:$0xf]
  %v126 = vld [vmem:[%s1 + $0x130] sm:$0xf]
  %v127 = vld [vmem:[%s1 + $0x134] sm:$0xf]
  %v128 = vld [vmem:[%s1 + $0x138] sm:$0xf]
  %v129 = vld [vmem:[%s1 + $0x13c] sm:$0xf]
  %v130 = vld [vmem:[%s1 + $0x140] sm:$0xf]
  %v131 = vld [vmem:[%s1 + $0x144] sm:$0xf]
  %v132 = vld [vmem:[%s1 + $0x148] sm:$0xf]
  %v133 = vld [vmem:[%s1 + $0x14c] sm:$0xf]
  %v134 = vld [vmem:[%s1 + $0x150] sm:$0xf]
  %v135 = vld [vmem:[%s1 + $0x154] sm:$0xf]
  %v136 = vld [vmem:[%s1 + $0x158] sm:$0xf]
  %v137 = vld [vmem:[%s1 + $0x15c] sm:$0xf]
  %v138 = vld [vmem:[%s1 + $0x160] sm:$0xf]
  %v139 = vld [vmem:[%s1 + $0x164] sm:$0xf]
  %v140 = vld [vmem:[%s1 + $0x168] sm:$0xf]
  %v141 = vld [vmem:[%s1 + $0x16c] sm:$0xf]
  %v142 = vld [vmem:[%s1 + $0x170] sm:$0xf]
  %v143 = vld [vmem:[%s1 + $0x174] sm:$0xf]
  %v144 = vld [vmem:[%s1 + $0x178] sm:$0xf]
  %v145 = vld [vmem:[%s1 + $0x17c] sm:$0xf]
  %v146 = vld [vmem:[%s1 + $0x180] sm:$0xf]
  %v147 = vld [vmem:[%s1 + $0x184] sm:$0xf]
  %v148 = vld [vmem:[%s1 + $0x188] sm:$0xf]
  %v149 = vld [vmem:[%s1 + $0x18c] sm:$0xf]
  %v150 = vld [vmem:[%s1 + $0x190] sm:$0xf]
  %v151 = vld [vmem:[%s1 + $0x194] sm:$0xf]
  %v152 = vld [vmem:[%s1 + $0x198] sm:$0xf]
  %v153 = vld [vmem:[%s1 + $0x19c] sm:$0xf]
  %v154 = vld [vmem:[%s1 + $0x1a0] sm:$0xf]
  %v155 = vld [vmem:[%s1 + $0x1a4] sm:$0xf]
  %v156 = vld [vmem:[%s1 + $0x1a8] sm:$0xf]
  %v157 = vld [vmem:[%s1 + $0x1ac] sm:$0xf]
  %v158 = vld [vmem:[%s1 + $0x1b0] sm:$0xf]
  %v159 = vld [vmem:[%s1 + $0x1b4] sm:$0xf]
  %v160 = vld [vmem:[%s1 + $0x1b8] sm:$0xf]
  %v161 = vld [vmem:[%s1 + $0x1bc] sm:$0xf]
  %v162 = vld [vmem:[%s1 + $0x1c0] sm:$0xf]
  %v163 = vld [vmem:[%s1 + $0x1c4] sm:$0xf]
  %v164 = vld [vmem:[%s1 + $0x1c8] sm:$0xf]
  %v165 = vld [vmem:[%s1 + $0x1cc] sm:$0xf]
  %v166 = vld [vmem:[%s1 + $0x1d0] sm:$0xf]
  %v167 = vld [vmem:[%s1 + $0x1d4] sm:$0xf]
  %v168 = vld [vmem:[%s1 + $0x1d8] sm:$0xf]
  %v169 = vld [vmem:[%s1 + $0x1dc] sm:$0xf]
  %v170 = vld [vmem:[%s1 + $0x1e0] sm:$0xf]
  %v171 = vld [vmem:[%s1 + $0x1e4] sm:$0xf]
  %v172 = vld [vmem:[%s1 + $0x1e8] sm:$0xf]
  %v173 = vld [vmem:[%s1 + $0x1ec] sm:$0xf]
  %v174 = vld [vmem:[%s1 + $0x1f0] sm:$0xf]
  %v175 = vld [vmem:[%s1 + $0x1f4] sm:$0xf]
  %v176 = vld [vmem:[%s1 + $0x1f8] sm:$0xf]
  %v177 = vld [vmem:[%s1 + $0x1fc] sm:$0xf]
  %v178 = vld [vmem:[%s1 + $0x200] sm:$0xf]
  %v179 = vld [vmem:[%s1 + $0x204] sm:$0xf]
  %v180 = vld [vmem:[%s1 + $0x208] sm:$0xf]
  %v181 = vld [vmem:[%s1 + $0x20c] sm:$0xf]
  %v182 = vld [vmem:[%s1 + $0x210] sm:$0xf]
  %v183 = vld [vmem:[%s1 + $0x214] sm:$0xf]
  %v184 = vld [vmem:[%s1 + $0x218] sm:$0xf]
  %v185 = vld [vmem:[%s1 + $0x21c] sm:$0xf]
  %v186 = vld [vmem:[%s1 + $0x220] sm:$0xf]
  %v187 = vld [vmem:[%s1 + $0x224] sm:$0xf]
  %v188 = vld [vmem:[%s1 + $0x228] sm:$0xf]
  %v189 = vld [vmem:[%s1 + $0x22c] sm:$0xf]
  %v190 = vld [vmem:[%s1 + $0x230] sm:$0xf]
  %v191 = vld [vmem:[%s1 + $0x234] sm:$0xf]
  %v192 = vld [vmem:[%s1 + $0x238] sm:$0xf]
  %v193 = vld [vmem:[%s1 + $0x23c] sm:$0xf]
  %v194 = vld [vmem:[%s1 + $0x240] sm:$0xf]
  %v195 = vld [vmem:[%s1 + $0x244] sm:$0xf]
  %v196 = vld [vmem:[%s1 + $0x248] sm:$0xf]
  %v197 = vld [vmem:[%s1 + $0x24c] sm:$0xf]
  %v198 = vld [vmem:[%s1 + $0x250] sm:$0xf]
  %v199 = vld [vmem:[%s1 + $0x254] sm:$0xf]
  %v200 = vld [vmem:[%s1 + $0x258] sm:$0xf]
  %v201 = vld [vmem:[%s1 + $0x25c] sm:$0xf]
  %v202 = vld [vmem:[%s1 + $0x260] sm:$0xf]
  %v203 = vld [vmem:[%s1 + $0x264] sm:$0xf]
  %v204 = vld [vmem:[%s1 + $0x268] sm:$0xf]
  %v205 = vld [vmem:[%s1 + $0x26c] sm:$0xf]
  %v206 = vld [vmem:[%s1 + $0x270] sm:$0xf]
  %v207 = vld [vmem:[%s1 + $0x274] sm:$0xf]
  %v208 = vld [vmem:[%s1 + $0x278] sm:$0xf]
  %v209 = vld [vmem:[%s1 + $0x27c] sm:$0xf]
  %v210 = vld [vmem:[%s1 + $0x280] sm:$0xf]
  %v211 = vld [vmem:[%s1 + $0x284] sm:$0xf]
  %v212 = vld [vmem:[%s1 + $0x288] sm:$0xf]
  %v213 = vld [vmem:[%s1 + $0x28c] sm:$0xf]
  %v214 = vld [vmem:[%s1 + $0x290] sm:$0xf]
  %v215 = vld [vmem:[%s1 + $0x294] sm:$0xf]
  %v216 = vld [vmem:[%s1 + $0x298] sm:$0xf]
  %v217 = vld [vmem:[%s1 + $0x29c] sm:$0xf]
  %v218 = vld [vmem:[%s1 + $0x2a0] sm:$0xf]
  %v219 = vld [vmem:[%s1 + $0x2a4] sm:$0xf]
  %v220 = vld [vmem:[%s1 + $0x2a8] sm:$0xf]
  %v221 = vld [vmem:[%s1 + $0x2ac] sm:$0xf]
  %v222 = vld [vmem:[%s1 + $0x2b0] sm:$0xf]
  %v223 = vld [vmem:[%s1 + $0x2b4] sm:$0xf]
  %v224 = vld [vmem:[%s1 + $0x2b8] sm:$0xf]
  %v225 = vld [vmem:[%s1 + $0x2bc] sm:$0xf]
  %v226 = vld [vmem:[%s1 + $0x2c0] sm:$0xf]
  %v227 = vld [vmem:[%s1 + $0x2c4] sm:$0xf]
  %v228 = vld [vmem:[%s1 + $0x2c8] sm:$0xf]
  %v229 = vld [vmem:[%s1 + $0x2cc] sm:$0xf]
  %v230 = vld [vmem:[%s1 + $0x2d0] sm:$0xf]
  %v231 = vld [vmem:[%s1 + $0x2d4] sm:$0xf]
  %v232 = vld [vmem:[%s1 + $0x2d8] sm:$0xf]
  %v233 = vld [vmem:[%s1 + $0x2dc] sm:$0xf]
  %v234 = vld [vmem:[%s1 + $0x2e0] sm:$0xf]
  %v235 = vld [vmem:[%s1 + $0x2e4] sm:$0xf]
  %v236 = vld [vmem:[%s1 + $0x2e8] sm:$0xf]
  %v237 = vld [vmem:[%s1 + $0x2ec] sm:$0xf]
  %v238 = vld [vmem:[%s1 + $0x2f0] sm:$0xf]
  %v239 = vld [vmem:[%s1 + $0x2f4] sm:$0xf]
  %v240 = vld [vmem:[%s1 + $0x2f8] sm:$0xf]
  %v241 = vld [vmem:[%s1 + $0x2fc] sm:$0xf]
  %v242 = vld [vmem:[%s1 + $0x300] sm:$0xf]
  %v243 = vld [vmem:[%s1 + $0x304] sm:$0xf]
  %v244 = vld [vmem:[%s1 + $0x308] sm:$0xf]
  %v245 = vld [vmem:[%s1 + $0x30c] sm:$0xf]
  %v246 = vld [vmem:[%s1 + $0x310] sm:$0xf]
  %v247 = vld [vmem:[%s1 + $0x314] sm:$0xf]
  %v248 = vld [vmem:[%s1 + $0x318] sm:$0xf]
  %v249 = vld [vmem:[%s1 + $0x31c] sm:$0xf]
  %v250 = vld [vmem:[%s1 + $0x320] sm:$0xf]
  %v251 = vld [vmem:[%s1 + $0x324] sm:$0xf]
  %v252 = vld [vmem:[%s1 + $0x328] sm:$0xf]
  %v253 = vld [vmem:[%s1 + $0x32c] sm:$0xf]
  %v254 = vld [vmem:[%s1 + $0x330] sm:$0xf]
  %v255 = vld [vmem:[%s1 + $0x334] sm:$0xf]
  %v256 = vld [vmem:[%s1 + $0x338] sm:$0xf]
  %v257 = vld [vmem:[%s1 + $0x33c] sm:$0xf]
  %v258 = vld [vmem:[%s1 + $0x340] sm:$0xf]
  %v259 = vld [vmem:[%s1 + $0x344] sm:$0xf]
  %v260 = vld [vmem:[%s1 + $0x348] sm:$0xf]
  %v261 = vld [vmem:[%s1 + $0x34c] sm:$0xf]
  %v262 = vld [vmem:[%s1 + $0x350] sm:$0xf]
  %v263 = vld [vmem:[%s1 + $0x354] sm:$0xf]
  %v264 = vld [vmem:[%s1 + $0x358] sm:$0xf]
  %v265 = vld [vmem:[%s1 + $0x35c] sm:$0xf]
  %v266 = vld [vmem:[%s1 + $0x360] sm:$0xf]
  %v267 = vld [vmem:[%s1 + $0x364] sm:$0xf]
  %v268 = vld [vmem:[%s1 + $0x368] sm:$0xf]
  %v269 = vld [vmem:[%s1 + $0x36c] sm:$0xf]
  %v270 = vld [vmem:[%s1 + $0x370] sm:$0xf]
  %v271 = vld [vmem:[%s1 + $0x374] sm:$0xf]
  %v272 = vld [vmem:[%s1 + $0x378] sm:$0xf]
  %v273 = vld [vmem:[%s1 + $0x37c] sm:$0xf]
  %v274 = vld [vmem:[%s1 + $0x380] sm:$0xf]
  %v275 = vld [vmem:[%s1 + $0x384] sm:$0xf]
  %v276 = vld [vmem:[%s1 + $0x388] sm:$0xf]
  %v277 = vld [vmem:[%s1 + $0x38c] sm:$0xf]
  %v278 = vld [vmem:[%s1 + $0x390] sm:$0xf]
  %v279 = vld [vmem:[%s1 + $0x394] sm:$0xf]
  %v280 = vld [vmem:[%s1 + $0x398] sm:$0xf]
  %v281 = vld [vmem:[%s1 + $0x39c] sm:$0xf]
  %v282 = vld [vmem:[%s1 + $0x3a0] sm:$0xf]
  %v283 = vld [vmem:[%s1 + $0x3a4] sm:$0xf]
  %v284 = vld [vmem:[%s1 + $0x3a8] sm:$0xf]
  %v285 = vld [vmem:[%s1 + $0x3ac] sm:$0xf]
  %v286 = vld [vmem:[%s1 + $0x3b0] sm:$0xf]
  %v287 = vld [vmem:[%s1 + $0x3b4] sm:$0xf]
  %v288 = vld [vmem:[%s1 + $0x3b8] sm:$0xf]
  %v289 = vld [vmem:[%s1 + $0x3bc] sm:$0xf]
  %v290 = vld [vmem:[%s1 + $0x3c0] sm:$0xf]
  %v291 = vld [vmem:[%s1 + $0x3c4] sm:$0xf]
  %v292 = vld [vmem:[%s1 + $0x3c8] sm:$0xf]
  %v293 = vld [vmem:[%s1 + $0x3cc] sm:$0xf]
  %v294 = vld [vmem:[%s1 + $0x3d0] sm:$0xf]
  %v295 = vld [vmem:[%s1 + $0x3d4] sm:$0xf]
  %v296 = vld [vmem:[%s1 + $0x3d8] sm:$0xf]
  %v297 = vld [vmem:[%s1 + $0x3dc] sm:$0xf]
  %v298 = vld [vmem:[%s1 + $0x3e0] sm:$0xf]
  %v299 = vld [vmem:[%s1 + $0x3e4] sm:$0xf]
  %v300 = vld [vmem:[%s1 + $0x3e8] sm:$0xf]
  %v301 = vld [vmem:[%s1 + $0x3ec] sm:$0xf]
  %v302 = vld [vmem:[%s1 + $0x3f0] sm:$0xf]
  %v303 = vld [vmem:[%s1 + $0x3f4] sm:$0xf]
  %v304 = vld [vmem:[%s1 + $0x3f8] sm:$0xf]
  %v305 = vld [vmem:[%s1 + $0x3fc] sm:$0xf]
  %v338 = vunpack.c.l.b16 %v18
  %v339 = vunpack.c.h.b16 %v18
  %v340 = vunpack.c.l.b16 %v19
  %v341 = vunpack.c.h.b16 %v19
  %v342 = vunpack.c.l.b16 %v20
  %v343 = vunpack.c.h.b16 %v20
  %v344 = vunpack.c.l.b16 %v21
  %v345 = vunpack.c.h.b16 %v21
  %v346 = vunpack.c.l.b16 %v22
  %v347 = vunpack.c.h.b16 %v22
  %v348 = vunpack.c.l.b16 %v23
  %v349 = vunpack.c.h.b16 %v23
  %v350 = vunpack.c.l.b16 %v24
  %v351 = vunpack.c.h.b16 %v24
  %v352 = vunpack.c.l.b16 %v25
  %v353 = vunpack.c.h.b16 %v25
  %v354 = vunpack.c.l.b16 %v26
  %v355 = vunpack.c.h.b16 %v26
  %v356 = vunpack.c.l.b16 %v27
  %v357 = vunpack.c.h.b16 %v27
  %v358 = vunpack.c.l.b16 %v28
  %v359 = vunpack.c.h.b16 %v28
  %v360 = vunpack.c.l.b16 %v29
  %v361 = vunpack.c.h.b16 %v29
  %v362 = vunpack.c.l.b16 %v30
  %v363 = vunpack.c.h.b16 %v30
  %v364 = vunpack.c.l.b16 %v31
  %v365 = vunpack.c.h.b16 %v31
  %v366 = vunpack.c.l.b16 %v32
  %v367 = vunpack.c.h.b16 %v32
  %v368 = vunpack.c.l.b16 %v33
  %v369 = vunpack.c.h.b16 %v33
  %v370 = vunpack.c.l.b16 %v34
  %v371 = vunpack.c.h.b16 %v34
  %v372 = vunpack.c.l.b16 %v35
  %v373 = vunpack.c.h.b16 %v35
  %v374 = vunpack.c.l.b16 %v36
  %v375 = vunpack.c.h.b16 %v36
  %v376 = vunpack.c.l.b16 %v37
  %v377 = vunpack.c.h.b16 %v37
  %v378 = vunpack.c.l.b16 %v38
  %v379 = vunpack.c.h.b16 %v38
  %v380 = vunpack.c.l.b16 %v39
  %v381 = vunpack.c.h.b16 %v39
  %v382 = vunpack.c.l.b16 %v40
  %v383 = vunpack.c.h.b16 %v40
  %v384 = vunpack.c.l.b16 %v41
  %v385 = vunpack.c.h.b16 %v41
  %v386 = vunpack.c.l.b16 %v42
  %v387 = vunpack.c.h.b16 %v42
  %v388 = vunpack.c.l.b16 %v43
  %v389 = vunpack.c.h.b16 %v43
  %v390 = vunpack.c.l.b16 %v44
  %v391 = vunpack.c.h.b16 %v44
  %v392 = vunpack.c.l.b16 %v45
  %v393 = vunpack.c.h.b16 %v45
  %v394 = vunpack.c.l.b16 %v46
  %v395 = vunpack.c.h.b16 %v46
  %v396 = vunpack.c.l.b16 %v47
  %v397 = vunpack.c.h.b16 %v47
  %v398 = vunpack.c.l.b16 %v48
  %v399 = vunpack.c.h.b16 %v48
  %v400 = vunpack.c.l.b16 %v49
  %v401 = vunpack.c.h.b16 %v49
  %v402 = vpack.c.b16 %v354, %v338
  %v403 = vpack.c.b16 %v355, %v339
  %v404 = vpack.c.b16 %v356, %v340
  %v405 = vpack.c.b16 %v357, %v341
  %v406 = vpack.c.b16 %v358, %v342
  %v407 = vpack.c.b16 %v359, %v343
  %v408 = vpack.c.b16 %v360, %v344
  %v409 = vpack.c.b16 %v361, %v345
  %v410 = vpack.c.b16 %v362, %v346
  %v411 = vpack.c.b16 %v363, %v347
  %v412 = vpack.c.b16 %v364, %v348
  %v413 = vpack.c.b16 %v365, %v349
  %v414 = vpack.c.b16 %v366, %v350
  %v415 = vpack.c.b16 %v367, %v351
  %v416 = vpack.c.b16 %v368, %v352
  %v417 = vpack.c.b16 %v369, %v353
  %v418 = vpack.c.b16 %v386, %v370
  %v419 = vpack.c.b16 %v387, %v371
  %v420 = vpack.c.b16 %v388, %v372
  %v421 = vpack.c.b16 %v389, %v373
  %v422 = vpack.c.b16 %v390, %v374
  %v423 = vpack.c.b16 %v391, %v375
  %v424 = vpack.c.b16 %v392, %v376
  %v425 = vpack.c.b16 %v393, %v377
  %v426 = vpack.c.b16 %v394, %v378
  %v427 = vpack.c.b16 %v395, %v379
  %v428 = vpack.c.b16 %v396, %v380
  %v429 = vpack.c.b16 %v397, %v381
  %v430 = vpack.c.b16 %v398, %v382
  %v431 = vpack.c.b16 %v399, %v383
  %v432 = vpack.c.b16 %v400, %v384
  %v433 = vpack.c.b16 %v401, %v385
  %v722 = vunpack.c.l.b16 %v50
  %v723 = vunpack.c.l.b16 %v51
  %v724 = vunpack.c.l.b16 %v52
  %v725 = vunpack.c.l.b16 %v53
  %v726 = vunpack.c.l.b16 %v54
  %v727 = vunpack.c.l.b16 %v55
  %v728 = vunpack.c.l.b16 %v56
  %v729 = vunpack.c.l.b16 %v57
  %v730 = vunpack.c.l.b16 %v58
  %v731 = vunpack.c.l.b16 %v59
  %v732 = vunpack.c.l.b16 %v60
  %v733 = vunpack.c.l.b16 %v61
  %v734 = vunpack.c.l.b16 %v62
  %v735 = vunpack.c.l.b16 %v63
  %v736 = vunpack.c.l.b16 %v64
  %v737 = vunpack.c.l.b16 %v65
  %v738 = vunpack.c.l.b16 %v66
  %v739 = vunpack.c.l.b16 %v67
  %v740 = vunpack.c.l.b16 %v68
  %v741 = vunpack.c.l.b16 %v69
  %v742 = vunpack.c.l.b16 %v70
  %v743 = vunpack.c.l.b16 %v71
  %v744 = vunpack.c.l.b16 %v72
  %v745 = vunpack.c.l.b16 %v73
  %v746 = vunpack.c.l.b16 %v74
  %v747 = vunpack.c.l.b16 %v75
  %v748 = vunpack.c.l.b16 %v76
  %v749 = vunpack.c.l.b16 %v77
  %v750 = vunpack.c.l.b16 %v78
  %v751 = vunpack.c.l.b16 %v79
  %v752 = vunpack.c.l.b16 %v80
  %v753 = vunpack.c.l.b16 %v81
  %v754 = vunpack.c.l.b16 %v82
  %v755 = vunpack.c.l.b16 %v83
  %v756 = vunpack.c.l.b16 %v84
  %v757 = vunpack.c.l.b16 %v85
  %v758 = vunpack.c.l.b16 %v86
  %v759 = vunpack.c.l.b16 %v87
  %v760 = vunpack.c.l.b16 %v88
  %v761 = vunpack.c.l.b16 %v89
  %v762 = vunpack.c.l.b16 %v90
  %v763 = vunpack.c.l.b16 %v91
  %v764 = vunpack.c.l.b16 %v92
  %v765 = vunpack.c.l.b16 %v93
  %v766 = vunpack.c.l.b16 %v94
  %v767 = vunpack.c.l.b16 %v95
  %v768 = vunpack.c.l.b16 %v96
  %v769 = vunpack.c.l.b16 %v97
  %v770 = vunpack.c.l.b16 %v98
  %v771 = vunpack.c.l.b16 %v99
  %v772 = vunpack.c.l.b16 %v100
  %v773 = vunpack.c.l.b16 %v101
  %v774 = vunpack.c.l.b16 %v102
  %v775 = vunpack.c.l.b16 %v103
  %v776 = vunpack.c.l.b16 %v104
  %v777 = vunpack.c.l.b16 %v105
  %v778 = vunpack.c.l.b16 %v106
  %v779 = vunpack.c.l.b16 %v107
  %v780 = vunpack.c.l.b16 %v108
  %v781 = vunpack.c.l.b16 %v109
  %v782 = vunpack.c.l.b16 %v110
  %v783 = vunpack.c.l.b16 %v111
  %v784 = vunpack.c.l.b16 %v112
  %v785 = vunpack.c.l.b16 %v113
  %v786 = vunpack.c.l.b16 %v114
  %v787 = vunpack.c.l.b16 %v115
  %v788 = vunpack.c.l.b16 %v116
  %v789 = vunpack.c.l.b16 %v117
  %v790 = vunpack.c.l.b16 %v118
  %v791 = vunpack.c.l.b16 %v119
  %v792 = vunpack.c.l.b16 %v120
  %v793 = vunpack.c.l.b16 %v121
  %v794 = vunpack.c.l.b16 %v122
  %v795 = vunpack.c.l.b16 %v123
  %v796 = vunpack.c.l.b16 %v124
  %v797 = vunpack.c.l.b16 %v125
  %v798 = vunpack.c.l.b16 %v126
  %v799 = vunpack.c.l.b16 %v127
  %v800 = vunpack.c.l.b16 %v128
  %v801 = vunpack.c.l.b16 %v129
  %v802 = vunpack.c.l.b16 %v130
  %v803 = vunpack.c.l.b16 %v131
  %v804 = vunpack.c.l.b16 %v132
  %v805 = vunpack.c.l.b16 %v133
  %v806 = vunpack.c.l.b16 %v134
  %v807 = vunpack.c.l.b16 %v135
  %v808 = vunpack.c.l.b16 %v136
  %v809 = vunpack.c.l.b16 %v137
  %v810 = vunpack.c.l.b16 %v138
  %v811 = vunpack.c.l.b16 %v139
  %v812 = vunpack.c.l.b16 %v140
  %v813 = vunpack.c.l.b16 %v141
  %v814 = vunpack.c.l.b16 %v142
  %v815 = vunpack.c.l.b16 %v143
  %v816 = vunpack.c.l.b16 %v144
  %v817 = vunpack.c.l.b16 %v145
  %v818 = vunpack.c.l.b16 %v146
  %v819 = vunpack.c.l.b16 %v147
  %v820 = vunpack.c.l.b16 %v148
  %v821 = vunpack.c.l.b16 %v149
  %v822 = vunpack.c.l.b16 %v150
  %v823 = vunpack.c.l.b16 %v151
  %v824 = vunpack.c.l.b16 %v152
  %v825 = vunpack.c.l.b16 %v153
  %v826 = vunpack.c.l.b16 %v154
  %v827 = vunpack.c.l.b16 %v155
  %v828 = vunpack.c.l.b16 %v156
  %v829 = vunpack.c.l.b16 %v157
  %v830 = vunpack.c.l.b16 %v158
  %v831 = vunpack.c.l.b16 %v159
  %v832 = vunpack.c.l.b16 %v160
  %v833 = vunpack.c.l.b16 %v161
  %v834 = vunpack.c.l.b16 %v162
  %v835 = vunpack.c.l.b16 %v163
  %v836 = vunpack.c.l.b16 %v164
  %v837 = vunpack.c.l.b16 %v165
  %v838 = vunpack.c.l.b16 %v166
  %v839 = vunpack.c.l.b16 %v167
  %v840 = vunpack.c.l.b16 %v168
  %v841 = vunpack.c.l.b16 %v169
  %v842 = vunpack.c.l.b16 %v170
  %v843 = vunpack.c.l.b16 %v171
  %v844 = vunpack.c.l.b16 %v172
  %v845 = vunpack.c.l.b16 %v173
  %v846 = vunpack.c.l.b16 %v174
  %v847 = vunpack.c.l.b16 %v175
  %v848 = vunpack.c.l.b16 %v176
  %v849 = vunpack.c.l.b16 %v177
  %v850 = vunpack.c.l.b16 %v178
  %v851 = vunpack.c.l.b16 %v179
  %v852 = vunpack.c.l.b16 %v180
  %v853 = vunpack.c.l.b16 %v181
  %v854 = vunpack.c.l.b16 %v182
  %v855 = vunpack.c.l.b16 %v183
  %v856 = vunpack.c.l.b16 %v184
  %v857 = vunpack.c.l.b16 %v185
  %v858 = vunpack.c.l.b16 %v186
  %v859 = vunpack.c.l.b16 %v187
  %v860 = vunpack.c.l.b16 %v188
  %v861 = vunpack.c.l.b16 %v189
  %v862 = vunpack.c.l.b16 %v190
  %v863 = vunpack.c.l.b16 %v191
  %v864 = vunpack.c.l.b16 %v192
  %v865 = vunpack.c.l.b16 %v193
  %v866 = vunpack.c.l.b16 %v194
  %v867 = vunpack.c.l.b16 %v195
  %v868 = vunpack.c.l.b16 %v196
  %v869 = vunpack.c.l.b16 %v197
  %v870 = vunpack.c.l.b16 %v198
  %v871 = vunpack.c.l.b16 %v199
  %v872 = vunpack.c.l.b16 %v200
  %v873 = vunpack.c.l.b16 %v201
  %v874 = vunpack.c.l.b16 %v202
  %v875 = vunpack.c.l.b16 %v203
  %v876 = vunpack.c.l.b16 %v204
  %v877 = vunpack.c.l.b16 %v205
  %v878 = vunpack.c.l.b16 %v206
  %v879 = vunpack.c.l.b16 %v207
  %v880 = vunpack.c.l.b16 %v208
  %v881 = vunpack.c.l.b16 %v209
  %v882 = vunpack.c.l.b16 %v210
  %v883 = vunpack.c.l.b16 %v211
  %v884 = vunpack.c.l.b16 %v212
  %v885 = vunpack.c.l.b16 %v213
  %v886 = vunpack.c.l.b16 %v214
  %v887 = vunpack.c.l.b16 %v215
  %v888 = vunpack.c.l.b16 %v216
  %v889 = vunpack.c.l.b16 %v217
  %v890 = vunpack.c.l.b16 %v218
  %v891 = vunpack.c.l.b16 %v219
  %v892 = vunpack.c.l.b16 %v220
  %v893 = vunpack.c.l.b16 %v221
  %v894 = vunpack.c.l.b16 %v222
  %v895 = vunpack.c.l.b16 %v223
  %v896 = vunpack.c.l.b16 %v224
  %v897 = vunpack.c.l.b16 %v225
  %v898 = vunpack.c.l.b16 %v226
  %v899 = vunpack.c.l.b16 %v227
  %v900 = vunpack.c.l.b16 %v228
  %v901 = vunpack.c.l.b16 %v229
  %v902 = vunpack.c.l.b16 %v230
  %v903 = vunpack.c.l.b16 %v231
  %v904 = vunpack.c.l.b16 %v232
  %v905 = vunpack.c.l.b16 %v233
  %v906 = vunpack.c.l.b16 %v234
  %v907 = vunpack.c.l.b16 %v235
  %v908 = vunpack.c.l.b16 %v236
  %v909 = vunpack.c.l.b16 %v237
  %v910 = vunpack.c.l.b16 %v238
  %v911 = vunpack.c.l.b16 %v239
  %v912 = vunpack.c.l.b16 %v240
  %v913 = vunpack.c.l.b16 %v241
  %v914 = vunpack.c.l.b16 %v242
  %v915 = vunpack.c.l.b16 %v243
  %v916 = vunpack.c.l.b16 %v244
  %v917 = vunpack.c.l.b16 %v245
  %v918 = vunpack.c.l.b16 %v246
  %v919 = vunpack.c.l.b16 %v247
  %v920 = vunpack.c.l.b16 %v248
  %v921 = vunpack.c.l.b16 %v249
  %v922 = vunpack.c.l.b16 %v250
  %v923 = vunpack.c.l.b16 %v251
  %v924 = vunpack.c.l.b16 %v252
  %v925 = vunpack.c.l.b16 %v253
  %v926 = vunpack.c.l.b16 %v254
  %v927 = vunpack.c.l.b16 %v255
  %v928 = vunpack.c.l.b16 %v256
  %v929 = vunpack.c.l.b16 %v257
  %v930 = vunpack.c.l.b16 %v258
  %v931 = vunpack.c.l.b16 %v259
  %v932 = vunpack.c.l.b16 %v260
  %v933 = vunpack.c.l.b16 %v261
  %v934 = vunpack.c.l.b16 %v262
  %v935 = vunpack.c.l.b16 %v263
  %v936 = vunpack.c.l.b16 %v264
  %v937 = vunpack.c.l.b16 %v265
  %v938 = vunpack.c.l.b16 %v266
  %v939 = vunpack.c.l.b16 %v267
  %v940 = vunpack.c.l.b16 %v268
  %v941 = vunpack.c.l.b16 %v269
  %v942 = vunpack.c.l.b16 %v270
  %v943 = vunpack.c.l.b16 %v271
  %v944 = vunpack.c.l.b16 %v272
  %v945 = vunpack.c.l.b16 %v273
  %v946 = vunpack.c.l.b16 %v274
  %v947 = vunpack.c.l.b16 %v275
  %v948 = vunpack.c.l.b16 %v276
  %v949 = vunpack.c.l.b16 %v277
  %v950 = vunpack.c.l.b16 %v278
  %v951 = vunpack.c.l.b16 %v279
  %v952 = vunpack.c.l.b16 %v280
  %v953 = vunpack.c.l.b16 %v281
  %v954 = vunpack.c.l.b16 %v282
  %v955 = vunpack.c.l.b16 %v283
  %v956 = vunpack.c.l.b16 %v284
  %v957 = vunpack.c.l.b16 %v285
  %v958 = vunpack.c.l.b16 %v286
  %v959 = vunpack.c.l.b16 %v287
  %v960 = vunpack.c.l.b16 %v288
  %v961 = vunpack.c.l.b16 %v289
  %v962 = vunpack.c.l.b16 %v290
  %v963 = vunpack.c.l.b16 %v291
  %v964 = vunpack.c.l.b16 %v292
  %v965 = vunpack.c.l.b16 %v293
  %v966 = vunpack.c.l.b16 %v294
  %v967 = vunpack.c.l.b16 %v295
  %v968 = vunpack.c.l.b16 %v296
  %v969 = vunpack.c.l.b16 %v297
  %v970 = vunpack.c.l.b16 %v298
  %v971 = vunpack.c.l.b16 %v299
  %v972 = vunpack.c.l.b16 %v300
  %v973 = vunpack.c.l.b16 %v301
  %v974 = vunpack.c.l.b16 %v302
  %v975 = vunpack.c.l.b16 %v303
  %v976 = vunpack.c.l.b16 %v304
  %v977 = vunpack.c.l.b16 %v305
  %v978 = vpack.c.b16 %v723, %v722
  %v979 = vpack.c.b16 %v725, %v724
  %v980 = vpack.c.b16 %v727, %v726
  %v981 = vpack.c.b16 %v729, %v728
  %v982 = vpack.c.b16 %v731, %v730
  %v983 = vpack.c.b16 %v733, %v732
  %v984 = vpack.c.b16 %v735, %v734
  %v985 = vpack.c.b16 %v737, %v736
  %v986 = vpack.c.b16 %v739, %v738
  %v987 = vpack.c.b16 %v741, %v740
  %v988 = vpack.c.b16 %v743, %v742
  %v989 = vpack.c.b16 %v745, %v744
  %v990 = vpack.c.b16 %v747, %v746
  %v991 = vpack.c.b16 %v749, %v748
  %v992 = vpack.c.b16 %v751, %v750
  %v993 = vpack.c.b16 %v753, %v752
  %v994 = vpack.c.b16 %v755, %v754
  %v995 = vpack.c.b16 %v757, %v756
  %v996 = vpack.c.b16 %v759, %v758
  %v997 = vpack.c.b16 %v761, %v760
  %v998 = vpack.c.b16 %v763, %v762
  %v999 = vpack.c.b16 %v765, %v764
  %v1000 = vpack.c.b16 %v767, %v766
  %v1001 = vpack.c.b16 %v769, %v768
  %v1002 = vpack.c.b16 %v771, %v770
  %v1003 = vpack.c.b16 %v773, %v772
  %v1004 = vpack.c.b16 %v775, %v774
  %v1005 = vpack.c.b16 %v777, %v776
  %v1006 = vpack.c.b16 %v779, %v778
  %v1007 = vpack.c.b16 %v781, %v780
  %v1008 = vpack.c.b16 %v783, %v782
  %v1009 = vpack.c.b16 %v785, %v784
  %v1010 = vpack.c.b16 %v787, %v786
  %v1011 = vpack.c.b16 %v789, %v788
  %v1012 = vpack.c.b16 %v791, %v790
  %v1013 = vpack.c.b16 %v793, %v792
  %v1014 = vpack.c.b16 %v795, %v794
  %v1015 = vpack.c.b16 %v797, %v796
  %v1016 = vpack.c.b16 %v799, %v798
  %v1017 = vpack.c.b16 %v801, %v800
  %v1018 = vpack.c.b16 %v803, %v802
  %v1019 = vpack.c.b16 %v805, %v804
  %v1020 = vpack.c.b16 %v807, %v806
  %v1021 = vpack.c.b16 %v809, %v808
  %v1022 = vpack.c.b16 %v811, %v810
  %v1023 = vpack.c.b16 %v813, %v812
  %v1024 = vpack.c.b16 %v815, %v814
  %v1025 = vpack.c.b16 %v817, %v816
  %v1026 = vpack.c.b16 %v819, %v818
  %v1027 = vpack.c.b16 %v821, %v820
  %v1028 = vpack.c.b16 %v823, %v822
  %v1029 = vpack.c.b16 %v825, %v824
  %v1030 = vpack.c.b16 %v827, %v826
  %v1031 = vpack.c.b16 %v829, %v828
  %v1032 = vpack.c.b16 %v831, %v830
  %v1033 = vpack.c.b16 %v833, %v832
  %v1034 = vpack.c.b16 %v835, %v834
  %v1035 = vpack.c.b16 %v837, %v836
  %v1036 = vpack.c.b16 %v839, %v838
  %v1037 = vpack.c.b16 %v841, %v840
  %v1038 = vpack.c.b16 %v843, %v842
  %v1039 = vpack.c.b16 %v845, %v844
  %v1040 = vpack.c.b16 %v847, %v846
  %v1041 = vpack.c.b16 %v849, %v848
  %v1042 = vpack.c.b16 %v851, %v850
  %v1043 = vpack.c.b16 %v853, %v852
  %v1044 = vpack.c.b16 %v855, %v854
  %v1045 = vpack.c.b16 %v857, %v856
  %v1046 = vpack.c.b16 %v859, %v858
  %v1047 = vpack.c.b16 %v861, %v860
  %v1048 = vpack.c.b16 %v863, %v862
  %v1049 = vpack.c.b16 %v865, %v864
  %v1050 = vpack.c.b16 %v867, %v866
  %v1051 = vpack.c.b16 %v869, %v868
  %v1052 = vpack.c.b16 %v871, %v870
  %v1053 = vpack.c.b16 %v873, %v872
  %v1054 = vpack.c.b16 %v875, %v874
  %v1055 = vpack.c.b16 %v877, %v876
  %v1056 = vpack.c.b16 %v879, %v878
  %v1057 = vpack.c.b16 %v881, %v880
  %v1058 = vpack.c.b16 %v883, %v882
  %v1059 = vpack.c.b16 %v885, %v884
  %v1060 = vpack.c.b16 %v887, %v886
  %v1061 = vpack.c.b16 %v889, %v888
  %v1062 = vpack.c.b16 %v891, %v890
  %v1063 = vpack.c.b16 %v893, %v892
  %v1064 = vpack.c.b16 %v895, %v894
  %v1065 = vpack.c.b16 %v897, %v896
  %v1066 = vpack.c.b16 %v899, %v898
  %v1067 = vpack.c.b16 %v901, %v900
  %v1068 = vpack.c.b16 %v903, %v902
  %v1069 = vpack.c.b16 %v905, %v904
  %v1070 = vpack.c.b16 %v907, %v906
  %v1071 = vpack.c.b16 %v909, %v908
  %v1072 = vpack.c.b16 %v911, %v910
  %v1073 = vpack.c.b16 %v913, %v912
  %v1074 = vpack.c.b16 %v915, %v914
  %v1075 = vpack.c.b16 %v917, %v916
  %v1076 = vpack.c.b16 %v919, %v918
  %v1077 = vpack.c.b16 %v921, %v920
  %v1078 = vpack.c.b16 %v923, %v922
  %v1079 = vpack.c.b16 %v925, %v924
  %v1080 = vpack.c.b16 %v927, %v926
  %v1081 = vpack.c.b16 %v929, %v928
  %v1082 = vpack.c.b16 %v931, %v930
  %v1083 = vpack.c.b16 %v933, %v932
  %v1084 = vpack.c.b16 %v935, %v934
  %v1085 = vpack.c.b16 %v937, %v936
  %v1086 = vpack.c.b16 %v939, %v938
  %v1087 = vpack.c.b16 %v941, %v940
  %v1088 = vpack.c.b16 %v943, %v942
  %v1089 = vpack.c.b16 %v945, %v944
  %v1090 = vpack.c.b16 %v947, %v946
  %v1091 = vpack.c.b16 %v949, %v948
  %v1092 = vpack.c.b16 %v951, %v950
  %v1093 = vpack.c.b16 %v953, %v952
  %v1094 = vpack.c.b16 %v955, %v954
  %v1095 = vpack.c.b16 %v957, %v956
  %v1096 = vpack.c.b16 %v959, %v958
  %v1097 = vpack.c.b16 %v961, %v960
  %v1098 = vpack.c.b16 %v963, %v962
  %v1099 = vpack.c.b16 %v965, %v964
  %v1100 = vpack.c.b16 %v967, %v966
  %v1101 = vpack.c.b16 %v969, %v968
  %v1102 = vpack.c.b16 %v971, %v970
  %v1103 = vpack.c.b16 %v973, %v972
  %v1104 = vpack.c.b16 %v975, %v974
  %v1105 = vpack.c.b16 %v977, %v976
  %1234 = vmatprep.subr.bf16.mxu0 0
  %1235 = vmatpush1.bf16.msra.mxu0 %v985
  %1236 = vmatprep.subr.bf16.mxu0 0
  %1237 = vmatpush1.bf16.msra.mxu0 %v984
  %1238 = vmatprep.subr.bf16.mxu0 0
  %1239 = vmatpush1.bf16.msra.mxu0 %v983
  %1240 = vmatprep.subr.bf16.mxu0 0
  %1241 = vmatpush1.bf16.msra.mxu0 %v982
  %1242 = vmatprep.subr.bf16.mxu0 0
  %1243 = vmatpush1.bf16.msra.mxu0 %v981
  %1244 = vmatprep.subr.bf16.mxu0 0
  %1245 = vmatpush1.bf16.msra.mxu0 %v980
  %1246 = vmatprep.subr.bf16.mxu0 0
  %1247 = vmatpush1.bf16.msra.mxu0 %v979
  %1248 = vmatprep.subr.bf16.mxu0 0
  %1249 = vmatpush1.bf16.msra.mxu0 %v978
  %1250 = vmatprep.subr.bf16.mxu0 0
  %1251 = vmatpush2.bf16.msra.mxu0 %v993
  %1252 = vmatprep.subr.bf16.mxu0 0
  %1253 = vmatpush2.bf16.msra.mxu0 %v992
  %1254 = vmatprep.subr.bf16.mxu0 0
  %1255 = vmatpush2.bf16.msra.mxu0 %v991
  %1256 = vmatprep.subr.bf16.mxu0 0
  %1257 = vmatpush2.bf16.msra.mxu0 %v990
  %1258 = vmatprep.subr.bf16.mxu0 0
  %1259 = vmatpush2.bf16.msra.mxu0 %v989
  %1260 = vmatprep.subr.bf16.mxu0 0
  %1261 = vmatpush2.bf16.msra.mxu0 %v988
  %1262 = vmatprep.subr.bf16.mxu0 0
  %1263 = vmatpush2.bf16.msra.mxu0 %v987
  %1264 = vmatprep.subr.bf16.mxu0 0
  %1265 = vmatpush2.bf16.msra.mxu0 %v986
  %1266 = vmatprep.mubr.bf16.mxu0 %v403
  %1267 = vmatmul.mubr.bf16.gmra.mxu0 %v402
  %v1268 = vpop.f32.mrf.mxu0
  %v1269 = vadd.f32 0.0, %v1268
  %v1270 = vpop.f32.mrf.mxu0
  %v1271 = vpop.f32.mrf.mxu0
  %v1272 = vadd.f32 0.0, %v1271
  %v1273 = vpop.f32.mrf.mxu0
  %1274 = vmatprep.mubr.bf16.mxu0 %v419
  %1275 = vmatmul.mubr.bf16.gmra.mxu0 %v418
  %v1276 = vpop.f32.mrf.mxu0
  %v1277 = vadd.f32 0.0, %v1276
  %v1278 = vpop.f32.mrf.mxu0
  %v1279 = vpop.f32.mrf.mxu0
  %v1280 = vadd.f32 0.0, %v1279
  %v1281 = vpop.f32.mrf.mxu0
  %1282 = vdwg.mxu0
  %1283 = vmatprep.subr.bf16.mxu0 0
  %1284 = vmatpush1.bf16.msra.mxu0 %v1001
  %1285 = vmatprep.subr.bf16.mxu0 0
  %1286 = vmatpush1.bf16.msra.mxu0 %v1000
  %1287 = vmatprep.subr.bf16.mxu0 0
  %1288 = vmatpush1.bf16.msra.mxu0 %v999
  %1289 = vmatprep.subr.bf16.mxu0 0
  %1290 = vmatpush1.bf16.msra.mxu0 %v998
  %1291 = vmatprep.subr.bf16.mxu0 0
  %1292 = vmatpush1.bf16.msra.mxu0 %v997
  %1293 = vmatprep.subr.bf16.mxu0 0
  %1294 = vmatpush1.bf16.msra.mxu0 %v996
  %1295 = vmatprep.subr.bf16.mxu0 0
  %1296 = vmatpush1.bf16.msra.mxu0 %v995
  %1297 = vmatprep.subr.bf16.mxu0 0
  %1298 = vmatpush1.bf16.msra.mxu0 %v994
  %1299 = vmatprep.subr.bf16.mxu0 0
  %1300 = vmatpush2.bf16.msra.mxu0 %v1009
  %1301 = vmatprep.subr.bf16.mxu0 0
  %1302 = vmatpush2.bf16.msra.mxu0 %v1008
  %1303 = vmatprep.subr.bf16.mxu0 0
  %1304 = vmatpush2.bf16.msra.mxu0 %v1007
  %1305 = vmatprep.subr.bf16.mxu0 0
  %1306 = vmatpush2.bf16.msra.mxu0 %v1006
  %1307 = vmatprep.subr.bf16.mxu0 0
  %1308 = vmatpush2.bf16.msra.mxu0 %v1005
  %1309 = vmatprep.subr.bf16.mxu0 0
  %1310 = vmatpush2.bf16.msra.mxu0 %v1004
  %1311 = vmatprep.subr.bf16.mxu0 0
  %1312 = vmatpush2.bf16.msra.mxu0 %v1003
  %1313 = vmatprep.subr.bf16.mxu0 0
  %1314 = vmatpush2.bf16.msra.mxu0 %v1002
  %1315 = vmatprep.mubr.bf16.mxu0 %v405
  %1316 = vmatmul.mubr.bf16.gmra.mxu0 %v404
  %v1317 = vpop.f32.mrf.mxu0
  %v1318 = vadd.f32 %v1269, %v1317
  %v1319 = vpop.f32.mrf.mxu0
  %v1320 = vpop.f32.mrf.mxu0
  %v1321 = vadd.f32 %v1272, %v1320
  %v1322 = vpop.f32.mrf.mxu0
  %1323 = vmatprep.mubr.bf16.mxu0 %v421
  %1324 = vmatmul.mubr.bf16.gmra.mxu0 %v420
  %v1325 = vpop.f32.mrf.mxu0
  %v1326 = vadd.f32 %v1277, %v1325
  %v1327 = vpop.f32.mrf.mxu0
  %v1328 = vpop.f32.mrf.mxu0
  %v1329 = vadd.f32 %v1280, %v1328
  %v1330 = vpop.f32.mrf.mxu0
  %1331 = vdwg.mxu0
  %1332 = vmatprep.subr.bf16.mxu0 0
  %1333 = vmatpush1.bf16.msra.mxu0 %v1017
  %1334 = vmatprep.subr.bf16.mxu0 0
  %1335 = vmatpush1.bf16.msra.mxu0 %v1016
  %1336 = vmatprep.subr.bf16.mxu0 0
  %1337 = vmatpush1.bf16.msra.mxu0 %v1015
  %1338 = vmatprep.subr.bf16.mxu0 0
  %1339 = vmatpush1.bf16.msra.mxu0 %v1014
  %1340 = vmatprep.subr.bf16.mxu0 0
  %1341 = vmatpush1.bf16.msra.mxu0 %v1013
  %1342 = vmatprep.subr.bf16.mxu0 0
  %1343 = vmatpush1.bf16.msra.mxu0 %v1012
  %1344 = vmatprep.subr.bf16.mxu0 0
  %1345 = vmatpush1.bf16.msra.mxu0 %v1011
  %1346 = vmatprep.subr.bf16.mxu0 0
  %1347 = vmatpush1.bf16.msra.mxu0 %v1010
  %1348 = vmatprep.subr.bf16.mxu0 0
  %1349 = vmatpush2.bf16.msra.mxu0 %v1025
  %1350 = vmatprep.subr.bf16.mxu0 0
  %1351 = vmatpush2.bf16.msra.mxu0 %v1024
  %1352 = vmatprep.subr.bf16.mxu0 0
  %1353 = vmatpush2.bf16.msra.mxu0 %v1023
  %1354 = vmatprep.subr.bf16.mxu0 0
  %1355 = vmatpush2.bf16.msra.mxu0 %v1022
  %1356 = vmatprep.subr.bf16.mxu0 0
  %1357 = vmatpush2.bf16.msra.mxu0 %v1021
  %1358 = vmatprep.subr.bf16.mxu0 0
  %1359 = vmatpush2.bf16.msra.mxu0 %v1020
  %1360 = vmatprep.subr.bf16.mxu0 0
  %1361 = vmatpush2.bf16.msra.mxu0 %v1019
  %1362 = vmatprep.subr.bf16.mxu0 0
  %1363 = vmatpush2.bf16.msra.mxu0 %v1018
  %1364 = vmatprep.mubr.bf16.mxu0 %v407
  %1365 = vmatmul.mubr.bf16.gmra.mxu0 %v406
  %v1366 = vpop.f32.mrf.mxu0
  %v1367 = vadd.f32 %v1318, %v1366
  %v1368 = vpop.f32.mrf.mxu0
  %v1369 = vpop.f32.mrf.mxu0
  %v1370 = vadd.f32 %v1321, %v1369
  %v1371 = vpop.f32.mrf.mxu0
  %1372 = vmatprep.mubr.bf16.mxu0 %v423
  %1373 = vmatmul.mubr.bf16.gmra.mxu0 %v422
  %v1374 = vpop.f32.mrf.mxu0
  %v1375 = vadd.f32 %v1326, %v1374
  %v1376 = vpop.f32.mrf.mxu0
  %v1377 = vpop.f32.mrf.mxu0
  %v1378 = vadd.f32 %v1329, %v1377
  %v1379 = vpop.f32.mrf.mxu0
  %1380 = vdwg.mxu0
  %1381 = vmatprep.subr.bf16.mxu0 0
  %1382 = vmatpush1.bf16.msra.mxu0 %v1033
  %1383 = vmatprep.subr.bf16.mxu0 0
  %1384 = vmatpush1.bf16.msra.mxu0 %v1032
  %1385 = vmatprep.subr.bf16.mxu0 0
  %1386 = vmatpush1.bf16.msra.mxu0 %v1031
  %1387 = vmatprep.subr.bf16.mxu0 0
  %1388 = vmatpush1.bf16.msra.mxu0 %v1030
  %1389 = vmatprep.subr.bf16.mxu0 0
  %1390 = vmatpush1.bf16.msra.mxu0 %v1029
  %1391 = vmatprep.subr.bf16.mxu0 0
  %1392 = vmatpush1.bf16.msra.mxu0 %v1028
  %1393 = vmatprep.subr.bf16.mxu0 0
  %1394 = vmatpush1.bf16.msra.mxu0 %v1027
  %1395 = vmatprep.subr.bf16.mxu0 0
  %1396 = vmatpush1.bf16.msra.mxu0 %v1026
  %1397 = vmatprep.subr.bf16.mxu0 0
  %1398 = vmatpush2.bf16.msra.mxu0 %v1041
  %1399 = vmatprep.subr.bf16.mxu0 0
  %1400 = vmatpush2.bf16.msra.mxu0 %v1040
  %1401 = vmatprep.subr.bf16.mxu0 0
  %1402 = vmatpush2.bf16.msra.mxu0 %v1039
  %1403 = vmatprep.subr.bf16.mxu0 0
  %1404 = vmatpush2.bf16.msra.mxu0 %v1038
  %1405 = vmatprep.subr.bf16.mxu0 0
  %1406 = vmatpush2.bf16.msra.mxu0 %v1037
  %1407 = vmatprep.subr.bf16.mxu0 0
  %1408 = vmatpush2.bf16.msra.mxu0 %v1036
  %1409 = vmatprep.subr.bf16.mxu0 0
  %1410 = vmatpush2.bf16.msra.mxu0 %v1035
  %1411 = vmatprep.subr.bf16.mxu0 0
  %1412 = vmatpush2.bf16.msra.mxu0 %v1034
  %1413 = vmatprep.mubr.bf16.mxu0 %v409
  %1414 = vmatmul.mubr.bf16.gmra.mxu0 %v408
  %v1415 = vpop.f32.mrf.mxu0
  %v1416 = vadd.f32 %v1367, %v1415
  %v1417 = vpop.f32.mrf.mxu0
  %v1418 = vpop.f32.mrf.mxu0
  %v1419 = vadd.f32 %v1370, %v1418
  %v1420 = vpop.f32.mrf.mxu0
  %1421 = vmatprep.mubr.bf16.mxu0 %v425
  %1422 = vmatmul.mubr.bf16.gmra.mxu0 %v424
  %v1423 = vpop.f32.mrf.mxu0
  %v1424 = vadd.f32 %v1375, %v1423
  %v1425 = vpop.f32.mrf.mxu0
  %v1426 = vpop.f32.mrf.mxu0
  %v1427 = vadd.f32 %v1378, %v1426
  %v1428 = vpop.f32.mrf.mxu0
  %1429 = vdwg.mxu0
  %1430 = vmatprep.subr.bf16.mxu0 0
  %1431 = vmatpush1.bf16.msra.mxu0 %v1049
  %1432 = vmatprep.subr.bf16.mxu0 0
  %1433 = vmatpush1.bf16.msra.mxu0 %v1048
  %1434 = vmatprep.subr.bf16.mxu0 0
  %1435 = vmatpush1.bf16.msra.mxu0 %v1047
  %1436 = vmatprep.subr.bf16.mxu0 0
  %1437 = vmatpush1.bf16.msra.mxu0 %v1046
  %1438 = vmatprep.subr.bf16.mxu0 0
  %1439 = vmatpush1.bf16.msra.mxu0 %v1045
  %1440 = vmatprep.subr.bf16.mxu0 0
  %1441 = vmatpush1.bf16.msra.mxu0 %v1044
  %1442 = vmatprep.subr.bf16.mxu0 0
  %1443 = vmatpush1.bf16.msra.mxu0 %v1043
  %1444 = vmatprep.subr.bf16.mxu0 0
  %1445 = vmatpush1.bf16.msra.mxu0 %v1042
  %1446 = vmatprep.subr.bf16.mxu0 0
  %1447 = vmatpush2.bf16.msra.mxu0 %v1057
  %1448 = vmatprep.subr.bf16.mxu0 0
  %1449 = vmatpush2.bf16.msra.mxu0 %v1056
  %1450 = vmatprep.subr.bf16.mxu0 0
  %1451 = vmatpush2.bf16.msra.mxu0 %v1055
  %1452 = vmatprep.subr.bf16.mxu0 0
  %1453 = vmatpush2.bf16.msra.mxu0 %v1054
  %1454 = vmatprep.subr.bf16.mxu0 0
  %1455 = vmatpush2.bf16.msra.mxu0 %v1053
  %1456 = vmatprep.subr.bf16.mxu0 0
  %1457 = vmatpush2.bf16.msra.mxu0 %v1052
  %1458 = vmatprep.subr.bf16.mxu0 0
  %1459 = vmatpush2.bf16.msra.mxu0 %v1051
  %1460 = vmatprep.subr.bf16.mxu0 0
  %1461 = vmatpush2.bf16.msra.mxu0 %v1050
  %1462 = vmatprep.mubr.bf16.mxu0 %v411
  %1463 = vmatmul.mubr.bf16.gmra.mxu0 %v410
  %v1464 = vpop.f32.mrf.mxu0
  %v1465 = vadd.f32 %v1416, %v1464
  %v1466 = vpop.f32.mrf.mxu0
  %v1467 = vpop.f32.mrf.mxu0
  %v1468 = vadd.f32 %v1419, %v1467
  %v1469 = vpop.f32.mrf.mxu0
  %1470 = vmatprep.mubr.bf16.mxu0 %v427
  %1471 = vmatmul.mubr.bf16.gmra.mxu0 %v426
  %v1472 = vpop.f32.mrf.mxu0
  %v1473 = vadd.f32 %v1424, %v1472
  %v1474 = vpop.f32.mrf.mxu0
  %v1475 = vpop.f32.mrf.mxu0
  %v1476 = vadd.f32 %v1427, %v1475
  %v1477 = vpop.f32.mrf.mxu0
  %1478 = vdwg.mxu0
  %1479 = vmatprep.subr.bf16.mxu0 0
  %1480 = vmatpush1.bf16.msra.mxu0 %v1065
  %1481 = vmatprep.subr.bf16.mxu0 0
  %1482 = vmatpush1.bf16.msra.mxu0 %v1064
  %1483 = vmatprep.subr.bf16.mxu0 0
  %1484 = vmatpush1.bf16.msra.mxu0 %v1063
  %1485 = vmatprep.subr.bf16.mxu0 0
  %1486 = vmatpush1.bf16.msra.mxu0 %v1062
  %1487 = vmatprep.subr.bf16.mxu0 0
  %1488 = vmatpush1.bf16.msra.mxu0 %v1061
  %1489 = vmatprep.subr.bf16.mxu0 0
  %1490 = vmatpush1.bf16.msra.mxu0 %v1060
  %1491 = vmatprep.subr.bf16.mxu0 0
  %1492 = vmatpush1.bf16.msra.mxu0 %v1059
  %1493 = vmatprep.subr.bf16.mxu0 0
  %1494 = vmatpush1.bf16.msra.mxu0 %v1058
  %1495 = vmatprep.subr.bf16.mxu0 0
  %1496 = vmatpush2.bf16.msra.mxu0 %v1073
  %1497 = vmatprep.subr.bf16.mxu0 0
  %1498 = vmatpush2.bf16.msra.mxu0 %v1072
  %1499 = vmatprep.subr.bf16.mxu0 0
  %1500 = vmatpush2.bf16.msra.mxu0 %v1071
  %1501 = vmatprep.subr.bf16.mxu0 0
  %1502 = vmatpush2.bf16.msra.mxu0 %v1070
  %1503 = vmatprep.subr.bf16.mxu0 0
  %1504 = vmatpush2.bf16.msra.mxu0 %v1069
  %1505 = vmatprep.subr.bf16.mxu0 0
  %1506 = vmatpush2.bf16.msra.mxu0 %v1068
  %1507 = vmatprep.subr.bf16.mxu0 0
  %1508 = vmatpush2.bf16.msra.mxu0 %v1067
  %1509 = vmatprep.subr.bf16.mxu0 0
  %1510 = vmatpush2.bf16.msra.mxu0 %v1066
  %1511 = vmatprep.mubr.bf16.mxu0 %v413
  %1512 = vmatmul.mubr.bf16.gmra.mxu0 %v412
  %v1513 = vpop.f32.mrf.mxu0
  %v1514 = vadd.f32 %v1465, %v1513
  %v1515 = vpop.f32.mrf.mxu0
  %v1516 = vpop.f32.mrf.mxu0
  %v1517 = vadd.f32 %v1468, %v1516
  %v1518 = vpop.f32.mrf.mxu0
  %1519 = vmatprep.mubr.bf16.mxu0 %v429
  %1520 = vmatmul.mubr.bf16.gmra.mxu0 %v428
  %v1521 = vpop.f32.mrf.mxu0
  %v1522 = vadd.f32 %v1473, %v1521
  %v1523 = vpop.f32.mrf.mxu0
  %v1524 = vpop.f32.mrf.mxu0
  %v1525 = vadd.f32 %v1476, %v1524
  %v1526 = vpop.f32.mrf.mxu0
  %1527 = vdwg.mxu0
  %1528 = vmatprep.subr.bf16.mxu0 0
  %1529 = vmatpush1.bf16.msra.mxu0 %v1081
  %1530 = vmatprep.subr.bf16.mxu0 0
  %1531 = vmatpush1.bf16.msra.mxu0 %v1080
  %1532 = vmatprep.subr.bf16.mxu0 0
  %1533 = vmatpush1.bf16.msra.mxu0 %v1079
  %1534 = vmatprep.subr.bf16.mxu0 0
  %1535 = vmatpush1.bf16.msra.mxu0 %v1078
  %1536 = vmatprep.subr.bf16.mxu0 0
  %1537 = vmatpush1.bf16.msra.mxu0 %v1077
  %1538 = vmatprep.subr.bf16.mxu0 0
  %1539 = vmatpush1.bf16.msra.mxu0 %v1076
  %1540 = vmatprep.subr.bf16.mxu0 0
  %1541 = vmatpush1.bf16.msra.mxu0 %v1075
  %1542 = vmatprep.subr.bf16.mxu0 0
  %1543 = vmatpush1.bf16.msra.mxu0 %v1074
  %1544 = vmatprep.subr.bf16.mxu0 0
  %1545 = vmatpush2.bf16.msra.mxu0 %v1089
  %1546 = vmatprep.subr.bf16.mxu0 0
  %1547 = vmatpush2.bf16.msra.mxu0 %v1088
  %1548 = vmatprep.subr.bf16.mxu0 0
  %1549 = vmatpush2.bf16.msra.mxu0 %v1087
  %1550 = vmatprep.subr.bf16.mxu0 0
  %1551 = vmatpush2.bf16.msra.mxu0 %v1086
  %1552 = vmatprep.subr.bf16.mxu0 0
  %1553 = vmatpush2.bf16.msra.mxu0 %v1085
  %1554 = vmatprep.subr.bf16.mxu0 0
  %1555 = vmatpush2.bf16.msra.mxu0 %v1084
  %1556 = vmatprep.subr.bf16.mxu0 0
  %1557 = vmatpush2.bf16.msra.mxu0 %v1083
  %1558 = vmatprep.subr.bf16.mxu0 0
  %1559 = vmatpush2.bf16.msra.mxu0 %v1082
  %1560 = vmatprep.mubr.bf16.mxu0 %v415
  %1561 = vmatmul.mubr.bf16.gmra.mxu0 %v414
  %v1562 = vpop.f32.mrf.mxu0
  %v1563 = vadd.f32 %v1514, %v1562
  %v1564 = vpop.f32.mrf.mxu0
  %v1565 = vpop.f32.mrf.mxu0
  %v1566 = vadd.f32 %v1517, %v1565
  %v1567 = vpop.f32.mrf.mxu0
  %1568 = vmatprep.mubr.bf16.mxu0 %v431
  %1569 = vmatmul.mubr.bf16.gmra.mxu0 %v430
  %v1570 = vpop.f32.mrf.mxu0
  %v1571 = vadd.f32 %v1522, %v1570
  %v1572 = vpop.f32.mrf.mxu0
  %v1573 = vpop.f32.mrf.mxu0
  %v1574 = vadd.f32 %v1525, %v1573
  %v1575 = vpop.f32.mrf.mxu0
  %1576 = vdwg.mxu0
  %1577 = vmatprep.subr.bf16.mxu0 0
  %1578 = vmatpush1.bf16.msra.mxu0 %v1097
  %1579 = vmatprep.subr.bf16.mxu0 0
  %1580 = vmatpush1.bf16.msra.mxu0 %v1096
  %1581 = vmatprep.subr.bf16.mxu0 0
  %1582 = vmatpush1.bf16.msra.mxu0 %v1095
  %1583 = vmatprep.subr.bf16.mxu0 0
  %1584 = vmatpush1.bf16.msra.mxu0 %v1094
  %1585 = vmatprep.subr.bf16.mxu0 0
  %1586 = vmatpush1.bf16.msra.mxu0 %v1093
  %1587 = vmatprep.subr.bf16.mxu0 0
  %1588 = vmatpush1.bf16.msra.mxu0 %v1092
  %1589 = vmatprep.subr.bf16.mxu0 0
  %1590 = vmatpush1.bf16.msra.mxu0 %v1091
  %1591 = vmatprep.subr.bf16.mxu0 0
  %1592 = vmatpush1.bf16.msra.mxu0 %v1090
  %1593 = vmatprep.subr.bf16.mxu0 0
  %1594 = vmatpush2.bf16.msra.mxu0 %v1105
  %1595 = vmatprep.subr.bf16.mxu0 0
  %1596 = vmatpush2.bf16.msra.mxu0 %v1104
  %1597 = vmatprep.subr.bf16.mxu0 0
  %1598 = vmatpush2.bf16.msra.mxu0 %v1103
  %1599 = vmatprep.subr.bf16.mxu0 0
  %1600 = vmatpush2.bf16.msra.mxu0 %v1102
  %1601 = vmatprep.subr.bf16.mxu0 0
  %1602 = vmatpush2.bf16.msra.mxu0 %v1101
  %1603 = vmatprep.subr.bf16.mxu0 0
  %1604 = vmatpush2.bf16.msra.mxu0 %v1100
  %1605 = vmatprep.subr.bf16.mxu0 0
  %1606 = vmatpush2.bf16.msra.mxu0 %v1099
  %1607 = vmatprep.subr.bf16.mxu0 0
  %1608 = vmatpush2.bf16.msra.mxu0 %v1098
  %1609 = vmatprep.mubr.bf16.mxu0 %v417
  %1610 = vmatmul.mubr.bf16.gmra.mxu0 %v416
  %v1611 = vpop.f32.mrf.mxu0
  %v1612 = vadd.f32 %v1563, %v1611
  %v1613 = vpop.f32.mrf.mxu0
  %v1614 = vpop.f32.mrf.mxu0
  %v1615 = vadd.f32 %v1566, %v1614
  %v1616 = vpop.f32.mrf.mxu0
  %1617 = vmatprep.mubr.bf16.mxu0 %v433
  %1618 = vmatmul.mubr.bf16.gmra.mxu0 %v432
  %v1619 = vpop.f32.mrf.mxu0
  %v1620 = vadd.f32 %v1571, %v1619
  %v1621 = vpop.f32.mrf.mxu0
  %v1622 = vpop.f32.mrf.mxu0
  %v1623 = vadd.f32 %v1574, %v1622
  %v1624 = vpop.f32.mrf.mxu0
  %1625 = vdwg.mxu0
  %v1626 = vld [vmem:[%s2] sm:$0x1]
  %v1627 = vld [vmem:[%s3] sm:$0x1]
  %v1628 = vadd.f32 %v1612, %v1615
  %v1629 = vadd.f32 %v1628, %v1620
  %v1630 = vadd.f32 %v1629, %v1623
  %v1631 = vrot.slane %v1630, 4
  %v1632 = vadd.f32 %v1630, %v1631
  %v1633 = vrot.slane %v1632, 2
  %v1634 = vadd.f32 %v1632, %v1633
  %v1635 = vrot.slane %v1634, 1
  %v1636 = vadd.f32 %v1634, %v1635
  %v1637 = vmul.f32 %v1636, 0.03125
  %v1638 = vmul.f32 %v1612, %v1612
  %v1639 = vmul.f32 %v1615, %v1615
  %v1640 = vmul.f32 %v1620, %v1620
  %v1641 = vmul.f32 %v1623, %v1623
  %v1642 = vadd.f32 %v1638, %v1639
  %v1643 = vadd.f32 %v1642, %v1640
  %v1644 = vadd.f32 %v1643, %v1641
  %v1645 = vrot.slane %v1644, 4
  %v1646 = vadd.f32 %v1644, %v1645
  %v1647 = vrot.slane %v1646, 2
  %v1648 = vadd.f32 %v1646, %v1647
  %v1649 = vrot.slane %v1648, 1
  %v1650 = vadd.f32 %v1648, %v1649
  %v1651 = vmul.f32 %v1650, 0.03125
  %v1652 = vmul.f32 %v1637, %v1637
  %v1653 = vsub.f32 %v1651, %v1652
  %v1654 = vmax.f32 %v1653, 0.0
  %v1655 = vsub.f32 %v1612, %v1637
  %v1656 = vsub.f32 %v1615, %v1637
  %v1657 = vsub.f32 %v1620, %v1637
  %v1658 = vsub.f32 %v1623, %v1637
  %v1659 = vadd.f32 %v1654, 1e-05
  %v1660 = vrsqrt.pop %v1659
  %v1661 = vmul.f32 %v1655, %v1660
  %v1662 = vmul.f32 %v1656, %v1660
  %v1663 = vmul.f32 %v1657, %v1660
  %v1664 = vmul.f32 %v1658, %v1660
  %v1666 = vlaneseq
  %v1667 = vshrl.u32 %v1666, 7
  %v1668 = vsub.s32 0, %v1667
  %v1669 = vrot.slane %v1626, %v1668
  %v1671 = vmul.f32 %v1661, %v1669
  %v1672 = vmul.f32 %v1662, %v1669
  %v1673 = vmul.f32 %v1663, %v1669
  %v1674 = vmul.f32 %v1664, %v1669
  %v1676 = vlaneseq
  %v1677 = vshrl.u32 %v1676, 7
  %v1678 = vsub.s32 0, %v1677
  %v1679 = vrot.slane %v1627, %v1678
  %v1681 = vadd.f32 %v1671, %v1679
  %v1682 = vadd.f32 %v1672, %v1679
  %v1683 = vadd.f32 %v1673, %v1679
  %v1684 = vadd.f32 %v1674, %v1679
  %v1685 = vmax.f32 %v1681, 0.0
  %v1686 = vmax.f32 %v1682, 0.0
  %v1687 = vmax.f32 %v1683, 0.0
  %v1688 = vmax.f32 %v1684, 0.0
  %v1689 = vpack.c.bf16 %v1686, %v1685
  %v1690 = vpack.c.bf16 %v1688, %v1687
  %v1693 = vunpack.c.l.b16 %v1689
  %v1694 = vunpack.c.h.b16 %v1689
  %v1695 = vunpack.c.l.b16 %v1690
  %v1696 = vunpack.c.h.b16 %v1690
  %v1697 = vpack.c.b16 %v1693, %v1693
  %v1698 = vpack.c.b16 %v1694, %v1694
  %v1699 = vpack.c.b16 %v1695, %v1695
  %v1700 = vpack.c.b16 %v1696, %v1696
  %1705 = vst [vmem:[%s4] sm:$0xf] %v1697
  %1706 = vst [vmem:[%s4 + $0x4] sm:$0xf] %v1698
  %1707 = vst [vmem:[%s4 + $0x8] sm:$0xf] %v1699
  %1708 = vst [vmem:[%s4 + $0xc] sm:$0xf] %v1700
  // Predicated region
  $region18: #{generator_forward.9} parent=0 // pred_check
    _
  $region19: #{generator_forward.9} parent=0 // pred_check_branch
    %1710 = sbr.rel (0) target = $region21
  $region20: #{generator_forward.9} parent=0 // pred_region
    _
  $region21: #{generator_forward.9} parent=0 // pred_fallthru
    _
  // Predicated region
  $region22: #{generator_forward.9} parent=0 // pred_check
    _
  $region23: #{generator_forward.9} parent=0 // pred_check_branch
    %1712 = sbr.rel (0) target = $region25
  $region24: #{generator_forward.9} parent=0 // pred_region
    _
  $region25: #{generator_forward.9} parent=0 // pred_fallthru
    _

// kernel: generator_forward.10
$region0: #{generator_forward.10}
  #allocation0 [shape = 'u32[]', space=smem, size = 0x4, offset = 0x4, fixed_abs, tag = 'smem constant byte address 0x4 - core index']
  #allocation1 [shape = 'u32[144,128]{1,0:T(1,128)}', space=vmem, size = 0x12000, scoped, tag = 'internal scratch']
  %s0 = inlined_call_operand.vmem [shape: bf16[32,128], index: 0, kind: input, shape index: {}]
  %s1 = inlined_call_operand.vmem [shape: f32[9,32,1], index: 1, kind: input, shape index: {}]
  %s2 = inlined_call_operand.vmem [shape: bf16[1152,128], index: 2, kind: input, shape index: {}]
  %s3 = inlined_call_operand.vmem [shape: f32[1,128], index: 3, kind: input, shape index: {}]
  %s4 = inlined_call_operand.vmem [shape: f32[1,128], index: 4, kind: input, shape index: {}]
  %s5 = inlined_call_operand.vmem [shape: bf16[1152,128], index: 5, kind: input, shape index: {}]
  %s6 = inlined_call_operand.vmem [shape: f32[1,128], index: 6, kind: input, shape index: {}]
  %s7 = inlined_call_operand.vmem [shape: f32[1,128], index: 7, kind: input, shape index: {}]
  %s8 = inlined_call_operand.vmem [shape: bf16[32,128], index: 8, kind: output, shape index: {}]
  %s9 = sld [smem:[#allocation0]]
  $region42: #{generator_forward.10} parent=0
    _
  %s11 = ssub.s32 1, %s9
  %s12 = scalar_select 0, %s11, %s9
  // Predicated region
  $region2: #{generator_forward.10} parent=0 // pred_check
    _
  $region3: #{generator_forward.10} parent=0 // pred_check_branch
    %14 = sbr.rel (0) target = $region5
  $region4: #{generator_forward.10} parent=0 // pred_region
    _
  $region5: #{generator_forward.10} parent=0 // pred_fallthru
    _
  // Predicated region
  $region6: #{generator_forward.10} parent=0 // pred_check
    _
  $region7: #{generator_forward.10} parent=0 // pred_check_branch
    %16 = sbr.rel (0) target = $region9
  $region8: #{generator_forward.10} parent=0 // pred_region
    _
  $region9: #{generator_forward.10} parent=0 // pred_fallthru
    _
  // Predicated region
  $region10: #{generator_forward.10} parent=0 // pred_check
    _
  $region11: #{generator_forward.10} parent=0 // pred_check_branch
    %18 = sbr.rel (0) target = $region13
  $region12: #{generator_forward.10} parent=0 // pred_region
    _
  $region13: #{generator_forward.10} parent=0 // pred_fallthru
    _
  // Predicated region
  $region14: #{generator_forward.10} parent=0 // pred_check
    _
  $region15: #{generator_forward.10} parent=0 // pred_check_branch
    %20 = sbr.rel (0) target = $region17
  $region16: #{generator_forward.10} parent=0 // pred_region
    _
  $region17: #{generator_forward.10} parent=0 // pred_fallthru
    _
  // Predicated region
  $region18: #{generator_forward.10} parent=0 // pred_check
    _
  $region19: #{generator_forward.10} parent=0 // pred_check_branch
    %22 = sbr.rel (0) target = $region21
  $region20: #{generator_forward.10} parent=0 // pred_region
    _
  $region21: #{generator_forward.10} parent=0 // pred_fallthru
    _
  // Predicated region
  $region22: #{generator_forward.10} parent=0 // pred_check
    _
  $region23: #{generator_forward.10} parent=0 // pred_check_branch
    %24 = sbr.rel (0) target = $region25
  $region24: #{generator_forward.10} parent=0 // pred_region
    _
  $region25: #{generator_forward.10} parent=0 // pred_fallthru
    _
  // Predicated region
  $region26: #{generator_forward.10} parent=0 // pred_check
    _
  $region27: #{generator_forward.10} parent=0 // pred_check_branch
    %26 = sbr.rel (0) target = $region29
  $region28: #{generator_forward.10} parent=0 // pred_region
    _
  $region29: #{generator_forward.10} parent=0 // pred_fallthru
    _
  // Predicated region
  $region30: #{generator_forward.10} parent=0 // pred_check
    _
  $region31: #{generator_forward.10} parent=0 // pred_check_branch
    %28 = sbr.rel (0) target = $region33
  $region32: #{generator_forward.10} parent=0 // pred_region
    _
  $region33: #{generator_forward.10} parent=0 // pred_fallthru
    _
  %v30 = vld [vmem:[%s0] sm:$0xf]
  %v31 = vld [vmem:[%s0 + $0x4] sm:$0xf]
  %v32 = vld [vmem:[%s0 + $0x8] sm:$0xf]
  %v33 = vld [vmem:[%s0 + $0xc] sm:$0xf]
  %v34 = vunpack.c.l.bf16 %v30
  %v35 = vunpack.c.l.bf16 %v31
  %v36 = vunpack.c.l.bf16 %v32
  %v37 = vunpack.c.l.bf16 %v33
  %v38 = vrot.slane %v34, 3
  %v39 = vrot.slane %v35, 3
  %v40 = vrot.slane %v36, 3
  %v41 = vrot.slane %v37, 3
  %v42 = vlaneseq
  %v43 = vshrl.u32 %v42, 7
  %vm44 = vcmp.lt.s32.totalorder %v43, 5
  %v45 = vsel %vm44, %v40, %v41
  %v46 = vsel %vm44, %v39, %v40
  %v47 = vsel %vm44, %v38, %v39
  %v48 = vsel %vm44, %v41, %v38
  %v49 = vld [vmem:[%s1] sm:$0xff]
  %v50 = vld [vmem:[%s1 + $0x8] sm:$0xff]
  %v51 = vld [vmem:[%s1 + $0x10] sm:$0xff]
  %v52 = vld [vmem:[%s1 + $0x18] sm:$0xff]
  %54 = vset.pattern.permute.xlu0 0
  %55 = vperm.xlu0 %54, %v49
  %v56 = vpop.permute.xlu0 %55
  %59 = vset.pattern.permute.xlu0 0
  %60 = vperm.xlu0 %59, %v50
  %v61 = vpop.permute.xlu0 %60
  %64 = vset.pattern.permute.xlu0 0
  %65 = vperm.xlu0 %64, %v51
  %v66 = vpop.permute.xlu0 %65
  %69 = vset.pattern.permute.xlu0 0
  %70 = vperm.xlu0 %69, %v52
  %v71 = vpop.permute.xlu0 %70
  %v73 = vmul.f32 %v48, %v56
  %v74 = vmul.f32 %v47, %v61
  %v75 = vmul.f32 %v46, %v66
  %v76 = vmul.f32 %v45, %v71
  %v77 = vrot.slane %v34, 4
  %v78 = vrot.slane %v35, 4
  %v79 = vrot.slane %v36, 4
  %v80 = vrot.slane %v37, 4
  %vm81 = vcmp.lt.s32.totalorder %v43, 4
  %v82 = vsel %vm81, %v79, %v80
  %v83 = vsel %vm81, %v78, %v79
  %v84 = vsel %vm81, %v77, %v78
  %v85 = vsel %vm81, %v80, %v77
  %s86 = scalar_lea.vmem %s1, 32
  %v87 = vld [vmem:[%s86] sm:$0xff]
  %v88 = vld [vmem:[%s86 + $0x8] sm:$0xff]
  %v89 = vld [vmem:[%s86 + $0x10] sm:$0xff]
  %v90 = vld [vmem:[%s86 + $0x18] sm:$0xff]
  %92 = vset.pattern.permute.xlu0 0
  %93 = vperm.xlu0 %92, %v87
  %v94 = vpop.permute.xlu0 %93
  %97 = vset.pattern.permute.xlu0 0
  %98 = vperm.xlu0 %97, %v88
  %v99 = vpop.permute.xlu0 %98
  %102 = vset.pattern.permute.xlu0 0
  %103 = vperm.xlu0 %102, %v89
  %v104 = vpop.permute.xlu0 %103
  %107 = vset.pattern.permute.xlu0 0
  %108 = vperm.xlu0 %107, %v90
  %v109 = vpop.permute.xlu0 %108
  %v111 = vmul.f32 %v85, %v94
  %v112 = vmul.f32 %v84, %v99
  %v113 = vmul.f32 %v83, %v104
  %v114 = vmul.f32 %v82, %v109
  %v115 = vrot.slane %v34, 5
  %v116 = vrot.slane %v35, 5
  %v117 = vrot.slane %v36, 5
  %v118 = vrot.slane %v37, 5
  %vm119 = vcmp.lt.s32.totalorder %v43, 3
  %v120 = vsel %vm119, %v117, %v118
  %v121 = vsel %vm119, %v116, %v117
  %v122 = vsel %vm119, %v115, %v116
  %v123 = vsel %vm119, %v118, %v115
  %s124 = scalar_lea.vmem %s1, 64
  %v125 = vld [vmem:[%s124] sm:$0xff]
  %v126 = vld [vmem:[%s124 + $0x8] sm:$0xff]
  %v127 = vld [vmem:[%s124 + $0x10] sm:$0xff]
  %v128 = vld [vmem:[%s124 + $0x18] sm:$0xff]
  %130 = vset.pattern.permute.xlu0 0
  %131 = vperm.xlu0 %130, %v125
  %v132 = vpop.permute.xlu0 %131
  %135 = vset.pattern.permute.xlu0 0
  %136 = vperm.xlu0 %135, %v126
  %v137 = vpop.permute.xlu0 %136
  %140 = vset.pattern.permute.xlu0 0
  %141 = vperm.xlu0 %140, %v127
  %v142 = vpop.permute.xlu0 %141
  %145 = vset.pattern.permute.xlu0 0
  %146 = vperm.xlu0 %145, %v128
  %v147 = vpop.permute.xlu0 %146
  %v149 = vmul.f32 %v123, %v132
  %v150 = vmul.f32 %v122, %v137
  %v151 = vmul.f32 %v121, %v142
  %v152 = vmul.f32 %v120, %v147
  %v153 = vrot.slane %v34, 7
  %v154 = vrot.slane %v35, 7
  %v155 = vrot.slane %v36, 7
  %v156 = vrot.slane %v37, 7
  %vm157 = vcmp.lt.s32.totalorder %v43, 1
  %v158 = vsel %vm157, %v155, %v156
  %v159 = vsel %vm157, %v154, %v155
  %v160 = vsel %vm157, %v153, %v154
  %v161 = vsel %vm157, %v156, %v153
  %s162 = scalar_lea.vmem %s1, 96
  %v163 = vld [vmem:[%s162] sm:$0xff]
  %v164 = vld [vmem:[%s162 + $0x8] sm:$0xff]
  %v165 = vld [vmem:[%s162 + $0x10] sm:$0xff]
  %v166 = vld [vmem:[%s162 + $0x18] sm:$0xff]
  %168 = vset.pattern.permute.xlu0 0
  %169 = vperm.xlu0 %168, %v163
  %v170 = vpop.permute.xlu0 %169
  %173 = vset.pattern.permute.xlu0 0
  %174 = vperm.xlu0 %173, %v164
  %v175 = vpop.permute.xlu0 %174
  %178 = vset.pattern.permute.xlu0 0
  %179 = vperm.xlu0 %178, %v165
  %v180 = vpop.permute.xlu0 %179
  %183 = vset.pattern.permute.xlu0 0
  %184 = vperm.xlu0 %183, %v166
  %v185 = vpop.permute.xlu0 %184
  %v187 = vmul.f32 %v161, %v170
  %v188 = vmul.f32 %v160, %v175
  %v189 = vmul.f32 %v159, %v180
  %v190 = vmul.f32 %v158, %v185
  %s191 = scalar_lea.vmem %s1, 128
  %v192 = vld [vmem:[%s191] sm:$0xff]
  %v193 = vld [vmem:[%s191 + $0x8] sm:$0xff]
  %v194 = vld [vmem:[%s191 + $0x10] sm:$0xff]
  %v195 = vld [vmem:[%s191 + $0x18] sm:$0xff]
  %197 = vset.pattern.permute.xlu0 0
  %198 = vperm.xlu0 %197, %v192
  %v199 = vpop.permute.xlu0 %198
  %202 = vset.pattern.permute.xlu0 0
  %203 = vperm.xlu0 %202, %v193
  %v204 = vpop.permute.xlu0 %203
  %207 = vset.pattern.permute.xlu0 0
  %208 = vperm.xlu0 %207, %v194
  %v209 = vpop.permute.xlu0 %208
  %212 = vset.pattern.permute.xlu0 0
  %213 = vperm.xlu0 %212, %v195
  %v214 = vpop.permute.xlu0 %213
  %v216 = vmul.f32 %v34, %v199
  %v217 = vmul.f32 %v35, %v204
  %v218 = vmul.f32 %v36, %v209
  %v219 = vmul.f32 %v37, %v214
  %v220 = vrot.slane %v34, 1
  %v221 = vrot.slane %v35, 1
  %v222 = vrot.slane %v36, 1
  %v223 = vrot.slane %v37, 1
  %vm224 = vcmp.lt.s32.totalorder %v43, 7
  %v225 = vsel %vm224, %v222, %v223
  %v226 = vsel %vm224, %v221, %v222
  %v227 = vsel %vm224, %v220, %v221
  %v228 = vsel %vm224, %v223, %v220
  %s229 = scalar_lea.vmem %s1, 160
  %v230 = vld [vmem:[%s229] sm:$0xff]
  %v231 = vld [vmem:[%s229 + $0x8] sm:$0xff]
  %v232 = vld [vmem:[%s229 + $0x10] sm:$0xff]
  %v233 = vld [vmem:[%s229 + $0x18] sm:$0xff]
  %235 = vset.pattern.permute.xlu0 0
  %236 = vperm.xlu0 %235, %v230
  %v237 = vpop.permute.xlu0 %236
  %240 = vset.pattern.permute.xlu0 0
  %241 = vperm.xlu0 %240, %v231
  %v242 = vpop.permute.xlu0 %241
  %245 = vset.pattern.permute.xlu0 0
  %246 = vperm.xlu0 %245, %v232
  %v247 = vpop.permute.xlu0 %246
  %250 = vset.pattern.permute.xlu0 0
  %251 = vperm.xlu0 %250, %v233
  %v252 = vpop.permute.xlu0 %251
  %v254 = vmul.f32 %v227, %v237
  %v255 = vmul.f32 %v226, %v242
  %v256 = vmul.f32 %v225, %v247
  %v257 = vmul.f32 %v228, %v252
  %s258 = scalar_lea.vmem %s1, 192
  %v259 = vld [vmem:[%s258] sm:$0xff]
  %v260 = vld [vmem:[%s258 + $0x8] sm:$0xff]
  %v261 = vld [vmem:[%s258 + $0x10] sm:$0xff]
  %v262 = vld [vmem:[%s258 + $0x18] sm:$0xff]
  %264 = vset.pattern.permute.xlu0 0
  %265 = vperm.xlu0 %264, %v259
  %v266 = vpop.permute.xlu0 %265
  %269 = vset.pattern.permute.xlu0 0
  %270 = vperm.xlu0 %269, %v260
  %v271 = vpop.permute.xlu0 %270
  %274 = vset.pattern.permute.xlu0 0
  %275 = vperm.xlu0 %274, %v261
  %v276 = vpop.permute.xlu0 %275
  %279 = vset.pattern.permute.xlu0 0
  %280 = vperm.xlu0 %279, %v262
  %v281 = vpop.permute.xlu0 %280
  %v283 = vmul.f32 %v47, %v266
  %v284 = vmul.f32 %v46, %v271
  %v285 = vmul.f32 %v45, %v276
  %v286 = vmul.f32 %v48, %v281
  %s287 = scalar_lea.vmem %s1, 224
  %v288 = vld [vmem:[%s287] sm:$0xff]
  %v289 = vld [vmem:[%s287 + $0x8] sm:$0xff]
  %v290 = vld [vmem:[%s287 + $0x10] sm:$0xff]
  %v291 = vld [vmem:[%s287 + $0x18] sm:$0xff]
  %293 = vset.pattern.permute.xlu0 0
  %294 = vperm.xlu0 %293, %v288
  %v295 = vpop.permute.xlu0 %294
  %298 = vset.pattern.permute.xlu0 0
  %299 = vperm.xlu0 %298, %v289
  %v300 = vpop.permute.xlu0 %299
  %303 = vset.pattern.permute.xlu0 0
  %304 = vperm.xlu0 %303, %v290
  %v305 = vpop.permute.xlu0 %304
  %308 = vset.pattern.permute.xlu0 0
  %309 = vperm.xlu0 %308, %v291
  %v310 = vpop.permute.xlu0 %309
  %v312 = vmul.f32 %v84, %v295
  %v313 = vmul.f32 %v83, %v300
  %v314 = vmul.f32 %v82, %v305
  %v315 = vmul.f32 %v85, %v310
  %s316 = scalar_lea.vmem %s1, 256
  %v317 = vld [vmem:[%s316] sm:$0xff]
  %v318 = vld [vmem:[%s316 + $0x8] sm:$0xff]
  %v319 = vld [vmem:[%s316 + $0x10] sm:$0xff]
  %v320 = vld [vmem:[%s316 + $0x18] sm:$0xff]
  %322 = vset.pattern.permute.xlu0 0
  %323 = vperm.xlu0 %322, %v317
  %v324 = vpop.permute.xlu0 %323
  %327 = vset.pattern.permute.xlu0 0
  %328 = vperm.xlu0 %327, %v318
  %v329 = vpop.permute.xlu0 %328
  %332 = vset.pattern.permute.xlu0 0
  %333 = vperm.xlu0 %332, %v319
  %v334 = vpop.permute.xlu0 %333
  %337 = vset.pattern.permute.xlu0 0
  %338 = vperm.xlu0 %337, %v320
  %v339 = vpop.permute.xlu0 %338
  %v341 = vmul.f32 %v122, %v324
  %v342 = vmul.f32 %v121, %v329
  %v343 = vmul.f32 %v120, %v334
  %v344 = vmul.f32 %v123, %v339
  %v345 = vpack.c.bf16 %v74, %v73
  %v346 = vpack.c.bf16 %v112, %v111
  %v347 = vpack.c.bf16 %v150, %v149
  %v348 = vpack.c.bf16 %v188, %v187
  %v349 = vpack.c.bf16 %v217, %v216
  %v350 = vpack.c.bf16 %v255, %v254
  %v351 = vpack.c.bf16 %v284, %v283
  %v352 = vpack.c.bf16 %v313, %v312
  %v353 = vpack.c.bf16 %v342, %v341
  %v354 = vpack.c.bf16 %v76, %v75
  %v355 = vpack.c.bf16 %v114, %v113
  %v356 = vpack.c.bf16 %v152, %v151
  %v357 = vpack.c.bf16 %v190, %v189
  %v358 = vpack.c.bf16 %v219, %v218
  %v359 = vpack.c.bf16 %v257, %v256
  %v360 = vpack.c.bf16 %v286, %v285
  %v361 = vpack.c.bf16 %v315, %v314
  %v362 = vpack.c.bf16 %v344, %v343
  %v363 = vld [vmem:[%s2] sm:$0xf]
  %v364 = vld [vmem:[%s2 + $0x4] sm:$0xf]
  %v365 = vld [vmem:[%s2 + $0x8] sm:$0xf]
  %v366 = vld [vmem:[%s2 + $0xc] sm:$0xf]
  %v367 = vld [vmem:[%s2 + $0x10] sm:$0xf]
  %v368 = vld [vmem:[%s2 + $0x14] sm:$0xf]
  %v369 = vld [vmem:[%s2 + $0x18] sm:$0xf]
  %v370 = vld [vmem:[%s2 + $0x1c] sm:$0xf]
  %v371 = vld [vmem:[%s2 + $0x20] sm:$0xf]
  %v372 = vld [vmem:[%s2 + $0x24] sm:$0xf]
  %v373 = vld [vmem:[%s2 + $0x28] sm:$0xf]
  %v374 = vld [vmem:[%s2 + $0x2c] sm:$0xf]
  %v375 = vld [vmem:[%s2 + $0x30] sm:$0xf]
  %v376 = vld [vmem:[%s2 + $0x34] sm:$0xf]
  %v377 = vld [vmem:[%s2 + $0x38] sm:$0xf]
  %v378 = vld [vmem:[%s2 + $0x3c] sm:$0xf]
  %v379 = vld [vmem:[%s2 + $0x40] sm:$0xf]
  %v380 = vld [vmem:[%s2 + $0x44] sm:$0xf]
  %v381 = vld [vmem:[%s2 + $0x48] sm:$0xf]
  %v382 = vld [vmem:[%s2 + $0x4c] sm:$0xf]
  %v383 = vld [vmem:[%s2 + $0x50] sm:$0xf]
  %v384 = vld [vmem:[%s2 + $0x54] sm:$0xf]
  %v385 = vld [vmem:[%s2 + $0x58] sm:$0xf]
  %v386 = vld [vmem:[%s2 + $0x5c] sm:$0xf]
  %v387 = vld [vmem:[%s2 + $0x60] sm:$0xf]
  %v388 = vld [vmem:[%s2 + $0x64] sm:$0xf]
  %v389 = vld [vmem:[%s2 + $0x68] sm:$0xf]
  %v390 = vld [vmem:[%s2 + $0x6c] sm:$0xf]
  %v391 = vld [vmem:[%s2 + $0x70] sm:$0xf]
  %v392 = vld [vmem:[%s2 + $0x74] sm:$0xf]
  %v393 = vld [vmem:[%s2 + $0x78] sm:$0xf]
  %v394 = vld [vmem:[%s2 + $0x7c] sm:$0xf]
  %v395 = vld [vmem:[%s2 + $0x80] sm:$0xf]
  %v396 = vld [vmem:[%s2 + $0x84] sm:$0xf]
  %v397 = vld [vmem:[%s2 + $0x88] sm:$0xf]
  %v398 = vld [vmem:[%s2 + $0x8c] sm:$0xf]
  %v399 = vld [vmem:[%s2 + $0x90] sm:$0xf]
  %v400 = vld [vmem:[%s2 + $0x94] sm:$0xf]
  %v401 = vld [vmem:[%s2 + $0x98] sm:$0xf]
  %v402 = vld [vmem:[%s2 + $0x9c] sm:$0xf]
  %v403 = vld [vmem:[%s2 + $0xa0] sm:$0xf]
  %v404 = vld [vmem:[%s2 + $0xa4] sm:$0xf]
  %v405 = vld [vmem:[%s2 + $0xa8] sm:$0xf]
  %v406 = vld [vmem:[%s2 + $0xac] sm:$0xf]
  %v407 = vld [vmem:[%s2 + $0xb0] sm:$0xf]
  %v408 = vld [vmem:[%s2 + $0xb4] sm:$0xf]
  %v409 = vld [vmem:[%s2 + $0xb8] sm:$0xf]
  %v410 = vld [vmem:[%s2 + $0xbc] sm:$0xf]
  %v411 = vld [vmem:[%s2 + $0xc0] sm:$0xf]
  %v412 = vld [vmem:[%s2 + $0xc4] sm:$0xf]
  %v413 = vld [vmem:[%s2 + $0xc8] sm:$0xf]
  %v414 = vld [vmem:[%s2 + $0xcc] sm:$0xf]
  %v415 = vld [vmem:[%s2 + $0xd0] sm:$0xf]
  %v416 = vld [vmem:[%s2 + $0xd4] sm:$0xf]
  %v417 = vld [vmem:[%s2 + $0xd8] sm:$0xf]
  %v418 = vld [vmem:[%s2 + $0xdc] sm:$0xf]
  %v419 = vld [vmem:[%s2 + $0xe0] sm:$0xf]
  %v420 = vld [vmem:[%s2 + $0xe4] sm:$0xf]
  %v421 = vld [vmem:[%s2 + $0xe8] sm:$0xf]
  %v422 = vld [vmem:[%s2 + $0xec] sm:$0xf]
  %v423 = vld [vmem:[%s2 + $0xf0] sm:$0xf]
  %v424 = vld [vmem:[%s2 + $0xf4] sm:$0xf]
  %v425 = vld [vmem:[%s2 + $0xf8] sm:$0xf]
  %v426 = vld [vmem:[%s2 + $0xfc] sm:$0xf]
  %v427 = vld [vmem:[%s2 + $0x100] sm:$0xf]
  %v428 = vld [vmem:[%s2 + $0x104] sm:$0xf]
  %v429 = vld [vmem:[%s2 + $0x108] sm:$0xf]
  %v430 = vld [vmem:[%s2 + $0x10c] sm:$0xf]
  %v431 = vld [vmem:[%s2 + $0x110] sm:$0xf]
  %v432 = vld [vmem:[%s2 + $0x114] sm:$0xf]
  %v433 = vld [vmem:[%s2 + $0x118] sm:$0xf]
  %v434 = vld [vmem:[%s2 + $0x11c] sm:$0xf]
  %v435 = vld [vmem:[%s2 + $0x120] sm:$0xf]
  %v436 = vld [vmem:[%s2 + $0x124] sm:$0xf]
  %v437 = vld [vmem:[%s2 + $0x128] sm:$0xf]
  %v438 = vld [vmem:[%s2 + $0x12c] sm:$0xf]
  %v439 = vld [vmem:[%s2 + $0x130] sm:$0xf]
  %v440 = vld [vmem:[%s2 + $0x134] sm:$0xf]
  %v441 = vld [vmem:[%s2 + $0x138] sm:$0xf]
  %v442 = vld [vmem:[%s2 + $0x13c] sm:$0xf]
  %v443 = vld [vmem:[%s2 + $0x140] sm:$0xf]
  %v444 = vld [vmem:[%s2 + $0x144] sm:$0xf]
  %v445 = vld [vmem:[%s2 + $0x148] sm:$0xf]
  %v446 = vld [vmem:[%s2 + $0x14c] sm:$0xf]
  %v447 = vld [vmem:[%s2 + $0x150] sm:$0xf]
  %v448 = vld [vmem:[%s2 + $0x154] sm:$0xf]
  %v449 = vld [vmem:[%s2 + $0x158] sm:$0xf]
  %v450 = vld [vmem:[%s2 + $0x15c] sm:$0xf]
  %v451 = vld [vmem:[%s2 + $0x160] sm:$0xf]
  %v452 = vld [vmem:[%s2 + $0x164] sm:$0xf]
  %v453 = vld [vmem:[%s2 + $0x168] sm:$0xf]
  %v454 = vld [vmem:[%s2 + $0x16c] sm:$0xf]
  %v455 = vld [vmem:[%s2 + $0x170] sm:$0xf]
  %v456 = vld [vmem:[%s2 + $0x174] sm:$0xf]
  %v457 = vld [vmem:[%s2 + $0x178] sm:$0xf]
  %v458 = vld [vmem:[%s2 + $0x17c] sm:$0xf]
  %v459 = vld [vmem:[%s2 + $0x180] sm:$0xf]
  %v460 = vld [vmem:[%s2 + $0x184] sm:$0xf]
  %v461 = vld [vmem:[%s2 + $0x188] sm:$0xf]
  %v462 = vld [vmem:[%s2 + $0x18c] sm:$0xf]
  %v463 = vld [vmem:[%s2 + $0x190] sm:$0xf]
  %v464 = vld [vmem:[%s2 + $0x194] sm:$0xf]
  %v465 = vld [vmem:[%s2 + $0x198] sm:$0xf]
  %v466 = vld [vmem:[%s2 + $0x19c] sm:$0xf]
  %v467 = vld [vmem:[%s2 + $0x1a0] sm:$0xf]
  %v468 = vld [vmem:[%s2 + $0x1a4] sm:$0xf]
  %v469 = vld [vmem:[%s2 + $0x1a8] sm:$0xf]
  %v470 = vld [vmem:[%s2 + $0x1ac] sm:$0xf]
  %v471 = vld [vmem:[%s2 + $0x1b0] sm:$0xf]
  %v472 = vld [vmem:[%s2 + $0x1b4] sm:$0xf]
  %v473 = vld [vmem:[%s2 + $0x1b8] sm:$0xf]
  %v474 = vld [vmem:[%s2 + $0x1bc] sm:$0xf]
  %v475 = vld [vmem:[%s2 + $0x1c0] sm:$0xf]
  %v476 = vld [vmem:[%s2 + $0x1c4] sm:$0xf]
  %v477 = vld [vmem:[%s2 + $0x1c8] sm:$0xf]
  %v478 = vld [vmem:[%s2 + $0x1cc] sm:$0xf]
  %v479 = vld [vmem:[%s2 + $0x1d0] sm:$0xf]
  %v480 = vld [vmem:[%s2 + $0x1d4] sm:$0xf]
  %v481 = vld [vmem:[%s2 + $0x1d8] sm:$0xf]
  %v482 = vld [vmem:[%s2 + $0x1dc] sm:$0xf]
  %v483 = vld [vmem:[%s2 + $0x1e0] sm:$0xf]
  %v484 = vld [vmem:[%s2 + $0x1e4] sm:$0xf]
  %v485 = vld [vmem:[%s2 + $0x1e8] sm:$0xf]
  %v486 = vld [vmem:[%s2 + $0x1ec] sm:$0xf]
  %v487 = vld [vmem:[%s2 + $0x1f0] sm:$0xf]
  %v488 = vld [vmem:[%s2 + $0x1f4] sm:$0xf]
  %v489 = vld [vmem:[%s2 + $0x1f8] sm:$0xf]
  %v490 = vld [vmem:[%s2 + $0x1fc] sm:$0xf]
  %v491 = vld [vmem:[%s2 + $0x200] sm:$0xf]
  %v492 = vld [vmem:[%s2 + $0x204] sm:$0xf]
  %v493 = vld [vmem:[%s2 + $0x208] sm:$0xf]
  %v494 = vld [vmem:[%s2 + $0x20c] sm:$0xf]
  %v495 = vld [vmem:[%s2 + $0x210] sm:$0xf]
  %v496 = vld [vmem:[%s2 + $0x214] sm:$0xf]
  %v497 = vld [vmem:[%s2 + $0x218] sm:$0xf]
  %v498 = vld [vmem:[%s2 + $0x21c] sm:$0xf]
  %v499 = vld [vmem:[%s2 + $0x220] sm:$0xf]
  %v500 = vld [vmem:[%s2 + $0x224] sm:$0xf]
  %v501 = vld [vmem:[%s2 + $0x228] sm:$0xf]
  %v502 = vld [vmem:[%s2 + $0x22c] sm:$0xf]
  %v503 = vld [vmem:[%s2 + $0x230] sm:$0xf]
  %v504 = vld [vmem:[%s2 + $0x234] sm:$0xf]
  %v505 = vld [vmem:[%s2 + $0x238] sm:$0xf]
  %v506 = vld [vmem:[%s2 + $0x23c] sm:$0xf]
  %v651 = vunpack.c.l.b16 %v363
  %v652 = vunpack.c.l.b16 %v364
  %v653 = vunpack.c.l.b16 %v365
  %v654 = vunpack.c.l.b16 %v366
  %v655 = vunpack.c.l.b16 %v367
  %v656 = vunpack.c.l.b16 %v368
  %v657 = vunpack.c.l.b16 %v369
  %v658 = vunpack.c.l.b16 %v370
  %v659 = vunpack.c.l.b16 %v371
  %v660 = vunpack.c.l.b16 %v372
  %v661 = vunpack.c.l.b16 %v373
  %v662 = vunpack.c.l.b16 %v374
  %v663 = vunpack.c.l.b16 %v375
  %v664 = vunpack.c.l.b16 %v376
  %v665 = vunpack.c.l.b16 %v377
  %v666 = vunpack.c.l.b16 %v378
  %v667 = vunpack.c.l.b16 %v379
  %v668 = vunpack.c.l.b16 %v380
  %v669 = vunpack.c.l.b16 %v381
  %v670 = vunpack.c.l.b16 %v382
  %v671 = vunpack.c.l.b16 %v383
  %v672 = vunpack.c.l.b16 %v384
  %v673 = vunpack.c.l.b16 %v385
  %v674 = vunpack.c.l.b16 %v386
  %v675 = vunpack.c.l.b16 %v387
  %v676 = vunpack.c.l.b16 %v388
  %v677 = vunpack.c.l.b16 %v389
  %v678 = vunpack.c.l.b16 %v390
  %v679 = vunpack.c.l.b16 %v391
  %v680 = vunpack.c.l.b16 %v392
  %v681 = vunpack.c.l.b16 %v393
  %v682 = vunpack.c.l.b16 %v394
  %v683 = vunpack.c.l.b16 %v395
  %v684 = vunpack.c.l.b16 %v396
  %v685 = vunpack.c.l.b16 %v397
  %v686 = vunpack.c.l.b16 %v398
  %v687 = vunpack.c.l.b16 %v399
  %v688 = vunpack.c.l.b16 %v400
  %v689 = vunpack.c.l.b16 %v401
  %v690 = vunpack.c.l.b16 %v402
  %v691 = vunpack.c.l.b16 %v403
  %v692 = vunpack.c.l.b16 %v404
  %v693 = vunpack.c.l.b16 %v405
  %v694 = vunpack.c.l.b16 %v406
  %v695 = vunpack.c.l.b16 %v407
  %v696 = vunpack.c.l.b16 %v408
  %v697 = vunpack.c.l.b16 %v409
  %v698 = vunpack.c.l.b16 %v410
  %v699 = vunpack.c.l.b16 %v411
  %v700 = vunpack.c.l.b16 %v412
  %v701 = vunpack.c.l.b16 %v413
  %v702 = vunpack.c.l.b16 %v414
  %v703 = vunpack.c.l.b16 %v415
  %v704 = vunpack.c.l.b16 %v416
  %v705 = vunpack.c.l.b16 %v417
  %v706 = vunpack.c.l.b16 %v418
  %v707 = vunpack.c.l.b16 %v419
  %v708 = vunpack.c.l.b16 %v420
  %v709 = vunpack.c.l.b16 %v421
  %v710 = vunpack.c.l.b16 %v422
  %v711 = vunpack.c.l.b16 %v423
  %v712 = vunpack.c.l.b16 %v424
  %v713 = vunpack.c.l.b16 %v425
  %v714 = vunpack.c.l.b16 %v426
  %v715 = vunpack.c.l.b16 %v427
  %v716 = vunpack.c.l.b16 %v428
  %v717 = vunpack.c.l.b16 %v429
  %v718 = vunpack.c.l.b16 %v430
  %v719 = vunpack.c.l.b16 %v431
  %v720 = vunpack.c.l.b16 %v432
  %v721 = vunpack.c.l.b16 %v433
  %v722 = vunpack.c.l.b16 %v434
  %v723 = vunpack.c.l.b16 %v435
  %v724 = vunpack.c.l.b16 %v436
  %v725 = vunpack.c.l.b16 %v437
  %v726 = vunpack.c.l.b16 %v438
  %v727 = vunpack.c.l.b16 %v439
  %v728 = vunpack.c.l.b16 %v440
  %v729 = vunpack.c.l.b16 %v441
  %v730 = vunpack.c.l.b16 %v442
  %v731 = vunpack.c.l.b16 %v443
  %v732 = vunpack.c.l.b16 %v444
  %v733 = vunpack.c.l.b16 %v445
  %v734 = vunpack.c.l.b16 %v446
  %v735 = vunpack.c.l.b16 %v447
  %v736 = vunpack.c.l.b16 %v448
  %v737 = vunpack.c.l.b16 %v449
  %v738 = vunpack.c.l.b16 %v450
  %v739 = vunpack.c.l.b16 %v451
  %v740 = vunpack.c.l.b16 %v452
  %v741 = vunpack.c.l.b16 %v453
  %v742 = vunpack.c.l.b16 %v454
  %v743 = vunpack.c.l.b16 %v455
  %v744 = vunpack.c.l.b16 %v456
  %v745 = vunpack.c.l.b16 %v457
  %v746 = vunpack.c.l.b16 %v458
  %v747 = vunpack.c.l.b16 %v459
  %v748 = vunpack.c.l.b16 %v460
  %v749 = vunpack.c.l.b16 %v461
  %v750 = vunpack.c.l.b16 %v462
  %v751 = vunpack.c.l.b16 %v463
  %v752 = vunpack.c.l.b16 %v464
  %v753 = vunpack.c.l.b16 %v465
  %v754 = vunpack.c.l.b16 %v466
  %v755 = vunpack.c.l.b16 %v467
  %v756 = vunpack.c.l.b16 %v468
  %v757 = vunpack.c.l.b16 %v469
  %v758 = vunpack.c.l.b16 %v470
  %v759 = vunpack.c.l.b16 %v471
  %v760 = vunpack.c.l.b16 %v472
  %v761 = vunpack.c.l.b16 %v473
  %v762 = vunpack.c.l.b16 %v474
  %v763 = vunpack.c.l.b16 %v475
  %v764 = vunpack.c.l.b16 %v476
  %v765 = vunpack.c.l.b16 %v477
  %v766 = vunpack.c.l.b16 %v478
  %v767 = vunpack.c.l.b16 %v479
  %v768 = vunpack.c.l.b16 %v480
  %v769 = vunpack.c.l.b16 %v481
  %v770 = vunpack.c.l.b16 %v482
  %v771 = vunpack.c.l.b16 %v483
  %v772 = vunpack.c.l.b16 %v484
  %v773 = vunpack.c.l.b16 %v485
  %v774 = vunpack.c.l.b16 %v486
  %v775 = vunpack.c.l.b16 %v487
  %v776 = vunpack.c.l.b16 %v488
  %v777 = vunpack.c.l.b16 %v489
  %v778 = vunpack.c.l.b16 %v490
  %v779 = vunpack.c.l.b16 %v491
  %v780 = vunpack.c.l.b16 %v492
  %v781 = vunpack.c.l.b16 %v493
  %v782 = vunpack.c.l.b16 %v494
  %v783 = vunpack.c.l.b16 %v495
  %v784 = vunpack.c.l.b16 %v496
  %v785 = vunpack.c.l.b16 %v497
  %v786 = vunpack.c.l.b16 %v498
  %v787 = vunpack.c.l.b16 %v499
  %v788 = vunpack.c.l.b16 %v500
  %v789 = vunpack.c.l.b16 %v501
  %v790 = vunpack.c.l.b16 %v502
  %v791 = vunpack.c.l.b16 %v503
  %v792 = vunpack.c.l.b16 %v504
  %v793 = vunpack.c.l.b16 %v505
  %v794 = vunpack.c.l.b16 %v506
  %v795 = vpack.c.b16 %v652, %v651
  %v796 = vpack.c.b16 %v654, %v653
  %v797 = vpack.c.b16 %v656, %v655
  %v798 = vpack.c.b16 %v658, %v657
  %v799 = vpack.c.b16 %v660, %v659
  %v800 = vpack.c.b16 %v662, %v661
  %v801 = vpack.c.b16 %v664, %v663
  %v802 = vpack.c.b16 %v666, %v665
  %v803 = vpack.c.b16 %v668, %v667
  %v804 = vpack.c.b16 %v670, %v669
  %v805 = vpack.c.b16 %v672, %v671
  %v806 = vpack.c.b16 %v674, %v673
  %v807 = vpack.c.b16 %v676, %v675
  %v808 = vpack.c.b16 %v678, %v677
  %v809 = vpack.c.b16 %v680, %v679
  %v810 = vpack.c.b16 %v682, %v681
  %v811 = vpack.c.b16 %v684, %v683
  %v812 = vpack.c.b16 %v686, %v685
  %v813 = vpack.c.b16 %v688, %v687
  %v814 = vpack.c.b16 %v690, %v689
  %v815 = vpack.c.b16 %v692, %v691
  %v816 = vpack.c.b16 %v694, %v693
  %v817 = vpack.c.b16 %v696, %v695
  %v818 = vpack.c.b16 %v698, %v697
  %v819 = vpack.c.b16 %v700, %v699
  %v820 = vpack.c.b16 %v702, %v701
  %v821 = vpack.c.b16 %v704, %v703
  %v822 = vpack.c.b16 %v706, %v705
  %v823 = vpack.c.b16 %v708, %v707
  %v824 = vpack.c.b16 %v710, %v709
  %v825 = vpack.c.b16 %v712, %v711
  %v826 = vpack.c.b16 %v714, %v713
  %v827 = vpack.c.b16 %v716, %v715
  %v828 = vpack.c.b16 %v718, %v717
  %v829 = vpack.c.b16 %v720, %v719
  %v830 = vpack.c.b16 %v722, %v721
  %v831 = vpack.c.b16 %v724, %v723
  %v832 = vpack.c.b16 %v726, %v725
  %v833 = vpack.c.b16 %v728, %v727
  %v834 = vpack.c.b16 %v730, %v729
  %v835 = vpack.c.b16 %v732, %v731
  %v836 = vpack.c.b16 %v734, %v733
  %v837 = vpack.c.b16 %v736, %v735
  %v838 = vpack.c.b16 %v738, %v737
  %v839 = vpack.c.b16 %v740, %v739
  %v840 = vpack.c.b16 %v742, %v741
  %v841 = vpack.c.b16 %v744, %v743
  %v842 = vpack.c.b16 %v746, %v745
  %v843 = vpack.c.b16 %v748, %v747
  %v844 = vpack.c.b16 %v750, %v749
  %v845 = vpack.c.b16 %v752, %v751
  %v846 = vpack.c.b16 %v754, %v753
  %v847 = vpack.c.b16 %v756, %v755
  %v848 = vpack.c.b16 %v758, %v757
  %v849 = vpack.c.b16 %v760, %v759
  %v850 = vpack.c.b16 %v762, %v761
  %v851 = vpack.c.b16 %v764, %v763
  %v852 = vpack.c.b16 %v766, %v765
  %v853 = vpack.c.b16 %v768, %v767
  %v854 = vpack.c.b16 %v770, %v769
  %v855 = vpack.c.b16 %v772, %v771
  %v856 = vpack.c.b16 %v774, %v773
  %v857 = vpack.c.b16 %v776, %v775
  %v858 = vpack.c.b16 %v778, %v777
  %v859 = vpack.c.b16 %v780, %v779
  %v860 = vpack.c.b16 %v782, %v781
  %v861 = vpack.c.b16 %v784, %v783
  %v862 = vpack.c.b16 %v786, %v785
  %v863 = vpack.c.b16 %v788, %v787
  %v864 = vpack.c.b16 %v790, %v789
  %v865 = vpack.c.b16 %v792, %v791
  %v866 = vpack.c.b16 %v794, %v793
  %939 = vmatprep.subr.bf16.mxu0 0
  %940 = vmatpush1.bf16.msra.mxu0 %v802
  %941 = vmatprep.subr.bf16.mxu0 0
  %942 = vmatpush1.bf16.msra.mxu0 %v801
  %943 = vmatprep.subr.bf16.mxu0 0
  %944 = vmatpush1.bf16.msra.mxu0 %v800
  %945 = vmatprep.subr.bf16.mxu0 0
  %946 = vmatpush1.bf16.msra.mxu0 %v799
  %947 = vmatprep.subr.bf16.mxu0 0
  %948 = vmatpush1.bf16.msra.mxu0 %v798
  %949 = vmatprep.subr.bf16.mxu0 0
  %950 = vmatpush1.bf16.msra.mxu0 %v797
  %951 = vmatprep.subr.bf16.mxu0 0
  %952 = vmatpush1.bf16.msra.mxu0 %v796
  %953 = vmatprep.subr.bf16.mxu0 0
  %954 = vmatpush1.bf16.msra.mxu0 %v795
  %955 = vmatprep.subr.bf16.mxu0 0
  %956 = vmatpush2.bf16.msra.mxu0 %v810
  %957 = vmatprep.subr.bf16.mxu0 0
  %958 = vmatpush2.bf16.msra.mxu0 %v809
  %959 = vmatprep.subr.bf16.mxu0 0
  %960 = vmatpush2.bf16.msra.mxu0 %v808
  %961 = vmatprep.subr.bf16.mxu0 0
  %962 = vmatpush2.bf16.msra.mxu0 %v807
  %963 = vmatprep.subr.bf16.mxu0 0
  %964 = vmatpush2.bf16.msra.mxu0 %v806
  %965 = vmatprep.subr.bf16.mxu0 0
  %966 = vmatpush2.bf16.msra.mxu0 %v805
  %967 = vmatprep.subr.bf16.mxu0 0
  %968 = vmatpush2.bf16.msra.mxu0 %v804
  %969 = vmatprep.subr.bf16.mxu0 0
  %970 = vmatpush2.bf16.msra.mxu0 %v803
  %971 = vmatprep.mubr.bf16.mxu0 %v346
  %972 = vmatmul.mubr.bf16.gmra.mxu0 %v345
  %v973 = vpop.f32.mrf.mxu0
  %v974 = vadd.f32 0.0, %v973
  %v975 = vpop.f32.mrf.mxu0
  %v976 = vpop.f32.mrf.mxu0
  %v977 = vadd.f32 0.0, %v976
  %v978 = vpop.f32.mrf.mxu0
  %979 = vmatprep.mubr.bf16.mxu0 %v355
  %980 = vmatmul.mubr.bf16.gmra.mxu0 %v354
  %v981 = vpop.f32.mrf.mxu0
  %v982 = vadd.f32 0.0, %v981
  %v983 = vpop.f32.mrf.mxu0
  %v984 = vpop.f32.mrf.mxu0
  %v985 = vadd.f32 0.0, %v984
  %v986 = vpop.f32.mrf.mxu0
  %987 = vdwg.mxu0
  %988 = vmatprep.subr.bf16.mxu0 0
  %989 = vmatpush1.bf16.msra.mxu0 %v818
  %990 = vmatprep.subr.bf16.mxu0 0
  %991 = vmatpush1.bf16.msra.mxu0 %v817
  %992 = vmatprep.subr.bf16.mxu0 0
  %993 = vmatpush1.bf16.msra.mxu0 %v816
  %994 = vmatprep.subr.bf16.mxu0 0
  %995 = vmatpush1.bf16.msra.mxu0 %v815
  %996 = vmatprep.subr.bf16.mxu0 0
  %997 = vmatpush1.bf16.msra.mxu0 %v814
  %998 = vmatprep.subr.bf16.mxu0 0
  %999 = vmatpush1.bf16.msra.mxu0 %v813
  %1000 = vmatprep.subr.bf16.mxu0 0
  %1001 = vmatpush1.bf16.msra.mxu0 %v812
  %1002 = vmatprep.subr.bf16.mxu0 0
  %1003 = vmatpush1.bf16.msra.mxu0 %v811
  %1004 = vmatprep.subr.bf16.mxu0 0
  %1005 = vmatpush2.bf16.msra.mxu0 %v826
  %1006 = vmatprep.subr.bf16.mxu0 0
  %1007 = vmatpush2.bf16.msra.mxu0 %v825
  %1008 = vmatprep.subr.bf16.mxu0 0
  %1009 = vmatpush2.bf16.msra.mxu0 %v824
  %1010 = vmatprep.subr.bf16.mxu0 0
  %1011 = vmatpush2.bf16.msra.mxu0 %v823
  %1012 = vmatprep.subr.bf16.mxu0 0
  %1013 = vmatpush2.bf16.msra.mxu0 %v822
  %1014 = vmatprep.subr.bf16.mxu0 0
  %1015 = vmatpush2.bf16.msra.mxu0 %v821
  %1016 = vmatprep.subr.bf16.mxu0 0
  %1017 = vmatpush2.bf16.msra.mxu0 %v820
  %1018 = vmatprep.subr.bf16.mxu0 0
  %1019 = vmatpush2.bf16.msra.mxu0 %v819
  %1020 = vmatprep.mubr.bf16.mxu0 %v348
  %1021 = vmatmul.mubr.bf16.gmra.mxu0 %v347
  %v1022 = vpop.f32.mrf.mxu0
  %v1023 = vadd.f32 %v974, %v1022
  %v1024 = vpop.f32.mrf.mxu0
  %v1025 = vpop.f32.mrf.mxu0
  %v1026 = vadd.f32 %v977, %v1025
  %v1027 = vpop.f32.mrf.mxu0
  %1028 = vmatprep.mubr.bf16.mxu0 %v357
  %1029 = vmatmul.mubr.bf16.gmra.mxu0 %v356
  %v1030 = vpop.f32.mrf.mxu0
  %v1031 = vadd.f32 %v982, %v1030
  %v1032 = vpop.f32.mrf.mxu0
  %v1033 = vpop.f32.mrf.mxu0
  %v1034 = vadd.f32 %v985, %v1033
  %v1035 = vpop.f32.mrf.mxu0
  %1036 = vdwg.mxu0
  %1037 = vmatprep.subr.bf16.mxu0 0
  %1038 = vmatpush1.bf16.msra.mxu0 %v834
  %1039 = vmatprep.subr.bf16.mxu0 0
  %1040 = vmatpush1.bf16.msra.mxu0 %v833
  %1041 = vmatprep.subr.bf16.mxu0 0
  %1042 = vmatpush1.bf16.msra.mxu0 %v832
  %1043 = vmatprep.subr.bf16.mxu0 0
  %1044 = vmatpush1.bf16.msra.mxu0 %v831
  %1045 = vmatprep.subr.bf16.mxu0 0
  %1046 = vmatpush1.bf16.msra.mxu0 %v830
  %1047 = vmatprep.subr.bf16.mxu0 0
  %1048 = vmatpush1.bf16.msra.mxu0 %v829
  %1049 = vmatprep.subr.bf16.mxu0 0
  %1050 = vmatpush1.bf16.msra.mxu0 %v828
  %1051 = vmatprep.subr.bf16.mxu0 0
  %1052 = vmatpush1.bf16.msra.mxu0 %v827
  %1053 = vmatprep.subr.bf16.mxu0 0
  %1054 = vmatpush2.bf16.msra.mxu0 %v842
  %1055 = vmatprep.subr.bf16.mxu0 0
  %1056 = vmatpush2.bf16.msra.mxu0 %v841
  %1057 = vmatprep.subr.bf16.mxu0 0
  %1058 = vmatpush2.bf16.msra.mxu0 %v840
  %1059 = vmatprep.subr.bf16.mxu0 0
  %1060 = vmatpush2.bf16.msra.mxu0 %v839
  %1061 = vmatprep.subr.bf16.mxu0 0
  %1062 = vmatpush2.bf16.msra.mxu0 %v838
  %1063 = vmatprep.subr.bf16.mxu0 0
  %1064 = vmatpush2.bf16.msra.mxu0 %v837
  %1065 = vmatprep.subr.bf16.mxu0 0
  %1066 = vmatpush2.bf16.msra.mxu0 %v836
  %1067 = vmatprep.subr.bf16.mxu0 0
  %1068 = vmatpush2.bf16.msra.mxu0 %v835
  %1069 = vmatprep.mubr.bf16.mxu0 %v350
  %1070 = vmatmul.mubr.bf16.gmra.mxu0 %v349
  %v1071 = vpop.f32.mrf.mxu0
  %v1072 = vadd.f32 %v1023, %v1071
  %v1073 = vpop.f32.mrf.mxu0
  %v1074 = vpop.f32.mrf.mxu0
  %v1075 = vadd.f32 %v1026, %v1074
  %v1076 = vpop.f32.mrf.mxu0
  %1077 = vmatprep.mubr.bf16.mxu0 %v359
  %1078 = vmatmul.mubr.bf16.gmra.mxu0 %v358
  %v1079 = vpop.f32.mrf.mxu0
  %v1080 = vadd.f32 %v1031, %v1079
  %v1081 = vpop.f32.mrf.mxu0
  %v1082 = vpop.f32.mrf.mxu0
  %v1083 = vadd.f32 %v1034, %v1082
  %v1084 = vpop.f32.mrf.mxu0
  %1085 = vdwg.mxu0
  %1086 = vmatprep.subr.bf16.mxu0 0
  %1087 = vmatpush1.bf16.msra.mxu0 %v850
  %1088 = vmatprep.subr.bf16.mxu0 0
  %1089 = vmatpush1.bf16.msra.mxu0 %v849
  %1090 = vmatprep.subr.bf16.mxu0 0
  %1091 = vmatpush1.bf16.msra.mxu0 %v848
  %1092 = vmatprep.subr.bf16.mxu0 0
  %1093 = vmatpush1.bf16.msra.mxu0 %v847
  %1094 = vmatprep.subr.bf16.mxu0 0
  %1095 = vmatpush1.bf16.msra.mxu0 %v846
  %1096 = vmatprep.subr.bf16.mxu0 0
  %1097 = vmatpush1.bf16.msra.mxu0 %v845
  %1098 = vmatprep.subr.bf16.mxu0 0
  %1099 = vmatpush1.bf16.msra.mxu0 %v844
  %1100 = vmatprep.subr.bf16.mxu0 0
  %1101 = vmatpush1.bf16.msra.mxu0 %v843
  %1102 = vmatprep.subr.bf16.mxu0 0
  %1103 = vmatpush2.bf16.msra.mxu0 %v858
  %1104 = vmatprep.subr.bf16.mxu0 0
  %1105 = vmatpush2.bf16.msra.mxu0 %v857
  %1106 = vmatprep.subr.bf16.mxu0 0
  %1107 = vmatpush2.bf16.msra.mxu0 %v856
  %1108 = vmatprep.subr.bf16.mxu0 0
  %1109 = vmatpush2.bf16.msra.mxu0 %v855
  %1110 = vmatprep.subr.bf16.mxu0 0
  %1111 = vmatpush2.bf16.msra.mxu0 %v854
  %1112 = vmatprep.subr.bf16.mxu0 0
  %1113 = vmatpush2.bf16.msra.mxu0 %v853
  %1114 = vmatprep.subr.bf16.mxu0 0
  %1115 = vmatpush2.bf16.msra.mxu0 %v852
  %1116 = vmatprep.subr.bf16.mxu0 0
  %1117 = vmatpush2.bf16.msra.mxu0 %v851
  %1118 = vmatprep.mubr.bf16.mxu0 %v352
  %1119 = vmatmul.mubr.bf16.gmra.mxu0 %v351
  %v1120 = vpop.f32.mrf.mxu0
  %v1121 = vadd.f32 %v1072, %v1120
  %v1122 = vpop.f32.mrf.mxu0
  %v1123 = vpop.f32.mrf.mxu0
  %v1124 = vadd.f32 %v1075, %v1123
  %v1125 = vpop.f32.mrf.mxu0
  %1126 = vmatprep.mubr.bf16.mxu0 %v361
  %1127 = vmatmul.mubr.bf16.gmra.mxu0 %v360
  %v1128 = vpop.f32.mrf.mxu0
  %v1129 = vadd.f32 %v1080, %v1128
  %v1130 = vpop.f32.mrf.mxu0
  %v1131 = vpop.f32.mrf.mxu0
  %v1132 = vadd.f32 %v1083, %v1131
  %v1133 = vpop.f32.mrf.mxu0
  %1134 = vdwg.mxu0
  %1135 = vmatprep.subr.bf16.mxu0 0
  %1136 = vmatpush1.bf16.msra.mxu0 %v866
  %1137 = vmatprep.subr.bf16.mxu0 0
  %1138 = vmatpush1.bf16.msra.mxu0 %v865
  %1139 = vmatprep.subr.bf16.mxu0 0
  %1140 = vmatpush1.bf16.msra.mxu0 %v864
  %1141 = vmatprep.subr.bf16.mxu0 0
  %1142 = vmatpush1.bf16.msra.mxu0 %v863
  %1143 = vmatprep.subr.bf16.mxu0 0
  %1144 = vmatpush1.bf16.msra.mxu0 %v862
  %1145 = vmatprep.subr.bf16.mxu0 0
  %1146 = vmatpush1.bf16.msra.mxu0 %v861
  %1147 = vmatprep.subr.bf16.mxu0 0
  %1148 = vmatpush1.bf16.msra.mxu0 %v860
  %1149 = vmatprep.subr.bf16.mxu0 0
  %1150 = vmatpush1.bf16.msra.mxu0 %v859
  %1151 = vmatprep.subr.bf16.mxu0 0
  %1152 = vmatpush2.bf16.msra.mxu0 0
  %1153 = vmatprep.subr.bf16.mxu0 0
  %1154 = vmatpush2.bf16.msra.mxu0 0
  %1155 = vmatprep.subr.bf16.mxu0 0
  %1156 = vmatpush2.bf16.msra.mxu0 0
  %1157 = vmatprep.subr.bf16.mxu0 0
  %1158 = vmatpush2.bf16.msra.mxu0 0
  %1159 = vmatprep.subr.bf16.mxu0 0
  %1160 = vmatpush2.bf16.msra.mxu0 0
  %1161 = vmatprep.subr.bf16.mxu0 0
  %1162 = vmatpush2.bf16.msra.mxu0 0
  %1163 = vmatprep.subr.bf16.mxu0 0
  %1164 = vmatpush2.bf16.msra.mxu0 0
  %1165 = vmatprep.subr.bf16.mxu0 0
  %1166 = vmatpush2.bf16.msra.mxu0 0
  %1167 = vmatprep.mubr.bf16.mxu0 0
  %1168 = vmatmul.mubr.bf16.gmra.mxu0 %v353
  %v1169 = vpop.f32.mrf.mxu0
  %v1170 = vadd.f32 %v1121, %v1169
  %v1171 = vpop.f32.mrf.mxu0
  %v1172 = vpop.f32.mrf.mxu0
  %v1173 = vadd.f32 %v1124, %v1172
  %v1174 = vpop.f32.mrf.mxu0
  %1175 = vmatprep.mubr.bf16.mxu0 0
  %1176 = vmatmul.mubr.bf16.gmra.mxu0 %v362
  %v1177 = vpop.f32.mrf.mxu0
  %v1178 = vadd.f32 %v1129, %v1177
  %v1179 = vpop.f32.mrf.mxu0
  %v1180 = vpop.f32.mrf.mxu0
  %v1181 = vadd.f32 %v1132, %v1180
  %v1182 = vpop.f32.mrf.mxu0
  %1183 = vdwg.mxu0
  %v1184 = vld [vmem:[%s3] sm:$0x1]
  %v1185 = vld [vmem:[%s4] sm:$0x1]
  %v1186 = vadd.f32 %v1170, %v1173
  %v1187 = vadd.f32 %v1186, %v1178
  %v1188 = vadd.f32 %v1187, %v1181
  %v1189 = vrot.slane %v1188, 4
  %v1190 = vadd.f32 %v1188, %v1189
  %v1191 = vrot.slane %v1190, 2
  %v1192 = vadd.f32 %v1190, %v1191
  %v1193 = vrot.slane %v1192, 1
  %v1194 = vadd.f32 %v1192, %v1193
  %v1195 = vmul.f32 %v1194, 0.03125
  %v1196 = vmul.f32 %v1170, %v1170
  %v1197 = vmul.f32 %v1173, %v1173
  %v1198 = vmul.f32 %v1178, %v1178
  %v1199 = vmul.f32 %v1181, %v1181
  %v1200 = vadd.f32 %v1196, %v1197
  %v1201 = vadd.f32 %v1200, %v1198
  %v1202 = vadd.f32 %v1201, %v1199
  %v1203 = vrot.slane %v1202, 4
  %v1204 = vadd.f32 %v1202, %v1203
  %v1205 = vrot.slane %v1204, 2
  %v1206 = vadd.f32 %v1204, %v1205
  %v1207 = vrot.slane %v1206, 1
  %v1208 = vadd.f32 %v1206, %v1207
  %v1209 = vmul.f32 %v1208, 0.03125
  %v1210 = vmul.f32 %v1195, %v1195
  %v1211 = vsub.f32 %v1209, %v1210
  %v1212 = vmax.f32 %v1211, 0.0
  %v1213 = vsub.f32 %v1170, %v1195
  %v1214 = vsub.f32 %v1173, %v1195
  %v1215 = vsub.f32 %v1178, %v1195
  %v1216 = vsub.f32 %v1181, %v1195
  %v1217 = vadd.f32 %v1212, 1e-05
  %v1218 = vrsqrt.pop %v1217
  %v1219 = vmul.f32 %v1213, %v1218
  %v1220 = vmul.f32 %v1214, %v1218
  %v1221 = vmul.f32 %v1215, %v1218
  %v1222 = vmul.f32 %v1216, %v1218
  %v1224 = vlaneseq
  %v1225 = vshrl.u32 %v1224, 7
  %v1226 = vsub.s32 0, %v1225
  %v1227 = vrot.slane %v1184, %v1226
  %v1229 = vmul.f32 %v1219, %v1227
  %v1230 = vmul.f32 %v1220, %v1227
  %v1231 = vmul.f32 %v1221, %v1227
  %v1232 = vmul.f32 %v1222, %v1227
  %v1234 = vlaneseq
  %v1235 = vshrl.u32 %v1234, 7
  %v1236 = vsub.s32 0, %v1235
  %v1237 = vrot.slane %v1185, %v1236
  %v1239 = vadd.f32 %v1229, %v1237
  %v1240 = vadd.f32 %v1230, %v1237
  %v1241 = vadd.f32 %v1231, %v1237
  %v1242 = vadd.f32 %v1232, %v1237
  %v1243 = vmax.f32 %v1239, 0.0
  %v1244 = vmax.f32 %v1240, 0.0
  %v1245 = vmax.f32 %v1241, 0.0
  %v1246 = vmax.f32 %v1242, 0.0
  %v1247 = vrot.slane %v1243, 3
  %v1248 = vrot.slane %v1244, 3
  %v1249 = vrot.slane %v1245, 3
  %v1250 = vrot.slane %v1246, 3
  %v1251 = vsel %vm44, %v1249, %v1250
  %v1252 = vsel %vm44, %v1248, %v1249
  %v1253 = vsel %vm44, %v1247, %v1248
  %v1254 = vsel %vm44, %v1250, %v1247
  %v1255 = vmul.f32 %v1254, %v56
  %v1256 = vmul.f32 %v1253, %v61
  %v1257 = vmul.f32 %v1252, %v66
  %v1258 = vmul.f32 %v1251, %v71
  %v1259 = vrot.slane %v1243, 4
  %v1260 = vrot.slane %v1244, 4
  %v1261 = vrot.slane %v1245, 4
  %v1262 = vrot.slane %v1246, 4
  %v1263 = vsel %vm81, %v1261, %v1262
  %v1264 = vsel %vm81, %v1260, %v1261
  %v1265 = vsel %vm81, %v1259, %v1260
  %v1266 = vsel %vm81, %v1262, %v1259
  %v1267 = vmul.f32 %v1266, %v94
  %v1268 = vmul.f32 %v1265, %v99
  %v1269 = vmul.f32 %v1264, %v104
  %v1270 = vmul.f32 %v1263, %v109
  %v1271 = vrot.slane %v1243, 5
  %v1272 = vrot.slane %v1244, 5
  %v1273 = vrot.slane %v1245, 5
  %v1274 = vrot.slane %v1246, 5
  %v1275 = vsel %vm119, %v1273, %v1274
  %v1276 = vsel %vm119, %v1272, %v1273
  %v1277 = vsel %vm119, %v1271, %v1272
  %v1278 = vsel %vm119, %v1274, %v1271
  %v1279 = vmul.f32 %v1278, %v132
  %v1280 = vmul.f32 %v1277, %v137
  %v1281 = vmul.f32 %v1276, %v142
  %v1282 = vmul.f32 %v1275, %v147
  %v1283 = vrot.slane %v1243, 7
  %v1284 = vrot.slane %v1244, 7
  %v1285 = vrot.slane %v1245, 7
  %v1286 = vrot.slane %v1246, 7
  %v1287 = vsel %vm157, %v1285, %v1286
  %v1288 = vsel %vm157, %v1284, %v1285
  %v1289 = vsel %vm157, %v1283, %v1284
  %v1290 = vsel %vm157, %v1286, %v1283
  %v1291 = vmul.f32 %v1290, %v170
  %v1292 = vmul.f32 %v1289, %v175
  %v1293 = vmul.f32 %v1288, %v180
  %v1294 = vmul.f32 %v1287, %v185
  %v1295 = vmul.f32 %v1243, %v199
  %v1296 = vmul.f32 %v1244, %v204
  %v1297 = vmul.f32 %v1245, %v209
  %v1298 = vmul.f32 %v1246, %v214
  %v1299 = vrot.slane %v1243, 1
  %v1300 = vrot.slane %v1244, 1
  %v1301 = vrot.slane %v1245, 1
  %v1302 = vrot.slane %v1246, 1
  %v1303 = vsel %vm224, %v1301, %v1302
  %v1304 = vsel %vm224, %v1300, %v1301
  %v1305 = vsel %vm224, %v1299, %v1300
  %v1306 = vsel %vm224, %v1302, %v1299
  %v1307 = vmul.f32 %v1305, %v237
  %v1308 = vmul.f32 %v1304, %v242
  %v1309 = vmul.f32 %v1303, %v247
  %v1310 = vmul.f32 %v1306, %v252
  %v1311 = vmul.f32 %v1253, %v266
  %v1312 = vmul.f32 %v1252, %v271
  %v1313 = vmul.f32 %v1251, %v276
  %v1314 = vmul.f32 %v1254, %v281
  %v1315 = vmul.f32 %v1265, %v295
  %v1316 = vmul.f32 %v1264, %v300
  %v1317 = vmul.f32 %v1263, %v305
  %v1318 = vmul.f32 %v1266, %v310
  %v1319 = vmul.f32 %v1277, %v324
  %v1320 = vmul.f32 %v1276, %v329
  %v1321 = vmul.f32 %v1275, %v334
  %v1322 = vmul.f32 %v1278, %v339
  %v1323 = vpack.c.bf16 %v1256, %v1255
  %v1324 = vpack.c.bf16 %v1268, %v1267
  %v1325 = vpack.c.bf16 %v1280, %v1279
  %v1326 = vpack.c.bf16 %v1292, %v1291
  %v1327 = vpack.c.bf16 %v1296, %v1295
  %v1328 = vpack.c.bf16 %v1308, %v1307
  %v1329 = vpack.c.bf16 %v1312, %v1311
  %v1330 = vpack.c.bf16 %v1316, %v1315
  %v1331 = vpack.c.bf16 %v1320, %v1319
  %v1332 = vpack.c.bf16 %v1258, %v1257
  %v1333 = vpack.c.bf16 %v1270, %v1269
  %v1334 = vpack.c.bf16 %v1282, %v1281
  %v1335 = vpack.c.bf16 %v1294, %v1293
  %v1336 = vpack.c.bf16 %v1298, %v1297
  %v1337 = vpack.c.bf16 %v1310, %v1309
  %v1338 = vpack.c.bf16 %v1314, %v1313
  %v1339 = vpack.c.bf16 %v1318, %v1317
  %v1340 = vpack.c.bf16 %v1322, %v1321
  %v1341 = vld [vmem:[%s5] sm:$0xf]
  %v1342 = vld [vmem:[%s5 + $0x4] sm:$0xf]
  %v1343 = vld [vmem:[%s5 + $0x8] sm:$0xf]
  %v1344 = vld [vmem:[%s5 + $0xc] sm:$0xf]
  %v1345 = vld [vmem:[%s5 + $0x10] sm:$0xf]
  %v1346 = vld [vmem:[%s5 + $0x14] sm:$0xf]
  %v1347 = vld [vmem:[%s5 + $0x18] sm:$0xf]
  %v1348 = vld [vmem:[%s5 + $0x1c] sm:$0xf]
  %v1349 = vld [vmem:[%s5 + $0x20] sm:$0xf]
  %v1350 = vld [vmem:[%s5 + $0x24] sm:$0xf]
  %v1351 = vld [vmem:[%s5 + $0x28] sm:$0xf]
  %v1352 = vld [vmem:[%s5 + $0x2c] sm:$0xf]
  %v1353 = vld [vmem:[%s5 + $0x30] sm:$0xf]
  %v1354 = vld [vmem:[%s5 + $0x34] sm:$0xf]
  %v1355 = vld [vmem:[%s5 + $0x38] sm:$0xf]
  %v1356 = vld [vmem:[%s5 + $0x3c] sm:$0xf]
  %v1357 = vld [vmem:[%s5 + $0x40] sm:$0xf]
  %v1358 = vld [vmem:[%s5 + $0x44] sm:$0xf]
  %v1359 = vld [vmem:[%s5 + $0x48] sm:$0xf]
  %v1360 = vld [vmem:[%s5 + $0x4c] sm:$0xf]
  %v1361 = vld [vmem:[%s5 + $0x50] sm:$0xf]
  %v1362 = vld [vmem:[%s5 + $0x54] sm:$0xf]
  %v1363 = vld [vmem:[%s5 + $0x58] sm:$0xf]
  %v1364 = vld [vmem:[%s5 + $0x5c] sm:$0xf]
  %v1365 = vld [vmem:[%s5 + $0x60] sm:$0xf]
  %v1366 = vld [vmem:[%s5 + $0x64] sm:$0xf]
  %v1367 = vld [vmem:[%s5 + $0x68] sm:$0xf]
  %v1368 = vld [vmem:[%s5 + $0x6c] sm:$0xf]
  %v1369 = vld [vmem:[%s5 + $0x70] sm:$0xf]
  %v1370 = vld [vmem:[%s5 + $0x74] sm:$0xf]
  %v1371 = vld [vmem:[%s5 + $0x78] sm:$0xf]
  %v1372 = vld [vmem:[%s5 + $0x7c] sm:$0xf]
  %v1373 = vld [vmem:[%s5 + $0x80] sm:$0xf]
  %v1374 = vld [vmem:[%s5 + $0x84] sm:$0xf]
  %v1375 = vld [vmem:[%s5 + $0x88] sm:$0xf]
  %v1376 = vld [vmem:[%s5 + $0x8c] sm:$0xf]
  %v1377 = vld [vmem:[%s5 + $0x90] sm:$0xf]
  %v1378 = vld [vmem:[%s5 + $0x94] sm:$0xf]
  %v1379 = vld [vmem:[%s5 + $0x98] sm:$0xf]
  %v1380 = vld [vmem:[%s5 + $0x9c] sm:$0xf]
  %v1381 = vld [vmem:[%s5 + $0xa0] sm:$0xf]
  %v1382 = vld [vmem:[%s5 + $0xa4] sm:$0xf]
  %v1383 = vld [vmem:[%s5 + $0xa8] sm:$0xf]
  %v1384 = vld [vmem:[%s5 + $0xac] sm:$0xf]
  %v1385 = vld [vmem:[%s5 + $0xb0] sm:$0xf]
  %v1386 = vld [vmem:[%s5 + $0xb4] sm:$0xf]
  %v1387 = vld [vmem:[%s5 + $0xb8] sm:$0xf]
  %v1388 = vld [vmem:[%s5 + $0xbc] sm:$0xf]
  %v1389 = vld [vmem:[%s5 + $0xc0] sm:$0xf]
  %v1390 = vld [vmem:[%s5 + $0xc4] sm:$0xf]
  %v1391 = vld [vmem:[%s5 + $0xc8] sm:$0xf]
  %v1392 = vld [vmem:[%s5 + $0xcc] sm:$0xf]
  %v1393 = vld [vmem:[%s5 + $0xd0] sm:$0xf]
  %v1394 = vld [vmem:[%s5 + $0xd4] sm:$0xf]
  %v1395 = vld [vmem:[%s5 + $0xd8] sm:$0xf]
  %v1396 = vld [vmem:[%s5 + $0xdc] sm:$0xf]
  %v1397 = vld [vmem:[%s5 + $0xe0] sm:$0xf]
  %v1398 = vld [vmem:[%s5 + $0xe4] sm:$0xf]
  %v1399 = vld [vmem:[%s5 + $0xe8] sm:$0xf]
  %v1400 = vld [vmem:[%s5 + $0xec] sm:$0xf]
  %v1401 = vld [vmem:[%s5 + $0xf0] sm:$0xf]
  %v1402 = vld [vmem:[%s5 + $0xf4] sm:$0xf]
  %v1403 = vld [vmem:[%s5 + $0xf8] sm:$0xf]
  %v1404 = vld [vmem:[%s5 + $0xfc] sm:$0xf]
  %v1405 = vld [vmem:[%s5 + $0x100] sm:$0xf]
  %v1406 = vld [vmem:[%s5 + $0x104] sm:$0xf]
  %v1407 = vld [vmem:[%s5 + $0x108] sm:$0xf]
  %v1408 = vld [vmem:[%s5 + $0x10c] sm:$0xf]
  %v1409 = vld [vmem:[%s5 + $0x110] sm:$0xf]
  %v1410 = vld [vmem:[%s5 + $0x114] sm:$0xf]
  %v1411 = vld [vmem:[%s5 + $0x118] sm:$0xf]
  %v1412 = vld [vmem:[%s5 + $0x11c] sm:$0xf]
  %v1413 = vld [vmem:[%s5 + $0x120] sm:$0xf]
  %v1414 = vld [vmem:[%s5 + $0x124] sm:$0xf]
  %v1415 = vld [vmem:[%s5 + $0x128] sm:$0xf]
  %v1416 = vld [vmem:[%s5 + $0x12c] sm:$0xf]
  %v1417 = vld [vmem:[%s5 + $0x130] sm:$0xf]
  %v1418 = vld [vmem:[%s5 + $0x134] sm:$0xf]
  %v1419 = vld [vmem:[%s5 + $0x138] sm:$0xf]
  %v1420 = vld [vmem:[%s5 + $0x13c] sm:$0xf]
  %v1421 = vld [vmem:[%s5 + $0x140] sm:$0xf]
  %v1422 = vld [vmem:[%s5 + $0x144] sm:$0xf]
  %v1423 = vld [vmem:[%s5 + $0x148] sm:$0xf]
  %v1424 = vld [vmem:[%s5 + $0x14c] sm:$0xf]
  %v1425 = vld [vmem:[%s5 + $0x150] sm:$0xf]
  %v1426 = vld [vmem:[%s5 + $0x154] sm:$0xf]
  %v1427 = vld [vmem:[%s5 + $0x158] sm:$0xf]
  %v1428 = vld [vmem:[%s5 + $0x15c] sm:$0xf]
  %v1429 = vld [vmem:[%s5 + $0x160] sm:$0xf]
  %v1430 = vld [vmem:[%s5 + $0x164] sm:$0xf]
  %v1431 = vld [vmem:[%s5 + $0x168] sm:$0xf]
  %v1432 = vld [vmem:[%s5 + $0x16c] sm:$0xf]
  %v1433 = vld [vmem:[%s5 + $0x170] sm:$0xf]
  %v1434 = vld [vmem:[%s5 + $0x174] sm:$0xf]
  %v1435 = vld [vmem:[%s5 + $0x178] sm:$0xf]
  %v1436 = vld [vmem:[%s5 + $0x17c] sm:$0xf]
  %v1437 = vld [vmem:[%s5 + $0x180] sm:$0xf]
  %v1438 = vld [vmem:[%s5 + $0x184] sm:$0xf]
  %v1439 = vld [vmem:[%s5 + $0x188] sm:$0xf]
  %v1440 = vld [vmem:[%s5 + $0x18c] sm:$0xf]
  %v1441 = vld [vmem:[%s5 + $0x190] sm:$0xf]
  %v1442 = vld [vmem:[%s5 + $0x194] sm:$0xf]
  %v1443 = vld [vmem:[%s5 + $0x198] sm:$0xf]
  %v1444 = vld [vmem:[%s5 + $0x19c] sm:$0xf]
  %v1445 = vld [vmem:[%s5 + $0x1a0] sm:$0xf]
  %v1446 = vld [vmem:[%s5 + $0x1a4] sm:$0xf]
  %v1447 = vld [vmem:[%s5 + $0x1a8] sm:$0xf]
  %v1448 = vld [vmem:[%s5 + $0x1ac] sm:$0xf]
  %v1449 = vld [vmem:[%s5 + $0x1b0] sm:$0xf]
  %v1450 = vld [vmem:[%s5 + $0x1b4] sm:$0xf]
  %v1451 = vld [vmem:[%s5 + $0x1b8] sm:$0xf]
  %v1452 = vld [vmem:[%s5 + $0x1bc] sm:$0xf]
  %v1453 = vld [vmem:[%s5 + $0x1c0] sm:$0xf]
  %v1454 = vld [vmem:[%s5 + $0x1c4] sm:$0xf]
  %v1455 = vld [vmem:[%s5 + $0x1c8] sm:$0xf]
  %v1456 = vld [vmem:[%s5 + $0x1cc] sm:$0xf]
  %v1457 = vld [vmem:[%s5 + $0x1d0] sm:$0xf]
  %v1458 = vld [vmem:[%s5 + $0x1d4] sm:$0xf]
  %v1459 = vld [vmem:[%s5 + $0x1d8] sm:$0xf]
  %v1460 = vld [vmem:[%s5 + $0x1dc] sm:$0xf]
  %v1461 = vld [vmem:[%s5 + $0x1e0] sm:$0xf]
  %v1462 = vld [vmem:[%s5 + $0x1e4] sm:$0xf]
  %v1463 = vld [vmem:[%s5 + $0x1e8] sm:$0xf]
  %v1464 = vld [vmem:[%s5 + $0x1ec] sm:$0xf]
  %v1465 = vld [vmem:[%s5 + $0x1f0] sm:$0xf]
  %v1466 = vld [vmem:[%s5 + $0x1f4] sm:$0xf]
  %v1467 = vld [vmem:[%s5 + $0x1f8] sm:$0xf]
  %v1468 = vld [vmem:[%s5 + $0x1fc] sm:$0xf]
  %v1469 = vld [vmem:[%s5 + $0x200] sm:$0xf]
  %v1470 = vld [vmem:[%s5 + $0x204] sm:$0xf]
  %v1471 = vld [vmem:[%s5 + $0x208] sm:$0xf]
  %v1472 = vld [vmem:[%s5 + $0x20c] sm:$0xf]
  %v1473 = vld [vmem:[%s5 + $0x210] sm:$0xf]
  %v1474 = vld [vmem:[%s5 + $0x214] sm:$0xf]
  %v1475 = vld [vmem:[%s5 + $0x218] sm:$0xf]
  %v1476 = vld [vmem:[%s5 + $0x21c] sm:$0xf]
  %v1477 = vld [vmem:[%s5 + $0x220] sm:$0xf]
  %v1478 = vld [vmem:[%s5 + $0x224] sm:$0xf]
  %v1479 = vld [vmem:[%s5 + $0x228] sm:$0xf]
  %v1480 = vld [vmem:[%s5 + $0x22c] sm:$0xf]
  %v1481 = vld [vmem:[%s5 + $0x230] sm:$0xf]
  %v1482 = vld [vmem:[%s5 + $0x234] sm:$0xf]
  %v1483 = vld [vmem:[%s5 + $0x238] sm:$0xf]
  %v1484 = vld [vmem:[%s5 + $0x23c] sm:$0xf]
  %v1629 = vunpack.c.l.b16 %v1341
  %v1630 = vunpack.c.l.b16 %v1342
  %v1631 = vunpack.c.l.b16 %v1343
  %v1632 = vunpack.c.l.b16 %v1344
  %v1633 = vunpack.c.l.b16 %v1345
  %v1634 = vunpack.c.l.b16 %v1346
  %v1635 = vunpack.c.l.b16 %v1347
  %v1636 = vunpack.c.l.b16 %v1348
  %v1637 = vunpack.c.l.b16 %v1349
  %v1638 = vunpack.c.l.b16 %v1350
  %v1639 = vunpack.c.l.b16 %v1351
  %v1640 = vunpack.c.l.b16 %v1352
  %v1641 = vunpack.c.l.b16 %v1353
  %v1642 = vunpack.c.l.b16 %v1354
  %v1643 = vunpack.c.l.b16 %v1355
  %v1644 = vunpack.c.l.b16 %v1356
  %v1645 = vunpack.c.l.b16 %v1357
  %v1646 = vunpack.c.l.b16 %v1358
  %v1647 = vunpack.c.l.b16 %v1359
  %v1648 = vunpack.c.l.b16 %v1360
  %v1649 = vunpack.c.l.b16 %v1361
  %v1650 = vunpack.c.l.b16 %v1362
  %v1651 = vunpack.c.l.b16 %v1363
  %v1652 = vunpack.c.l.b16 %v1364
  %v1653 = vunpack.c.l.b16 %v1365
  %v1654 = vunpack.c.l.b16 %v1366
  %v1655 = vunpack.c.l.b16 %v1367
  %v1656 = vunpack.c.l.b16 %v1368
  %v1657 = vunpack.c.l.b16 %v1369
  %v1658 = vunpack.c.l.b16 %v1370
  %v1659 = vunpack.c.l.b16 %v1371
  %v1660 = vunpack.c.l.b16 %v1372
  %v1661 = vunpack.c.l.b16 %v1373
  %v1662 = vunpack.c.l.b16 %v1374
  %v1663 = vunpack.c.l.b16 %v1375
  %v1664 = vunpack.c.l.b16 %v1376
  %v1665 = vunpack.c.l.b16 %v1377
  %v1666 = vunpack.c.l.b16 %v1378
  %v1667 = vunpack.c.l.b16 %v1379
  %v1668 = vunpack.c.l.b16 %v1380
  %v1669 = vunpack.c.l.b16 %v1381
  %v1670 = vunpack.c.l.b16 %v1382
  %v1671 = vunpack.c.l.b16 %v1383
  %v1672 = vunpack.c.l.b16 %v1384
  %v1673 = vunpack.c.l.b16 %v1385
  %v1674 = vunpack.c.l.b16 %v1386
  %v1675 = vunpack.c.l.b16 %v1387
  %v1676 = vunpack.c.l.b16 %v1388
  %v1677 = vunpack.c.l.b16 %v1389
  %v1678 = vunpack.c.l.b16 %v1390
  %v1679 = vunpack.c.l.b16 %v1391
  %v1680 = vunpack.c.l.b16 %v1392
  %v1681 = vunpack.c.l.b16 %v1393
  %v1682 = vunpack.c.l.b16 %v1394
  %v1683 = vunpack.c.l.b16 %v1395
  %v1684 = vunpack.c.l.b16 %v1396
  %v1685 = vunpack.c.l.b16 %v1397
  %v1686 = vunpack.c.l.b16 %v1398
  %v1687 = vunpack.c.l.b16 %v1399
  %v1688 = vunpack.c.l.b16 %v1400
  %v1689 = vunpack.c.l.b16 %v1401
  %v1690 = vunpack.c.l.b16 %v1402
  %v1691 = vunpack.c.l.b16 %v1403
  %v1692 = vunpack.c.l.b16 %v1404
  %v1693 = vunpack.c.l.b16 %v1405
  %v1694 = vunpack.c.l.b16 %v1406
  %v1695 = vunpack.c.l.b16 %v1407
  %v1696 = vunpack.c.l.b16 %v1408
  %v1697 = vunpack.c.l.b16 %v1409
  %v1698 = vunpack.c.l.b16 %v1410
  %v1699 = vunpack.c.l.b16 %v1411
  %v1700 = vunpack.c.l.b16 %v1412
  %v1701 = vunpack.c.l.b16 %v1413
  %v1702 = vunpack.c.l.b16 %v1414
  %v1703 = vunpack.c.l.b16 %v1415
  %v1704 = vunpack.c.l.b16 %v1416
  %v1705 = vunpack.c.l.b16 %v1417
  %v1706 = vunpack.c.l.b16 %v1418
  %v1707 = vunpack.c.l.b16 %v1419
  %v1708 = vunpack.c.l.b16 %v1420
  %v1709 = vunpack.c.l.b16 %v1421
  %v1710 = vunpack.c.l.b16 %v1422
  %v1711 = vunpack.c.l.b16 %v1423
  %v1712 = vunpack.c.l.b16 %v1424
  %v1713 = vunpack.c.l.b16 %v1425
  %v1714 = vunpack.c.l.b16 %v1426
  %v1715 = vunpack.c.l.b16 %v1427
  %v1716 = vunpack.c.l.b16 %v1428
  %v1717 = vunpack.c.l.b16 %v1429
  %v1718 = vunpack.c.l.b16 %v1430
  %v1719 = vunpack.c.l.b16 %v1431
  %v1720 = vunpack.c.l.b16 %v1432
  %v1721 = vunpack.c.l.b16 %v1433
  %v1722 = vunpack.c.l.b16 %v1434
  %v1723 = vunpack.c.l.b16 %v1435
  %v1724 = vunpack.c.l.b16 %v1436
  %v1725 = vunpack.c.l.b16 %v1437
  %v1726 = vunpack.c.l.b16 %v1438
  %v1727 = vunpack.c.l.b16 %v1439
  %v1728 = vunpack.c.l.b16 %v1440
  %v1729 = vunpack.c.l.b16 %v1441
  %v1730 = vunpack.c.l.b16 %v1442
  %v1731 = vunpack.c.l.b16 %v1443
  %v1732 = vunpack.c.l.b16 %v1444
  %v1733 = vunpack.c.l.b16 %v1445
  %v1734 = vunpack.c.l.b16 %v1446
  %v1735 = vunpack.c.l.b16 %v1447
  %v1736 = vunpack.c.l.b16 %v1448
  %v1737 = vunpack.c.l.b16 %v1449
  %v1738 = vunpack.c.l.b16 %v1450
  %v1739 = vunpack.c.l.b16 %v1451
  %v1740 = vunpack.c.l.b16 %v1452
  %v1741 = vunpack.c.l.b16 %v1453
  %v1742 = vunpack.c.l.b16 %v1454
  %v1743 = vunpack.c.l.b16 %v1455
  %v1744 = vunpack.c.l.b16 %v1456
  %v1745 = vunpack.c.l.b16 %v1457
  %v1746 = vunpack.c.l.b16 %v1458
  %v1747 = vunpack.c.l.b16 %v1459
  %v1748 = vunpack.c.l.b16 %v1460
  %v1749 = vunpack.c.l.b16 %v1461
  %v1750 = vunpack.c.l.b16 %v1462
  %v1751 = vunpack.c.l.b16 %v1463
  %v1752 = vunpack.c.l.b16 %v1464
  %v1753 = vunpack.c.l.b16 %v1465
  %v1754 = vunpack.c.l.b16 %v1466
  %v1755 = vunpack.c.l.b16 %v1467
  %v1756 = vunpack.c.l.b16 %v1468
  %v1757 = vunpack.c.l.b16 %v1469
  %v1758 = vunpack.c.l.b16 %v1470
  %v1759 = vunpack.c.l.b16 %v1471
  %v1760 = vunpack.c.l.b16 %v1472
  %v1761 = vunpack.c.l.b16 %v1473
  %v1762 = vunpack.c.l.b16 %v1474
  %v1763 = vunpack.c.l.b16 %v1475
  %v1764 = vunpack.c.l.b16 %v1476
  %v1765 = vunpack.c.l.b16 %v1477
  %v1766 = vunpack.c.l.b16 %v1478
  %v1767 = vunpack.c.l.b16 %v1479
  %v1768 = vunpack.c.l.b16 %v1480
  %v1769 = vunpack.c.l.b16 %v1481
  %v1770 = vunpack.c.l.b16 %v1482
  %v1771 = vunpack.c.l.b16 %v1483
  %v1772 = vunpack.c.l.b16 %v1484
  %v1773 = vpack.c.b16 %v1630, %v1629
  %v1774 = vpack.c.b16 %v1632, %v1631
  %v1775 = vpack.c.b16 %v1634, %v1633
  %v1776 = vpack.c.b16 %v1636, %v1635
  %v1777 = vpack.c.b16 %v1638, %v1637
  %v1778 = vpack.c.b16 %v1640, %v1639
  %v1779 = vpack.c.b16 %v1642, %v1641
  %v1780 = vpack.c.b16 %v1644, %v1643
  %v1781 = vpack.c.b16 %v1646, %v1645
  %v1782 = vpack.c.b16 %v1648, %v1647
  %v1783 = vpack.c.b16 %v1650, %v1649
  %v1784 = vpack.c.b16 %v1652, %v1651
  %v1785 = vpack.c.b16 %v1654, %v1653
  %v1786 = vpack.c.b16 %v1656, %v1655
  %v1787 = vpack.c.b16 %v1658, %v1657
  %v1788 = vpack.c.b16 %v1660, %v1659
  %v1789 = vpack.c.b16 %v1662, %v1661
  %v1790 = vpack.c.b16 %v1664, %v1663
  %v1791 = vpack.c.b16 %v1666, %v1665
  %v1792 = vpack.c.b16 %v1668, %v1667
  %v1793 = vpack.c.b16 %v1670, %v1669
  %v1794 = vpack.c.b16 %v1672, %v1671
  %v1795 = vpack.c.b16 %v1674, %v1673
  %v1796 = vpack.c.b16 %v1676, %v1675
  %v1797 = vpack.c.b16 %v1678, %v1677
  %v1798 = vpack.c.b16 %v1680, %v1679
  %v1799 = vpack.c.b16 %v1682, %v1681
  %v1800 = vpack.c.b16 %v1684, %v1683
  %v1801 = vpack.c.b16 %v1686, %v1685
  %v1802 = vpack.c.b16 %v1688, %v1687
  %v1803 = vpack.c.b16 %v1690, %v1689
  %v1804 = vpack.c.b16 %v1692, %v1691
  %v1805 = vpack.c.b16 %v1694, %v1693
  %v1806 = vpack.c.b16 %v1696, %v1695
  %v1807 = vpack.c.b16 %v1698, %v1697
  %v1808 = vpack.c.b16 %v1700, %v1699
  %v1809 = vpack.c.b16 %v1702, %v1701
  %v1810 = vpack.c.b16 %v1704, %v1703
  %v1811 = vpack.c.b16 %v1706, %v1705
  %v1812 = vpack.c.b16 %v1708, %v1707
  %v1813 = vpack.c.b16 %v1710, %v1709
  %v1814 = vpack.c.b16 %v1712, %v1711
  %v1815 = vpack.c.b16 %v1714, %v1713
  %v1816 = vpack.c.b16 %v1716, %v1715
  %v1817 = vpack.c.b16 %v1718, %v1717
  %v1818 = vpack.c.b16 %v1720, %v1719
  %v1819 = vpack.c.b16 %v1722, %v1721
  %v1820 = vpack.c.b16 %v1724, %v1723
  %v1821 = vpack.c.b16 %v1726, %v1725
  %v1822 = vpack.c.b16 %v1728, %v1727
  %v1823 = vpack.c.b16 %v1730, %v1729
  %v1824 = vpack.c.b16 %v1732, %v1731
  %v1825 = vpack.c.b16 %v1734, %v1733
  %v1826 = vpack.c.b16 %v1736, %v1735
  %v1827 = vpack.c.b16 %v1738, %v1737
  %v1828 = vpack.c.b16 %v1740, %v1739
  %v1829 = vpack.c.b16 %v1742, %v1741
  %v1830 = vpack.c.b16 %v1744, %v1743
  %v1831 = vpack.c.b16 %v1746, %v1745
  %v1832 = vpack.c.b16 %v1748, %v1747
  %v1833 = vpack.c.b16 %v1750, %v1749
  %v1834 = vpack.c.b16 %v1752, %v1751
  %v1835 = vpack.c.b16 %v1754, %v1753
  %v1836 = vpack.c.b16 %v1756, %v1755
  %v1837 = vpack.c.b16 %v1758, %v1757
  %v1838 = vpack.c.b16 %v1760, %v1759
  %v1839 = vpack.c.b16 %v1762, %v1761
  %v1840 = vpack.c.b16 %v1764, %v1763
  %v1841 = vpack.c.b16 %v1766, %v1765
  %v1842 = vpack.c.b16 %v1768, %v1767
  %v1843 = vpack.c.b16 %v1770, %v1769
  %v1844 = vpack.c.b16 %v1772, %v1771
  %1917 = vmatprep.subr.bf16.mxu0 0
  %1918 = vmatpush1.bf16.msra.mxu0 %v1780
  %1919 = vmatprep.subr.bf16.mxu0 0
  %1920 = vmatpush1.bf16.msra.mxu0 %v1779
  %1921 = vmatprep.subr.bf16.mxu0 0
  %1922 = vmatpush1.bf16.msra.mxu0 %v1778
  %1923 = vmatprep.subr.bf16.mxu0 0
  %1924 = vmatpush1.bf16.msra.mxu0 %v1777
  %1925 = vmatprep.subr.bf16.mxu0 0
  %1926 = vmatpush1.bf16.msra.mxu0 %v1776
  %1927 = vmatprep.subr.bf16.mxu0 0
  %1928 = vmatpush1.bf16.msra.mxu0 %v1775
  %1929 = vmatprep.subr.bf16.mxu0 0
  %1930 = vmatpush1.bf16.msra.mxu0 %v1774
  %1931 = vmatprep.subr.bf16.mxu0 0
  %1932 = vmatpush1.bf16.msra.mxu0 %v1773
  %1933 = vmatprep.subr.bf16.mxu0 0
  %1934 = vmatpush2.bf16.msra.mxu0 %v1788
  %1935 = vmatprep.subr.bf16.mxu0 0
  %1936 = vmatpush2.bf16.msra.mxu0 %v1787
  %1937 = vmatprep.subr.bf16.mxu0 0
  %1938 = vmatpush2.bf16.msra.mxu0 %v1786
  %1939 = vmatprep.subr.bf16.mxu0 0
  %1940 = vmatpush2.bf16.msra.mxu0 %v1785
  %1941 = vmatprep.subr.bf16.mxu0 0
  %1942 = vmatpush2.bf16.msra.mxu0 %v1784
  %1943 = vmatprep.subr.bf16.mxu0 0
  %1944 = vmatpush2.bf16.msra.mxu0 %v1783
  %1945 = vmatprep.subr.bf16.mxu0 0
  %1946 = vmatpush2.bf16.msra.mxu0 %v1782
  %1947 = vmatprep.subr.bf16.mxu0 0
  %1948 = vmatpush2.bf16.msra.mxu0 %v1781
  %1949 = vmatprep.mubr.bf16.mxu0 %v1324
  %1950 = vmatmul.mubr.bf16.gmra.mxu0 %v1323
  %v1951 = vpop.f32.mrf.mxu0
  %v1952 = vadd.f32 0.0, %v1951
  %v1953 = vpop.f32.mrf.mxu0
  %v1954 = vpop.f32.mrf.mxu0
  %v1955 = vadd.f32 0.0, %v1954
  %v1956 = vpop.f32.mrf.mxu0
  %1957 = vmatprep.mubr.bf16.mxu0 %v1333
  %1958 = vmatmul.mubr.bf16.gmra.mxu0 %v1332
  %v1959 = vpop.f32.mrf.mxu0
  %v1960 = vadd.f32 0.0, %v1959
  %v1961 = vpop.f32.mrf.mxu0
  %v1962 = vpop.f32.mrf.mxu0
  %v1963 = vadd.f32 0.0, %v1962
  %v1964 = vpop.f32.mrf.mxu0
  %1965 = vdwg.mxu0
  %1966 = vmatprep.subr.bf16.mxu0 0
  %1967 = vmatpush1.bf16.msra.mxu0 %v1796
  %1968 = vmatprep.subr.bf16.mxu0 0
  %1969 = vmatpush1.bf16.msra.mxu0 %v1795
  %1970 = vmatprep.subr.bf16.mxu0 0
  %1971 = vmatpush1.bf16.msra.mxu0 %v1794
  %1972 = vmatprep.subr.bf16.mxu0 0
  %1973 = vmatpush1.bf16.msra.mxu0 %v1793
  %1974 = vmatprep.subr.bf16.mxu0 0
  %1975 = vmatpush1.bf16.msra.mxu0 %v1792
  %1976 = vmatprep.subr.bf16.mxu0 0
  %1977 = vmatpush1.bf16.msra.mxu0 %v1791
  %1978 = vmatprep.subr.bf16.mxu0 0
  %1979 = vmatpush1.bf16.msra.mxu0 %v1790
  %1980 = vmatprep.subr.bf16.mxu0 0
  %1981 = vmatpush1.bf16.msra.mxu0 %v1789
  %1982 = vmatprep.subr.bf16.mxu0 0
  %1983 = vmatpush2.bf16.msra.mxu0 %v1804
  %1984 = vmatprep.subr.bf16.mxu0 0
  %1985 = vmatpush2.bf16.msra.mxu0 %v1803
  %1986 = vmatprep.subr.bf16.mxu0 0
  %1987 = vmatpush2.bf16.msra.mxu0 %v1802
  %1988 = vmatprep.subr.bf16.mxu0 0
  %1989 = vmatpush2.bf16.msra.mxu0 %v1801
  %1990 = vmatprep.subr.bf16.mxu0 0
  %1991 = vmatpush2.bf16.msra.mxu0 %v1800
  %1992 = vmatprep.subr.bf16.mxu0 0
  %1993 = vmatpush2.bf16.msra.mxu0 %v1799
  %1994 = vmatprep.subr.bf16.mxu0 0
  %1995 = vmatpush2.bf16.msra.mxu0 %v1798
  %1996 = vmatprep.subr.bf16.mxu0 0
  %1997 = vmatpush2.bf16.msra.mxu0 %v1797
  %1998 = vmatprep.mubr.bf16.mxu0 %v1326
  %1999 = vmatmul.mubr.bf16.gmra.mxu0 %v1325
  %v2000 = vpop.f32.mrf.mxu0
  %v2001 = vadd.f32 %v1952, %v2000
  %v2002 = vpop.f32.mrf.mxu0
  %v2003 = vpop.f32.mrf.mxu0
  %v2004 = vadd.f32 %v1955, %v2003
  %v2005 = vpop.f32.mrf.mxu0
  %2006 = vmatprep.mubr.bf16.mxu0 %v1335
  %2007 = vmatmul.mubr.bf16.gmra.mxu0 %v1334
  %v2008 = vpop.f32.mrf.mxu0
  %v2009 = vadd.f32 %v1960, %v2008
  %v2010 = vpop.f32.mrf.mxu0
  %v2011 = vpop.f32.mrf.mxu0
  %v2012 = vadd.f32 %v1963, %v2011
  %v2013 = vpop.f32.mrf.mxu0
  %2014 = vdwg.mxu0
  %2015 = vmatprep.subr.bf16.mxu0 0
  %2016 = vmatpush1.bf16.msra.mxu0 %v1812
  %2017 = vmatprep.subr.bf16.mxu0 0
  %2018 = vmatpush1.bf16.msra.mxu0 %v1811
  %2019 = vmatprep.subr.bf16.mxu0 0
  %2020 = vmatpush1.bf16.msra.mxu0 %v1810
  %2021 = vmatprep.subr.bf16.mxu0 0
  %2022 = vmatpush1.bf16.msra.mxu0 %v1809
  %2023 = vmatprep.subr.bf16.mxu0 0
  %2024 = vmatpush1.bf16.msra.mxu0 %v1808
  %2025 = vmatprep.subr.bf16.mxu0 0
  %2026 = vmatpush1.bf16.msra.mxu0 %v1807
  %2027 = vmatprep.subr.bf16.mxu0 0
  %2028 = vmatpush1.bf16.msra.mxu0 %v1806
  %2029 = vmatprep.subr.bf16.mxu0 0
  %2030 = vmatpush1.bf16.msra.mxu0 %v1805
  %2031 = vmatprep.subr.bf16.mxu0 0
  %2032 = vmatpush2.bf16.msra.mxu0 %v1820
  %2033 = vmatprep.subr.bf16.mxu0 0
  %2034 = vmatpush2.bf16.msra.mxu0 %v1819
  %2035 = vmatprep.subr.bf16.mxu0 0
  %2036 = vmatpush2.bf16.msra.mxu0 %v1818
  %2037 = vmatprep.subr.bf16.mxu0 0
  %2038 = vmatpush2.bf16.msra.mxu0 %v1817
  %2039 = vmatprep.subr.bf16.mxu0 0
  %2040 = vmatpush2.bf16.msra.mxu0 %v1816
  %2041 = vmatprep.subr.bf16.mxu0 0
  %2042 = vmatpush2.bf16.msra.mxu0 %v1815
  %2043 = vmatprep.subr.bf16.mxu0 0
  %2044 = vmatpush2.bf16.msra.mxu0 %v1814
  %2045 = vmatprep.subr.bf16.mxu0 0
  %2046 = vmatpush2.bf16.msra.mxu0 %v1813
  %2047 = vmatprep.mubr.bf16.mxu0 %v1328
  %2048 = vmatmul.mubr.bf16.gmra.mxu0 %v1327
  %v2049 = vpop.f32.mrf.mxu0
  %v2050 = vadd.f32 %v2001, %v2049
  %v2051 = vpop.f32.mrf.mxu0
  %v2052 = vpop.f32.mrf.mxu0
  %v2053 = vadd.f32 %v2004, %v2052
  %v2054 = vpop.f32.mrf.mxu0
  %2055 = vmatprep.mubr.bf16.mxu0 %v1337
  %2056 = vmatmul.mubr.bf16.gmra.mxu0 %v1336
  %v2057 = vpop.f32.mrf.mxu0
  %v2058 = vadd.f32 %v2009, %v2057
  %v2059 = vpop.f32.mrf.mxu0
  %v2060 = vpop.f32.mrf.mxu0
  %v2061 = vadd.f32 %v2012, %v2060
  %v2062 = vpop.f32.mrf.mxu0
  %2063 = vdwg.mxu0
  %2064 = vmatprep.subr.bf16.mxu0 0
  %2065 = vmatpush1.bf16.msra.mxu0 %v1828
  %2066 = vmatprep.subr.bf16.mxu0 0
  %2067 = vmatpush1.bf16.msra.mxu0 %v1827
  %2068 = vmatprep.subr.bf16.mxu0 0
  %2069 = vmatpush1.bf16.msra.mxu0 %v1826
  %2070 = vmatprep.subr.bf16.mxu0 0
  %2071 = vmatpush1.bf16.msra.mxu0 %v1825
  %2072 = vmatprep.subr.bf16.mxu0 0
  %2073 = vmatpush1.bf16.msra.mxu0 %v1824
  %2074 = vmatprep.subr.bf16.mxu0 0
  %2075 = vmatpush1.bf16.msra.mxu0 %v1823
  %2076 = vmatprep.subr.bf16.mxu0 0
  %2077 = vmatpush1.bf16.msra.mxu0 %v1822
  %2078 = vmatprep.subr.bf16.mxu0 0
  %2079 = vmatpush1.bf16.msra.mxu0 %v1821
  %2080 = vmatprep.subr.bf16.mxu0 0
  %2081 = vmatpush2.bf16.msra.mxu0 %v1836
  %2082 = vmatprep.subr.bf16.mxu0 0
  %2083 = vmatpush2.bf16.msra.mxu0 %v1835
  %2084 = vmatprep.subr.bf16.mxu0 0
  %2085 = vmatpush2.bf16.msra.mxu0 %v1834
  %2086 = vmatprep.subr.bf16.mxu0 0
  %2087 = vmatpush2.bf16.msra.mxu0 %v1833
  %2088 = vmatprep.subr.bf16.mxu0 0
  %2089 = vmatpush2.bf16.msra.mxu0 %v1832
  %2090 = vmatprep.subr.bf16.mxu0 0
  %2091 = vmatpush2.bf16.msra.mxu0 %v1831
  %2092 = vmatprep.subr.bf16.mxu0 0
  %2093 = vmatpush2.bf16.msra.mxu0 %v1830
  %2094 = vmatprep.subr.bf16.mxu0 0
  %2095 = vmatpush2.bf16.msra.mxu0 %v1829
  %2096 = vmatprep.mubr.bf16.mxu0 %v1330
  %2097 = vmatmul.mubr.bf16.gmra.mxu0 %v1329
  %v2098 = vpop.f32.mrf.mxu0
  %v2099 = vadd.f32 %v2050, %v2098
  %v2100 = vpop.f32.mrf.mxu0
  %v2101 = vpop.f32.mrf.mxu0
  %v2102 = vadd.f32 %v2053, %v2101
  %v2103 = vpop.f32.mrf.mxu0
  %2104 = vmatprep.mubr.bf16.mxu0 %v1339
  %2105 = vmatmul.mubr.bf16.gmra.mxu0 %v1338
  %v2106 = vpop.f32.mrf.mxu0
  %v2107 = vadd.f32 %v2058, %v2106
  %v2108 = vpop.f32.mrf.mxu0
  %v2109 = vpop.f32.mrf.mxu0
  %v2110 = vadd.f32 %v2061, %v2109
  %v2111 = vpop.f32.mrf.mxu0
  %2112 = vdwg.mxu0
  %2113 = vmatprep.subr.bf16.mxu0 0
  %2114 = vmatpush1.bf16.msra.mxu0 %v1844
  %2115 = vmatprep.subr.bf16.mxu0 0
  %2116 = vmatpush1.bf16.msra.mxu0 %v1843
  %2117 = vmatprep.subr.bf16.mxu0 0
  %2118 = vmatpush1.bf16.msra.mxu0 %v1842
  %2119 = vmatprep.subr.bf16.mxu0 0
  %2120 = vmatpush1.bf16.msra.mxu0 %v1841
  %2121 = vmatprep.subr.bf16.mxu0 0
  %2122 = vmatpush1.bf16.msra.mxu0 %v1840
  %2123 = vmatprep.subr.bf16.mxu0 0
  %2124 = vmatpush1.bf16.msra.mxu0 %v1839
  %2125 = vmatprep.subr.bf16.mxu0 0
  %2126 = vmatpush1.bf16.msra.mxu0 %v1838
  %2127 = vmatprep.subr.bf16.mxu0 0
  %2128 = vmatpush1.bf16.msra.mxu0 %v1837
  %2129 = vmatprep.subr.bf16.mxu0 0
  %2130 = vmatpush2.bf16.msra.mxu0 0
  %2131 = vmatprep.subr.bf16.mxu0 0
  %2132 = vmatpush2.bf16.msra.mxu0 0
  %2133 = vmatprep.subr.bf16.mxu0 0
  %2134 = vmatpush2.bf16.msra.mxu0 0
  %2135 = vmatprep.subr.bf16.mxu0 0
  %2136 = vmatpush2.bf16.msra.mxu0 0
  %2137 = vmatprep.subr.bf16.mxu0 0
  %2138 = vmatpush2.bf16.msra.mxu0 0
  %2139 = vmatprep.subr.bf16.mxu0 0
  %2140 = vmatpush2.bf16.msra.mxu0 0
  %2141 = vmatprep.subr.bf16.mxu0 0
  %2142 = vmatpush2.bf16.msra.mxu0 0
  %2143 = vmatprep.subr.bf16.mxu0 0
  %2144 = vmatpush2.bf16.msra.mxu0 0
  %2145 = vmatprep.mubr.bf16.mxu0 0
  %2146 = vmatmul.mubr.bf16.gmra.mxu0 %v1331
  %v2147 = vpop.f32.mrf.mxu0
  %v2148 = vadd.f32 %v2099, %v2147
  %v2149 = vpop.f32.mrf.mxu0
  %v2150 = vpop.f32.mrf.mxu0
  %v2151 = vadd.f32 %v2102, %v2150
  %v2152 = vpop.f32.mrf.mxu0
  %2153 = vmatprep.mubr.bf16.mxu0 0
  %2154 = vmatmul.mubr.bf16.gmra.mxu0 %v1340
  %v2155 = vpop.f32.mrf.mxu0
  %v2156 = vadd.f32 %v2107, %v2155
  %v2157 = vpop.f32.mrf.mxu0
  %v2158 = vpop.f32.mrf.mxu0
  %v2159 = vadd.f32 %v2110, %v2158
  %v2160 = vpop.f32.mrf.mxu0
  %2161 = vdwg.mxu0
  %v2162 = vld [vmem:[%s6] sm:$0x1]
  %v2163 = vld [vmem:[%s7] sm:$0x1]
  %v2164 = vadd.f32 %v2148, %v2151
  %v2165 = vadd.f32 %v2164, %v2156
  %v2166 = vadd.f32 %v2165, %v2159
  %v2167 = vrot.slane %v2166, 4
  %v2168 = vadd.f32 %v2166, %v2167
  %v2169 = vrot.slane %v2168, 2
  %v2170 = vadd.f32 %v2168, %v2169
  %v2171 = vrot.slane %v2170, 1
  %v2172 = vadd.f32 %v2170, %v2171
  %v2173 = vmul.f32 %v2172, 0.03125
  %v2174 = vmul.f32 %v2148, %v2148
  %v2175 = vmul.f32 %v2151, %v2151
  %v2176 = vmul.f32 %v2156, %v2156
  %v2177 = vmul.f32 %v2159, %v2159
  %v2178 = vadd.f32 %v2174, %v2175
  %v2179 = vadd.f32 %v2178, %v2176
  %v2180 = vadd.f32 %v2179, %v2177
  %v2181 = vrot.slane %v2180, 4
  %v2182 = vadd.f32 %v2180, %v2181
  %v2183 = vrot.slane %v2182, 2
  %v2184 = vadd.f32 %v2182, %v2183
  %v2185 = vrot.slane %v2184, 1
  %v2186 = vadd.f32 %v2184, %v2185
  %v2187 = vmul.f32 %v2186, 0.03125
  %v2188 = vmul.f32 %v2173, %v2173
  %v2189 = vsub.f32 %v2187, %v2188
  %v2190 = vmax.f32 %v2189, 0.0
  %v2191 = vsub.f32 %v2148, %v2173
  %v2192 = vsub.f32 %v2151, %v2173
  %v2193 = vsub.f32 %v2156, %v2173
  %v2194 = vsub.f32 %v2159, %v2173
  %v2195 = vadd.f32 %v2190, 1e-05
  %v2196 = vrsqrt.pop %v2195
  %v2197 = vmul.f32 %v2191, %v2196
  %v2198 = vmul.f32 %v2192, %v2196
  %v2199 = vmul.f32 %v2193, %v2196
  %v2200 = vmul.f32 %v2194, %v2196
  %v2202 = vlaneseq
  %v2203 = vshrl.u32 %v2202, 7
  %v2204 = vsub.s32 0, %v2203
  %v2205 = vrot.slane %v2162, %v2204
  %v2207 = vmul.f32 %v2197, %v2205
  %v2208 = vmul.f32 %v2198, %v2205
  %v2209 = vmul.f32 %v2199, %v2205
  %v2210 = vmul.f32 %v2200, %v2205
  %v2212 = vlaneseq
  %v2213 = vshrl.u32 %v2212, 7
  %v2214 = vsub.s32 0, %v2213
  %v2215 = vrot.slane %v2163, %v2214
  %v2217 = vadd.f32 %v2207, %v2215
  %v2218 = vadd.f32 %v2208, %v2215
  %v2219 = vadd.f32 %v2209, %v2215
  %v2220 = vadd.f32 %v2210, %v2215
  %v2221 = vadd.f32 %v34, %v2217
  %v2222 = vadd.f32 %v35, %v2218
  %v2223 = vadd.f32 %v36, %v2219
  %v2224 = vadd.f32 %v37, %v2220
  %v2225 = vpack.c.bf16 %v2222, %v2221
  %v2226 = vpack.c.bf16 %v2224, %v2223
  %v2229 = vunpack.c.l.b16 %v2225
  %v2230 = vunpack.c.h.b16 %v2225
  %v2231 = vunpack.c.l.b16 %v2226
  %v2232 = vunpack.c.h.b16 %v2226
  %v2233 = vpack.c.b16 %v2229, %v2229
  %v2234 = vpack.c.b16 %v2230, %v2230
  %v2235 = vpack.c.b16 %v2231, %v2231
  %v2236 = vpack.c.b16 %v2232, %v2232
  %2241 = vst [vmem:[%s8] sm:$0xf] %v2233
  %2242 = vst [vmem:[%s8 + $0x4] sm:$0xf] %v2234
  %2243 = vst [vmem:[%s8 + $0x8] sm:$0xf] %v2235
  %2244 = vst [vmem:[%s8 + $0xc] sm:$0xf] %v2236
  // Predicated region
  $region34: #{generator_forward.10} parent=0 // pred_check
    _
  $region35: #{generator_forward.10} parent=0 // pred_check_branch
    %2246 = sbr.rel (0) target = $region37
  $region36: #{generator_forward.10} parent=0 // pred_region
    _
  $region37: #{generator_forward.10} parent=0 // pred_fallthru
    _
  // Predicated region
  $region38: #{generator_forward.10} parent=0 // pred_check
    _
  $region39: #{generator_forward.10} parent=0 // pred_check_branch
    %2248 = sbr.rel (0) target = $region41
  $region40: #{generator_forward.10} parent=0 // pred_region
    _
  $region41: #{generator_forward.10} parent=0 // pred_fallthru
    _

// kernel: generator_forward.13
$region0: #{generator_forward.13}
  #allocation0 [shape = 'u32[]', space=smem, size = 0x4, offset = 0x4, fixed_abs, tag = 'smem constant byte address 0x4 - core index']
  #allocation1 [shape = 'u32[144,128]{1,0:T(1,128)}', space=vmem, size = 0x12000, scoped, tag = 'internal scratch']
  #allocation2 [shape = 'f32[2,128]{1,0:T(2,128)}', space=vmem, size = 0x400, scoped, tag = 'scratch operand']
  %s0 = inlined_call_operand.vmem [shape: bf16[2,1024], index: 0, kind: input, shape index: {}]
  %s1 = inlined_call_operand.vmem [shape: bf16[1024,128], index: 1, kind: input, shape index: {}]
  %s2 = inlined_call_operand.vmem [shape: f32[1,128], index: 2, kind: input, shape index: {}]
  %s3 = inlined_call_operand.hbm [shape: f32[2,128], index: 3, kind: output, shape index: {}]
  %s4 = sld [smem:[#allocation0]]
  $region53: #{generator_forward.13} parent=0
    _
  %s6 = ssub.s32 1, %s4
  %s7 = scalar_select 0, %s6, %s4
  $region1: #{generator_forward.13} parent=0
    #allocation3 [shape = 'u8[1024]{0}', space=vmem, size = 0x400, scoped, tag = 'output window, operand 0, single buffered']
    #allocation4 [shape = 's32[2]{0}', space=sflag, size = 0x8, scoped, tag = 'scoped memory for generator_forward.13']
    %8 = vsyncpa [#allocation4], 0
    loop: start=0, step=1, limit=4
    $region2: #{generator_forward.13} parent=1 // loop_pre_header
      _
    $region3: #{generator_forward.13} parent=1 // loop_header
      %s10 = sphi 0, %s14
      %p11 = scmp.ge.s32.totalorder %s10, 4
      %s20 = sphi 0, %s22
      %s23 = sphi 0, %s20
      %s24 = sphi 0, %s23
      %s40 = sphi 0, %s24
      %s46 = sphi 0, %s48
      %s49 = sphi 0, %s46
      %s50 = sphi 0, %s49
      %s66 = sphi 0, %s50
      %s70 = sphi 0, %s70
      %s72 = sphi 0, %s70
      %s73 = sphi 0, %s72
      %s87 = sphi 0, %s73
      %s91 = sphi 0, %s91
      %s93 = sphi 0, %s91
      %s94 = sphi 0, %s93
      %s108 = sphi 0, %s94
    $region4: #{generator_forward.13} parent=1 // loop_header_branch
      %13 = sbr.rel (%p11) target = $region8
    $region5: #{generator_forward.13} parent=1 // loop_body
      %s15 = ssub.s32 %s10, 1
      %s16 = ssub.s32 %s10, 2
      %s17 = sadd.s32 %s10, 1
      %s18 = ssub.s32 %s10, %s17
      %p19 = scmp.eq.s32.totalorder %s18, 0
      %s21 = sadd.s32 %s20, 1
      %s22 = scalar_select %p19, %s20, %s21
      %p25 = pneg %p19
      %p26 = scmp.eq.s32.totalorder %s10, 1
      %p27 = por %p25, %p26
      %p28 = scmp.ne.s32.totalorder %s20, %s23
      %p29 = scmp.eq.s32.totalorder %s10, 0
      %p30 = por %p28, %p29
      %p31 = scmp.ne.s32.totalorder %s20, %s23
      %p32 = scmp.eq.s32.totalorder %s15, 1
      %p33 = por %p31, %p32
      %p34 = scmp.ne.s32.totalorder %s23, %s24
      %p35 = scmp.eq.s32.totalorder %s15, 0
      %p36 = por %p34, %p35
      %p37 = scmp.ne.s32.totalorder %s23, %s24
      %p38 = scmp.eq.s32.totalorder %s16, 1
      %p39 = por %p37, %p38
      %p41 = scmp.ne.s32.totalorder %s24, %s40
      %p42 = scmp.eq.s32.totalorder %s16, 0
      %p43 = por %p41, %p42
      %s44 = ssub.s32 %s10, %s17
      %p45 = scmp.eq.s32.totalorder %s44, 0
      %s47 = sadd.s32 %s46, 1
      %s48 = scalar_select %p45, %s46, %s47
      %p51 = pneg %p45
      %p52 = scmp.eq.s32.totalorder %s10, 1
      %p53 = por %p51, %p52
      %p54 = scmp.ne.s32.totalorder %s46, %s49
      %p55 = scmp.eq.s32.totalorder %s10, 0
      %p56 = por %p54, %p55
      %p57 = scmp.ne.s32.totalorder %s46, %s49
      %p58 = scmp.eq.s32.totalorder %s15, 1
      %p59 = por %p57, %p58
      %p60 = scmp.ne.s32.totalorder %s49, %s50
      %p61 = scmp.eq.s32.totalorder %s15, 0
      %p62 = por %p60, %p61
      %p63 = scmp.ne.s32.totalorder %s49, %s50
      %p64 = scmp.eq.s32.totalorder %s16, 1
      %p65 = por %p63, %p64
      %p67 = scmp.ne.s32.totalorder %s50, %s66
      %p68 = scmp.eq.s32.totalorder %s16, 0
      %p69 = por %p67, %p68
      %s71 = sadd.s32 %s70, 1
      %p74 = scmp.eq.s32.totalorder %s10, 1
      %p75 = scmp.ne.s32.totalorder %s70, %s72
      %p76 = scmp.eq.s32.totalorder %s10, 0
      %p77 = por %p75, %p76
      %p78 = scmp.ne.s32.totalorder %s70, %s72
      %p79 = scmp.eq.s32.totalorder %s15, 1
      %p80 = por %p78, %p79
      %p81 = scmp.ne.s32.totalorder %s72, %s73
      %p82 = scmp.eq.s32.totalorder %s15, 0
      %p83 = por %p81, %p82
      %p84 = scmp.ne.s32.totalorder %s72, %s73
      %p85 = scmp.eq.s32.totalorder %s16, 1
      %p86 = por %p84, %p85
      %p88 = scmp.ne.s32.totalorder %s73, %s87
      %p89 = scmp.eq.s32.totalorder %s16, 0
      %p90 = por %p88, %p89
      %s92 = sadd.s32 %s91, 1
      %p95 = scmp.eq.s32.totalorder %s10, 1
      %p96 = scmp.ne.s32.totalorder %s91, %s93
      %p97 = scmp.eq.s32.totalorder %s10, 0
      %p98 = por %p96, %p97
      %p99 = scmp.ne.s32.totalorder %s91, %s93
      %p100 = scmp.eq.s32.totalorder %s15, 1
      %p101 = por %p99, %p100
      %p102 = scmp.ne.s32.totalorder %s93, %s94
      %p103 = scmp.eq.s32.totalorder %s15, 0
      %p104 = por %p102, %p103
      %p105 = scmp.ne.s32.totalorder %s93, %s94
      %p106 = scmp.eq.s32.totalorder %s16, 1
      %p107 = por %p105, %p106
      %p109 = scmp.ne.s32.totalorder %s94, %s108
      %p110 = scmp.eq.s32.totalorder %s16, 0
      %p111 = por %p109, %p110
      %p112 = scmp.le.s32.totalorder 1, %s10
      %p113 = scmp.lt.s32.totalorder %s10, 3
      %p114 = pnand %p112, %p113
      %p115 = pneg %p114
      // Predicated region
      $region9: #{generator_forward.13} parent=5 // pred_check
        _
      $region10: #{generator_forward.13} parent=5 // pred_check_branch
        %117 = sbr.rel (%p114) target = $region12
      $region11: #{generator_forward.13} parent=5 // pred_region
        %s118 = ssub.s32 %s10, 1
        // Predicated region
        $region13: #{generator_forward.13} parent=11 // pred_check
          %p119 = pneg %p83
        $region14: #{generator_forward.13} parent=11 // pred_check_branch
          %121 = sbr.rel (%p119) target = $region16
        $region15: #{generator_forward.13} parent=11 // pred_region
          _
        $region16: #{generator_forward.13} parent=11 // pred_fallthru
          _
      $region12: #{generator_forward.13} parent=5 // pred_fallthru
        _
      %p122 = scmp.lt.s32.totalorder %s10, 2
      // Predicated region
      $region17: #{generator_forward.13} parent=5 // pred_check
        %p123 = pneg %p122
      $region18: #{generator_forward.13} parent=5 // pred_check_branch
        %125 = sbr.rel (%p123) target = $region20
      $region19: #{generator_forward.13} parent=5 // pred_region
        // Predicated region
        $region21: #{generator_forward.13} parent=19 // pred_check
          %p126 = pneg %p30
        $region22: #{generator_forward.13} parent=19 // pred_check_branch
          %128 = sbr.rel (%p126) target = $region24
        $region23: #{generator_forward.13} parent=19 // pred_region
          %s129 = smul.u32 4, %s10
          %p130 = scmp.lt.s32.totalorder %s129, 7
          %s131 = scalar_select %p130, %s129, 7
          %s132 = scalar_lea.vmem %s0, %s131
          %s133 = smul.u32 4, %s10
        $region24: #{generator_forward.13} parent=19 // pred_fallthru
          _
        // Predicated region
        $region25: #{generator_forward.13} parent=19 // pred_check
          %p134 = pneg %p56
        $region26: #{generator_forward.13} parent=19 // pred_check_branch
          %136 = sbr.rel (%p134) target = $region28
        $region27: #{generator_forward.13} parent=19 // pred_region
          %s137 = smul.u32 64, %s10
          %p138 = scmp.lt.s32.totalorder %s137, 127
          %s139 = scalar_select %p138, %s137, 127
          %s140 = smul.addr %s139, 4
          %s141 = scalar_lea.vmem %s1, %s140
          %s142 = smul.u32 64, %s10
        $region28: #{generator_forward.13} parent=19 // pred_fallthru
          _
      $region20: #{generator_forward.13} parent=5 // pred_fallthru
        _
      %p143 = scmp.le.s32.totalorder 1, %s10
      %p144 = scmp.lt.s32.totalorder %s10, 3
      %p145 = pnand %p143, %p144
      %p146 = pneg %p145
      // Predicated region
      $region29: #{generator_forward.13} parent=5 // pred_check
        _
      $region30: #{generator_forward.13} parent=5 // pred_check_branch
        %148 = sbr.rel (%p145) target = $region32
      $region31: #{generator_forward.13} parent=5 // pred_region
        %s149 = ssub.s32 %s10, 1
        %s150 = smul.u32 4, %s15
        %p151 = scmp.lt.s32.totalorder %s150, 7
        %s152 = scalar_select %p151, %s150, 7
        %s153 = scalar_lea.vmem %s0, %s152
        %p154 = pneg %p36
        %p155 = pneg %p33
        %s156 = smul.u32 64, %s15
        %p157 = scmp.lt.s32.totalorder %s156, 127
        %s158 = scalar_select %p157, %s156, 127
        %s159 = smul.addr %s158, 4
        %s160 = scalar_lea.vmem %s1, %s159
        %p161 = pneg %p62
        %p162 = pneg %p59
        %p163 = pneg %p83
        %p164 = pneg %p80
        %p165 = pneg %p104
        %p166 = pneg %p101
        %s167 = smul.u32 4, %s15
        %p168 = scmp.lt.s32.totalorder %s167, 7
        %s169 = scalar_select %p168, %s167, 7
        %s170 = scalar_lea.vmem %s0, %s169
        %s171 = smul.u32 4, %s15
        %s172 = smul.u32 64, %s15
        %p173 = scmp.lt.s32.totalorder %s172, 127
        %s174 = scalar_select %p173, %s172, 127
        %s175 = smul.addr %s174, 4
        %s176 = scalar_lea.vmem %s1, %s175
        %s177 = smul.u32 64, %s15
        %p179 = scmp.eq.s32.totalorder %s15, 0
        // Predicated region
        $region33: #{generator_forward.13} parent=31 // pred_check
          %p180 = pneg %p179
        $region34: #{generator_forward.13} parent=31 // pred_check_branch
          %182 = sbr.rel (%p180) target = $region36
        $region35: #{generator_forward.13} parent=31 // pred_region
          %183 = vst [vmem:[#allocation2] sm:$0x3] 0.0
        $region36: #{generator_forward.13} parent=31 // pred_fallthru
          _
        %v184 = vld [vmem:[#allocation2] sm:$0x3]
        %v185 = vld [vmem:[%s170] sm:$0xf]
        %v186 = vld [vmem:[%s176] sm:$0xf]
        %v187 = vld [vmem:[%s176 + $0x4] sm:$0xf]
        %v188 = vld [vmem:[%s176 + $0x8] sm:$0xf]
        %v189 = vld [vmem:[%s176 + $0xc] sm:$0xf]
        %v190 = vld [vmem:[%s176 + $0x10] sm:$0xf]
        %v191 = vld [vmem:[%s176 + $0x14] sm:$0xf]
        %v192 = vld [vmem:[%s176 + $0x18] sm:$0xf]
        %v193 = vld [vmem:[%s176 + $0x1c] sm:$0xf]
        %v194 = vld [vmem:[%s176 + $0x20] sm:$0xf]
        %v195 = vld [vmem:[%s176 + $0x24] sm:$0xf]
        %v196 = vld [vmem:[%s176 + $0x28] sm:$0xf]
        %v197 = vld [vmem:[%s176 + $0x2c] sm:$0xf]
        %v198 = vld [vmem:[%s176 + $0x30] sm:$0xf]
        %v199 = vld [vmem:[%s176 + $0x34] sm:$0xf]
        %v200 = vld [vmem:[%s176 + $0x38] sm:$0xf]
        %v201 = vld [vmem:[%s176 + $0x3c] sm:$0xf]
        %v202 = vld [vmem:[%s176 + $0x40] sm:$0xf]
        %v203 = vld [vmem:[%s176 + $0x44] sm:$0xf]
        %v204 = vld [vmem:[%s176 + $0x48] sm:$0xf]
        %v205 = vld [vmem:[%s176 + $0x4c] sm:$0xf]
        %v206 = vld [vmem:[%s176 + $0x50] sm:$0xf]
        %v207 = vld [vmem:[%s176 + $0x54] sm:$0xf]
        %v208 = vld [vmem:[%s176 + $0x58] sm:$0xf]
        %v209 = vld [vmem:[%s176 + $0x5c] sm:$0xf]
        %v210 = vld [vmem:[%s176 + $0x60] sm:$0xf]
        %v211 = vld [vmem:[%s176 + $0x64] sm:$0xf]
        %v212 = vld [vmem:[%s176 + $0x68] sm:$0xf]
        %v213 = vld [vmem:[%s176 + $0x6c] sm:$0xf]
        %v214 = vld [vmem:[%s176 + $0x70] sm:$0xf]
        %v215 = vld [vmem:[%s176 + $0x74] sm:$0xf]
        %v216 = vld [vmem:[%s176 + $0x78] sm:$0xf]
        %v217 = vld [vmem:[%s176 + $0x7c] sm:$0xf]
        %v218 = vld [vmem:[%s176 + $0x80] sm:$0xf]
        %v219 = vld [vmem:[%s176 + $0x84] sm:$0xf]
        %v220 = vld [vmem:[%s176 + $0x88] sm:$0xf]
        %v221 = vld [vmem:[%s176 + $0x8c] sm:$0xf]
        %v222 = vld [vmem:[%s176 + $0x90] sm:$0xf]
        %v223 = vld [vmem:[%s176 + $0x94] sm:$0xf]
        %v224 = vld [vmem:[%s176 + $0x98] sm:$0xf]
        %v225 = vld [vmem:[%s176 + $0x9c] sm:$0xf]
        %v226 = vld [vmem:[%s176 + $0xa0] sm:$0xf]
        %v227 = vld [vmem:[%s176 + $0xa4] sm:$0xf]
        %v228 = vld [vmem:[%s176 + $0xa8] sm:$0xf]
        %v229 = vld [vmem:[%s176 + $0xac] sm:$0xf]
        %v230 = vld [vmem:[%s176 + $0xb0] sm:$0xf]
        %v231 = vld [vmem:[%s176 + $0xb4] sm:$0xf]
        %v232 = vld [vmem:[%s176 + $0xb8] sm:$0xf]
        %v233 = vld [vmem:[%s176 + $0xbc] sm:$0xf]
        %v234 = vld [vmem:[%s176 + $0xc0] sm:$0xf]
        %v235 = vld [vmem:[%s176 + $0xc4] sm:$0xf]
        %v236 = vld [vmem:[%s176 + $0xc8] sm:$0xf]
        %v237 = vld [vmem:[%s176 + $0xcc] sm:$0xf]
        %v238 = vld [vmem:[%s176 + $0xd0] sm:$0xf]
        %v239 = vld [vmem:[%s176 + $0xd4] sm:$0xf]
        %v240 = vld [vmem:[%s176 + $0xd8] sm:$0xf]
        %v241 = vld [vmem:[%s176 + $0xdc] sm:$0xf]
        %v242 = vld [vmem:[%s176 + $0xe0] sm:$0xf]
        %v243 = vld [vmem:[%s176 + $0xe4] sm:$0xf]
        %v244 = vld [vmem:[%s176 + $0xe8] sm:$0xf]
        %v245 = vld [vmem:[%s176 + $0xec] sm:$0xf]
        %v246 = vld [vmem:[%s176 + $0xf0] sm:$0xf]
        %v247 = vld [vmem:[%s176 + $0xf4] sm:$0xf]
        %v248 = vld [vmem:[%s176 + $0xf8] sm:$0xf]
        %v249 = vld [vmem:[%s176 + $0xfc] sm:$0xf]
        %v252 = vunpack.c.l.s4 1966171168
        %v253 = vunpack.c.0.s8 %v252
        %v254 = vlaneseq
        %v255 = vshrl.u32 %v254, 7
        %v256 = vsub.s32 %v253, %v255
        %v257 = vrot.slane %v185, %v256
        %v258 = vcombine.high %v257, %v257
        %v260 = vunpack.c.l.s4 1966171168
        %v261 = vunpack.c.0.s8 %v260
        %v262 = vlaneseq
        %v263 = vshrl.u32 %v262, 7
        %v264 = vsub.s32 %v261, %v263
        %v265 = vrot.slane %v257, %v264
        %v267 = vunpack.c.l.s4 1966171168
        %v268 = vunpack.c.0.s8 %v267
        %v269 = vlaneseq
        %v270 = vshrl.u32 %v269, 7
        %v271 = vsub.s32 %v268, %v270
        %v272 = vrot.slane %v258, %v271
        %v273 = vcombine.high %v265, %v265
        %v274 = vcombine.high %v272, %v272
        %v343 = vunpack.c.l.b16 %v186
        %v344 = vunpack.c.l.b16 %v187
        %v345 = vunpack.c.l.b16 %v188
        %v346 = vunpack.c.l.b16 %v189
        %v347 = vunpack.c.l.b16 %v190
        %v348 = vunpack.c.l.b16 %v191
        %v349 = vunpack.c.l.b16 %v192
        %v350 = vunpack.c.l.b16 %v193
        %v351 = vunpack.c.l.b16 %v194
        %v352 = vunpack.c.l.b16 %v195
        %v353 = vunpack.c.l.b16 %v196
        %v354 = vunpack.c.l.b16 %v197
        %v355 = vunpack.c.l.b16 %v198
        %v356 = vunpack.c.l.b16 %v199
        %v357 = vunpack.c.l.b16 %v200
        %v358 = vunpack.c.l.b16 %v201
        %v359 = vunpack.c.l.b16 %v202
        %v360 = vunpack.c.l.b16 %v203
        %v361 = vunpack.c.l.b16 %v204
        %v362 = vunpack.c.l.b16 %v205
        %v363 = vunpack.c.l.b16 %v206
        %v364 = vunpack.c.l.b16 %v207
        %v365 = vunpack.c.l.b16 %v208
        %v366 = vunpack.c.l.b16 %v209
        %v367 = vunpack.c.l.b16 %v210
        %v368 = vunpack.c.l.b16 %v211
        %v369 = vunpack.c.l.b16 %v212
        %v370 = vunpack.c.l.b16 %v213
        %v371 = vunpack.c.l.b16 %v214
        %v372 = vunpack.c.l.b16 %v215
        %v373 = vunpack.c.l.b16 %v216
        %v374 = vunpack.c.l.b16 %v217
        %v375 = vunpack.c.l.b16 %v218
        %v376 = vunpack.c.l.b16 %v219
        %v377 = vunpack.c.l.b16 %v220
        %v378 = vunpack.c.l.b16 %v221
        %v379 = vunpack.c.l.b16 %v222
        %v380 = vunpack.c.l.b16 %v223
        %v381 = vunpack.c.l.b16 %v224
        %v382 = vunpack.c.l.b16 %v225
        %v383 = vunpack.c.l.b16 %v226
        %v384 = vunpack.c.l.b16 %v227
        %v385 = vunpack.c.l.b16 %v228
        %v386 = vunpack.c.l.b16 %v229
        %v387 = vunpack.c.l.b16 %v230
        %v388 = vunpack.c.l.b16 %v231
        %v389 = vunpack.c.l.b16 %v232
        %v390 = vunpack.c.l.b16 %v233
        %v391 = vunpack.c.l.b16 %v234
        %v392 = vunpack.c.l.b16 %v235
        %v393 = vunpack.c.l.b16 %v236
        %v394 = vunpack.c.l.b16 %v237
        %v395 = vunpack.c.l.b16 %v238
        %v396 = vunpack.c.l.b16 %v239
        %v397 = vunpack.c.l.b16 %v240
        %v398 = vunpack.c.l.b16 %v241
        %v399 = vunpack.c.l.b16 %v242
        %v400 = vunpack.c.l.b16 %v243
        %v401 = vunpack.c.l.b16 %v244
        %v402 = vunpack.c.l.b16 %v245
        %v403 = vunpack.c.l.b16 %v246
        %v404 = vunpack.c.l.b16 %v247
        %v405 = vunpack.c.l.b16 %v248
        %v406 = vunpack.c.l.b16 %v249
        %v407 = vpack.c.b16 %v344, %v343
        %v408 = vpack.c.b16 %v346, %v345
        %v409 = vpack.c.b16 %v348, %v347
        %v410 = vpack.c.b16 %v350, %v349
        %v411 = vpack.c.b16 %v352, %v351
        %v412 = vpack.c.b16 %v354, %v353
        %v413 = vpack.c.b16 %v356, %v355
        %v414 = vpack.c.b16 %v358, %v357
        %v415 = vpack.c.b16 %v360, %v359
        %v416 = vpack.c.b16 %v362, %v361
        %v417 = vpack.c.b16 %v364, %v363
        %v418 = vpack.c.b16 %v366, %v365
        %v419 = vpack.c.b16 %v368, %v367
        %v420 = vpack.c.b16 %v370, %v369
        %v421 = vpack.c.b16 %v372, %v371
        %v422 = vpack.c.b16 %v374, %v373
        %v423 = vpack.c.b16 %v376, %v375
        %v424 = vpack.c.b16 %v378, %v377
        %v425 = vpack.c.b16 %v380, %v379
        %v426 = vpack.c.b16 %v382, %v381
        %v427 = vpack.c.b16 %v384, %v383
        %v428 = vpack.c.b16 %v386, %v385
        %v429 = vpack.c.b16 %v388, %v387
        %v430 = vpack.c.b16 %v390, %v389
        %v431 = vpack.c.b16 %v392, %v391
        %v432 = vpack.c.b16 %v394, %v393
        %v433 = vpack.c.b16 %v396, %v395
        %v434 = vpack.c.b16 %v398, %v397
        %v435 = vpack.c.b16 %v400, %v399
        %v436 = vpack.c.b16 %v402, %v401
        %v437 = vpack.c.b16 %v404, %v403
        %v438 = vpack.c.b16 %v406, %v405
        %471 = vmatprep.subr.bf16.mxu0 0
        %472 = vmatpush1.bf16.msra.mxu0 %v414
        %473 = vmatprep.subr.bf16.mxu0 0
        %474 = vmatpush1.bf16.msra.mxu0 %v413
        %475 = vmatprep.subr.bf16.mxu0 0
        %476 = vmatpush1.bf16.msra.mxu0 %v412
        %477 = vmatprep.subr.bf16.mxu0 0
        %478 = vmatpush1.bf16.msra.mxu0 %v411
        %479 = vmatprep.subr.bf16.mxu0 0
        %480 = vmatpush1.bf16.msra.mxu0 %v410
        %481 = vmatprep.subr.bf16.mxu0 0
        %482 = vmatpush1.bf16.msra.mxu0 %v409
        %483 = vmatprep.subr.bf16.mxu0 0
        %484 = vmatpush1.bf16.msra.mxu0 %v408
        %485 = vmatprep.subr.bf16.mxu0 0
        %486 = vmatpush1.bf16.msra.mxu0 %v407
        %487 = vmatprep.subr.bf16.mxu0 0
        %488 = vmatpush2.bf16.msra.mxu0 %v422
        %489 = vmatprep.subr.bf16.mxu0 0
        %490 = vmatpush2.bf16.msra.mxu0 %v421
        %491 = vmatprep.subr.bf16.mxu0 0
        %492 = vmatpush2.bf16.msra.mxu0 %v420
        %493 = vmatprep.subr.bf16.mxu0 0
        %494 = vmatpush2.bf16.msra.mxu0 %v419
        %495 = vmatprep.subr.bf16.mxu0 0
        %496 = vmatpush2.bf16.msra.mxu0 %v418
        %497 = vmatprep.subr.bf16.mxu0 0
        %498 = vmatpush2.bf16.msra.mxu0 %v417
        %499 = vmatprep.subr.bf16.mxu0 0
        %500 = vmatpush2.bf16.msra.mxu0 %v416
        %501 = vmatprep.subr.bf16.mxu0 0
        %502 = vmatpush2.bf16.msra.mxu0 %v415
        %503 = vmatprep.mubr.bf16.mxu0 %v272
        %504 = vmatmul.mubr.bf16.gmra.mxu0 %v265
        %v505 = vpop.f32.mrf.mxu0
        %v506 = vadd.f32 0.0, %v505
        %v507 = vpop.f32.mrf.mxu0
        %v508 = vpop.f32.mrf.mxu0
        %v509 = vpop.f32.mrf.mxu0
        %510 = vdwg.mxu0
        %511 = vmatprep.subr.bf16.mxu0 0
        %512 = vmatpush1.bf16.msra.mxu0 %v430
        %513 = vmatprep.subr.bf16.mxu0 0
        %514 = vmatpush1.bf16.msra.mxu0 %v429
        %515 = vmatprep.subr.bf16.mxu0 0
        %516 = vmatpush1.bf16.msra.mxu0 %v428
        %517 = vmatprep.subr.bf16.mxu0 0
        %518 = vmatpush1.bf16.msra.mxu0 %v427
        %519 = vmatprep.subr.bf16.mxu0 0
        %520 = vmatpush1.bf16.msra.mxu0 %v426
        %521 = vmatprep.subr.bf16.mxu0 0
        %522 = vmatpush1.bf16.msra.mxu0 %v425
        %523 = vmatprep.subr.bf16.mxu0 0
        %524 = vmatpush1.bf16.msra.mxu0 %v424
        %525 = vmatprep.subr.bf16.mxu0 0
        %526 = vmatpush1.bf16.msra.mxu0 %v423
        %527 = vmatprep.subr.bf16.mxu0 0
        %528 = vmatpush2.bf16.msra.mxu0 %v438
        %529 = vmatprep.subr.bf16.mxu0 0
        %530 = vmatpush2.bf16.msra.mxu0 %v437
        %531 = vmatprep.subr.bf16.mxu0 0
        %532 = vmatpush2.bf16.msra.mxu0 %v436
        %533 = vmatprep.subr.bf16.mxu0 0
        %534 = vmatpush2.bf16.msra.mxu0 %v435
        %535 = vmatprep.subr.bf16.mxu0 0
        %536 = vmatpush2.bf16.msra.mxu0 %v434
        %537 = vmatprep.subr.bf16.mxu0 0
        %538 = vmatpush2.bf16.msra.mxu0 %v433
        %539 = vmatprep.subr.bf16.mxu0 0
        %540 = vmatpush2.bf16.msra.mxu0 %v432
        %541 = vmatprep.subr.bf16.mxu0 0
        %542 = vmatpush2.bf16.msra.mxu0 %v431
        %543 = vmatprep.mubr.bf16.mxu0 %v274
        %544 = vmatmul.mubr.bf16.gmra.mxu0 %v273
        %v545 = vpop.f32.mrf.mxu0
        %v546 = vadd.f32 %v506, %v545
        %v547 = vpop.f32.mrf.mxu0
        %v548 = vpop.f32.mrf.mxu0
        %v549 = vpop.f32.mrf.mxu0
        %550 = vdwg.mxu0
        %v551 = vadd.f32 %v184, %v546
        %552 = vst [vmem:[#allocation2] sm:$0x3] %v551
        %p553 = scmp.eq.s32.totalorder %s15, 1
        // Predicated region
        $region37: #{generator_forward.13} parent=31 // pred_check
          %p554 = pneg %p553
        $region38: #{generator_forward.13} parent=31 // pred_check_branch
          %556 = sbr.rel (%p554) target = $region40
        $region39: #{generator_forward.13} parent=31 // pred_region
          %v557 = vld [vmem:[#allocation2] sm:$0x3]
          %v558 = vld [vmem:[%s2] sm:$0x1]
          %v560 = vlaneseq
          %v561 = vshrl.u32 %v560, 7
          %v562 = vsub.s32 0, %v561
          %v563 = vrot.slane %v558, %v562
          %v565 = vadd.f32 %v557, %v563
          %vm566 = vcmp.ge.f32.partialorder %v565, 0.0
          %v567 = vmul.f32 %v565, 0.01
          %v568 = vsel %vm566, %v565, %v567
          %569 = vst [vmem:[#allocation3] sm:$0x3] %v568
        $region40: #{generator_forward.13} parent=31 // pred_fallthru
          _
        // Predicated region
        $region41: #{generator_forward.13} parent=31 // pred_check
          %p570 = pneg %p101
        $region42: #{generator_forward.13} parent=31 // pred_check_branch
          %572 = sbr.rel (%p570) target = $region44
        $region43: #{generator_forward.13} parent=31 // pred_region
          %s574 = ssub.s32 32, 32
          %575 = vsyncadd [#allocation4], %s574
          %s577 = sshll.u32 [#allocation3], 4
          %s578 = int_to_ptr.vmem [resolvable:$true] %s577
          %580 = dma.vmem_to_hbm [thread:$0]  %s578, 32, %s3, [#allocation4]
        $region44: #{generator_forward.13} parent=31 // pred_fallthru
          _
        // Predicated region
        $region45: #{generator_forward.13} parent=31 // pred_check
          %p581 = pneg %p101
        $region46: #{generator_forward.13} parent=31 // pred_check_branch
          %583 = sbr.rel (%p581) target = $region48
        $region47: #{generator_forward.13} parent=31 // pred_region
          %584 = dma.done [#allocation4], 32
        $region48: #{generator_forward.13} parent=31 // pred_fallthru
          _
      $region32: #{generator_forward.13} parent=5 // pred_fallthru
        _
      %p585 = scmp.le.s32.totalorder 2, %s10
      // Predicated region
      $region49: #{generator_forward.13} parent=5 // pred_check
        %p586 = pneg %p585
      $region50: #{generator_forward.13} parent=5 // pred_check_branch
        %588 = sbr.rel (%p586) target = $region52
      $region51: #{generator_forward.13} parent=5 // pred_region
        %s589 = ssub.s32 %s10, 2
      $region52: #{generator_forward.13} parent=5 // pred_fallthru
        _
    $region6: #{generator_forward.13} parent=1 // loop_footer
      %s14 = sadd.s32 1, %s10
    $region7: #{generator_forward.13} parent=1 // loop_footer_branch
      %9 = sbr.rel target = $region3
    $region8: #{generator_forward.13} parent=1 // loop_exit
      _
    %590 = vsyncpa [#allocation4], 1
    %s591 = scalar_lea.sflag [#allocation4], 1
    %592 = vsyncpa %s591, 1

// kernel: generator_forward.12
$region0: #{generator_forward.12}
  #allocation0 [shape = 'u32[]', space=smem, size = 0x4, offset = 0x4, fixed_abs, tag = 'smem constant byte address 0x4 - core index']
  #allocation1 [shape = 'u32[144,128]{1,0:T(1,128)}', space=vmem, size = 0x12000, scoped, tag = 'internal scratch']
  #allocation2 [shape = 'f32[2,1024]{1,0:T(2,128)}', space=vmem, size = 0x2000, scoped, tag = 'scratch operand']
  %s0 = inlined_call_operand.vmem [shape: bf16[2,2048], index: 0, kind: input, shape index: {}]
  %s1 = inlined_call_operand.vmem [shape: bf16[2048,1024], index: 1, kind: input, shape index: {}]
  %s2 = inlined_call_operand.vmem [shape: f32[1,1024], index: 2, kind: input, shape index: {}]
  %s3 = inlined_call_operand.vmem [shape: bf16[2,1024], index: 3, kind: output, shape index: {}]
  %s4 = sld [smem:[#allocation0]]
  $region53: #{generator_forward.12} parent=0
    _
  %s6 = ssub.s32 1, %s4
  %s7 = scalar_select 0, %s6, %s4
  loop: start=0, step=1, limit=6
  $region2: #{generator_forward.12} parent=0 // loop_pre_header
    _
  $region3: #{generator_forward.12} parent=0 // loop_header
    %s9 = sphi 0, %s13
    %p10 = scmp.ge.s32.totalorder %s9, 6
    %s19 = sphi 0, %s21
    %s22 = sphi 0, %s19
    %s23 = sphi 0, %s22
    %s39 = sphi 0, %s23
    %s45 = sphi 0, %s47
    %s48 = sphi 0, %s45
    %s49 = sphi 0, %s48
    %s65 = sphi 0, %s49
    %s69 = sphi 0, %s69
    %s71 = sphi 0, %s69
    %s72 = sphi 0, %s71
    %s86 = sphi 0, %s72
    %s90 = sphi 0, %s90
    %s92 = sphi 0, %s90
    %s93 = sphi 0, %s92
    %s107 = sphi 0, %s93
  $region4: #{generator_forward.12} parent=0 // loop_header_branch
    %12 = sbr.rel (%p10) target = $region8
  $region5: #{generator_forward.12} parent=0 // loop_body
    %s14 = ssub.s32 %s9, 1
    %s15 = ssub.s32 %s9, 2
    %s16 = sadd.s32 %s9, 1
    %s17 = ssub.s32 %s9, %s16
    %p18 = scmp.eq.s32.totalorder %s17, 0
    %s20 = sadd.s32 %s19, 1
    %s21 = scalar_select %p18, %s19, %s20
    %p24 = pneg %p18
    %p25 = scmp.eq.s32.totalorder %s9, 3
    %p26 = por %p24, %p25
    %p27 = scmp.ne.s32.totalorder %s19, %s22
    %p28 = scmp.eq.s32.totalorder %s9, 0
    %p29 = por %p27, %p28
    %p30 = scmp.ne.s32.totalorder %s19, %s22
    %p31 = scmp.eq.s32.totalorder %s14, 3
    %p32 = por %p30, %p31
    %p33 = scmp.ne.s32.totalorder %s22, %s23
    %p34 = scmp.eq.s32.totalorder %s14, 0
    %p35 = por %p33, %p34
    %p36 = scmp.ne.s32.totalorder %s22, %s23
    %p37 = scmp.eq.s32.totalorder %s15, 3
    %p38 = por %p36, %p37
    %p40 = scmp.ne.s32.totalorder %s23, %s39
    %p41 = scmp.eq.s32.totalorder %s15, 0
    %p42 = por %p40, %p41
    %s43 = ssub.s32 %s9, %s16
    %p44 = scmp.eq.s32.totalorder %s43, 0
    %s46 = sadd.s32 %s45, 1
    %s47 = scalar_select %p44, %s45, %s46
    %p50 = pneg %p44
    %p51 = scmp.eq.s32.totalorder %s9, 3
    %p52 = por %p50, %p51
    %p53 = scmp.ne.s32.totalorder %s45, %s48
    %p54 = scmp.eq.s32.totalorder %s9, 0
    %p55 = por %p53, %p54
    %p56 = scmp.ne.s32.totalorder %s45, %s48
    %p57 = scmp.eq.s32.totalorder %s14, 3
    %p58 = por %p56, %p57
    %p59 = scmp.ne.s32.totalorder %s48, %s49
    %p60 = scmp.eq.s32.totalorder %s14, 0
    %p61 = por %p59, %p60
    %p62 = scmp.ne.s32.totalorder %s48, %s49
    %p63 = scmp.eq.s32.totalorder %s15, 3
    %p64 = por %p62, %p63
    %p66 = scmp.ne.s32.totalorder %s49, %s65
    %p67 = scmp.eq.s32.totalorder %s15, 0
    %p68 = por %p66, %p67
    %s70 = sadd.s32 %s69, 1
    %p73 = scmp.eq.s32.totalorder %s9, 3
    %p74 = scmp.ne.s32.totalorder %s69, %s71
    %p75 = scmp.eq.s32.totalorder %s9, 0
    %p76 = por %p74, %p75
    %p77 = scmp.ne.s32.totalorder %s69, %s71
    %p78 = scmp.eq.s32.totalorder %s14, 3
    %p79 = por %p77, %p78
    %p80 = scmp.ne.s32.totalorder %s71, %s72
    %p81 = scmp.eq.s32.totalorder %s14, 0
    %p82 = por %p80, %p81
    %p83 = scmp.ne.s32.totalorder %s71, %s72
    %p84 = scmp.eq.s32.totalorder %s15, 3
    %p85 = por %p83, %p84
    %p87 = scmp.ne.s32.totalorder %s72, %s86
    %p88 = scmp.eq.s32.totalorder %s15, 0
    %p89 = por %p87, %p88
    %s91 = sadd.s32 %s90, 1
    %p94 = scmp.eq.s32.totalorder %s9, 3
    %p95 = scmp.ne.s32.totalorder %s90, %s92
    %p96 = scmp.eq.s32.totalorder %s9, 0
    %p97 = por %p95, %p96
    %p98 = scmp.ne.s32.totalorder %s90, %s92
    %p99 = scmp.eq.s32.totalorder %s14, 3
    %p100 = por %p98, %p99
    %p101 = scmp.ne.s32.totalorder %s92, %s93
    %p102 = scmp.eq.s32.totalorder %s14, 0
    %p103 = por %p101, %p102
    %p104 = scmp.ne.s32.totalorder %s92, %s93
    %p105 = scmp.eq.s32.totalorder %s15, 3
    %p106 = por %p104, %p105
    %p108 = scmp.ne.s32.totalorder %s93, %s107
    %p109 = scmp.eq.s32.totalorder %s15, 0
    %p110 = por %p108, %p109
    %p111 = scmp.le.s32.totalorder 1, %s9
    %p112 = scmp.lt.s32.totalorder %s9, 5
    %p113 = pnand %p111, %p112
    %p114 = pneg %p113
    // Predicated region
    $region9: #{generator_forward.12} parent=5 // pred_check
      _
    $region10: #{generator_forward.12} parent=5 // pred_check_branch
      %116 = sbr.rel (%p113) target = $region12
    $region11: #{generator_forward.12} parent=5 // pred_region
      %s117 = ssub.s32 %s9, 1
      // Predicated region
      $region13: #{generator_forward.12} parent=11 // pred_check
        %p118 = pneg %p82
      $region14: #{generator_forward.12} parent=11 // pred_check_branch
        %120 = sbr.rel (%p118) target = $region16
      $region15: #{generator_forward.12} parent=11 // pred_region
        _
      $region16: #{generator_forward.12} parent=11 // pred_fallthru
        _
    $region12: #{generator_forward.12} parent=5 // pred_fallthru
      _
    %p121 = scmp.lt.s32.totalorder %s9, 4
    // Predicated region
    $region17: #{generator_forward.12} parent=5 // pred_check
      %p122 = pneg %p121
    $region18: #{generator_forward.12} parent=5 // pred_check_branch
      %124 = sbr.rel (%p122) target = $region20
    $region19: #{generator_forward.12} parent=5 // pred_region
      // Predicated region
      $region21: #{generator_forward.12} parent=19 // pred_check
        %p125 = pneg %p29
      $region22: #{generator_forward.12} parent=19 // pred_check_branch
        %127 = sbr.rel (%p125) target = $region24
      $region23: #{generator_forward.12} parent=19 // pred_region
        %s128 = smul.u32 4, %s9
        %p129 = scmp.lt.s32.totalorder %s128, 15
        %s130 = scalar_select %p129, %s128, 15
        %s131 = scalar_lea.vmem %s0, %s130
        %s132 = smul.u32 4, %s9
      $region24: #{generator_forward.12} parent=19 // pred_fallthru
        _
      // Predicated region
      $region25: #{generator_forward.12} parent=19 // pred_check
        %p133 = pneg %p55
      $region26: #{generator_forward.12} parent=19 // pred_check_branch
        %135 = sbr.rel (%p133) target = $region28
      $region27: #{generator_forward.12} parent=19 // pred_region
        %s136 = smul.u32 64, %s9
        %p137 = scmp.lt.s32.totalorder %s136, 255
        %s138 = scalar_select %p137, %s136, 255
        %s139 = smul.addr %s138, 8
        %s140 = smul.addr %s139, 4
        %s141 = scalar_lea.vmem %s1, %s140
        %s142 = smul.u32 64, %s9
      $region28: #{generator_forward.12} parent=19 // pred_fallthru
        _
    $region20: #{generator_forward.12} parent=5 // pred_fallthru
      _
    %p143 = scmp.le.s32.totalorder 1, %s9
    %p144 = scmp.lt.s32.totalorder %s9, 5
    %p145 = pnand %p143, %p144
    %p146 = pneg %p145
    // Predicated region
    $region29: #{generator_forward.12} parent=5 // pred_check
      _
    $region30: #{generator_forward.12} parent=5 // pred_check_branch
      %148 = sbr.rel (%p145) target = $region32
    $region31: #{generator_forward.12} parent=5 // pred_region
      %s149 = ssub.s32 %s9, 1
      %s150 = smul.u32 4, %s14
      %p151 = scmp.lt.s32.totalorder %s150, 15
      %s152 = scalar_select %p151, %s150, 15
      %s153 = scalar_lea.vmem %s0, %s152
      %p154 = pneg %p35
      %p155 = pneg %p32
      %s156 = smul.u32 64, %s14
      %p157 = scmp.lt.s32.totalorder %s156, 255
      %s158 = scalar_select %p157, %s156, 255
      %s159 = smul.addr %s158, 8
      %s160 = smul.addr %s159, 4
      %s161 = scalar_lea.vmem %s1, %s160
      %p162 = pneg %p61
      %p163 = pneg %p58
      %p164 = pneg %p82
      %p165 = pneg %p79
      %p166 = pneg %p103
      %p167 = pneg %p100
      %s168 = smul.u32 4, %s14
      %p169 = scmp.lt.s32.totalorder %s168, 15
      %s170 = scalar_select %p169, %s168, 15
      %s171 = scalar_lea.vmem %s0, %s170
      %s172 = smul.u32 4, %s14
      %s173 = smul.u32 64, %s14
      %p174 = scmp.lt.s32.totalorder %s173, 255
      %s175 = scalar_select %p174, %s173, 255
      %s176 = smul.addr %s175, 8
      %s177 = smul.addr %s176, 4
      %s178 = scalar_lea.vmem %s1, %s177
      %s179 = smul.u32 64, %s14
      %p180 = scmp.eq.s32.totalorder %s14, 0
      // Predicated region
      $region33: #{generator_forward.12} parent=31 // pred_check
        %p181 = pneg %p180
      $region34: #{generator_forward.12} parent=31 // pred_check_branch
        %183 = sbr.rel (%p181) target = $region36
      $region35: #{generator_forward.12} parent=31 // pred_region
        %184 = vst [vmem:[#allocation2] sm:$0xff] 0.0
        %185 = vst [vmem:[#allocation2 + $0x8] sm:$0xff] 0.0
      $region36: #{generator_forward.12} parent=31 // pred_fallthru
        _
      %v186 = vld [vmem:[#allocation2] sm:$0xff]
      %v187 = vld [vmem:[#allocation2 + $0x8] sm:$0xff]
      %v188 = vld [vmem:[%s171] sm:$0xf]
      %v189 = vld [vmem:[%s178] sm:$0xff]
      %v190 = vld [vmem:[%s178 + $0x8] sm:$0xff]
      %v191 = vld [vmem:[%s178 + $0x10] sm:$0xff]
      %v192 = vld [vmem:[%s178 + $0x18] sm:$0xff]
      %v193 = vld [vmem:[%s178 + $0x20] sm:$0xff]
      %v194 = vld [vmem:[%s178 + $0x28] sm:$0xff]
      %v195 = vld [vmem:[%s178 + $0x30] sm:$0xff]
      %v196 = vld [vmem:[%s178 + $0x38] sm:$0xff]
      %v197 = vld [vmem:[%s178 + $0x40] sm:$0xff]
      %v198 = vld [vmem:[%s178 + $0x48] sm:$0xff]
      %v199 = vld [vmem:[%s178 + $0x50] sm:$0xff]
      %v200 = vld [vmem:[%s178 + $0x58] sm:$0xff]
      %v201 = vld [vmem:[%s178 + $0x60] sm:$0xff]
      %v202 = vld [vmem:[%s178 + $0x68] sm:$0xff]
      %v203 = vld [vmem:[%s178 + $0x70] sm:$0xff]
      %v204 = vld [vmem:[%s178 + $0x78] sm:$0xff]
      %v205 = vld [vmem:[%s178 + $0x80] sm:$0xff]
      %v206 = vld [vmem:[%s178 + $0x88] sm:$0xff]
      %v207 = vld [vmem:[%s178 + $0x90] sm:$0xff]
      %v208 = vld [vmem:[%s178 + $0x98] sm:$0xff]
      %v209 = vld [vmem:[%s178 + $0xa0] sm:$0xff]
      %v210 = vld [vmem:[%s178 + $0xa8] sm:$0xff]
      %v211 = vld [vmem:[%s178 + $0xb0] sm:$0xff]
      %v212 = vld [vmem:[%s178 + $0xb8] sm:$0xff]
      %v213 = vld [vmem:[%s178 + $0xc0] sm:$0xff]
      %v214 = vld [vmem:[%s178 + $0xc8] sm:$0xff]
      %v215 = vld [vmem:[%s178 + $0xd0] sm:$0xff]
      %v216 = vld [vmem:[%s178 + $0xd8] sm:$0xff]
      %v217 = vld [vmem:[%s178 + $0xe0] sm:$0xff]
      %v218 = vld [vmem:[%s178 + $0xe8] sm:$0xff]
      %v219 = vld [vmem:[%s178 + $0xf0] sm:$0xff]
      %v220 = vld [vmem:[%s178 + $0xf8] sm:$0xff]
      %v221 = vld [vmem:[%s178 + $0x100] sm:$0xff]
      %v222 = vld [vmem:[%s178 + $0x108] sm:$0xff]
      %v223 = vld [vmem:[%s178 + $0x110] sm:$0xff]
      %v224 = vld [vmem:[%s178 + $0x118] sm:$0xff]
      %v225 = vld [vmem:[%s178 + $0x120] sm:$0xff]
      %v226 = vld [vmem:[%s178 + $0x128] sm:$0xff]
      %v227 = vld [vmem:[%s178 + $0x130] sm:$0xff]
      %v228 = vld [vmem:[%s178 + $0x138] sm:$0xff]
      %v229 = vld [vmem:[%s178 + $0x140] sm:$0xff]
      %v230 = vld [vmem:[%s178 + $0x148] sm:$0xff]
      %v231 = vld [vmem:[%s178 + $0x150] sm:$0xff]
      %v232 = vld [vmem:[%s178 + $0x158] sm:$0xff]
      %v233 = vld [vmem:[%s178 + $0x160] sm:$0xff]
      %v234 = vld [vmem:[%s178 + $0x168] sm:$0xff]
      %v235 = vld [vmem:[%s178 + $0x170] sm:$0xff]
      %v236 = vld [vmem:[%s178 + $0x178] sm:$0xff]
      %v237 = vld [vmem:[%s178 + $0x180] sm:$0xff]
      %v238 = vld [vmem:[%s178 + $0x188] sm:$0xff]
      %v239 = vld [vmem:[%s178 + $0x190] sm:$0xff]
      %v240 = vld [vmem:[%s178 + $0x198] sm:$0xff]
      %v241 = vld [vmem:[%s178 + $0x1a0] sm:$0xff]
      %v242 = vld [vmem:[%s178 + $0x1a8] sm:$0xff]
      %v243 = vld [vmem:[%s178 + $0x1b0] sm:$0xff]
      %v244 = vld [vmem:[%s178 + $0x1b8] sm:$0xff]
      %v245 = vld [vmem:[%s178 + $0x1c0] sm:$0xff]
      %v246 = vld [vmem:[%s178 + $0x1c8] sm:$0xff]
      %v247 = vld [vmem:[%s178 + $0x1d0] sm:$0xff]
      %v248 = vld [vmem:[%s178 + $0x1d8] sm:$0xff]
      %v249 = vld [vmem:[%s178 + $0x1e0] sm:$0xff]
      %v250 = vld [vmem:[%s178 + $0x1e8] sm:$0xff]
      %v251 = vld [vmem:[%s178 + $0x1f0] sm:$0xff]
      %v252 = vld [vmem:[%s178 + $0x1f8] sm:$0xff]
      %v253 = vld [vmem:[%s178 + $0x200] sm:$0xff]
      %v254 = vld [vmem:[%s178 + $0x208] sm:$0xff]
      %v255 = vld [vmem:[%s178 + $0x210] sm:$0xff]
      %v256 = vld [vmem:[%s178 + $0x218] sm:$0xff]
      %v257 = vld [vmem:[%s178 + $0x220] sm:$0xff]
      %v258 = vld [vmem:[%s178 + $0x228] sm:$0xff]
      %v259 = vld [vmem:[%s178 + $0x230] sm:$0xff]
      %v260 = vld [vmem:[%s178 + $0x238] sm:$0xff]
      %v261 = vld [vmem:[%s178 + $0x240] sm:$0xff]
      %v262 = vld [vmem:[%s178 + $0x248] sm:$0xff]
      %v263 = vld [vmem:[%s178 + $0x250] sm:$0xff]
      %v264 = vld [vmem:[%s178 + $0x258] sm:$0xff]
      %v265 = vld [vmem:[%s178 + $0x260] sm:$0xff]
      %v266 = vld [vmem:[%s178 + $0x268] sm:$0xff]
      %v267 = vld [vmem:[%s178 + $0x270] sm:$0xff]
      %v268 = vld [vmem:[%s178 + $0x278] sm:$0xff]
      %v269 = vld [vmem:[%s178 + $0x280] sm:$0xff]
      %v270 = vld [vmem:[%s178 + $0x288] sm:$0xff]
      %v271 = vld [vmem:[%s178 + $0x290] sm:$0xff]
      %v272 = vld [vmem:[%s178 + $0x298] sm:$0xff]
      %v273 = vld [vmem:[%s178 + $0x2a0] sm:$0xff]
      %v274 = vld [vmem:[%s178 + $0x2a8] sm:$0xff]
      %v275 = vld [vmem:[%s178 + $0x2b0] sm:$0xff]
      %v276 = vld [vmem:[%s178 + $0x2b8] sm:$0xff]
      %v277 = vld [vmem:[%s178 + $0x2c0] sm:$0xff]
      %v278 = vld [vmem:[%s178 + $0x2c8] sm:$0xff]
      %v279 = vld [vmem:[%s178 + $0x2d0] sm:$0xff]
      %v280 = vld [vmem:[%s178 + $0x2d8] sm:$0xff]
      %v281 = vld [vmem:[%s178 + $0x2e0] sm:$0xff]
      %v282 = vld [vmem:[%s178 + $0x2e8] sm:$0xff]
      %v283 = vld [vmem:[%s178 + $0x2f0] sm:$0xff]
      %v284 = vld [vmem:[%s178 + $0x2f8] sm:$0xff]
      %v285 = vld [vmem:[%s178 + $0x300] sm:$0xff]
      %v286 = vld [vmem:[%s178 + $0x308] sm:$0xff]
      %v287 = vld [vmem:[%s178 + $0x310] sm:$0xff]
      %v288 = vld [vmem:[%s178 + $0x318] sm:$0xff]
      %v289 = vld [vmem:[%s178 + $0x320] sm:$0xff]
      %v290 = vld [vmem:[%s178 + $0x328] sm:$0xff]
      %v291 = vld [vmem:[%s178 + $0x330] sm:$0xff]
      %v292 = vld [vmem:[%s178 + $0x338] sm:$0xff]
      %v293 = vld [vmem:[%s178 + $0x340] sm:$0xff]
      %v294 = vld [vmem:[%s178 + $0x348] sm:$0xff]
      %v295 = vld [vmem:[%s178 + $0x350] sm:$0xff]
      %v296 = vld [vmem:[%s178 + $0x358] sm:$0xff]
      %v297 = vld [vmem:[%s178 + $0x360] sm:$0xff]
      %v298 = vld [vmem:[%s178 + $0x368] sm:$0xff]
      %v299 = vld [vmem:[%s178 + $0x370] sm:$0xff]
      %v300 = vld [vmem:[%s178 + $0x378] sm:$0xff]
      %v301 = vld [vmem:[%s178 + $0x380] sm:$0xff]
      %v302 = vld [vmem:[%s178 + $0x388] sm:$0xff]
      %v303 = vld [vmem:[%s178 + $0x390] sm:$0xff]
      %v304 = vld [vmem:[%s178 + $0x398] sm:$0xff]
      %v305 = vld [vmem:[%s178 + $0x3a0] sm:$0xff]
      %v306 = vld [vmem:[%s178 + $0x3a8] sm:$0xff]
      %v307 = vld [vmem:[%s178 + $0x3b0] sm:$0xff]
      %v308 = vld [vmem:[%s178 + $0x3b8] sm:$0xff]
      %v309 = vld [vmem:[%s178 + $0x3c0] sm:$0xff]
      %v310 = vld [vmem:[%s178 + $0x3c8] sm:$0xff]
      %v311 = vld [vmem:[%s178 + $0x3d0] sm:$0xff]
      %v312 = vld [vmem:[%s178 + $0x3d8] sm:$0xff]
      %v313 = vld [vmem:[%s178 + $0x3e0] sm:$0xff]
      %v314 = vld [vmem:[%s178 + $0x3e8] sm:$0xff]
      %v315 = vld [vmem:[%s178 + $0x3f0] sm:$0xff]
      %v316 = vld [vmem:[%s178 + $0x3f8] sm:$0xff]
      %v317 = vld [vmem:[%s178 + $0x400] sm:$0xff]
      %v318 = vld [vmem:[%s178 + $0x408] sm:$0xff]
      %v319 = vld [vmem:[%s178 + $0x410] sm:$0xff]
      %v320 = vld [vmem:[%s178 + $0x418] sm:$0xff]
      %v321 = vld [vmem:[%s178 + $0x420] sm:$0xff]
      %v322 = vld [vmem:[%s178 + $0x428] sm:$0xff]
      %v323 = vld [vmem:[%s178 + $0x430] sm:$0xff]
      %v324 = vld [vmem:[%s178 + $0x438] sm:$0xff]
      %v325 = vld [vmem:[%s178 + $0x440] sm:$0xff]
      %v326 = vld [vmem:[%s178 + $0x448] sm:$0xff]
      %v327 = vld [vmem:[%s178 + $0x450] sm:$0xff]
      %v328 = vld [vmem:[%s178 + $0x458] sm:$0xff]
      %v329 = vld [vmem:[%s178 + $0x460] sm:$0xff]
      %v330 = vld [vmem:[%s178 + $0x468] sm:$0xff]
      %v331 = vld [vmem:[%s178 + $0x470] sm:$0xff]
      %v332 = vld [vmem:[%s178 + $0x478] sm:$0xff]
      %v333 = vld [vmem:[%s178 + $0x480] sm:$0xff]
      %v334 = vld [vmem:[%s178 + $0x488] sm:$0xff]
      %v335 = vld [vmem:[%s178 + $0x490] sm:$0xff]
      %v336 = vld [vmem:[%s178 + $0x498] sm:$0xff]
      %v337 = vld [vmem:[%s178 + $0x4a0] sm:$0xff]
      %v338 = vld [vmem:[%s178 + $0x4a8] sm:$0xff]
      %v339 = vld [vmem:[%s178 + $0x4b0] sm:$0xff]
      %v340 = vld [vmem:[%s178 + $0x4b8] sm:$0xff]
      %v341 = vld [vmem:[%s178 + $0x4c0] sm:$0xff]
      %v342 = vld [vmem:[%s178 + $0x4c8] sm:$0xff]
      %v343 = vld [vmem:[%s178 + $0x4d0] sm:$0xff]
      %v344 = vld [vmem:[%s178 + $0x4d8] sm:$0xff]
      %v345 = vld [vmem:[%s178 + $0x4e0] sm:$0xff]
      %v346 = vld [vmem:[%s178 + $0x4e8] sm:$0xff]
      %v347 = vld [vmem:[%s178 + $0x4f0] sm:$0xff]
      %v348 = vld [vmem:[%s178 + $0x4f8] sm:$0xff]
      %v349 = vld [vmem:[%s178 + $0x500] sm:$0xff]
      %v350 = vld [vmem:[%s178 + $0x508] sm:$0xff]
      %v351 = vld [vmem:[%s178 + $0x510] sm:$0xff]
      %v352 = vld [vmem:[%s178 + $0x518] sm:$0xff]
      %v353 = vld [vmem:[%s178 + $0x520] sm:$0xff]
      %v354 = vld [vmem:[%s178 + $0x528] sm:$0xff]
      %v355 = vld [vmem:[%s178 + $0x530] sm:$0xff]
      %v356 = vld [vmem:[%s178 + $0x538] sm:$0xff]
      %v357 = vld [vmem:[%s178 + $0x540] sm:$0xff]
      %v358 = vld [vmem:[%s178 + $0x548] sm:$0xff]
      %v359 = vld [vmem:[%s178 + $0x550] sm:$0xff]
      %v360 = vld [vmem:[%s178 + $0x558] sm:$0xff]
      %v361 = vld [vmem:[%s178 + $0x560] sm:$0xff]
      %v362 = vld [vmem:[%s178 + $0x568] sm:$0xff]
      %v363 = vld [vmem:[%s178 + $0x570] sm:$0xff]
      %v364 = vld [vmem:[%s178 + $0x578] sm:$0xff]
      %v365 = vld [vmem:[%s178 + $0x580] sm:$0xff]
      %v366 = vld [vmem:[%s178 + $0x588] sm:$0xff]
      %v367 = vld [vmem:[%s178 + $0x590] sm:$0xff]
      %v368 = vld [vmem:[%s178 + $0x598] sm:$0xff]
      %v369 = vld [vmem:[%s178 + $0x5a0] sm:$0xff]
      %v370 = vld [vmem:[%s178 + $0x5a8] sm:$0xff]
      %v371 = vld [vmem:[%s178 + $0x5b0] sm:$0xff]
      %v372 = vld [vmem:[%s178 + $0x5b8] sm:$0xff]
      %v373 = vld [vmem:[%s178 + $0x5c0] sm:$0xff]
      %v374 = vld [vmem:[%s178 + $0x5c8] sm:$0xff]
      %v375 = vld [vmem:[%s178 + $0x5d0] sm:$0xff]
      %v376 = vld [vmem:[%s178 + $0x5d8] sm:$0xff]
      %v377 = vld [vmem:[%s178 + $0x5e0] sm:$0xff]
      %v378 = vld [vmem:[%s178 + $0x5e8] sm:$0xff]
      %v379 = vld [vmem:[%s178 + $0x5f0] sm:$0xff]
      %v380 = vld [vmem:[%s178 + $0x5f8] sm:$0xff]
      %v381 = vld [vmem:[%s178 + $0x600] sm:$0xff]
      %v382 = vld [vmem:[%s178 + $0x608] sm:$0xff]
      %v383 = vld [vmem:[%s178 + $0x610] sm:$0xff]
      %v384 = vld [vmem:[%s178 + $0x618] sm:$0xff]
      %v385 = vld [vmem:[%s178 + $0x620] sm:$0xff]
      %v386 = vld [vmem:[%s178 + $0x628] sm:$0xff]
      %v387 = vld [vmem:[%s178 + $0x630] sm:$0xff]
      %v388 = vld [vmem:[%s178 + $0x638] sm:$0xff]
      %v389 = vld [vmem:[%s178 + $0x640] sm:$0xff]
      %v390 = vld [vmem:[%s178 + $0x648] sm:$0xff]
      %v391 = vld [vmem:[%s178 + $0x650] sm:$0xff]
      %v392 = vld [vmem:[%s178 + $0x658] sm:$0xff]
      %v393 = vld [vmem:[%s178 + $0x660] sm:$0xff]
      %v394 = vld [vmem:[%s178 + $0x668] sm:$0xff]
      %v395 = vld [vmem:[%s178 + $0x670] sm:$0xff]
      %v396 = vld [vmem:[%s178 + $0x678] sm:$0xff]
      %v397 = vld [vmem:[%s178 + $0x680] sm:$0xff]
      %v398 = vld [vmem:[%s178 + $0x688] sm:$0xff]
      %v399 = vld [vmem:[%s178 + $0x690] sm:$0xff]
      %v400 = vld [vmem:[%s178 + $0x698] sm:$0xff]
      %v401 = vld [vmem:[%s178 + $0x6a0] sm:$0xff]
      %v402 = vld [vmem:[%s178 + $0x6a8] sm:$0xff]
      %v403 = vld [vmem:[%s178 + $0x6b0] sm:$0xff]
      %v404 = vld [vmem:[%s178 + $0x6b8] sm:$0xff]
      %v405 = vld [vmem:[%s178 + $0x6c0] sm:$0xff]
      %v406 = vld [vmem:[%s178 + $0x6c8] sm:$0xff]
      %v407 = vld [vmem:[%s178 + $0x6d0] sm:$0xff]
      %v408 = vld [vmem:[%s178 + $0x6d8] sm:$0xff]
      %v409 = vld [vmem:[%s178 + $0x6e0] sm:$0xff]
      %v410 = vld [vmem:[%s178 + $0x6e8] sm:$0xff]
      %v411 = vld [vmem:[%s178 + $0x6f0] sm:$0xff]
      %v412 = vld [vmem:[%s178 + $0x6f8] sm:$0xff]
      %v413 = vld [vmem:[%s178 + $0x700] sm:$0xff]
      %v414 = vld [vmem:[%s178 + $0x708] sm:$0xff]
      %v415 = vld [vmem:[%s178 + $0x710] sm:$0xff]
      %v416 = vld [vmem:[%s178 + $0x718] sm:$0xff]
      %v417 = vld [vmem:[%s178 + $0x720] sm:$0xff]
      %v418 = vld [vmem:[%s178 + $0x728] sm:$0xff]
      %v419 = vld [vmem:[%s178 + $0x730] sm:$0xff]
      %v420 = vld [vmem:[%s178 + $0x738] sm:$0xff]
      %v421 = vld [vmem:[%s178 + $0x740] sm:$0xff]
      %v422 = vld [vmem:[%s178 + $0x748] sm:$0xff]
      %v423 = vld [vmem:[%s178 + $0x750] sm:$0xff]
      %v424 = vld [vmem:[%s178 + $0x758] sm:$0xff]
      %v425 = vld [vmem:[%s178 + $0x760] sm:$0xff]
      %v426 = vld [vmem:[%s178 + $0x768] sm:$0xff]
      %v427 = vld [vmem:[%s178 + $0x770] sm:$0xff]
      %v428 = vld [vmem:[%s178 + $0x778] sm:$0xff]
      %v429 = vld [vmem:[%s178 + $0x780] sm:$0xff]
      %v430 = vld [vmem:[%s178 + $0x788] sm:$0xff]
      %v431 = vld [vmem:[%s178 + $0x790] sm:$0xff]
      %v432 = vld [vmem:[%s178 + $0x798] sm:$0xff]
      %v433 = vld [vmem:[%s178 + $0x7a0] sm:$0xff]
      %v434 = vld [vmem:[%s178 + $0x7a8] sm:$0xff]
      %v435 = vld [vmem:[%s178 + $0x7b0] sm:$0xff]
      %v436 = vld [vmem:[%s178 + $0x7b8] sm:$0xff]
      %v437 = vld [vmem:[%s178 + $0x7c0] sm:$0xff]
      %v438 = vld [vmem:[%s178 + $0x7c8] sm:$0xff]
      %v439 = vld [vmem:[%s178 + $0x7d0] sm:$0xff]
      %v440 = vld [vmem:[%s178 + $0x7d8] sm:$0xff]
      %v441 = vld [vmem:[%s178 + $0x7e0] sm:$0xff]
      %v442 = vld [vmem:[%s178 + $0x7e8] sm:$0xff]
      %v443 = vld [vmem:[%s178 + $0x7f0] sm:$0xff]
      %v444 = vld [vmem:[%s178 + $0x7f8] sm:$0xff]
      %v447 = vunpack.c.l.s4 1966171168
      %v448 = vunpack.c.0.s8 %v447
      %v449 = vlaneseq
      %v450 = vshrl.u32 %v449, 7
      %v451 = vsub.s32 %v448, %v450
      %v452 = vrot.slane %v188, %v451
      %v453 = vcombine.high %v452, %v452
      %v455 = vunpack.c.l.s4 1966171168
      %v456 = vunpack.c.0.s8 %v455
      %v457 = vlaneseq
      %v458 = vshrl.u32 %v457, 7
      %v459 = vsub.s32 %v456, %v458
      %v460 = vrot.slane %v452, %v459
      %v462 = vunpack.c.l.s4 1966171168
      %v463 = vunpack.c.0.s8 %v462
      %v464 = vlaneseq
      %v465 = vshrl.u32 %v464, 7
      %v466 = vsub.s32 %v463, %v465
      %v467 = vrot.slane %v453, %v466
      %v468 = vcombine.high %v460, %v460
      %v469 = vcombine.high %v467, %v467
      %v730 = vunpack.c.l.b16 %v189
      %v731 = vunpack.c.h.b16 %v189
      %v732 = vunpack.c.l.b16 %v190
      %v733 = vunpack.c.h.b16 %v190
      %v734 = vunpack.c.l.b16 %v191
      %v735 = vunpack.c.h.b16 %v191
      %v736 = vunpack.c.l.b16 %v192
      %v737 = vunpack.c.h.b16 %v192
      %v738 = vunpack.c.l.b16 %v193
      %v739 = vunpack.c.h.b16 %v193
      %v740 = vunpack.c.l.b16 %v194
      %v741 = vunpack.c.h.b16 %v194
      %v742 = vunpack.c.l.b16 %v195
      %v743 = vunpack.c.h.b16 %v195
      %v744 = vunpack.c.l.b16 %v196
      %v745 = vunpack.c.h.b16 %v196
      %v746 = vunpack.c.l.b16 %v197
      %v747 = vunpack.c.h.b16 %v197
      %v748 = vunpack.c.l.b16 %v198
      %v749 = vunpack.c.h.b16 %v198
      %v750 = vunpack.c.l.b16 %v199
      %v751 = vunpack.c.h.b16 %v199
      %v752 = vunpack.c.l.b16 %v200
      %v753 = vunpack.c.h.b16 %v200
      %v754 = vunpack.c.l.b16 %v201
      %v755 = vunpack.c.h.b16 %v201
      %v756 = vunpack.c.l.b16 %v202
      %v757 = vunpack.c.h.b16 %v202
      %v758 = vunpack.c.l.b16 %v203
      %v759 = vunpack.c.h.b16 %v203
      %v760 = vunpack.c.l.b16 %v204
      %v761 = vunpack.c.h.b16 %v204
      %v762 = vunpack.c.l.b16 %v205
      %v763 = vunpack.c.h.b16 %v205
      %v764 = vunpack.c.l.b16 %v206
      %v765 = vunpack.c.h.b16 %v206
      %v766 = vunpack.c.l.b16 %v207
      %v767 = vunpack.c.h.b16 %v207
      %v768 = vunpack.c.l.b16 %v208
      %v769 = vunpack.c.h.b16 %v208
      %v770 = vunpack.c.l.b16 %v209
      %v771 = vunpack.c.h.b16 %v209
      %v772 = vunpack.c.l.b16 %v210
      %v773 = vunpack.c.h.b16 %v210
      %v774 = vunpack.c.l.b16 %v211
      %v775 = vunpack.c.h.b16 %v211
      %v776 = vunpack.c.l.b16 %v212
      %v777 = vunpack.c.h.b16 %v212
      %v778 = vunpack.c.l.b16 %v213
      %v779 = vunpack.c.h.b16 %v213
      %v780 = vunpack.c.l.b16 %v214
      %v781 = vunpack.c.h.b16 %v214
      %v782 = vunpack.c.l.b16 %v215
      %v783 = vunpack.c.h.b16 %v215
      %v784 = vunpack.c.l.b16 %v216
      %v785 = vunpack.c.h.b16 %v216
      %v786 = vunpack.c.l.b16 %v217
      %v787 = vunpack.c.h.b16 %v217
      %v788 = vunpack.c.l.b16 %v218
      %v789 = vunpack.c.h.b16 %v218
      %v790 = vunpack.c.l.b16 %v219
      %v791 = vunpack.c.h.b16 %v219
      %v792 = vunpack.c.l.b16 %v220
      %v793 = vunpack.c.h.b16 %v220
      %v794 = vunpack.c.l.b16 %v221
      %v795 = vunpack.c.h.b16 %v221
      %v796 = vunpack.c.l.b16 %v222
      %v797 = vunpack.c.h.b16 %v222
      %v798 = vunpack.c.l.b16 %v223
      %v799 = vunpack.c.h.b16 %v223
      %v800 = vunpack.c.l.b16 %v224
      %v801 = vunpack.c.h.b16 %v224
      %v802 = vunpack.c.l.b16 %v225
      %v803 = vunpack.c.h.b16 %v225
      %v804 = vunpack.c.l.b16 %v226
      %v805 = vunpack.c.h.b16 %v226
      %v806 = vunpack.c.l.b16 %v227
      %v807 = vunpack.c.h.b16 %v227
      %v808 = vunpack.c.l.b16 %v228
      %v809 = vunpack.c.h.b16 %v228
      %v810 = vunpack.c.l.b16 %v229
      %v811 = vunpack.c.h.b16 %v229
      %v812 = vunpack.c.l.b16 %v230
      %v813 = vunpack.c.h.b16 %v230
      %v814 = vunpack.c.l.b16 %v231
      %v815 = vunpack.c.h.b16 %v231
      %v816 = vunpack.c.l.b16 %v232
      %v817 = vunpack.c.h.b16 %v232
      %v818 = vunpack.c.l.b16 %v233
      %v819 = vunpack.c.h.b16 %v233
      %v820 = vunpack.c.l.b16 %v234
      %v821 = vunpack.c.h.b16 %v234
      %v822 = vunpack.c.l.b16 %v235
      %v823 = vunpack.c.h.b16 %v235
      %v824 = vunpack.c.l.b16 %v236
      %v825 = vunpack.c.h.b16 %v236
      %v826 = vunpack.c.l.b16 %v237
      %v827 = vunpack.c.h.b16 %v237
      %v828 = vunpack.c.l.b16 %v238
      %v829 = vunpack.c.h.b16 %v238
      %v830 = vunpack.c.l.b16 %v239
      %v831 = vunpack.c.h.b16 %v239
      %v832 = vunpack.c.l.b16 %v240
      %v833 = vunpack.c.h.b16 %v240
      %v834 = vunpack.c.l.b16 %v241
      %v835 = vunpack.c.h.b16 %v241
      %v836 = vunpack.c.l.b16 %v242
      %v837 = vunpack.c.h.b16 %v242
      %v838 = vunpack.c.l.b16 %v243
      %v839 = vunpack.c.h.b16 %v243
      %v840 = vunpack.c.l.b16 %v244
      %v841 = vunpack.c.h.b16 %v244
      %v842 = vunpack.c.l.b16 %v245
      %v843 = vunpack.c.h.b16 %v245
      %v844 = vunpack.c.l.b16 %v246
      %v845 = vunpack.c.h.b16 %v246
      %v846 = vunpack.c.l.b16 %v247
      %v847 = vunpack.c.h.b16 %v247
      %v848 = vunpack.c.l.b16 %v248
      %v849 = vunpack.c.h.b16 %v248
      %v850 = vunpack.c.l.b16 %v249
      %v851 = vunpack.c.h.b16 %v249
      %v852 = vunpack.c.l.b16 %v250
      %v853 = vunpack.c.h.b16 %v250
      %v854 = vunpack.c.l.b16 %v251
      %v855 = vunpack.c.h.b16 %v251
      %v856 = vunpack.c.l.b16 %v252
      %v857 = vunpack.c.h.b16 %v252
      %v858 = vunpack.c.l.b16 %v253
      %v859 = vunpack.c.h.b16 %v253
      %v860 = vunpack.c.l.b16 %v254
      %v861 = vunpack.c.h.b16 %v254
      %v862 = vunpack.c.l.b16 %v255
      %v863 = vunpack.c.h.b16 %v255
      %v864 = vunpack.c.l.b16 %v256
      %v865 = vunpack.c.h.b16 %v256
      %v866 = vunpack.c.l.b16 %v257
      %v867 = vunpack.c.h.b16 %v257
      %v868 = vunpack.c.l.b16 %v258
      %v869 = vunpack.c.h.b16 %v258
      %v870 = vunpack.c.l.b16 %v259
      %v871 = vunpack.c.h.b16 %v259
      %v872 = vunpack.c.l.b16 %v260
      %v873 = vunpack.c.h.b16 %v260
      %v874 = vunpack.c.l.b16 %v261
      %v875 = vunpack.c.h.b16 %v261
      %v876 = vunpack.c.l.b16 %v262
      %v877 = vunpack.c.h.b16 %v262
      %v878 = vunpack.c.l.b16 %v263
      %v879 = vunpack.c.h.b16 %v263
      %v880 = vunpack.c.l.b16 %v264
      %v881 = vunpack.c.h.b16 %v264
      %v882 = vunpack.c.l.b16 %v265
      %v883 = vunpack.c.h.b16 %v265
      %v884 = vunpack.c.l.b16 %v266
      %v885 = vunpack.c.h.b16 %v266
      %v886 = vunpack.c.l.b16 %v267
      %v887 = vunpack.c.h.b16 %v267
      %v888 = vunpack.c.l.b16 %v268
      %v889 = vunpack.c.h.b16 %v268
      %v890 = vunpack.c.l.b16 %v269
      %v891 = vunpack.c.h.b16 %v269
      %v892 = vunpack.c.l.b16 %v270
      %v893 = vunpack.c.h.b16 %v270
      %v894 = vunpack.c.l.b16 %v271
      %v895 = vunpack.c.h.b16 %v271
      %v896 = vunpack.c.l.b16 %v272
      %v897 = vunpack.c.h.b16 %v272
      %v898 = vunpack.c.l.b16 %v273
      %v899 = vunpack.c.h.b16 %v273
      %v900 = vunpack.c.l.b16 %v274
      %v901 = vunpack.c.h.b16 %v274
      %v902 = vunpack.c.l.b16 %v275
      %v903 = vunpack.c.h.b16 %v275
      %v904 = vunpack.c.l.b16 %v276
      %v905 = vunpack.c.h.b16 %v276
      %v906 = vunpack.c.l.b16 %v277
      %v907 = vunpack.c.h.b16 %v277
      %v908 = vunpack.c.l.b16 %v278
      %v909 = vunpack.c.h.b16 %v278
      %v910 = vunpack.c.l.b16 %v279
      %v911 = vunpack.c.h.b16 %v279
      %v912 = vunpack.c.l.b16 %v280
      %v913 = vunpack.c.h.b16 %v280
      %v914 = vunpack.c.l.b16 %v281
      %v915 = vunpack.c.h.b16 %v281
      %v916 = vunpack.c.l.b16 %v282
      %v917 = vunpack.c.h.b16 %v282
      %v918 = vunpack.c.l.b16 %v283
      %v919 = vunpack.c.h.b16 %v283
      %v920 = vunpack.c.l.b16 %v284
      %v921 = vunpack.c.h.b16 %v284
      %v922 = vunpack.c.l.b16 %v285
      %v923 = vunpack.c.h.b16 %v285
      %v924 = vunpack.c.l.b16 %v286
      %v925 = vunpack.c.h.b16 %v286
      %v926 = vunpack.c.l.b16 %v287
      %v927 = vunpack.c.h.b16 %v287
      %v928 = vunpack.c.l.b16 %v288
      %v929 = vunpack.c.h.b16 %v288
      %v930 = vunpack.c.l.b16 %v289
      %v931 = vunpack.c.h.b16 %v289
      %v932 = vunpack.c.l.b16 %v290
      %v933 = vunpack.c.h.b16 %v290
      %v934 = vunpack.c.l.b16 %v291
      %v935 = vunpack.c.h.b16 %v291
      %v936 = vunpack.c.l.b16 %v292
      %v937 = vunpack.c.h.b16 %v292
      %v938 = vunpack.c.l.b16 %v293
      %v939 = vunpack.c.h.b16 %v293
      %v940 = vunpack.c.l.b16 %v294
      %v941 = vunpack.c.h.b16 %v294
      %v942 = vunpack.c.l.b16 %v295
      %v943 = vunpack.c.h.b16 %v295
      %v944 = vunpack.c.l.b16 %v296
      %v945 = vunpack.c.h.b16 %v296
      %v946 = vunpack.c.l.b16 %v297
      %v947 = vunpack.c.h.b16 %v297
      %v948 = vunpack.c.l.b16 %v298
      %v949 = vunpack.c.h.b16 %v298
      %v950 = vunpack.c.l.b16 %v299
      %v951 = vunpack.c.h.b16 %v299
      %v952 = vunpack.c.l.b16 %v300
      %v953 = vunpack.c.h.b16 %v300
      %v954 = vunpack.c.l.b16 %v301
      %v955 = vunpack.c.h.b16 %v301
      %v956 = vunpack.c.l.b16 %v302
      %v957 = vunpack.c.h.b16 %v302
      %v958 = vunpack.c.l.b16 %v303
      %v959 = vunpack.c.h.b16 %v303
      %v960 = vunpack.c.l.b16 %v304
      %v961 = vunpack.c.h.b16 %v304
      %v962 = vunpack.c.l.b16 %v305
      %v963 = vunpack.c.h.b16 %v305
      %v964 = vunpack.c.l.b16 %v306
      %v965 = vunpack.c.h.b16 %v306
      %v966 = vunpack.c.l.b16 %v307
      %v967 = vunpack.c.h.b16 %v307
      %v968 = vunpack.c.l.b16 %v308
      %v969 = vunpack.c.h.b16 %v308
      %v970 = vunpack.c.l.b16 %v309
      %v971 = vunpack.c.h.b16 %v309
      %v972 = vunpack.c.l.b16 %v310
      %v973 = vunpack.c.h.b16 %v310
      %v974 = vunpack.c.l.b16 %v311
      %v975 = vunpack.c.h.b16 %v311
      %v976 = vunpack.c.l.b16 %v312
      %v977 = vunpack.c.h.b16 %v312
      %v978 = vunpack.c.l.b16 %v313
      %v979 = vunpack.c.h.b16 %v313
      %v980 = vunpack.c.l.b16 %v314
      %v981 = vunpack.c.h.b16 %v314
      %v982 = vunpack.c.l.b16 %v315
      %v983 = vunpack.c.h.b16 %v315
      %v984 = vunpack.c.l.b16 %v316
      %v985 = vunpack.c.h.b16 %v316
      %v986 = vunpack.c.l.b16 %v317
      %v987 = vunpack.c.h.b16 %v317
      %v988 = vunpack.c.l.b16 %v318
      %v989 = vunpack.c.h.b16 %v318
      %v990 = vunpack.c.l.b16 %v319
      %v991 = vunpack.c.h.b16 %v319
      %v992 = vunpack.c.l.b16 %v320
      %v993 = vunpack.c.h.b16 %v320
      %v994 = vunpack.c.l.b16 %v321
      %v995 = vunpack.c.h.b16 %v321
      %v996 = vunpack.c.l.b16 %v322
      %v997 = vunpack.c.h.b16 %v322
      %v998 = vunpack.c.l.b16 %v323
      %v999 = vunpack.c.h.b16 %v323
      %v1000 = vunpack.c.l.b16 %v324
      %v1001 = vunpack.c.h.b16 %v324
      %v1002 = vunpack.c.l.b16 %v325
      %v1003 = vunpack.c.h.b16 %v325
      %v1004 = vunpack.c.l.b16 %v326
      %v1005 = vunpack.c.h.b16 %v326
      %v1006 = vunpack.c.l.b16 %v327
      %v1007 = vunpack.c.h.b16 %v327
      %v1008 = vunpack.c.l.b16 %v328
      %v1009 = vunpack.c.h.b16 %v328
      %v1010 = vunpack.c.l.b16 %v329
      %v1011 = vunpack.c.h.b16 %v329
      %v1012 = vunpack.c.l.b16 %v330
      %v1013 = vunpack.c.h.b16 %v330
      %v1014 = vunpack.c.l.b16 %v331
      %v1015 = vunpack.c.h.b16 %v331
      %v1016 = vunpack.c.l.b16 %v332
      %v1017 = vunpack.c.h.b16 %v332
      %v1018 = vunpack.c.l.b16 %v333
      %v1019 = vunpack.c.h.b16 %v333
      %v1020 = vunpack.c.l.b16 %v334
      %v1021 = vunpack.c.h.b16 %v334
      %v1022 = vunpack.c.l.b16 %v335
      %v1023 = vunpack.c.h.b16 %v335
      %v1024 = vunpack.c.l.b16 %v336
      %v1025 = vunpack.c.h.b16 %v336
      %v1026 = vunpack.c.l.b16 %v337
      %v1027 = vunpack.c.h.b16 %v337
      %v1028 = vunpack.c.l.b16 %v338
      %v1029 = vunpack.c.h.b16 %v338
      %v1030 = vunpack.c.l.b16 %v339
      %v1031 = vunpack.c.h.b16 %v339
      %v1032 = vunpack.c.l.b16 %v340
      %v1033 = vunpack.c.h.b16 %v340
      %v1034 = vunpack.c.l.b16 %v341
      %v1035 = vunpack.c.h.b16 %v341
      %v1036 = vunpack.c.l.b16 %v342
      %v1037 = vunpack.c.h.b16 %v342
      %v1038 = vunpack.c.l.b16 %v343
      %v1039 = vunpack.c.h.b16 %v343
      %v1040 = vunpack.c.l.b16 %v344
      %v1041 = vunpack.c.h.b16 %v344
      %v1042 = vunpack.c.l.b16 %v345
      %v1043 = vunpack.c.h.b16 %v345
      %v1044 = vunpack.c.l.b16 %v346
      %v1045 = vunpack.c.h.b16 %v346
      %v1046 = vunpack.c.l.b16 %v347
      %v1047 = vunpack.c.h.b16 %v347
      %v1048 = vunpack.c.l.b16 %v348
      %v1049 = vunpack.c.h.b16 %v348
      %v1050 = vunpack.c.l.b16 %v349
      %v1051 = vunpack.c.h.b16 %v349
      %v1052 = vunpack.c.l.b16 %v350
      %v1053 = vunpack.c.h.b16 %v350
      %v1054 = vunpack.c.l.b16 %v351
      %v1055 = vunpack.c.h.b16 %v351
      %v1056 = vunpack.c.l.b16 %v352
      %v1057 = vunpack.c.h.b16 %v352
      %v1058 = vunpack.c.l.b16 %v353
      %v1059 = vunpack.c.h.b16 %v353
      %v1060 = vunpack.c.l.b16 %v354
      %v1061 = vunpack.c.h.b16 %v354
      %v1062 = vunpack.c.l.b16 %v355
      %v1063 = vunpack.c.h.b16 %v355
      %v1064 = vunpack.c.l.b16 %v356
      %v1065 = vunpack.c.h.b16 %v356
      %v1066 = vunpack.c.l.b16 %v357
      %v1067 = vunpack.c.h.b16 %v357
      %v1068 = vunpack.c.l.b16 %v358
      %v1069 = vunpack.c.h.b16 %v358
      %v1070 = vunpack.c.l.b16 %v359
      %v1071 = vunpack.c.h.b16 %v359
      %v1072 = vunpack.c.l.b16 %v360
      %v1073 = vunpack.c.h.b16 %v360
      %v1074 = vunpack.c.l.b16 %v361
      %v1075 = vunpack.c.h.b16 %v361
      %v1076 = vunpack.c.l.b16 %v362
      %v1077 = vunpack.c.h.b16 %v362
      %v1078 = vunpack.c.l.b16 %v363
      %v1079 = vunpack.c.h.b16 %v363
      %v1080 = vunpack.c.l.b16 %v364
      %v1081 = vunpack.c.h.b16 %v364
      %v1082 = vunpack.c.l.b16 %v365
      %v1083 = vunpack.c.h.b16 %v365
      %v1084 = vunpack.c.l.b16 %v366
      %v1085 = vunpack.c.h.b16 %v366
      %v1086 = vunpack.c.l.b16 %v367
      %v1087 = vunpack.c.h.b16 %v367
      %v1088 = vunpack.c.l.b16 %v368
      %v1089 = vunpack.c.h.b16 %v368
      %v1090 = vunpack.c.l.b16 %v369
      %v1091 = vunpack.c.h.b16 %v369
      %v1092 = vunpack.c.l.b16 %v370
      %v1093 = vunpack.c.h.b16 %v370
      %v1094 = vunpack.c.l.b16 %v371
      %v1095 = vunpack.c.h.b16 %v371
      %v1096 = vunpack.c.l.b16 %v372
      %v1097 = vunpack.c.h.b16 %v372
      %v1098 = vunpack.c.l.b16 %v373
      %v1099 = vunpack.c.h.b16 %v373
      %v1100 = vunpack.c.l.b16 %v374
      %v1101 = vunpack.c.h.b16 %v374
      %v1102 = vunpack.c.l.b16 %v375
      %v1103 = vunpack.c.h.b16 %v375
      %v1104 = vunpack.c.l.b16 %v376
      %v1105 = vunpack.c.h.b16 %v376
      %v1106 = vunpack.c.l.b16 %v377
      %v1107 = vunpack.c.h.b16 %v377
      %v1108 = vunpack.c.l.b16 %v378
      %v1109 = vunpack.c.h.b16 %v378
      %v1110 = vunpack.c.l.b16 %v379
      %v1111 = vunpack.c.h.b16 %v379
      %v1112 = vunpack.c.l.b16 %v380
      %v1113 = vunpack.c.h.b16 %v380
      %v1114 = vunpack.c.l.b16 %v381
      %v1115 = vunpack.c.h.b16 %v381
      %v1116 = vunpack.c.l.b16 %v382
      %v1117 = vunpack.c.h.b16 %v382
      %v1118 = vunpack.c.l.b16 %v383
      %v1119 = vunpack.c.h.b16 %v383
      %v1120 = vunpack.c.l.b16 %v384
      %v1121 = vunpack.c.h.b16 %v384
      %v1122 = vunpack.c.l.b16 %v385
      %v1123 = vunpack.c.h.b16 %v385
      %v1124 = vunpack.c.l.b16 %v386
      %v1125 = vunpack.c.h.b16 %v386
      %v1126 = vunpack.c.l.b16 %v387
      %v1127 = vunpack.c.h.b16 %v387
      %v1128 = vunpack.c.l.b16 %v388
      %v1129 = vunpack.c.h.b16 %v388
      %v1130 = vunpack.c.l.b16 %v389
      %v1131 = vunpack.c.h.b16 %v389
      %v1132 = vunpack.c.l.b16 %v390
      %v1133 = vunpack.c.h.b16 %v390
      %v1134 = vunpack.c.l.b16 %v391
      %v1135 = vunpack.c.h.b16 %v391
      %v1136 = vunpack.c.l.b16 %v392
      %v1137 = vunpack.c.h.b16 %v392
      %v1138 = vunpack.c.l.b16 %v393
      %v1139 = vunpack.c.h.b16 %v393
      %v1140 = vunpack.c.l.b16 %v394
      %v1141 = vunpack.c.h.b16 %v394
      %v1142 = vunpack.c.l.b16 %v395
      %v1143 = vunpack.c.h.b16 %v395
      %v1144 = vunpack.c.l.b16 %v396
      %v1145 = vunpack.c.h.b16 %v396
      %v1146 = vunpack.c.l.b16 %v397
      %v1147 = vunpack.c.h.b16 %v397
      %v1148 = vunpack.c.l.b16 %v398
      %v1149 = vunpack.c.h.b16 %v398
      %v1150 = vunpack.c.l.b16 %v399
      %v1151 = vunpack.c.h.b16 %v399
      %v1152 = vunpack.c.l.b16 %v400
      %v1153 = vunpack.c.h.b16 %v400
      %v1154 = vunpack.c.l.b16 %v401
      %v1155 = vunpack.c.h.b16 %v401
      %v1156 = vunpack.c.l.b16 %v402
      %v1157 = vunpack.c.h.b16 %v402
      %v1158 = vunpack.c.l.b16 %v403
      %v1159 = vunpack.c.h.b16 %v403
      %v1160 = vunpack.c.l.b16 %v404
      %v1161 = vunpack.c.h.b16 %v404
      %v1162 = vunpack.c.l.b16 %v405
      %v1163 = vunpack.c.h.b16 %v405
      %v1164 = vunpack.c.l.b16 %v406
      %v1165 = vunpack.c.h.b16 %v406
      %v1166 = vunpack.c.l.b16 %v407
      %v1167 = vunpack.c.h.b16 %v407
      %v1168 = vunpack.c.l.b16 %v408
      %v1169 = vunpack.c.h.b16 %v408
      %v1170 = vunpack.c.l.b16 %v409
      %v1171 = vunpack.c.h.b16 %v409
      %v1172 = vunpack.c.l.b16 %v410
      %v1173 = vunpack.c.h.b16 %v410
      %v1174 = vunpack.c.l.b16 %v411
      %v1175 = vunpack.c.h.b16 %v411
      %v1176 = vunpack.c.l.b16 %v412
      %v1177 = vunpack.c.h.b16 %v412
      %v1178 = vunpack.c.l.b16 %v413
      %v1179 = vunpack.c.h.b16 %v413
      %v1180 = vunpack.c.l.b16 %v414
      %v1181 = vunpack.c.h.b16 %v414
      %v1182 = vunpack.c.l.b16 %v415
      %v1183 = vunpack.c.h.b16 %v415
      %v1184 = vunpack.c.l.b16 %v416
      %v1185 = vunpack.c.h.b16 %v416
      %v1186 = vunpack.c.l.b16 %v417
      %v1187 = vunpack.c.h.b16 %v417
      %v1188 = vunpack.c.l.b16 %v418
      %v1189 = vunpack.c.h.b16 %v418
      %v1190 = vunpack.c.l.b16 %v419
      %v1191 = vunpack.c.h.b16 %v419
      %v1192 = vunpack.c.l.b16 %v420
      %v1193 = vunpack.c.h.b16 %v420
      %v1194 = vunpack.c.l.b16 %v421
      %v1195 = vunpack.c.h.b16 %v421
      %v1196 = vunpack.c.l.b16 %v422
      %v1197 = vunpack.c.h.b16 %v422
      %v1198 = vunpack.c.l.b16 %v423
      %v1199 = vunpack.c.h.b16 %v423
      %v1200 = vunpack.c.l.b16 %v424
      %v1201 = vunpack.c.h.b16 %v424
      %v1202 = vunpack.c.l.b16 %v425
      %v1203 = vunpack.c.h.b16 %v425
      %v1204 = vunpack.c.l.b16 %v426
      %v1205 = vunpack.c.h.b16 %v426
      %v1206 = vunpack.c.l.b16 %v427
      %v1207 = vunpack.c.h.b16 %v427
      %v1208 = vunpack.c.l.b16 %v428
      %v1209 = vunpack.c.h.b16 %v428
      %v1210 = vunpack.c.l.b16 %v429
      %v1211 = vunpack.c.h.b16 %v429
      %v1212 = vunpack.c.l.b16 %v430
      %v1213 = vunpack.c.h.b16 %v430
      %v1214 = vunpack.c.l.b16 %v431
      %v1215 = vunpack.c.h.b16 %v431
      %v1216 = vunpack.c.l.b16 %v432
      %v1217 = vunpack.c.h.b16 %v432
      %v1218 = vunpack.c.l.b16 %v433
      %v1219 = vunpack.c.h.b16 %v433
      %v1220 = vunpack.c.l.b16 %v434
      %v1221 = vunpack.c.h.b16 %v434
      %v1222 = vunpack.c.l.b16 %v435
      %v1223 = vunpack.c.h.b16 %v435
      %v1224 = vunpack.c.l.b16 %v436
      %v1225 = vunpack.c.h.b16 %v436
      %v1226 = vunpack.c.l.b16 %v437
      %v1227 = vunpack.c.h.b16 %v437
      %v1228 = vunpack.c.l.b16 %v438
      %v1229 = vunpack.c.h.b16 %v438
      %v1230 = vunpack.c.l.b16 %v439
      %v1231 = vunpack.c.h.b16 %v439
      %v1232 = vunpack.c.l.b16 %v440
      %v1233 = vunpack.c.h.b16 %v440
      %v1234 = vunpack.c.l.b16 %v441
      %v1235 = vunpack.c.h.b16 %v441
      %v1236 = vunpack.c.l.b16 %v442
      %v1237 = vunpack.c.h.b16 %v442
      %v1238 = vunpack.c.l.b16 %v443
      %v1239 = vunpack.c.h.b16 %v443
      %v1240 = vunpack.c.l.b16 %v444
      %v1241 = vunpack.c.h.b16 %v444
      %v1242 = vpack.c.b16 %v738, %v730
      %v1243 = vpack.c.b16 %v739, %v731
      %v1244 = vpack.c.b16 %v740, %v732
      %v1245 = vpack.c.b16 %v741, %v733
      %v1246 = vpack.c.b16 %v742, %v734
      %v1247 = vpack.c.b16 %v743, %v735
      %v1248 = vpack.c.b16 %v744, %v736
      %v1249 = vpack.c.b16 %v745, %v737
      %v1250 = vpack.c.b16 %v754, %v746
      %v1251 = vpack.c.b16 %v755, %v747
      %v1252 = vpack.c.b16 %v756, %v748
      %v1253 = vpack.c.b16 %v757, %v749
      %v1254 = vpack.c.b16 %v758, %v750
      %v1255 = vpack.c.b16 %v759, %v751
      %v1256 = vpack.c.b16 %v760, %v752
      %v1257 = vpack.c.b16 %v761, %v753
      %v1258 = vpack.c.b16 %v770, %v762
      %v1259 = vpack.c.b16 %v771, %v763
      %v1260 = vpack.c.b16 %v772, %v764
      %v1261 = vpack.c.b16 %v773, %v765
      %v1262 = vpack.c.b16 %v774, %v766
      %v1263 = vpack.c.b16 %v775, %v767
      %v1264 = vpack.c.b16 %v776, %v768
      %v1265 = vpack.c.b16 %v777, %v769
      %v1266 = vpack.c.b16 %v786, %v778
      %v1267 = vpack.c.b16 %v787, %v779
      %v1268 = vpack.c.b16 %v788, %v780
      %v1269 = vpack.c.b16 %v789, %v781
      %v1270 = vpack.c.b16 %v790, %v782
      %v1271 = vpack.c.b16 %v791, %v783
      %v1272 = vpack.c.b16 %v792, %v784
      %v1273 = vpack.c.b16 %v793, %v785
      %v1274 = vpack.c.b16 %v802, %v794
      %v1275 = vpack.c.b16 %v803, %v795
      %v1276 = vpack.c.b16 %v804, %v796
      %v1277 = vpack.c.b16 %v805, %v797
      %v1278 = vpack.c.b16 %v806, %v798
      %v1279 = vpack.c.b16 %v807, %v799
      %v1280 = vpack.c.b16 %v808, %v800
      %v1281 = vpack.c.b16 %v809, %v801
      %v1282 = vpack.c.b16 %v818, %v810
      %v1283 = vpack.c.b16 %v819, %v811
      %v1284 = vpack.c.b16 %v820, %v812
      %v1285 = vpack.c.b16 %v821, %v813
      %v1286 = vpack.c.b16 %v822, %v814
      %v1287 = vpack.c.b16 %v823, %v815
      %v1288 = vpack.c.b16 %v824, %v816
      %v1289 = vpack.c.b16 %v825, %v817
      %v1290 = vpack.c.b16 %v834, %v826
      %v1291 = vpack.c.b16 %v835, %v827
      %v1292 = vpack.c.b16 %v836, %v828
      %v1293 = vpack.c.b16 %v837, %v829
      %v1294 = vpack.c.b16 %v838, %v830
      %v1295 = vpack.c.b16 %v839, %v831
      %v1296 = vpack.c.b16 %v840, %v832
      %v1297 = vpack.c.b16 %v841, %v833
      %v1298 = vpack.c.b16 %v850, %v842
      %v1299 = vpack.c.b16 %v851, %v843
      %v1300 = vpack.c.b16 %v852, %v844
      %v1301 = vpack.c.b16 %v853, %v845
      %v1302 = vpack.c.b16 %v854, %v846
      %v1303 = vpack.c.b16 %v855, %v847
      %v1304 = vpack.c.b16 %v856, %v848
      %v1305 = vpack.c.b16 %v857, %v849
      %v1306 = vpack.c.b16 %v866, %v858
      %v1307 = vpack.c.b16 %v867, %v859
      %v1308 = vpack.c.b16 %v868, %v860
      %v1309 = vpack.c.b16 %v869, %v861
      %v1310 = vpack.c.b16 %v870, %v862
      %v1311 = vpack.c.b16 %v871, %v863
      %v1312 = vpack.c.b16 %v872, %v864
      %v1313 = vpack.c.b16 %v873, %v865
      %v1314 = vpack.c.b16 %v882, %v874
      %v1315 = vpack.c.b16 %v883, %v875
      %v1316 = vpack.c.b16 %v884, %v876
      %v1317 = vpack.c.b16 %v885, %v877
      %v1318 = vpack.c.b16 %v886, %v878
      %v1319 = vpack.c.b16 %v887, %v879
      %v1320 = vpack.c.b16 %v888, %v880
      %v1321 = vpack.c.b16 %v889, %v881
      %v1322 = vpack.c.b16 %v898, %v890
      %v1323 = vpack.c.b16 %v899, %v891
      %v1324 = vpack.c.b16 %v900, %v892
      %v1325 = vpack.c.b16 %v901, %v893
      %v1326 = vpack.c.b16 %v902, %v894
      %v1327 = vpack.c.b16 %v903, %v895
      %v1328 = vpack.c.b16 %v904, %v896
      %v1329 = vpack.c.b16 %v905, %v897
      %v1330 = vpack.c.b16 %v914, %v906
      %v1331 = vpack.c.b16 %v915, %v907
      %v1332 = vpack.c.b16 %v916, %v908
      %v1333 = vpack.c.b16 %v917, %v909
      %v1334 = vpack.c.b16 %v918, %v910
      %v1335 = vpack.c.b16 %v919, %v911
      %v1336 = vpack.c.b16 %v920, %v912
      %v1337 = vpack.c.b16 %v921, %v913
      %v1338 = vpack.c.b16 %v930, %v922
      %v1339 = vpack.c.b16 %v931, %v923
      %v1340 = vpack.c.b16 %v932, %v924
      %v1341 = vpack.c.b16 %v933, %v925
      %v1342 = vpack.c.b16 %v934, %v926
      %v1343 = vpack.c.b16 %v935, %v927
      %v1344 = vpack.c.b16 %v936, %v928
      %v1345 = vpack.c.b16 %v937, %v929
      %v1346 = vpack.c.b16 %v946, %v938
      %v1347 = vpack.c.b16 %v947, %v939
      %v1348 = vpack.c.b16 %v948, %v940
      %v1349 = vpack.c.b16 %v949, %v941
      %v1350 = vpack.c.b16 %v950, %v942
      %v1351 = vpack.c.b16 %v951, %v943
      %v1352 = vpack.c.b16 %v952, %v944
      %v1353 = vpack.c.b16 %v953, %v945
      %v1354 = vpack.c.b16 %v962, %v954
      %v1355 = vpack.c.b16 %v963, %v955
      %v1356 = vpack.c.b16 %v964, %v956
      %v1357 = vpack.c.b16 %v965, %v957
      %v1358 = vpack.c.b16 %v966, %v958
      %v1359 = vpack.c.b16 %v967, %v959
      %v1360 = vpack.c.b16 %v968, %v960
      %v1361 = vpack.c.b16 %v969, %v961
      %v1362 = vpack.c.b16 %v978, %v970
      %v1363 = vpack.c.b16 %v979, %v971
      %v1364 = vpack.c.b16 %v980, %v972
      %v1365 = vpack.c.b16 %v981, %v973
      %v1366 = vpack.c.b16 %v982, %v974
      %v1367 = vpack.c.b16 %v983, %v975
      %v1368 = vpack.c.b16 %v984, %v976
      %v1369 = vpack.c.b16 %v985, %v977
      %v1370 = vpack.c.b16 %v994, %v986
      %v1371 = vpack.c.b16 %v995, %v987
      %v1372 = vpack.c.b16 %v996, %v988
      %v1373 = vpack.c.b16 %v997, %v989
      %v1374 = vpack.c.b16 %v998, %v990
      %v1375 = vpack.c.b16 %v999, %v991
      %v1376 = vpack.c.b16 %v1000, %v992
      %v1377 = vpack.c.b16 %v1001, %v993
      %v1378 = vpack.c.b16 %v1010, %v1002
      %v1379 = vpack.c.b16 %v1011, %v1003
      %v1380 = vpack.c.b16 %v1012, %v1004
      %v1381 = vpack.c.b16 %v1013, %v1005
      %v1382 = vpack.c.b16 %v1014, %v1006
      %v1383 = vpack.c.b16 %v1015, %v1007
      %v1384 = vpack.c.b16 %v1016, %v1008
      %v1385 = vpack.c.b16 %v1017, %v1009
      %v1386 = vpack.c.b16 %v1026, %v1018
      %v1387 = vpack.c.b16 %v1027, %v1019
      %v1388 = vpack.c.b16 %v1028, %v1020
      %v1389 = vpack.c.b16 %v1029, %v1021
      %v1390 = vpack.c.b16 %v1030, %v1022
      %v1391 = vpack.c.b16 %v1031, %v1023
      %v1392 = vpack.c.b16 %v1032, %v1024
      %v1393 = vpack.c.b16 %v1033, %v1025
      %v1394 = vpack.c.b16 %v1042, %v1034
      %v1395 = vpack.c.b16 %v1043, %v1035
      %v1396 = vpack.c.b16 %v1044, %v1036
      %v1397 = vpack.c.b16 %v1045, %v1037
      %v1398 = vpack.c.b16 %v1046, %v1038
      %v1399 = vpack.c.b16 %v1047, %v1039
      %v1400 = vpack.c.b16 %v1048, %v1040
      %v1401 = vpack.c.b16 %v1049, %v1041
      %v1402 = vpack.c.b16 %v1058, %v1050
      %v1403 = vpack.c.b16 %v1059, %v1051
      %v1404 = vpack.c.b16 %v1060, %v1052
      %v1405 = vpack.c.b16 %v1061, %v1053
      %v1406 = vpack.c.b16 %v1062, %v1054
      %v1407 = vpack.c.b16 %v1063, %v1055
      %v1408 = vpack.c.b16 %v1064, %v1056
      %v1409 = vpack.c.b16 %v1065, %v1057
      %v1410 = vpack.c.b16 %v1074, %v1066
      %v1411 = vpack.c.b16 %v1075, %v1067
      %v1412 = vpack.c.b16 %v1076, %v1068
      %v1413 = vpack.c.b16 %v1077, %v1069
      %v1414 = vpack.c.b16 %v1078, %v1070
      %v1415 = vpack.c.b16 %v1079, %v1071
      %v1416 = vpack.c.b16 %v1080, %v1072
      %v1417 = vpack.c.b16 %v1081, %v1073
      %v1418 = vpack.c.b16 %v1090, %v1082
      %v1419 = vpack.c.b16 %v1091, %v1083
      %v1420 = vpack.c.b16 %v1092, %v1084
      %v1421 = vpack.c.b16 %v1093, %v1085
      %v1422 = vpack.c.b16 %v1094, %v1086
      %v1423 = vpack.c.b16 %v1095, %v1087
      %v1424 = vpack.c.b16 %v1096, %v1088
      %v1425 = vpack.c.b16 %v1097, %v1089
      %v1426 = vpack.c.b16 %v1106, %v1098
      %v1427 = vpack.c.b16 %v1107, %v1099
      %v1428 = vpack.c.b16 %v1108, %v1100
      %v1429 = vpack.c.b16 %v1109, %v1101
      %v1430 = vpack.c.b16 %v1110, %v1102
      %v1431 = vpack.c.b16 %v1111, %v1103
      %v1432 = vpack.c.b16 %v1112, %v1104
      %v1433 = vpack.c.b16 %v1113, %v1105
      %v1434 = vpack.c.b16 %v1122, %v1114
      %v1435 = vpack.c.b16 %v1123, %v1115
      %v1436 = vpack.c.b16 %v1124, %v1116
      %v1437 = vpack.c.b16 %v1125, %v1117
      %v1438 = vpack.c.b16 %v1126, %v1118
      %v1439 = vpack.c.b16 %v1127, %v1119
      %v1440 = vpack.c.b16 %v1128, %v1120
      %v1441 = vpack.c.b16 %v1129, %v1121
      %v1442 = vpack.c.b16 %v1138, %v1130
      %v1443 = vpack.c.b16 %v1139, %v1131
      %v1444 = vpack.c.b16 %v1140, %v1132
      %v1445 = vpack.c.b16 %v1141, %v1133
      %v1446 = vpack.c.b16 %v1142, %v1134
      %v1447 = vpack.c.b16 %v1143, %v1135
      %v1448 = vpack.c.b16 %v1144, %v1136
      %v1449 = vpack.c.b16 %v1145, %v1137
      %v1450 = vpack.c.b16 %v1154, %v1146
      %v1451 = vpack.c.b16 %v1155, %v1147
      %v1452 = vpack.c.b16 %v1156, %v1148
      %v1453 = vpack.c.b16 %v1157, %v1149
      %v1454 = vpack.c.b16 %v1158, %v1150
      %v1455 = vpack.c.b16 %v1159, %v1151
      %v1456 = vpack.c.b16 %v1160, %v1152
      %v1457 = vpack.c.b16 %v1161, %v1153
      %v1458 = vpack.c.b16 %v1170, %v1162
      %v1459 = vpack.c.b16 %v1171, %v1163
      %v1460 = vpack.c.b16 %v1172, %v1164
      %v1461 = vpack.c.b16 %v1173, %v1165
      %v1462 = vpack.c.b16 %v1174, %v1166
      %v1463 = vpack.c.b16 %v1175, %v1167
      %v1464 = vpack.c.b16 %v1176, %v1168
      %v1465 = vpack.c.b16 %v1177, %v1169
      %v1466 = vpack.c.b16 %v1186, %v1178
      %v1467 = vpack.c.b16 %v1187, %v1179
      %v1468 = vpack.c.b16 %v1188, %v1180
      %v1469 = vpack.c.b16 %v1189, %v1181
      %v1470 = vpack.c.b16 %v1190, %v1182
      %v1471 = vpack.c.b16 %v1191, %v1183
      %v1472 = vpack.c.b16 %v1192, %v1184
      %v1473 = vpack.c.b16 %v1193, %v1185
      %v1474 = vpack.c.b16 %v1202, %v1194
      %v1475 = vpack.c.b16 %v1203, %v1195
      %v1476 = vpack.c.b16 %v1204, %v1196
      %v1477 = vpack.c.b16 %v1205, %v1197
      %v1478 = vpack.c.b16 %v1206, %v1198
      %v1479 = vpack.c.b16 %v1207, %v1199
      %v1480 = vpack.c.b16 %v1208, %v1200
      %v1481 = vpack.c.b16 %v1209, %v1201
      %v1482 = vpack.c.b16 %v1218, %v1210
      %v1483 = vpack.c.b16 %v1219, %v1211
      %v1484 = vpack.c.b16 %v1220, %v1212
      %v1485 = vpack.c.b16 %v1221, %v1213
      %v1486 = vpack.c.b16 %v1222, %v1214
      %v1487 = vpack.c.b16 %v1223, %v1215
      %v1488 = vpack.c.b16 %v1224, %v1216
      %v1489 = vpack.c.b16 %v1225, %v1217
      %v1490 = vpack.c.b16 %v1234, %v1226
      %v1491 = vpack.c.b16 %v1235, %v1227
      %v1492 = vpack.c.b16 %v1236, %v1228
      %v1493 = vpack.c.b16 %v1237, %v1229
      %v1494 = vpack.c.b16 %v1238, %v1230
      %v1495 = vpack.c.b16 %v1239, %v1231
      %v1496 = vpack.c.b16 %v1240, %v1232
      %v1497 = vpack.c.b16 %v1241, %v1233
      %1754 = vmatprep.subr.bf16.mxu0 %v1299
      %1755 = vmatpush1.bf16.msra.mxu0 %v1298
      %1756 = vmatprep.subr.bf16.mxu0 %v1291
      %1757 = vmatpush1.bf16.msra.mxu0 %v1290
      %1758 = vmatprep.subr.bf16.mxu0 %v1283
      %1759 = vmatpush1.bf16.msra.mxu0 %v1282
      %1760 = vmatprep.subr.bf16.mxu0 %v1275
      %1761 = vmatpush1.bf16.msra.mxu0 %v1274
      %1762 = vmatprep.subr.bf16.mxu0 %v1267
      %1763 = vmatpush1.bf16.msra.mxu0 %v1266
      %1764 = vmatprep.subr.bf16.mxu0 %v1259
      %1765 = vmatpush1.bf16.msra.mxu0 %v1258
      %1766 = vmatprep.subr.bf16.mxu0 %v1251
      %1767 = vmatpush1.bf16.msra.mxu0 %v1250
      %1768 = vmatprep.subr.bf16.mxu0 %v1243
      %1769 = vmatpush1.bf16.msra.mxu0 %v1242
      %1770 = vmatprep.subr.bf16.mxu0 %v1363
      %1771 = vmatpush2.bf16.msra.mxu0 %v1362
      %1772 = vmatprep.subr.bf16.mxu0 %v1355
      %1773 = vmatpush2.bf16.msra.mxu0 %v1354
      %1774 = vmatprep.subr.bf16.mxu0 %v1347
      %1775 = vmatpush2.bf16.msra.mxu0 %v1346
      %1776 = vmatprep.subr.bf16.mxu0 %v1339
      %1777 = vmatpush2.bf16.msra.mxu0 %v1338
      %1778 = vmatprep.subr.bf16.mxu0 %v1331
      %1779 = vmatpush2.bf16.msra.mxu0 %v1330
      %1780 = vmatprep.subr.bf16.mxu0 %v1323
      %1781 = vmatpush2.bf16.msra.mxu0 %v1322
      %1782 = vmatprep.subr.bf16.mxu0 %v1315
      %1783 = vmatpush2.bf16.msra.mxu0 %v1314
      %1784 = vmatprep.subr.bf16.mxu0 %v1307
      %1785 = vmatpush2.bf16.msra.mxu0 %v1306
      %1786 = vmatprep.mubr.bf16.mxu0 %v467
      %1787 = vmatmul.mubr.bf16.gmra.mxu0 %v460
      %v1788 = vpop.f32.mrf.mxu0
      %v1789 = vadd.f32 0.0, %v1788
      %v1790 = vpop.f32.mrf.mxu0
      %v1791 = vadd.f32 0.0, %v1790
      %v1792 = vpop.f32.mrf.mxu0
      %v1793 = vpop.f32.mrf.mxu0
      %1794 = vdwg.mxu0
      %1795 = vmatprep.subr.bf16.mxu0 %v1427
      %1796 = vmatpush1.bf16.msra.mxu0 %v1426
      %1797 = vmatprep.subr.bf16.mxu0 %v1419
      %1798 = vmatpush1.bf16.msra.mxu0 %v1418
      %1799 = vmatprep.subr.bf16.mxu0 %v1411
      %1800 = vmatpush1.bf16.msra.mxu0 %v1410
      %1801 = vmatprep.subr.bf16.mxu0 %v1403
      %1802 = vmatpush1.bf16.msra.mxu0 %v1402
      %1803 = vmatprep.subr.bf16.mxu0 %v1395
      %1804 = vmatpush1.bf16.msra.mxu0 %v1394
      %1805 = vmatprep.subr.bf16.mxu0 %v1387
      %1806 = vmatpush1.bf16.msra.mxu0 %v1386
      %1807 = vmatprep.subr.bf16.mxu0 %v1379
      %1808 = vmatpush1.bf16.msra.mxu0 %v1378
      %1809 = vmatprep.subr.bf16.mxu0 %v1371
      %1810 = vmatpush1.bf16.msra.mxu0 %v1370
      %1811 = vmatprep.subr.bf16.mxu0 %v1491
      %1812 = vmatpush2.bf16.msra.mxu0 %v1490
      %1813 = vmatprep.subr.bf16.mxu0 %v1483
      %1814 = vmatpush2.bf16.msra.mxu0 %v1482
      %1815 = vmatprep.subr.bf16.mxu0 %v1475
      %1816 = vmatpush2.bf16.msra.mxu0 %v1474
      %1817 = vmatprep.subr.bf16.mxu0 %v1467
      %1818 = vmatpush2.bf16.msra.mxu0 %v1466
      %1819 = vmatprep.subr.bf16.mxu0 %v1459
      %1820 = vmatpush2.bf16.msra.mxu0 %v1458
      %1821 = vmatprep.subr.bf16.mxu0 %v1451
      %1822 = vmatpush2.bf16.msra.mxu0 %v1450
      %1823 = vmatprep.subr.bf16.mxu0 %v1443
      %1824 = vmatpush2.bf16.msra.mxu0 %v1442
      %1825 = vmatprep.subr.bf16.mxu0 %v1435
      %1826 = vmatpush2.bf16.msra.mxu0 %v1434
      %1827 = vmatprep.mubr.bf16.mxu0 %v469
      %1828 = vmatmul.mubr.bf16.gmra.mxu0 %v468
      %v1829 = vpop.f32.mrf.mxu0
      %v1830 = vadd.f32 %v1789, %v1829
      %v1831 = vpop.f32.mrf.mxu0
      %v1832 = vadd.f32 %v1791, %v1831
      %v1833 = vpop.f32.mrf.mxu0
      %v1834 = vpop.f32.mrf.mxu0
      %1835 = vdwg.mxu0
      %1836 = vmatprep.subr.bf16.mxu0 %v1301
      %1837 = vmatpush1.bf16.msra.mxu0 %v1300
      %1838 = vmatprep.subr.bf16.mxu0 %v1293
      %1839 = vmatpush1.bf16.msra.mxu0 %v1292
      %1840 = vmatprep.subr.bf16.mxu0 %v1285
      %1841 = vmatpush1.bf16.msra.mxu0 %v1284
      %1842 = vmatprep.subr.bf16.mxu0 %v1277
      %1843 = vmatpush1.bf16.msra.mxu0 %v1276
      %1844 = vmatprep.subr.bf16.mxu0 %v1269
      %1845 = vmatpush1.bf16.msra.mxu0 %v1268
      %1846 = vmatprep.subr.bf16.mxu0 %v1261
      %1847 = vmatpush1.bf16.msra.mxu0 %v1260
      %1848 = vmatprep.subr.bf16.mxu0 %v1253
      %1849 = vmatpush1.bf16.msra.mxu0 %v1252
      %1850 = vmatprep.subr.bf16.mxu0 %v1245
      %1851 = vmatpush1.bf16.msra.mxu0 %v1244
      %1852 = vmatprep.subr.bf16.mxu0 %v1365
      %1853 = vmatpush2.bf16.msra.mxu0 %v1364
      %1854 = vmatprep.subr.bf16.mxu0 %v1357
      %1855 = vmatpush2.bf16.msra.mxu0 %v1356
      %1856 = vmatprep.subr.bf16.mxu0 %v1349
      %1857 = vmatpush2.bf16.msra.mxu0 %v1348
      %1858 = vmatprep.subr.bf16.mxu0 %v1341
      %1859 = vmatpush2.bf16.msra.mxu0 %v1340
      %1860 = vmatprep.subr.bf16.mxu0 %v1333
      %1861 = vmatpush2.bf16.msra.mxu0 %v1332
      %1862 = vmatprep.subr.bf16.mxu0 %v1325
      %1863 = vmatpush2.bf16.msra.mxu0 %v1324
      %1864 = vmatprep.subr.bf16.mxu0 %v1317
      %1865 = vmatpush2.bf16.msra.mxu0 %v1316
      %1866 = vmatprep.subr.bf16.mxu0 %v1309
      %1867 = vmatpush2.bf16.msra.mxu0 %v1308
      %1868 = vmatprep.mubr.bf16.mxu0 %v467
      %1869 = vmatmul.mubr.bf16.gmra.mxu0 %v460
      %v1870 = vpop.f32.mrf.mxu0
      %v1871 = vadd.f32 0.0, %v1870
      %v1872 = vpop.f32.mrf.mxu0
      %v1873 = vadd.f32 0.0, %v1872
      %v1874 = vpop.f32.mrf.mxu0
      %v1875 = vpop.f32.mrf.mxu0
      %1876 = vdwg.mxu0
      %1877 = vmatprep.subr.bf16.mxu0 %v1429
      %1878 = vmatpush1.bf16.msra.mxu0 %v1428
      %1879 = vmatprep.subr.bf16.mxu0 %v1421
      %1880 = vmatpush1.bf16.msra.mxu0 %v1420
      %1881 = vmatprep.subr.bf16.mxu0 %v1413
      %1882 = vmatpush1.bf16.msra.mxu0 %v1412
      %1883 = vmatprep.subr.bf16.mxu0 %v1405
      %1884 = vmatpush1.bf16.msra.mxu0 %v1404
      %1885 = vmatprep.subr.bf16.mxu0 %v1397
      %1886 = vmatpush1.bf16.msra.mxu0 %v1396
      %1887 = vmatprep.subr.bf16.mxu0 %v1389
      %1888 = vmatpush1.bf16.msra.mxu0 %v1388
      %1889 = vmatprep.subr.bf16.mxu0 %v1381
      %1890 = vmatpush1.bf16.msra.mxu0 %v1380
      %1891 = vmatprep.subr.bf16.mxu0 %v1373
      %1892 = vmatpush1.bf16.msra.mxu0 %v1372
      %1893 = vmatprep.subr.bf16.mxu0 %v1493
      %1894 = vmatpush2.bf16.msra.mxu0 %v1492
      %1895 = vmatprep.subr.bf16.mxu0 %v1485
      %1896 = vmatpush2.bf16.msra.mxu0 %v1484
      %1897 = vmatprep.subr.bf16.mxu0 %v1477
      %1898 = vmatpush2.bf16.msra.mxu0 %v1476
      %1899 = vmatprep.subr.bf16.mxu0 %v1469
      %1900 = vmatpush2.bf16.msra.mxu0 %v1468
      %1901 = vmatprep.subr.bf16.mxu0 %v1461
      %1902 = vmatpush2.bf16.msra.mxu0 %v1460
      %1903 = vmatprep.subr.bf16.mxu0 %v1453
      %1904 = vmatpush2.bf16.msra.mxu0 %v1452
      %1905 = vmatprep.subr.bf16.mxu0 %v1445
      %1906 = vmatpush2.bf16.msra.mxu0 %v1444
      %1907 = vmatprep.subr.bf16.mxu0 %v1437
      %1908 = vmatpush2.bf16.msra.mxu0 %v1436
      %1909 = vmatprep.mubr.bf16.mxu0 %v469
      %1910 = vmatmul.mubr.bf16.gmra.mxu0 %v468
      %v1911 = vpop.f32.mrf.mxu0
      %v1912 = vadd.f32 %v1871, %v1911
      %v1913 = vpop.f32.mrf.mxu0
      %v1914 = vadd.f32 %v1873, %v1913
      %v1915 = vpop.f32.mrf.mxu0
      %v1916 = vpop.f32.mrf.mxu0
      %1917 = vdwg.mxu0
      %1918 = vmatprep.subr.bf16.mxu0 %v1303
      %1919 = vmatpush1.bf16.msra.mxu0 %v1302
      %1920 = vmatprep.subr.bf16.mxu0 %v1295
      %1921 = vmatpush1.bf16.msra.mxu0 %v1294
      %1922 = vmatprep.subr.bf16.mxu0 %v1287
      %1923 = vmatpush1.bf16.msra.mxu0 %v1286
      %1924 = vmatprep.subr.bf16.mxu0 %v1279
      %1925 = vmatpush1.bf16.msra.mxu0 %v1278
      %1926 = vmatprep.subr.bf16.mxu0 %v1271
      %1927 = vmatpush1.bf16.msra.mxu0 %v1270
      %1928 = vmatprep.subr.bf16.mxu0 %v1263
      %1929 = vmatpush1.bf16.msra.mxu0 %v1262
      %1930 = vmatprep.subr.bf16.mxu0 %v1255
      %1931 = vmatpush1.bf16.msra.mxu0 %v1254
      %1932 = vmatprep.subr.bf16.mxu0 %v1247
      %1933 = vmatpush1.bf16.msra.mxu0 %v1246
      %1934 = vmatprep.subr.bf16.mxu0 %v1367
      %1935 = vmatpush2.bf16.msra.mxu0 %v1366
      %1936 = vmatprep.subr.bf16.mxu0 %v1359
      %1937 = vmatpush2.bf16.msra.mxu0 %v1358
      %1938 = vmatprep.subr.bf16.mxu0 %v1351
      %1939 = vmatpush2.bf16.msra.mxu0 %v1350
      %1940 = vmatprep.subr.bf16.mxu0 %v1343
      %1941 = vmatpush2.bf16.msra.mxu0 %v1342
      %1942 = vmatprep.subr.bf16.mxu0 %v1335
      %1943 = vmatpush2.bf16.msra.mxu0 %v1334
      %1944 = vmatprep.subr.bf16.mxu0 %v1327
      %1945 = vmatpush2.bf16.msra.mxu0 %v1326
      %1946 = vmatprep.subr.bf16.mxu0 %v1319
      %1947 = vmatpush2.bf16.msra.mxu0 %v1318
      %1948 = vmatprep.subr.bf16.mxu0 %v1311
      %1949 = vmatpush2.bf16.msra.mxu0 %v1310
      %1950 = vmatprep.mubr.bf16.mxu0 %v467
      %1951 = vmatmul.mubr.bf16.gmra.mxu0 %v460
      %v1952 = vpop.f32.mrf.mxu0
      %v1953 = vadd.f32 0.0, %v1952
      %v1954 = vpop.f32.mrf.mxu0
      %v1955 = vadd.f32 0.0, %v1954
      %v1956 = vpop.f32.mrf.mxu0
      %v1957 = vpop.f32.mrf.mxu0
      %1958 = vdwg.mxu0
      %1959 = vmatprep.subr.bf16.mxu0 %v1431
      %1960 = vmatpush1.bf16.msra.mxu0 %v1430
      %1961 = vmatprep.subr.bf16.mxu0 %v1423
      %1962 = vmatpush1.bf16.msra.mxu0 %v1422
      %1963 = vmatprep.subr.bf16.mxu0 %v1415
      %1964 = vmatpush1.bf16.msra.mxu0 %v1414
      %1965 = vmatprep.subr.bf16.mxu0 %v1407
      %1966 = vmatpush1.bf16.msra.mxu0 %v1406
      %1967 = vmatprep.subr.bf16.mxu0 %v1399
      %1968 = vmatpush1.bf16.msra.mxu0 %v1398
      %1969 = vmatprep.subr.bf16.mxu0 %v1391
      %1970 = vmatpush1.bf16.msra.mxu0 %v1390
      %1971 = vmatprep.subr.bf16.mxu0 %v1383
      %1972 = vmatpush1.bf16.msra.mxu0 %v1382
      %1973 = vmatprep.subr.bf16.mxu0 %v1375
      %1974 = vmatpush1.bf16.msra.mxu0 %v1374
      %1975 = vmatprep.subr.bf16.mxu0 %v1495
      %1976 = vmatpush2.bf16.msra.mxu0 %v1494
      %1977 = vmatprep.subr.bf16.mxu0 %v1487
      %1978 = vmatpush2.bf16.msra.mxu0 %v1486
      %1979 = vmatprep.subr.bf16.mxu0 %v1479
      %1980 = vmatpush2.bf16.msra.mxu0 %v1478
      %1981 = vmatprep.subr.bf16.mxu0 %v1471
      %1982 = vmatpush2.bf16.msra.mxu0 %v1470
      %1983 = vmatprep.subr.bf16.mxu0 %v1463
      %1984 = vmatpush2.bf16.msra.mxu0 %v1462
      %1985 = vmatprep.subr.bf16.mxu0 %v1455
      %1986 = vmatpush2.bf16.msra.mxu0 %v1454
      %1987 = vmatprep.subr.bf16.mxu0 %v1447
      %1988 = vmatpush2.bf16.msra.mxu0 %v1446
      %1989 = vmatprep.subr.bf16.mxu0 %v1439
      %1990 = vmatpush2.bf16.msra.mxu0 %v1438
      %1991 = vmatprep.mubr.bf16.mxu0 %v469
      %1992 = vmatmul.mubr.bf16.gmra.mxu0 %v468
      %v1993 = vpop.f32.mrf.mxu0
      %v1994 = vadd.f32 %v1953, %v1993
      %v1995 = vpop.f32.mrf.mxu0
      %v1996 = vadd.f32 %v1955, %v1995
      %v1997 = vpop.f32.mrf.mxu0
      %v1998 = vpop.f32.mrf.mxu0
      %1999 = vdwg.mxu0
      %2000 = vmatprep.subr.bf16.mxu0 %v1305
      %2001 = vmatpush1.bf16.msra.mxu0 %v1304
      %2002 = vmatprep.subr.bf16.mxu0 %v1297
      %2003 = vmatpush1.bf16.msra.mxu0 %v1296
      %2004 = vmatprep.subr.bf16.mxu0 %v1289
      %2005 = vmatpush1.bf16.msra.mxu0 %v1288
      %2006 = vmatprep.subr.bf16.mxu0 %v1281
      %2007 = vmatpush1.bf16.msra.mxu0 %v1280
      %2008 = vmatprep.subr.bf16.mxu0 %v1273
      %2009 = vmatpush1.bf16.msra.mxu0 %v1272
      %2010 = vmatprep.subr.bf16.mxu0 %v1265
      %2011 = vmatpush1.bf16.msra.mxu0 %v1264
      %2012 = vmatprep.subr.bf16.mxu0 %v1257
      %2013 = vmatpush1.bf16.msra.mxu0 %v1256
      %2014 = vmatprep.subr.bf16.mxu0 %v1249
      %2015 = vmatpush1.bf16.msra.mxu0 %v1248
      %2016 = vmatprep.subr.bf16.mxu0 %v1369
      %2017 = vmatpush2.bf16.msra.mxu0 %v1368
      %2018 = vmatprep.subr.bf16.mxu0 %v1361
      %2019 = vmatpush2.bf16.msra.mxu0 %v1360
      %2020 = vmatprep.subr.bf16.mxu0 %v1353
      %2021 = vmatpush2.bf16.msra.mxu0 %v1352
      %2022 = vmatprep.subr.bf16.mxu0 %v1345
      %2023 = vmatpush2.bf16.msra.mxu0 %v1344
      %2024 = vmatprep.subr.bf16.mxu0 %v1337
      %2025 = vmatpush2.bf16.msra.mxu0 %v1336
      %2026 = vmatprep.subr.bf16.mxu0 %v1329
      %2027 = vmatpush2.bf16.msra.mxu0 %v1328
      %2028 = vmatprep.subr.bf16.mxu0 %v1321
      %2029 = vmatpush2.bf16.msra.mxu0 %v1320
      %2030 = vmatprep.subr.bf16.mxu0 %v1313
      %2031 = vmatpush2.bf16.msra.mxu0 %v1312
      %2032 = vmatprep.mubr.bf16.mxu0 %v467
      %2033 = vmatmul.mubr.bf16.gmra.mxu0 %v460
      %v2034 = vpop.f32.mrf.mxu0
      %v2035 = vadd.f32 0.0, %v2034
      %v2036 = vpop.f32.mrf.mxu0
      %v2037 = vadd.f32 0.0, %v2036
      %v2038 = vpop.f32.mrf.mxu0
      %v2039 = vpop.f32.mrf.mxu0
      %2040 = vdwg.mxu0
      %2041 = vmatprep.subr.bf16.mxu0 %v1433
      %2042 = vmatpush1.bf16.msra.mxu0 %v1432
      %2043 = vmatprep.subr.bf16.mxu0 %v1425
      %2044 = vmatpush1.bf16.msra.mxu0 %v1424
      %2045 = vmatprep.subr.bf16.mxu0 %v1417
      %2046 = vmatpush1.bf16.msra.mxu0 %v1416
      %2047 = vmatprep.subr.bf16.mxu0 %v1409
      %2048 = vmatpush1.bf16.msra.mxu0 %v1408
      %2049 = vmatprep.subr.bf16.mxu0 %v1401
      %2050 = vmatpush1.bf16.msra.mxu0 %v1400
      %2051 = vmatprep.subr.bf16.mxu0 %v1393
      %2052 = vmatpush1.bf16.msra.mxu0 %v1392
      %2053 = vmatprep.subr.bf16.mxu0 %v1385
      %2054 = vmatpush1.bf16.msra.mxu0 %v1384
      %2055 = vmatprep.subr.bf16.mxu0 %v1377
      %2056 = vmatpush1.bf16.msra.mxu0 %v1376
      %2057 = vmatprep.subr.bf16.mxu0 %v1497
      %2058 = vmatpush2.bf16.msra.mxu0 %v1496
      %2059 = vmatprep.subr.bf16.mxu0 %v1489
      %2060 = vmatpush2.bf16.msra.mxu0 %v1488
      %2061 = vmatprep.subr.bf16.mxu0 %v1481
      %2062 = vmatpush2.bf16.msra.mxu0 %v1480
      %2063 = vmatprep.subr.bf16.mxu0 %v1473
      %2064 = vmatpush2.bf16.msra.mxu0 %v1472
      %2065 = vmatprep.subr.bf16.mxu0 %v1465
      %2066 = vmatpush2.bf16.msra.mxu0 %v1464
      %2067 = vmatprep.subr.bf16.mxu0 %v1457
      %2068 = vmatpush2.bf16.msra.mxu0 %v1456
      %2069 = vmatprep.subr.bf16.mxu0 %v1449
      %2070 = vmatpush2.bf16.msra.mxu0 %v1448
      %2071 = vmatprep.subr.bf16.mxu0 %v1441
      %2072 = vmatpush2.bf16.msra.mxu0 %v1440
      %2073 = vmatprep.mubr.bf16.mxu0 %v469
      %2074 = vmatmul.mubr.bf16.gmra.mxu0 %v468
      %v2075 = vpop.f32.mrf.mxu0
      %v2076 = vadd.f32 %v2035, %v2075
      %v2077 = vpop.f32.mrf.mxu0
      %v2078 = vadd.f32 %v2037, %v2077
      %v2079 = vpop.f32.mrf.mxu0
      %v2080 = vpop.f32.mrf.mxu0
      %2081 = vdwg.mxu0
      %v2090 = vcombine.low %v1830, %v1832
      %v2091 = vcombine.low %v1912, %v1914
      %v2093 = vunpack.c.l.s4 1983009808
      %v2094 = vunpack.c.0.s8 %v2093
      %v2095 = vlaneseq
      %v2096 = vshrl.u32 %v2095, 7
      %v2097 = vsub.s32 %v2094, %v2096
      %v2098 = vrot.slane %v2090, %v2097
      %v2100 = vunpack.c.l.s4 1983009808
      %v2101 = vunpack.c.0.s8 %v2100
      %v2102 = vlaneseq
      %v2103 = vshrl.u32 %v2102, 7
      %v2104 = vsub.s32 %v2101, %v2103
      %v2105 = vrot.slane %v2091, %v2104
      %v2106 = vcombine.low %v2098, %v2105
      %v2107 = vcombine.low %v1994, %v1996
      %v2108 = vcombine.low %v2076, %v2078
      %v2110 = vunpack.c.l.s4 1983009808
      %v2111 = vunpack.c.0.s8 %v2110
      %v2112 = vlaneseq
      %v2113 = vshrl.u32 %v2112, 7
      %v2114 = vsub.s32 %v2111, %v2113
      %v2115 = vrot.slane %v2107, %v2114
      %v2117 = vunpack.c.l.s4 1983009808
      %v2118 = vunpack.c.0.s8 %v2117
      %v2119 = vlaneseq
      %v2120 = vshrl.u32 %v2119, 7
      %v2121 = vsub.s32 %v2118, %v2120
      %v2122 = vrot.slane %v2108, %v2121
      %v2123 = vcombine.low %v2115, %v2122
      %v2126 = vadd.f32 %v186, %v2106
      %v2127 = vadd.f32 %v187, %v2123
      %2128 = vst [vmem:[#allocation2] sm:$0xff] %v2126
      %2129 = vst [vmem:[#allocation2 + $0x8] sm:$0xff] %v2127
      %p2130 = scmp.eq.s32.totalorder %s14, 3
      // Predicated region
      $region37: #{generator_forward.12} parent=31 // pred_check
        %p2131 = pneg %p2130
      $region38: #{generator_forward.12} parent=31 // pred_check_branch
        %2133 = sbr.rel (%p2131) target = $region40
      $region39: #{generator_forward.12} parent=31 // pred_region
        %v2134 = vld [vmem:[#allocation2] sm:$0xff]
        %v2135 = vld [vmem:[#allocation2 + $0x8] sm:$0xff]
        %v2136 = vld [vmem:[%s2] sm:$0xff]
        %v2138 = vlaneseq
        %v2139 = vshrl.u32 %v2138, 7
        %v2140 = vsub.s32 0, %v2139
        %v2141 = vrot.slane %v2136, %v2140
        %v2142 = vlaneseq
        %v2143 = vshrl.u32 %v2142, 7
        %v2144 = vsub.s32 1, %v2143
        %v2145 = vrot.slane %v2136, %v2144
        %v2146 = vlaneseq
        %v2147 = vshrl.u32 %v2146, 7
        %v2148 = vsub.s32 2, %v2147
        %v2149 = vrot.slane %v2136, %v2148
        %v2150 = vlaneseq
        %v2151 = vshrl.u32 %v2150, 7
        %v2152 = vsub.s32 3, %v2151
        %v2153 = vrot.slane %v2136, %v2152
        %v2154 = vlaneseq
        %v2155 = vshrl.u32 %v2154, 7
        %v2156 = vsub.s32 4, %v2155
        %v2157 = vrot.slane %v2136, %v2156
        %v2158 = vlaneseq
        %v2159 = vshrl.u32 %v2158, 7
        %v2160 = vsub.s32 5, %v2159
        %v2161 = vrot.slane %v2136, %v2160
        %v2162 = vlaneseq
        %v2163 = vshrl.u32 %v2162, 7
        %v2164 = vsub.s32 6, %v2163
        %v2165 = vrot.slane %v2136, %v2164
        %v2166 = vlaneseq
        %v2167 = vshrl.u32 %v2166, 7
        %v2168 = vsub.s32 7, %v2167
        %v2169 = vrot.slane %v2136, %v2168
        %v2170 = vcombine.low %v2141, %v2145
        %v2171 = vcombine.low %v2149, %v2153
        %v2173 = vunpack.c.l.s4 1983009808
        %v2174 = vunpack.c.0.s8 %v2173
        %v2175 = vlaneseq
        %v2176 = vshrl.u32 %v2175, 7
        %v2177 = vsub.s32 %v2174, %v2176
        %v2178 = vrot.slane %v2170, %v2177
        %v2180 = vunpack.c.l.s4 1983009808
        %v2181 = vunpack.c.0.s8 %v2180
        %v2182 = vlaneseq
        %v2183 = vshrl.u32 %v2182, 7
        %v2184 = vsub.s32 %v2181, %v2183
        %v2185 = vrot.slane %v2171, %v2184
        %v2186 = vcombine.low %v2178, %v2185
        %v2187 = vcombine.low %v2157, %v2161
        %v2188 = vcombine.low %v2165, %v2169
        %v2190 = vunpack.c.l.s4 1983009808
        %v2191 = vunpack.c.0.s8 %v2190
        %v2192 = vlaneseq
        %v2193 = vshrl.u32 %v2192, 7
        %v2194 = vsub.s32 %v2191, %v2193
        %v2195 = vrot.slane %v2187, %v2194
        %v2197 = vunpack.c.l.s4 1983009808
        %v2198 = vunpack.c.0.s8 %v2197
        %v2199 = vlaneseq
        %v2200 = vshrl.u32 %v2199, 7
        %v2201 = vsub.s32 %v2198, %v2200
        %v2202 = vrot.slane %v2188, %v2201
        %v2203 = vcombine.low %v2195, %v2202
        %v2206 = vadd.f32 %v2134, %v2186
        %v2207 = vadd.f32 %v2135, %v2203
        %v2208 = vmax.f32 %v2206, 0.0
        %v2209 = vmax.f32 %v2207, 0.0
        %v2212 = vcombine.high %v2208, %v2208
        %v2214 = vunpack.c.l.s4 1983009808
        %v2215 = vunpack.c.0.s8 %v2214
        %v2216 = vlaneseq
        %v2217 = vshrl.u32 %v2216, 7
        %v2218 = vsub.s32 %v2215, %v2217
        %v2219 = vrot.slane %v2208, %v2218
        %v2221 = vunpack.c.l.s4 1983009808
        %v2222 = vunpack.c.0.s8 %v2221
        %v2223 = vlaneseq
        %v2224 = vshrl.u32 %v2223, 7
        %v2225 = vsub.s32 %v2222, %v2224
        %v2226 = vrot.slane %v2212, %v2225
        %v2227 = vcombine.high %v2219, %v2219
        %v2228 = vcombine.high %v2226, %v2226
        %v2229 = vcombine.high %v2209, %v2209
        %v2231 = vunpack.c.l.s4 1983009808
        %v2232 = vunpack.c.0.s8 %v2231
        %v2233 = vlaneseq
        %v2234 = vshrl.u32 %v2233, 7
        %v2235 = vsub.s32 %v2232, %v2234
        %v2236 = vrot.slane %v2209, %v2235
        %v2238 = vunpack.c.l.s4 1983009808
        %v2239 = vunpack.c.0.s8 %v2238
        %v2240 = vlaneseq
        %v2241 = vshrl.u32 %v2240, 7
        %v2242 = vsub.s32 %v2239, %v2241
        %v2243 = vrot.slane %v2229, %v2242
        %v2244 = vcombine.high %v2236, %v2236
        %v2245 = vcombine.high %v2243, %v2243
        %v2254 = vpack.c.bf16 %v2219, %v2219
        %v2255 = vpack.c.bf16 %v2227, %v2227
        %v2256 = vpack.c.bf16 %v2226, %v2226
        %v2257 = vpack.c.bf16 %v2228, %v2228
        %v2258 = vpack.c.bf16 %v2236, %v2236
        %v2259 = vpack.c.bf16 %v2244, %v2244
        %v2260 = vpack.c.bf16 %v2243, %v2243
        %v2261 = vpack.c.bf16 %v2245, %v2245
        %v2270 = vcombine.low %v2254, %v2255
        %v2271 = vcombine.low %v2256, %v2257
        %v2272 = vcombine.low %v2258, %v2259
        %v2273 = vcombine.low %v2260, %v2261
        %v2275 = vunpack.c.l.s4 1966171168
        %v2276 = vunpack.c.0.s8 %v2275
        %v2277 = vlaneseq
        %v2278 = vshrl.u32 %v2277, 7
        %v2279 = vsub.s32 %v2276, %v2278
        %v2280 = vrot.slane %v2270, %v2279
        %v2282 = vunpack.c.l.s4 1966171168
        %v2283 = vunpack.c.0.s8 %v2282
        %v2284 = vlaneseq
        %v2285 = vshrl.u32 %v2284, 7
        %v2286 = vsub.s32 %v2283, %v2285
        %v2287 = vrot.slane %v2271, %v2286
        %v2289 = vunpack.c.l.s4 1966171168
        %v2290 = vunpack.c.0.s8 %v2289
        %v2291 = vlaneseq
        %v2292 = vshrl.u32 %v2291, 7
        %v2293 = vsub.s32 %v2290, %v2292
        %v2294 = vrot.slane %v2272, %v2293
        %v2296 = vunpack.c.l.s4 1966171168
        %v2297 = vunpack.c.0.s8 %v2296
        %v2298 = vlaneseq
        %v2299 = vshrl.u32 %v2298, 7
        %v2300 = vsub.s32 %v2297, %v2299
        %v2301 = vrot.slane %v2273, %v2300
        %v2302 = vcombine.low %v2280, %v2287
        %v2303 = vcombine.low %v2294, %v2301
        %v2305 = vunpack.c.l.s4 1966171168
        %v2306 = vunpack.c.0.s8 %v2305
        %v2307 = vlaneseq
        %v2308 = vshrl.u32 %v2307, 7
        %v2309 = vsub.s32 %v2306, %v2308
        %v2310 = vrot.slane %v2302, %v2309
        %v2312 = vunpack.c.l.s4 1966171168
        %v2313 = vunpack.c.0.s8 %v2312
        %v2314 = vlaneseq
        %v2315 = vshrl.u32 %v2314, 7
        %v2316 = vsub.s32 %v2313, %v2315
        %v2317 = vrot.slane %v2303, %v2316
        %v2318 = vcombine.low %v2310, %v2317
        %2320 = vst [vmem:[%s3] sm:$0xff] %v2318
      $region40: #{generator_forward.12} parent=31 // pred_fallthru
        _
      // Predicated region
      $region41: #{generator_forward.12} parent=31 // pred_check
        %p2321 = pneg %p100
      $region42: #{generator_forward.12} parent=31 // pred_check_branch
        %2323 = sbr.rel (%p2321) target = $region44
      $region43: #{generator_forward.12} parent=31 // pred_region
        _
      $region44: #{generator_forward.12} parent=31 // pred_fallthru
        _
      // Predicated region
      $region45: #{generator_forward.12} parent=31 // pred_check
        %p2324 = pneg %p100
      $region46: #{generator_forward.12} parent=31 // pred_check_branch
        %2326 = sbr.rel (%p2324) target = $region48
      $region47: #{generator_forward.12} parent=31 // pred_region
        _
      $region48: #{generator_forward.12} parent=31 // pred_fallthru
        _
    $region32: #{generator_forward.12} parent=5 // pred_fallthru
      _
    %p2327 = scmp.le.s32.totalorder 2, %s9
    // Predicated region
    $region49: #{generator_forward.12} parent=5 // pred_check
      %p2328 = pneg %p2327
    $region50: #{generator_forward.12} parent=5 // pred_check_branch
      %2330 = sbr.rel (%p2328) target = $region52
    $region51: #{generator_forward.12} parent=5 // pred_region
      %s2331 = ssub.s32 %s9, 2
    $region52: #{generator_forward.12} parent=5 // pred_fallthru
      _
  $region6: #{generator_forward.12} parent=0 // loop_footer
    %s13 = sadd.s32 1, %s9
  $region7: #{generator_forward.12} parent=0 // loop_footer_branch
    %8 = sbr.rel target = $region3
  $region8: #{generator_forward.12} parent=0 // loop_exit
    _

</llo_original>
